<compile_context>
chip_gen: v7x
topology: tpu7x:2x2x1
jax: 0.10.0
libtpu: 0.0.40
codegen_flags: <defaults>
</compile_context>

<pallas_src>
import functools

import jax
import jax.numpy as jnp
from jax import lax
from jax.experimental import pallas as pl
from jax.experimental.pallas import tpu as pltpu

EPS = 1e-5


def _conv_bn_prelu_kernel(kh, kw, inv_cnt,
                          x_ref, w_ref, p_ref,
                          o_ref,
                          s0_ref, s1_ref):
    """Fused Conv2d(stride=(1,2)) + BatchNorm2d(training stats) + PReLU.

    Grid = (phase, n).  Phase 0 accumulates batch statistics; phase 1 normalizes + writes out.

    x_ref : (1, H, W//2, 2, Cin)  -- NHWC with W pre-split so stride-2 is static slicing
    w_ref : (kh*kw*Cin, Cout)     -- K ordered (dh, dw, cin)
    p_ref : (3, Cout)             -- rows: gamma, beta, prelu-alpha
    o_ref : (1, Ho, Wo, Cout)     -- final output (NHWC)
    s0/s1 : (1, Cout) VMEM scratch -- running batch sum / sum-of-squares of the conv output
    """
    phase = pl.program_id(0)
    n = pl.program_id(1)
    Ho, Wo, C = o_ref.shape[1], o_ref.shape[2], o_ref.shape[3]

    # ---- im2col: stack the kh*kw shifted taps along the channel (lane) axis ----
    xv = x_ref[...]
    slabs = []
    for dh in range(kh):
        for dw in range(kw):
            q, r = dw // 2, dw % 2                           # stride-2 via the (W//2, 2) split
            slabs.append(xv[:, dh:dh + Ho, q:q + Wo, r, :])  # (1, Ho, Wo, Cin)
    patch = jnp.concatenate(slabs, axis=-1)                  # (1, Ho, Wo, kh*kw*Cin)

    # One matmul, contraction dim kh*kw*Cin, f32 accumulation on the MXU.
    y = jnp.einsum('nhwk,ko->nhwo', patch, w_ref[...],
                   preferred_element_type=jnp.float32)       # (1, Ho, Wo, Cout)

    # ---- phase 0: accumulate batch statistics in persistent VMEM scratch ----
    @pl.when(jnp.logical_and(phase == 0, n == 0))
    def _():
        s0_ref[...] = jnp.zeros_like(s0_ref)
        s1_ref[...] = jnp.zeros_like(s1_ref)

    @pl.when(phase == 0)
    def _():
        s0_ref[...] = s0_ref[...] + jnp.sum(y, axis=(1, 2))          # (1, C)
        s1_ref[...] = s1_ref[...] + jnp.sum(y * y, axis=(1, 2))      # (1, C)

    # ---- phase 1: fold (conv-bias + BN) into scale/shift, apply PReLU, write out ----
    @pl.when(phase == 1)
    def _():
        mean = s0_ref[...] * inv_cnt                                 # (1, C)
        # var = E[y^2] - mean^2, kept f32, clamped >= 0 (cancellation guard).
        var = jnp.maximum(s1_ref[...] * inv_cnt - mean * mean, 0.0)
        gamma = p_ref[0:1, :]
        beta = p_ref[1:2, :]
        alpha = p_ref[2:3, :]
        scale = gamma * lax.rsqrt(var + EPS)                         # EUP rsqrt, (1, C)
        shift = beta - mean * scale
        z = y * scale.reshape(1, 1, 1, C) + shift.reshape(1, 1, 1, C)   # 2 VPU ops/elem
        o_ref[...] = jnp.where(z > 0, z, alpha.reshape(1, 1, 1, C) * z)  # per-channel PReLU


def conv2d_unit(x_nchw, w_oihw, b, gamma, beta, alpha, k):
    """x_nchw: (N, C, H, W) float32 (torch layout). Returns (N, C, Ho, Wo)."""
    kh, kw = k
    N, C, H, W = x_nchw.shape
    assert W % 2 == 0, "stride-2 width pre-split requires even W"
    Ho = H - kh + 1
    Wo = (W - kw) // 2 + 1
    W2 = W // 2
    K = kh * kw * C
    inv_cnt = float(1.0 / (N * Ho * Wo))

    # Layout glue. TODO(synk): fuse NCHW->NHWC into the kernel DMA/index_map (see header).
    x = jnp.transpose(x_nchw, (0, 2, 3, 1)).reshape(N, H, W2, 2, C)
    # Weights OIHW -> (kh*kw*Cin, Cout), K ordered (dh, dw, cin) to match the im2col concat.
    w2d = jnp.transpose(w_oihw, (2, 3, 1, 0)).reshape(K, C)
    # gamma / beta / prelu-alpha packed into one small resident tile.
    params = jnp.stack([gamma, beta, alpha]).astype(jnp.float32)     # (3, C)
    _ = b  # conv bias cancels exactly in training-mode BatchNorm (see header); unused.

    out_nhwc = pl.pallas_call(
        functools.partial(_conv_bn_prelu_kernel, kh, kw, inv_cnt),
        out_shape=jax.ShapeDtypeStruct((N, Ho, Wo, C), jnp.float32),
        grid=(2, N),                                  # (phase, sample)
        in_specs=[
            pl.BlockSpec((1, H, W2, 2, C), lambda p, n: (n, 0, 0, 0, 0)),
            pl.BlockSpec((K, C), lambda p, n: (0, 0)),        # resident across the grid
            pl.BlockSpec((3, C), lambda p, n: (0, 0)),        # resident across the grid
        ],
        # Phase 0 never touches the output; map all phase-0 steps to block 0 so the first
        # HBM writeback of any out[n] happens only after phase 1 fills it (one write each).
        out_specs=pl.BlockSpec((1, Ho, Wo, C), lambda p, n: (n * p, 0, 0, 0)),
        scratch_shapes=[
            pltpu.VMEM((1, C), jnp.float32),          # running sum
            pltpu.VMEM((1, C), jnp.float32),          # running sum of squares
        ],
        compiler_params=pltpu.CompilerParams(
            # Both axes carry state (phase ordering, running stats) -> sequential.
            dimension_semantics=("arbitrary", "arbitrary")),
    )(x, w2d, params)

    # TODO(synk): emit NCHW directly from phase 1 (in-kernel relayout) to drop this transpose.
    return jnp.transpose(out_nhwc, (0, 3, 1, 2))


def _reference(x, w, b, gamma, beta, alpha):
    """Pure-JAX reference matching torch Conv2d + BatchNorm2d(train) + PReLU."""
    y = lax.conv_general_dilated(x, w, window_strides=(1, 2), padding='VALID',
                                 dimension_numbers=('NCHW', 'OIHW', 'NCHW'))
    y = y + b.reshape(1, -1, 1, 1)
    mean = jnp.mean(y, axis=(0, 2, 3), keepdims=True)
    var = jnp.mean((y - mean) ** 2, axis=(0, 2, 3), keepdims=True)
    yh = (y - mean) / jnp.sqrt(var + EPS)
    yh = yh * gamma.reshape(1, -1, 1, 1) + beta.reshape(1, -1, 1, 1)
    return jnp.where(yh > 0, yh, alpha.reshape(1, -1, 1, 1) * yh)


if __name__ == "__main__":
    N, C, H, W = 2, 4, 16, 16
    k = (2, 3)

    key = jax.random.PRNGKey(0)
    kx, kw_, kb = jax.random.split(key, 3)
    x = jax.random.normal(kx, (N, C, H, W), jnp.float32)
    w = 0.1 * jax.random.normal(kw_, (C, C, k[0], k[1]), jnp.float32)   # OIHW
    b = 0.1 * jax.random.normal(kb, (C,), jnp.float32)
    gamma = jnp.ones((C,), jnp.float32)          # BatchNorm2d affine weight
    beta = jnp.zeros((C,), jnp.float32)          # BatchNorm2d affine bias
    alpha = jnp.full((C,), 0.25, jnp.float32)    # PReLU per-channel init

    fn = jax.jit(functools.partial(conv2d_unit, k=k))
    out = jax.block_until_ready(fn(x, w, b, gamma, beta, alpha))

    ref = jax.block_until_ready(_reference(x, w, b, gamma, beta, alpha))
    assert out.shape == (N, C, H - k[0] + 1, (W - k[1]) // 2 + 1)
    err = float(jnp.max(jnp.abs(out - ref)))
    assert jnp.allclose(out, ref, rtol=1e-4, atol=1e-4), err

    print("KERNEL_OK")
</pallas_src>

<mosaic_0001>
module attributes {stable_mosaic.version = 11 : i64} {
  func.func @_conv_bn_prelu_kernel(%arg0: i32, %arg1: i32, %arg2: memref<1x16x8x2x4xf32, #tpu.memory_space<vmem>>, %arg3: memref<24x4xf32, #tpu.memory_space<vmem>>, %arg4: memref<3x4xf32, #tpu.memory_space<vmem>>, %arg5: memref<1x15x7x4xf32, #tpu.memory_space<vmem>>, %arg6: memref<1x4xf32, #tpu.memory_space<vmem>>, %arg7: memref<1x4xf32, #tpu.memory_space<vmem>>) attributes {dimension_semantics = [#tpu.dimension_semantics<arbitrary>, #tpu.dimension_semantics<arbitrary>], iteration_bounds = array<i64: 2, 2>, scalar_prefetch = 0 : i64, scratch_operands = 2 : i64, tpu.core_type = #tpu.core_type<tc>, window_params = [{transform_indices = @transform_0, window_bounds = array<i64: 1, 16, 8, 2, 4>}, {pipeline_mode = #tpu.pipeline_mode<synchronous>, transform_indices = @transform_1, window_bounds = array<i64: 24, 4>}, {pipeline_mode = #tpu.pipeline_mode<synchronous>, transform_indices = @transform_2, window_bounds = array<i64: 3, 4>}, {transform_indices = @transform_3, window_bounds = array<i64: 1, 15, 7, 4>}]} {
    %c0 = arith.constant 0 : index
    %c0_0 = arith.constant 0 : index
    %c0_1 = arith.constant 0 : index
    %c0_2 = arith.constant 0 : index
    %c0_3 = arith.constant 0 : index
    %0 = vector.load %arg2[%c0, %c0_0, %c0_1, %c0_2, %c0_3] : memref<1x16x8x2x4xf32, #tpu.memory_space<vmem>>, vector<1x16x8x2x4xf32>
    %1 = vector.extract_strided_slice %0 {offsets = [0, 0, 0, 0, 0], sizes = [1, 15, 7, 1, 4], strides = [1, 1, 1, 1, 1]} : vector<1x16x8x2x4xf32> to vector<1x15x7x1x4xf32>
    %2 = vector.shape_cast %1 : vector<1x15x7x1x4xf32> to vector<1x15x7x4xf32>
    %3 = vector.extract_strided_slice %0 {offsets = [0, 0, 0, 1, 0], sizes = [1, 15, 7, 1, 4], strides = [1, 1, 1, 1, 1]} : vector<1x16x8x2x4xf32> to vector<1x15x7x1x4xf32>
    %4 = vector.shape_cast %3 : vector<1x15x7x1x4xf32> to vector<1x15x7x4xf32>
    %5 = vector.extract_strided_slice %0 {offsets = [0, 0, 1, 0, 0], sizes = [1, 15, 7, 1, 4], strides = [1, 1, 1, 1, 1]} : vector<1x16x8x2x4xf32> to vector<1x15x7x1x4xf32>
    %6 = vector.shape_cast %5 : vector<1x15x7x1x4xf32> to vector<1x15x7x4xf32>
    %7 = vector.extract_strided_slice %0 {offsets = [0, 1, 0, 0, 0], sizes = [1, 15, 7, 1, 4], strides = [1, 1, 1, 1, 1]} : vector<1x16x8x2x4xf32> to vector<1x15x7x1x4xf32>
    %8 = vector.shape_cast %7 : vector<1x15x7x1x4xf32> to vector<1x15x7x4xf32>
    %9 = vector.extract_strided_slice %0 {offsets = [0, 1, 0, 1, 0], sizes = [1, 15, 7, 1, 4], strides = [1, 1, 1, 1, 1]} : vector<1x16x8x2x4xf32> to vector<1x15x7x1x4xf32>
    %10 = vector.shape_cast %9 : vector<1x15x7x1x4xf32> to vector<1x15x7x4xf32>
    %11 = vector.extract_strided_slice %0 {offsets = [0, 1, 1, 0, 0], sizes = [1, 15, 7, 1, 4], strides = [1, 1, 1, 1, 1]} : vector<1x16x8x2x4xf32> to vector<1x15x7x1x4xf32>
    %12 = vector.shape_cast %11 : vector<1x15x7x1x4xf32> to vector<1x15x7x4xf32>
    %13 = tpu.concatenate %2, %4, %6, %8, %10, %12 in 3 : vector<1x15x7x4xf32>, vector<1x15x7x4xf32>, vector<1x15x7x4xf32>, vector<1x15x7x4xf32>, vector<1x15x7x4xf32>, vector<1x15x7x4xf32> -> vector<1x15x7x24xf32>
    %c0_4 = arith.constant 0 : index
    %c0_5 = arith.constant 0 : index
    %14 = vector.load %arg3[%c0_4, %c0_5] : memref<24x4xf32, #tpu.memory_space<vmem>>, vector<24x4xf32>
    "tpu.trace_start"() <{level = 10 : i32, message = "nhwk,ko->nhwo"}> : () -> ()
    %cst = arith.constant dense<0.000000e+00> : vector<1x15x7x4xf32>
    %15 = tpu.matmul %13, %14, %cst {dimension_numbers = #tpu.dot_dimension_numbers<[3], [0], [0, 1, 2], [1], [0, 0, 0, 1, 0, 2, 1, 1], [], []>} : vector<1x15x7x24xf32>, vector<24x4xf32>, vector<1x15x7x4xf32> -> vector<1x15x7x4xf32>
    %c0_i32 = arith.constant 0 : i32
    "tpu.trace_stop"() : () -> ()
    %16 = arith.cmpi eq, %arg0, %c0_i32 : i32
    %c0_i32_6 = arith.constant 0 : i32
    %17 = arith.cmpi eq, %arg1, %c0_i32_6 : i32
    %18 = arith.andi %16, %17 : i1
    %19 = arith.extui %18 : i1 to i32
    %c0_i32_7 = arith.constant 0 : i32
    %20 = arith.cmpi ne, %19, %c0_i32_7 : i32
    scf.if %20 {
      %cst_11 = arith.constant 0.000000e+00 : f32
      %27 = vector.broadcast %cst_11 : f32 to vector<1x4xf32>
      %c0_12 = arith.constant 0 : index
      %c0_13 = arith.constant 0 : index
      %28 = vector.load %arg6[%c0_12, %c0_13] : memref<1x4xf32, #tpu.memory_space<vmem>>, vector<1x4xf32>
      tpu.vector_store %arg6[%c0_12, %c0_13], %27 {strides = array<i32>} : memref<1x4xf32, #tpu.memory_space<vmem>>, vector<1x4xf32>,
      %cst_14 = arith.constant 0.000000e+00 : f32
      %29 = vector.broadcast %cst_14 : f32 to vector<1x4xf32>
      %c0_15 = arith.constant 0 : index
      %c0_16 = arith.constant 0 : index
      %30 = vector.load %arg7[%c0_15, %c0_16] : memref<1x4xf32, #tpu.memory_space<vmem>>, vector<1x4xf32>
      tpu.vector_store %arg7[%c0_15, %c0_16], %29 {strides = array<i32>} : memref<1x4xf32, #tpu.memory_space<vmem>>, vector<1x4xf32>,
    } else {
    }
    %c0_i32_8 = arith.constant 0 : i32
    %21 = arith.cmpi eq, %arg0, %c0_i32_8 : i32
    %22 = arith.extui %21 : i1 to i32
    %c0_i32_9 = arith.constant 0 : i32
    %23 = arith.cmpi ne, %22, %c0_i32_9 : i32
    scf.if %23 {
      %c0_11 = arith.constant 0 : index
      %c0_12 = arith.constant 0 : index
      %27 = vector.load %arg6[%c0_11, %c0_12] : memref<1x4xf32, #tpu.memory_space<vmem>>, vector<1x4xf32>
      %cst_13 = arith.constant dense<0.000000e+00> : vector<1x4xf32>
      %28 = vector.multi_reduction <add>, %15, %cst_13 [1, 2] : vector<1x15x7x4xf32> to vector<1x4xf32>
      %29 = arith.addf %27, %28 : vector<1x4xf32>
      %c0_14 = arith.constant 0 : index
      %c0_15 = arith.constant 0 : index
      %30 = vector.load %arg6[%c0_14, %c0_15] : memref<1x4xf32, #tpu.memory_space<vmem>>, vector<1x4xf32>
      tpu.vector_store %arg6[%c0_14, %c0_15], %29 {strides = array<i32>} : memref<1x4xf32, #tpu.memory_space<vmem>>, vector<1x4xf32>,
      %c0_16 = arith.constant 0 : index
      %c0_17 = arith.constant 0 : index
      %31 = vector.load %arg7[%c0_16, %c0_17] : memref<1x4xf32, #tpu.memory_space<vmem>>, vector<1x4xf32>
      %32 = arith.mulf %15, %15 : vector<1x15x7x4xf32>
      %cst_18 = arith.constant dense<0.000000e+00> : vector<1x4xf32>
      %33 = vector.multi_reduction <add>, %32, %cst_18 [1, 2] : vector<1x15x7x4xf32> to vector<1x4xf32>
      %34 = arith.addf %31, %33 : vector<1x4xf32>
      %c0_19 = arith.constant 0 : index
      %c0_20 = arith.constant 0 : index
      %35 = vector.load %arg7[%c0_19, %c0_20] : memref<1x4xf32, #tpu.memory_space<vmem>>, vector<1x4xf32>
      tpu.vector_store %arg7[%c0_19, %c0_20], %34 {strides = array<i32>} : memref<1x4xf32, #tpu.memory_space<vmem>>, vector<1x4xf32>,
    } else {
    }
    %c1_i32 = arith.constant 1 : i32
    %24 = arith.cmpi eq, %arg0, %c1_i32 : i32
    %25 = arith.extui %24 : i1 to i32
    %c0_i32_10 = arith.constant 0 : i32
    %26 = arith.cmpi ne, %25, %c0_i32_10 : i32
    scf.if %26 {
      %c0_11 = arith.constant 0 : index
      %c0_12 = arith.constant 0 : index
      %27 = vector.load %arg6[%c0_11, %c0_12] : memref<1x4xf32, #tpu.memory_space<vmem>>, vector<1x4xf32>
      %cst_13 = arith.constant 0.00476190494 : f32
      %28 = vector.broadcast %cst_13 : f32 to vector<1x4xf32>
      %29 = arith.mulf %27, %28 : vector<1x4xf32>
      %c0_14 = arith.constant 0 : index
      %c0_15 = arith.constant 0 : index
      %30 = vector.load %arg7[%c0_14, %c0_15] : memref<1x4xf32, #tpu.memory_space<vmem>>, vector<1x4xf32>
      %cst_16 = arith.constant 0.00476190494 : f32
      %31 = vector.broadcast %cst_16 : f32 to vector<1x4xf32>
      %32 = arith.mulf %30, %31 : vector<1x4xf32>
      %33 = arith.mulf %29, %29 : vector<1x4xf32>
      %34 = arith.subf %32, %33 : vector<1x4xf32>
      %cst_17 = arith.constant 0.000000e+00 : f32
      %35 = vector.broadcast %cst_17 : f32 to vector<1x4xf32>
      %36 = arith.maximumf %34, %35 : vector<1x4xf32>
      %c0_18 = arith.constant 0 : index
      %c0_19 = arith.constant 0 : index
      %37 = vector.load %arg4[%c0_18, %c0_19] : memref<3x4xf32, #tpu.memory_space<vmem>>, vector<1x4xf32>
      %c1 = arith.constant 1 : index
      %c0_20 = arith.constant 0 : index
      %38 = vector.load %arg4[%c1, %c0_20] : memref<3x4xf32, #tpu.memory_space<vmem>>, vector<1x4xf32>
      %c2 = arith.constant 2 : index
      %c0_21 = arith.constant 0 : index
      %39 = vector.load %arg4[%c2, %c0_21] : memref<3x4xf32, #tpu.memory_space<vmem>>, vector<1x4xf32>
      %cst_22 = arith.constant 9.99999974E-6 : f32
      %40 = vector.broadcast %cst_22 : f32 to vector<1x4xf32>
      %41 = arith.addf %36, %40 : vector<1x4xf32>
      %42 = math.rsqrt %41 : vector<1x4xf32>
      %43 = arith.mulf %37, %42 : vector<1x4xf32>
      %44 = arith.mulf %29, %43 : vector<1x4xf32>
      %45 = arith.subf %38, %44 : vector<1x4xf32>
      %46 = vector.shape_cast %43 : vector<1x4xf32> to vector<1x1x1x4xf32>
      %47 = vector.broadcast %46 : vector<1x1x1x4xf32> to vector<1x15x7x4xf32>
      %48 = arith.mulf %15, %47 : vector<1x15x7x4xf32>
      %49 = vector.shape_cast %45 : vector<1x4xf32> to vector<1x1x1x4xf32>
      %50 = vector.broadcast %49 : vector<1x1x1x4xf32> to vector<1x15x7x4xf32>
      %51 = arith.addf %48, %50 : vector<1x15x7x4xf32>
      %cst_23 = arith.constant 0.000000e+00 : f32
      %52 = vector.broadcast %cst_23 : f32 to vector<1x15x7x4xf32>
      %53 = arith.cmpf ogt, %51, %52 : vector<1x15x7x4xf32>
      %54 = vector.shape_cast %39 : vector<1x4xf32> to vector<1x1x1x4xf32>
      %55 = vector.broadcast %54 : vector<1x1x1x4xf32> to vector<1x15x7x4xf32>
      %56 = arith.mulf %55, %51 : vector<1x15x7x4xf32>
      %57 = arith.select %53, %51, %56 : vector<1x15x7x4xi1>, vector<1x15x7x4xf32>
      %c0_24 = arith.constant 0 : index
      %c0_25 = arith.constant 0 : index
      %c0_26 = arith.constant 0 : index
      %c0_27 = arith.constant 0 : index
      %58 = vector.load %arg5[%c0_24, %c0_25, %c0_26, %c0_27] : memref<1x15x7x4xf32, #tpu.memory_space<vmem>>, vector<1x15x7x4xf32>
      tpu.vector_store %arg5[%c0_24, %c0_25, %c0_26, %c0_27], %57 {strides = array<i32>} : memref<1x15x7x4xf32, #tpu.memory_space<vmem>>, vector<1x15x7x4xf32>,
    } else {
    }
    return
  }
  func.func @transform_0(%arg0: i32, %arg1: i32) -> (i32, i32, i32, i32, i32) {
    %c0_i32 = arith.constant 0 : i32
    %c0_i32_0 = arith.constant 0 : i32
    %c0_i32_1 = arith.constant 0 : i32
    %c0_i32_2 = arith.constant 0 : i32
    %c0_i32_3 = arith.constant 0 : i32
    return %arg1, %c0_i32, %c0_i32_0, %c0_i32_1, %c0_i32_2 : i32, i32, i32, i32, i32
  }
  func.func @transform_1(%arg0: i32, %arg1: i32) -> (i32, i32) {
    %c0_i32 = arith.constant 0 : i32
    %c0_i32_0 = arith.constant 0 : i32
    %c0_i32_1 = arith.constant 0 : i32
    return %c0_i32, %c0_i32_0 : i32, i32
  }
  func.func @transform_2(%arg0: i32, %arg1: i32) -> (i32, i32) {
    %c0_i32 = arith.constant 0 : i32
    %c0_i32_0 = arith.constant 0 : i32
    %c0_i32_1 = arith.constant 0 : i32
    return %c0_i32, %c0_i32_0 : i32, i32
  }
  func.func @transform_3(%arg0: i32, %arg1: i32) -> (i32, i32, i32, i32) {
    %0 = arith.muli %arg1, %arg0 : i32
    %c0_i32 = arith.constant 0 : i32
    %c0_i32_0 = arith.constant 0 : i32
    %c0_i32_1 = arith.constant 0 : i32
    %c0_i32_2 = arith.constant 0 : i32
    return %0, %c0_i32, %c0_i32_0, %c0_i32_1 : i32, i32, i32, i32
  }
}

</mosaic_0001>

<llo_original>
// kernel: conv2d_unit.1
$region0: #{conv2d_unit.1}
  #allocation0 [shape = 'u32[]', space=smem, size = 0x4, offset = 0x4, fixed_abs, tag = 'smem constant byte address 0x4 - core index']
  #allocation1 [shape = 'u32[144,128]{1,0:T(1,128)}', space=vmem, size = 0x12000, scoped, tag = 'internal scratch']
  #allocation2 [shape = 'f32[1,4]{1,0:T(1,128)}', space=vmem, size = 0x200, scoped, tag = 'scratch operand']
  #allocation3 [shape = 'f32[1,4]{1,0:T(1,128)}', space=vmem, size = 0x200, scoped, tag = 'scratch operand']
  %s0 = inlined_call_operand.vmem [shape: f32[2,16,8,2,4], index: 0, kind: input, shape index: {}]
  %s1 = inlined_call_operand.vmem [shape: f32[24,4], index: 1, kind: input, shape index: {}]
  %s2 = inlined_call_operand.vmem [shape: f32[3,4], index: 2, kind: input, shape index: {}]
  %s3 = inlined_call_operand.vmem [shape: f32[2,15,7,4], index: 3, kind: output, shape index: {}]
  %s4 = sld [smem:[#allocation0]]
  $region57: #{conv2d_unit.1} parent=0
    _
  %s6 = ssub.s32 1, %s4
  %s7 = scalar_select 0, %s6, %s4
  loop: start=0, step=1, limit=6
  $region2: #{conv2d_unit.1} parent=0 // loop_pre_header
    _
  $region3: #{conv2d_unit.1} parent=0 // loop_header
    %s9 = sphi 0, %s13
    %p10 = scmp.ge.s32.totalorder %s9, 6
    %s16 = sphi 0, %s28
    %s17 = sphi 0, %s24
    %s18 = sphi 0, %s16
    %s19 = sphi 0, %s17
    %s20 = sphi 0, %s18
    %s21 = sphi 0, %s19
    %s31 = sphi 0, %s33
    %s34 = sphi 0, %s31
    %s35 = sphi 0, %s34
    %s51 = sphi 0, %s35
    %s55 = sphi 0, %s55
    %s57 = sphi 0, %s55
    %s58 = sphi 0, %s57
    %s72 = sphi 0, %s58
    %s76 = sphi 0, %s76
    %s78 = sphi 0, %s76
    %s79 = sphi 0, %s78
    %s93 = sphi 0, %s79
    %s101 = sphi 0, %s103
    %s104 = sphi 0, %s101
    %s105 = sphi 0, %s104
    %s121 = sphi 0, %s105
  $region4: #{conv2d_unit.1} parent=0 // loop_header_branch
    %12 = sbr.rel (%p10) target = $region8
  $region5: #{conv2d_unit.1} parent=0 // loop_body
    %s14 = ssub.s32 %s9, 1
    %s15 = ssub.s32 %s9, 2
    %s22 = sadd.s32 1, %s17
    %p23 = scmp.ge.s32.totalorder %s22, 2
    %s24 = scalar_select %p23, 0, %s22
    %s25 = sadd.s32 1, %s16
    %s26 = scalar_select %p23, %s25, %s16
    %p27 = scmp.ge.s32.totalorder %s26, 2
    %s28 = scalar_select %p27, 0, %s26
    %s29 = ssub.s32 %s17, %s24
    %p30 = scmp.eq.s32.totalorder %s29, 0
    %s32 = sadd.s32 %s31, 1
    %s33 = scalar_select %p30, %s31, %s32
    %p36 = pneg %p30
    %p37 = scmp.eq.s32.totalorder %s9, 3
    %p38 = por %p36, %p37
    %p39 = scmp.ne.s32.totalorder %s31, %s34
    %p40 = scmp.eq.s32.totalorder %s9, 0
    %p41 = por %p39, %p40
    %p42 = scmp.ne.s32.totalorder %s31, %s34
    %p43 = scmp.eq.s32.totalorder %s14, 3
    %p44 = por %p42, %p43
    %p45 = scmp.ne.s32.totalorder %s34, %s35
    %p46 = scmp.eq.s32.totalorder %s14, 0
    %p47 = por %p45, %p46
    %p48 = scmp.ne.s32.totalorder %s34, %s35
    %p49 = scmp.eq.s32.totalorder %s15, 3
    %p50 = por %p48, %p49
    %p52 = scmp.ne.s32.totalorder %s35, %s51
    %p53 = scmp.eq.s32.totalorder %s15, 0
    %p54 = por %p52, %p53
    %s56 = sadd.s32 %s55, 1
    %p59 = scmp.eq.s32.totalorder %s9, 3
    %p60 = scmp.ne.s32.totalorder %s55, %s57
    %p61 = scmp.eq.s32.totalorder %s9, 0
    %p62 = por %p60, %p61
    %p63 = scmp.ne.s32.totalorder %s55, %s57
    %p64 = scmp.eq.s32.totalorder %s14, 3
    %p65 = por %p63, %p64
    %p66 = scmp.ne.s32.totalorder %s57, %s58
    %p67 = scmp.eq.s32.totalorder %s14, 0
    %p68 = por %p66, %p67
    %p69 = scmp.ne.s32.totalorder %s57, %s58
    %p70 = scmp.eq.s32.totalorder %s15, 3
    %p71 = por %p69, %p70
    %p73 = scmp.ne.s32.totalorder %s58, %s72
    %p74 = scmp.eq.s32.totalorder %s15, 0
    %p75 = por %p73, %p74
    %s77 = sadd.s32 %s76, 1
    %p80 = scmp.eq.s32.totalorder %s9, 3
    %p81 = scmp.ne.s32.totalorder %s76, %s78
    %p82 = scmp.eq.s32.totalorder %s9, 0
    %p83 = por %p81, %p82
    %p84 = scmp.ne.s32.totalorder %s76, %s78
    %p85 = scmp.eq.s32.totalorder %s14, 3
    %p86 = por %p84, %p85
    %p87 = scmp.ne.s32.totalorder %s78, %s79
    %p88 = scmp.eq.s32.totalorder %s14, 0
    %p89 = por %p87, %p88
    %p90 = scmp.ne.s32.totalorder %s78, %s79
    %p91 = scmp.eq.s32.totalorder %s15, 3
    %p92 = por %p90, %p91
    %p94 = scmp.ne.s32.totalorder %s79, %s93
    %p95 = scmp.eq.s32.totalorder %s15, 0
    %p96 = por %p94, %p95
    %s97 = smul.u32 %s17, %s16
    %s98 = smul.u32 %s24, %s28
    %s99 = ssub.s32 %s97, %s98
    %p100 = scmp.eq.s32.totalorder %s99, 0
    %s102 = sadd.s32 %s101, 1
    %s103 = scalar_select %p100, %s101, %s102
    %p106 = pneg %p100
    %p107 = scmp.eq.s32.totalorder %s9, 3
    %p108 = por %p106, %p107
    %p109 = scmp.ne.s32.totalorder %s101, %s104
    %p110 = scmp.eq.s32.totalorder %s9, 0
    %p111 = por %p109, %p110
    %p112 = scmp.ne.s32.totalorder %s101, %s104
    %p113 = scmp.eq.s32.totalorder %s14, 3
    %p114 = por %p112, %p113
    %p115 = scmp.ne.s32.totalorder %s104, %s105
    %p116 = scmp.eq.s32.totalorder %s14, 0
    %p117 = por %p115, %p116
    %p118 = scmp.ne.s32.totalorder %s104, %s105
    %p119 = scmp.eq.s32.totalorder %s15, 3
    %p120 = por %p118, %p119
    %p122 = scmp.ne.s32.totalorder %s105, %s121
    %p123 = scmp.eq.s32.totalorder %s15, 0
    %p124 = por %p122, %p123
    %p125 = scmp.le.s32.totalorder 1, %s9
    %p126 = scmp.lt.s32.totalorder %s9, 5
    %p127 = pnand %p125, %p126
    %p128 = pneg %p127
    // Predicated region
    $region9: #{conv2d_unit.1} parent=5 // pred_check
      _
    $region10: #{conv2d_unit.1} parent=5 // pred_check_branch
      %130 = sbr.rel (%p127) target = $region12
    $region11: #{conv2d_unit.1} parent=5 // pred_region
      %s131 = ssub.s32 %s9, 1
      // Predicated region
      $region13: #{conv2d_unit.1} parent=11 // pred_check
        %p132 = pneg %p68
      $region14: #{conv2d_unit.1} parent=11 // pred_check_branch
        %134 = sbr.rel (%p132) target = $region16
      $region15: #{conv2d_unit.1} parent=11 // pred_region
        _
      $region16: #{conv2d_unit.1} parent=11 // pred_fallthru
        _
      // Predicated region
      $region17: #{conv2d_unit.1} parent=11 // pred_check
        %p135 = pneg %p89
      $region18: #{conv2d_unit.1} parent=11 // pred_check_branch
        %137 = sbr.rel (%p135) target = $region20
      $region19: #{conv2d_unit.1} parent=11 // pred_region
        _
      $region20: #{conv2d_unit.1} parent=11 // pred_fallthru
        _
    $region12: #{conv2d_unit.1} parent=5 // pred_fallthru
      _
    %p138 = scmp.lt.s32.totalorder %s9, 4
    // Predicated region
    $region21: #{conv2d_unit.1} parent=5 // pred_check
      %p139 = pneg %p138
    $region22: #{conv2d_unit.1} parent=5 // pred_check_branch
      %141 = sbr.rel (%p139) target = $region24
    $region23: #{conv2d_unit.1} parent=5 // pred_region
      // Predicated region
      $region25: #{conv2d_unit.1} parent=23 // pred_check
        %p142 = pneg %p41
      $region26: #{conv2d_unit.1} parent=23 // pred_check_branch
        %144 = sbr.rel (%p142) target = $region28
      $region27: #{conv2d_unit.1} parent=23 // pred_region
        %p145 = scmp.lt.s32.totalorder %s17, 1
        %s146 = scalar_select %p145, %s17, 1
        %s147 = smul.addr %s146, 128
        %s148 = smul.addr %s147, 2
        %s149 = scalar_lea.vmem %s0, %s148
      $region28: #{conv2d_unit.1} parent=23 // pred_fallthru
        _
    $region24: #{conv2d_unit.1} parent=5 // pred_fallthru
      _
    %p150 = scmp.le.s32.totalorder 1, %s9
    %p151 = scmp.lt.s32.totalorder %s9, 5
    %p152 = pnand %p150, %p151
    %p153 = pneg %p152
    // Predicated region
    $region29: #{conv2d_unit.1} parent=5 // pred_check
      _
    $region30: #{conv2d_unit.1} parent=5 // pred_check_branch
      %155 = sbr.rel (%p152) target = $region32
    $region31: #{conv2d_unit.1} parent=5 // pred_region
      %s156 = ssub.s32 %s9, 1
      %p157 = scmp.lt.s32.totalorder %s19, 1
      %s158 = scalar_select %p157, %s19, 1
      %s159 = smul.addr %s158, 128
      %s160 = smul.addr %s159, 2
      %s161 = scalar_lea.vmem %s0, %s160
      %p162 = pneg %p47
      %p163 = pneg %p44
      %p164 = pneg %p68
      %p165 = pneg %p65
      %p166 = pneg %p89
      %p167 = pneg %p86
      %p168 = pneg %p117
      %p169 = pneg %p114
      %s170 = smul.u32 %s19, %s18
      %p171 = scmp.lt.s32.totalorder %s170, 1
      %s172 = scalar_select %p171, %s170, 1
      %s173 = smul.addr %s172, 15
      %s174 = smul.addr %s173, 8
      %s175 = scalar_lea.vmem %s3, %s174
      %p176 = scmp.lt.s32.totalorder %s19, 1
      %s177 = scalar_select %p176, %s19, 1
      %s178 = smul.addr %s177, 128
      %s179 = smul.addr %s178, 2
      %s180 = scalar_lea.vmem %s0, %s179
      %s181 = smul.u32 %s19, %s18
      %p182 = scmp.lt.s32.totalorder %s181, 1
      %s183 = scalar_select %p182, %s181, 1
      %s184 = smul.addr %s183, 15
      %s185 = smul.addr %s184, 8
      %s186 = scalar_lea.vmem %s3, %s185
      %s187 = smul.u32 %s19, %s18
      %v188 = vld [vmem:[%s180] sm:$0x3]
      %v189 = vld [vmem:[%s180 + $0x2] sm:$0x3]
      %v190 = vld [vmem:[%s180 + $0x4] sm:$0x3]
      %v191 = vld [vmem:[%s180 + $0x6] sm:$0x3]
      %v192 = vld [vmem:[%s180 + $0x8] sm:$0x3]
      %v193 = vld [vmem:[%s180 + $0xa] sm:$0x3]
      %v194 = vld [vmem:[%s180 + $0xc] sm:$0x3]
      %v195 = vld [vmem:[%s180 + $0xe] sm:$0x3]
      %v196 = vld [vmem:[%s180 + $0x10] sm:$0x3]
      %v197 = vld [vmem:[%s180 + $0x12] sm:$0x3]
      %v198 = vld [vmem:[%s180 + $0x14] sm:$0x3]
      %v199 = vld [vmem:[%s180 + $0x16] sm:$0x3]
      %v200 = vld [vmem:[%s180 + $0x18] sm:$0x3]
      %v201 = vld [vmem:[%s180 + $0x1a] sm:$0x3]
      %v202 = vld [vmem:[%s180 + $0x1c] sm:$0x3]
      %v203 = vld [vmem:[%s180 + $0x1e] sm:$0x3]
      %v204 = vld [vmem:[%s180 + $0x20] sm:$0x3]
      %v205 = vld [vmem:[%s180 + $0x22] sm:$0x3]
      %v206 = vld [vmem:[%s180 + $0x24] sm:$0x3]
      %v207 = vld [vmem:[%s180 + $0x26] sm:$0x3]
      %v208 = vld [vmem:[%s180 + $0x28] sm:$0x3]
      %v209 = vld [vmem:[%s180 + $0x2a] sm:$0x3]
      %v210 = vld [vmem:[%s180 + $0x2c] sm:$0x3]
      %v211 = vld [vmem:[%s180 + $0x2e] sm:$0x3]
      %v212 = vld [vmem:[%s180 + $0x30] sm:$0x3]
      %v213 = vld [vmem:[%s180 + $0x32] sm:$0x3]
      %v214 = vld [vmem:[%s180 + $0x34] sm:$0x3]
      %v215 = vld [vmem:[%s180 + $0x36] sm:$0x3]
      %v216 = vld [vmem:[%s180 + $0x38] sm:$0x3]
      %v217 = vld [vmem:[%s180 + $0x3a] sm:$0x3]
      %v218 = vld [vmem:[%s180 + $0x3c] sm:$0x3]
      %v219 = vld [vmem:[%s180 + $0x3e] sm:$0x3]
      %v220 = vld [vmem:[%s180 + $0x40] sm:$0x3]
      %v221 = vld [vmem:[%s180 + $0x42] sm:$0x3]
      %v222 = vld [vmem:[%s180 + $0x44] sm:$0x3]
      %v223 = vld [vmem:[%s180 + $0x46] sm:$0x3]
      %v224 = vld [vmem:[%s180 + $0x48] sm:$0x3]
      %v225 = vld [vmem:[%s180 + $0x4a] sm:$0x3]
      %v226 = vld [vmem:[%s180 + $0x4c] sm:$0x3]
      %v227 = vld [vmem:[%s180 + $0x4e] sm:$0x3]
      %v228 = vld [vmem:[%s180 + $0x50] sm:$0x3]
      %v229 = vld [vmem:[%s180 + $0x52] sm:$0x3]
      %v230 = vld [vmem:[%s180 + $0x54] sm:$0x3]
      %v231 = vld [vmem:[%s180 + $0x56] sm:$0x3]
      %v232 = vld [vmem:[%s180 + $0x58] sm:$0x3]
      %v233 = vld [vmem:[%s180 + $0x5a] sm:$0x3]
      %v234 = vld [vmem:[%s180 + $0x5c] sm:$0x3]
      %v235 = vld [vmem:[%s180 + $0x5e] sm:$0x3]
      %v236 = vld [vmem:[%s180 + $0x60] sm:$0x3]
      %v237 = vld [vmem:[%s180 + $0x62] sm:$0x3]
      %v238 = vld [vmem:[%s180 + $0x64] sm:$0x3]
      %v239 = vld [vmem:[%s180 + $0x66] sm:$0x3]
      %v240 = vld [vmem:[%s180 + $0x68] sm:$0x3]
      %v241 = vld [vmem:[%s180 + $0x6a] sm:$0x3]
      %v242 = vld [vmem:[%s180 + $0x6c] sm:$0x3]
      %v243 = vld [vmem:[%s180 + $0x6e] sm:$0x3]
      %v244 = vld [vmem:[%s180 + $0x70] sm:$0x3]
      %v245 = vld [vmem:[%s180 + $0x72] sm:$0x3]
      %v246 = vld [vmem:[%s180 + $0x74] sm:$0x3]
      %v247 = vld [vmem:[%s180 + $0x76] sm:$0x3]
      %v248 = vld [vmem:[%s180 + $0x78] sm:$0x3]
      %v249 = vld [vmem:[%s180 + $0x7a] sm:$0x3]
      %v250 = vld [vmem:[%s180 + $0x7c] sm:$0x3]
      %v251 = vld [vmem:[%s180 + $0x7e] sm:$0x3]
      %v252 = vld [vmem:[%s180 + $0x80] sm:$0x3]
      %v253 = vld [vmem:[%s180 + $0x82] sm:$0x3]
      %v254 = vld [vmem:[%s180 + $0x84] sm:$0x3]
      %v255 = vld [vmem:[%s180 + $0x86] sm:$0x3]
      %v256 = vld [vmem:[%s180 + $0x88] sm:$0x3]
      %v257 = vld [vmem:[%s180 + $0x8a] sm:$0x3]
      %v258 = vld [vmem:[%s180 + $0x8c] sm:$0x3]
      %v259 = vld [vmem:[%s180 + $0x8e] sm:$0x3]
      %v260 = vld [vmem:[%s180 + $0x90] sm:$0x3]
      %v261 = vld [vmem:[%s180 + $0x92] sm:$0x3]
      %v262 = vld [vmem:[%s180 + $0x94] sm:$0x3]
      %v263 = vld [vmem:[%s180 + $0x96] sm:$0x3]
      %v264 = vld [vmem:[%s180 + $0x98] sm:$0x3]
      %v265 = vld [vmem:[%s180 + $0x9a] sm:$0x3]
      %v266 = vld [vmem:[%s180 + $0x9c] sm:$0x3]
      %v267 = vld [vmem:[%s180 + $0x9e] sm:$0x3]
      %v268 = vld [vmem:[%s180 + $0xa0] sm:$0x3]
      %v269 = vld [vmem:[%s180 + $0xa2] sm:$0x3]
      %v270 = vld [vmem:[%s180 + $0xa4] sm:$0x3]
      %v271 = vld [vmem:[%s180 + $0xa6] sm:$0x3]
      %v272 = vld [vmem:[%s180 + $0xa8] sm:$0x3]
      %v273 = vld [vmem:[%s180 + $0xaa] sm:$0x3]
      %v274 = vld [vmem:[%s180 + $0xac] sm:$0x3]
      %v275 = vld [vmem:[%s180 + $0xae] sm:$0x3]
      %v276 = vld [vmem:[%s180 + $0xb0] sm:$0x3]
      %v277 = vld [vmem:[%s180 + $0xb2] sm:$0x3]
      %v278 = vld [vmem:[%s180 + $0xb4] sm:$0x3]
      %v279 = vld [vmem:[%s180 + $0xb6] sm:$0x3]
      %v280 = vld [vmem:[%s180 + $0xb8] sm:$0x3]
      %v281 = vld [vmem:[%s180 + $0xba] sm:$0x3]
      %v282 = vld [vmem:[%s180 + $0xbc] sm:$0x3]
      %v283 = vld [vmem:[%s180 + $0xbe] sm:$0x3]
      %v284 = vld [vmem:[%s180 + $0xc0] sm:$0x3]
      %v285 = vld [vmem:[%s180 + $0xc2] sm:$0x3]
      %v286 = vld [vmem:[%s180 + $0xc4] sm:$0x3]
      %v287 = vld [vmem:[%s180 + $0xc6] sm:$0x3]
      %v288 = vld [vmem:[%s180 + $0xc8] sm:$0x3]
      %v289 = vld [vmem:[%s180 + $0xca] sm:$0x3]
      %v290 = vld [vmem:[%s180 + $0xcc] sm:$0x3]
      %v291 = vld [vmem:[%s180 + $0xce] sm:$0x3]
      %v292 = vld [vmem:[%s180 + $0xd0] sm:$0x3]
      %v293 = vld [vmem:[%s180 + $0xd2] sm:$0x3]
      %v294 = vld [vmem:[%s180 + $0xd4] sm:$0x3]
      %v295 = vld [vmem:[%s180 + $0xd6] sm:$0x3]
      %v296 = vld [vmem:[%s180 + $0xd8] sm:$0x3]
      %v297 = vld [vmem:[%s180 + $0xda] sm:$0x3]
      %v298 = vld [vmem:[%s180 + $0xdc] sm:$0x3]
      %v299 = vld [vmem:[%s180 + $0xde] sm:$0x3]
      %v300 = vld [vmem:[%s180 + $0xe0] sm:$0x3]
      %v301 = vld [vmem:[%s180 + $0xe2] sm:$0x3]
      %v302 = vld [vmem:[%s180 + $0xe4] sm:$0x3]
      %v303 = vld [vmem:[%s180 + $0xe6] sm:$0x3]
      %v304 = vld [vmem:[%s180 + $0xe8] sm:$0x3]
      %v305 = vld [vmem:[%s180 + $0xea] sm:$0x3]
      %v306 = vld [vmem:[%s180 + $0xec] sm:$0x3]
      %v307 = vld [vmem:[%s180 + $0xee] sm:$0x3]
      %v308 = vld [vmem:[%s180 + $0xf0] sm:$0x3]
      %v309 = vld [vmem:[%s180 + $0xf2] sm:$0x3]
      %v310 = vld [vmem:[%s180 + $0xf4] sm:$0x3]
      %v311 = vld [vmem:[%s180 + $0xf6] sm:$0x3]
      %v312 = vld [vmem:[%s180 + $0xf8] sm:$0x3]
      %v313 = vld [vmem:[%s180 + $0xfa] sm:$0x3]
      %v314 = vld [vmem:[%s180 + $0xfc] sm:$0x3]
      %v315 = vld [vmem:[%s180 + $0xfe] sm:$0x3]
      %v421 = vrot.slane %v189, 7
      %vm422 = vcmask 1041409
      %v423 = vsel %vm422, %v421, %v188
      %v424 = vrot.slane %v190, 6
      %vm425 = vcmask 1042434
      %v426 = vsel %vm425, %v424, %v423
      %v427 = vrot.slane %v191, 5
      %vm428 = vcmask 1043459
      %v429 = vsel %vm428, %v427, %v426
      %v430 = vrot.slane %v192, 4
      %vm431 = vcmask 1044484
      %v432 = vsel %vm431, %v430, %v429
      %v433 = vrot.slane %v193, 3
      %vm434 = vcmask 1045509
      %v435 = vsel %vm434, %v433, %v432
      %v436 = vrot.slane %v194, 2
      %vm437 = vcmask 1046534
      %v438 = vsel %vm437, %v436, %v435
      %v439 = vrot.slane %v197, 7
      %v440 = vsel %vm422, %v439, %v196
      %v441 = vrot.slane %v198, 6
      %v442 = vsel %vm425, %v441, %v440
      %v443 = vrot.slane %v199, 5
      %v444 = vsel %vm428, %v443, %v442
      %v445 = vrot.slane %v200, 4
      %v446 = vsel %vm431, %v445, %v444
      %v447 = vrot.slane %v201, 3
      %v448 = vsel %vm434, %v447, %v446
      %v449 = vrot.slane %v202, 2
      %v450 = vsel %vm437, %v449, %v448
      %v451 = vrot.slane %v205, 7
      %v452 = vsel %vm422, %v451, %v204
      %v453 = vrot.slane %v206, 6
      %v454 = vsel %vm425, %v453, %v452
      %v455 = vrot.slane %v207, 5
      %v456 = vsel %vm428, %v455, %v454
      %v457 = vrot.slane %v208, 4
      %v458 = vsel %vm431, %v457, %v456
      %v459 = vrot.slane %v209, 3
      %v460 = vsel %vm434, %v459, %v458
      %v461 = vrot.slane %v210, 2
      %v462 = vsel %vm437, %v461, %v460
      %v463 = vrot.slane %v213, 7
      %v464 = vsel %vm422, %v463, %v212
      %v465 = vrot.slane %v214, 6
      %v466 = vsel %vm425, %v465, %v464
      %v467 = vrot.slane %v215, 5
      %v468 = vsel %vm428, %v467, %v466
      %v469 = vrot.slane %v216, 4
      %v470 = vsel %vm431, %v469, %v468
      %v471 = vrot.slane %v217, 3
      %v472 = vsel %vm434, %v471, %v470
      %v473 = vrot.slane %v218, 2
      %v474 = vsel %vm437, %v473, %v472
      %v475 = vrot.slane %v221, 7
      %v476 = vsel %vm422, %v475, %v220
      %v477 = vrot.slane %v222, 6
      %v478 = vsel %vm425, %v477, %v476
      %v479 = vrot.slane %v223, 5
      %v480 = vsel %vm428, %v479, %v478
      %v481 = vrot.slane %v224, 4
      %v482 = vsel %vm431, %v481, %v480
      %v483 = vrot.slane %v225, 3
      %v484 = vsel %vm434, %v483, %v482
      %v485 = vrot.slane %v226, 2
      %v486 = vsel %vm437, %v485, %v484
      %v487 = vrot.slane %v229, 7
      %v488 = vsel %vm422, %v487, %v228
      %v489 = vrot.slane %v230, 6
      %v490 = vsel %vm425, %v489, %v488
      %v491 = vrot.slane %v231, 5
      %v492 = vsel %vm428, %v491, %v490
      %v493 = vrot.slane %v232, 4
      %v494 = vsel %vm431, %v493, %v492
      %v495 = vrot.slane %v233, 3
      %v496 = vsel %vm434, %v495, %v494
      %v497 = vrot.slane %v234, 2
      %v498 = vsel %vm437, %v497, %v496
      %v499 = vrot.slane %v237, 7
      %v500 = vsel %vm422, %v499, %v236
      %v501 = vrot.slane %v238, 6
      %v502 = vsel %vm425, %v501, %v500
      %v503 = vrot.slane %v239, 5
      %v504 = vsel %vm428, %v503, %v502
      %v505 = vrot.slane %v240, 4
      %v506 = vsel %vm431, %v505, %v504
      %v507 = vrot.slane %v241, 3
      %v508 = vsel %vm434, %v507, %v506
      %v509 = vrot.slane %v242, 2
      %v510 = vsel %vm437, %v509, %v508
      %v511 = vrot.slane %v245, 7
      %v512 = vsel %vm422, %v511, %v244
      %v513 = vrot.slane %v246, 6
      %v514 = vsel %vm425, %v513, %v512
      %v515 = vrot.slane %v247, 5
      %v516 = vsel %vm428, %v515, %v514
      %v517 = vrot.slane %v248, 4
      %v518 = vsel %vm431, %v517, %v516
      %v519 = vrot.slane %v249, 3
      %v520 = vsel %vm434, %v519, %v518
      %v521 = vrot.slane %v250, 2
      %v522 = vsel %vm437, %v521, %v520
      %v523 = vrot.slane %v253, 7
      %v524 = vsel %vm422, %v523, %v252
      %v525 = vrot.slane %v254, 6
      %v526 = vsel %vm425, %v525, %v524
      %v527 = vrot.slane %v255, 5
      %v528 = vsel %vm428, %v527, %v526
      %v529 = vrot.slane %v256, 4
      %v530 = vsel %vm431, %v529, %v528
      %v531 = vrot.slane %v257, 3
      %v532 = vsel %vm434, %v531, %v530
      %v533 = vrot.slane %v258, 2
      %v534 = vsel %vm437, %v533, %v532
      %v535 = vrot.slane %v261, 7
      %v536 = vsel %vm422, %v535, %v260
      %v537 = vrot.slane %v262, 6
      %v538 = vsel %vm425, %v537, %v536
      %v539 = vrot.slane %v263, 5
      %v540 = vsel %vm428, %v539, %v538
      %v541 = vrot.slane %v264, 4
      %v542 = vsel %vm431, %v541, %v540
      %v543 = vrot.slane %v265, 3
      %v544 = vsel %vm434, %v543, %v542
      %v545 = vrot.slane %v266, 2
      %v546 = vsel %vm437, %v545, %v544
      %v547 = vrot.slane %v269, 7
      %v548 = vsel %vm422, %v547, %v268
      %v549 = vrot.slane %v270, 6
      %v550 = vsel %vm425, %v549, %v548
      %v551 = vrot.slane %v271, 5
      %v552 = vsel %vm428, %v551, %v550
      %v553 = vrot.slane %v272, 4
      %v554 = vsel %vm431, %v553, %v552
      %v555 = vrot.slane %v273, 3
      %v556 = vsel %vm434, %v555, %v554
      %v557 = vrot.slane %v274, 2
      %v558 = vsel %vm437, %v557, %v556
      %v559 = vrot.slane %v277, 7
      %v560 = vsel %vm422, %v559, %v276
      %v561 = vrot.slane %v278, 6
      %v562 = vsel %vm425, %v561, %v560
      %v563 = vrot.slane %v279, 5
      %v564 = vsel %vm428, %v563, %v562
      %v565 = vrot.slane %v280, 4
      %v566 = vsel %vm431, %v565, %v564
      %v567 = vrot.slane %v281, 3
      %v568 = vsel %vm434, %v567, %v566
      %v569 = vrot.slane %v282, 2
      %v570 = vsel %vm437, %v569, %v568
      %v571 = vrot.slane %v285, 7
      %v572 = vsel %vm422, %v571, %v284
      %v573 = vrot.slane %v286, 6
      %v574 = vsel %vm425, %v573, %v572
      %v575 = vrot.slane %v287, 5
      %v576 = vsel %vm428, %v575, %v574
      %v577 = vrot.slane %v288, 4
      %v578 = vsel %vm431, %v577, %v576
      %v579 = vrot.slane %v289, 3
      %v580 = vsel %vm434, %v579, %v578
      %v581 = vrot.slane %v290, 2
      %v582 = vsel %vm437, %v581, %v580
      %v583 = vrot.slane %v293, 7
      %v584 = vsel %vm422, %v583, %v292
      %v585 = vrot.slane %v294, 6
      %v586 = vsel %vm425, %v585, %v584
      %v587 = vrot.slane %v295, 5
      %v588 = vsel %vm428, %v587, %v586
      %v589 = vrot.slane %v296, 4
      %v590 = vsel %vm431, %v589, %v588
      %v591 = vrot.slane %v297, 3
      %v592 = vsel %vm434, %v591, %v590
      %v593 = vrot.slane %v298, 2
      %v594 = vsel %vm437, %v593, %v592
      %v595 = vrot.slane %v301, 7
      %v596 = vsel %vm422, %v595, %v300
      %v597 = vrot.slane %v302, 6
      %v598 = vsel %vm425, %v597, %v596
      %v599 = vrot.slane %v303, 5
      %v600 = vsel %vm428, %v599, %v598
      %v601 = vrot.slane %v304, 4
      %v602 = vsel %vm431, %v601, %v600
      %v603 = vrot.slane %v305, 3
      %v604 = vsel %vm434, %v603, %v602
      %v605 = vrot.slane %v306, 2
      %v606 = vsel %vm437, %v605, %v604
      %v622 = vrot.slane %v188, 1
      %v623 = vsel %vm422, %v189, %v622
      %v624 = vrot.slane %v190, 7
      %v625 = vsel %vm425, %v624, %v623
      %v626 = vrot.slane %v191, 6
      %v627 = vsel %vm428, %v626, %v625
      %v628 = vrot.slane %v192, 5
      %v629 = vsel %vm431, %v628, %v627
      %v630 = vrot.slane %v193, 4
      %v631 = vsel %vm434, %v630, %v629
      %v632 = vrot.slane %v194, 3
      %v633 = vsel %vm437, %v632, %v631
      %v634 = vrot.slane %v196, 1
      %v635 = vsel %vm422, %v197, %v634
      %v636 = vrot.slane %v198, 7
      %v637 = vsel %vm425, %v636, %v635
      %v638 = vrot.slane %v199, 6
      %v639 = vsel %vm428, %v638, %v637
      %v640 = vrot.slane %v200, 5
      %v641 = vsel %vm431, %v640, %v639
      %v642 = vrot.slane %v201, 4
      %v643 = vsel %vm434, %v642, %v641
      %v644 = vrot.slane %v202, 3
      %v645 = vsel %vm437, %v644, %v643
      %v646 = vrot.slane %v204, 1
      %v647 = vsel %vm422, %v205, %v646
      %v648 = vrot.slane %v206, 7
      %v649 = vsel %vm425, %v648, %v647
      %v650 = vrot.slane %v207, 6
      %v651 = vsel %vm428, %v650, %v649
      %v652 = vrot.slane %v208, 5
      %v653 = vsel %vm431, %v652, %v651
      %v654 = vrot.slane %v209, 4
      %v655 = vsel %vm434, %v654, %v653
      %v656 = vrot.slane %v210, 3
      %v657 = vsel %vm437, %v656, %v655
      %v658 = vrot.slane %v212, 1
      %v659 = vsel %vm422, %v213, %v658
      %v660 = vrot.slane %v214, 7
      %v661 = vsel %vm425, %v660, %v659
      %v662 = vrot.slane %v215, 6
      %v663 = vsel %vm428, %v662, %v661
      %v664 = vrot.slane %v216, 5
      %v665 = vsel %vm431, %v664, %v663
      %v666 = vrot.slane %v217, 4
      %v667 = vsel %vm434, %v666, %v665
      %v668 = vrot.slane %v218, 3
      %v669 = vsel %vm437, %v668, %v667
      %v670 = vrot.slane %v220, 1
      %v671 = vsel %vm422, %v221, %v670
      %v672 = vrot.slane %v222, 7
      %v673 = vsel %vm425, %v672, %v671
      %v674 = vrot.slane %v223, 6
      %v675 = vsel %vm428, %v674, %v673
      %v676 = vrot.slane %v224, 5
      %v677 = vsel %vm431, %v676, %v675
      %v678 = vrot.slane %v225, 4
      %v679 = vsel %vm434, %v678, %v677
      %v680 = vrot.slane %v226, 3
      %v681 = vsel %vm437, %v680, %v679
      %v682 = vrot.slane %v228, 1
      %v683 = vsel %vm422, %v229, %v682
      %v684 = vrot.slane %v230, 7
      %v685 = vsel %vm425, %v684, %v683
      %v686 = vrot.slane %v231, 6
      %v687 = vsel %vm428, %v686, %v685
      %v688 = vrot.slane %v232, 5
      %v689 = vsel %vm431, %v688, %v687
      %v690 = vrot.slane %v233, 4
      %v691 = vsel %vm434, %v690, %v689
      %v692 = vrot.slane %v234, 3
      %v693 = vsel %vm437, %v692, %v691
      %v694 = vrot.slane %v236, 1
      %v695 = vsel %vm422, %v237, %v694
      %v696 = vrot.slane %v238, 7
      %v697 = vsel %vm425, %v696, %v695
      %v698 = vrot.slane %v239, 6
      %v699 = vsel %vm428, %v698, %v697
      %v700 = vrot.slane %v240, 5
      %v701 = vsel %vm431, %v700, %v699
      %v702 = vrot.slane %v241, 4
      %v703 = vsel %vm434, %v702, %v701
      %v704 = vrot.slane %v242, 3
      %v705 = vsel %vm437, %v704, %v703
      %v706 = vrot.slane %v244, 1
      %v707 = vsel %vm422, %v245, %v706
      %v708 = vrot.slane %v246, 7
      %v709 = vsel %vm425, %v708, %v707
      %v710 = vrot.slane %v247, 6
      %v711 = vsel %vm428, %v710, %v709
      %v712 = vrot.slane %v248, 5
      %v713 = vsel %vm431, %v712, %v711
      %v714 = vrot.slane %v249, 4
      %v715 = vsel %vm434, %v714, %v713
      %v716 = vrot.slane %v250, 3
      %v717 = vsel %vm437, %v716, %v715
      %v718 = vrot.slane %v252, 1
      %v719 = vsel %vm422, %v253, %v718
      %v720 = vrot.slane %v254, 7
      %v721 = vsel %vm425, %v720, %v719
      %v722 = vrot.slane %v255, 6
      %v723 = vsel %vm428, %v722, %v721
      %v724 = vrot.slane %v256, 5
      %v725 = vsel %vm431, %v724, %v723
      %v726 = vrot.slane %v257, 4
      %v727 = vsel %vm434, %v726, %v725
      %v728 = vrot.slane %v258, 3
      %v729 = vsel %vm437, %v728, %v727
      %v730 = vrot.slane %v260, 1
      %v731 = vsel %vm422, %v261, %v730
      %v732 = vrot.slane %v262, 7
      %v733 = vsel %vm425, %v732, %v731
      %v734 = vrot.slane %v263, 6
      %v735 = vsel %vm428, %v734, %v733
      %v736 = vrot.slane %v264, 5
      %v737 = vsel %vm431, %v736, %v735
      %v738 = vrot.slane %v265, 4
      %v739 = vsel %vm434, %v738, %v737
      %v740 = vrot.slane %v266, 3
      %v741 = vsel %vm437, %v740, %v739
      %v742 = vrot.slane %v268, 1
      %v743 = vsel %vm422, %v269, %v742
      %v744 = vrot.slane %v270, 7
      %v745 = vsel %vm425, %v744, %v743
      %v746 = vrot.slane %v271, 6
      %v747 = vsel %vm428, %v746, %v745
      %v748 = vrot.slane %v272, 5
      %v749 = vsel %vm431, %v748, %v747
      %v750 = vrot.slane %v273, 4
      %v751 = vsel %vm434, %v750, %v749
      %v752 = vrot.slane %v274, 3
      %v753 = vsel %vm437, %v752, %v751
      %v754 = vrot.slane %v276, 1
      %v755 = vsel %vm422, %v277, %v754
      %v756 = vrot.slane %v278, 7
      %v757 = vsel %vm425, %v756, %v755
      %v758 = vrot.slane %v279, 6
      %v759 = vsel %vm428, %v758, %v757
      %v760 = vrot.slane %v280, 5
      %v761 = vsel %vm431, %v760, %v759
      %v762 = vrot.slane %v281, 4
      %v763 = vsel %vm434, %v762, %v761
      %v764 = vrot.slane %v282, 3
      %v765 = vsel %vm437, %v764, %v763
      %v766 = vrot.slane %v284, 1
      %v767 = vsel %vm422, %v285, %v766
      %v768 = vrot.slane %v286, 7
      %v769 = vsel %vm425, %v768, %v767
      %v770 = vrot.slane %v287, 6
      %v771 = vsel %vm428, %v770, %v769
      %v772 = vrot.slane %v288, 5
      %v773 = vsel %vm431, %v772, %v771
      %v774 = vrot.slane %v289, 4
      %v775 = vsel %vm434, %v774, %v773
      %v776 = vrot.slane %v290, 3
      %v777 = vsel %vm437, %v776, %v775
      %v778 = vrot.slane %v292, 1
      %v779 = vsel %vm422, %v293, %v778
      %v780 = vrot.slane %v294, 7
      %v781 = vsel %vm425, %v780, %v779
      %v782 = vrot.slane %v295, 6
      %v783 = vsel %vm428, %v782, %v781
      %v784 = vrot.slane %v296, 5
      %v785 = vsel %vm431, %v784, %v783
      %v786 = vrot.slane %v297, 4
      %v787 = vsel %vm434, %v786, %v785
      %v788 = vrot.slane %v298, 3
      %v789 = vsel %vm437, %v788, %v787
      %v790 = vrot.slane %v300, 1
      %v791 = vsel %vm422, %v301, %v790
      %v792 = vrot.slane %v302, 7
      %v793 = vsel %vm425, %v792, %v791
      %v794 = vrot.slane %v303, 6
      %v795 = vsel %vm428, %v794, %v793
      %v796 = vrot.slane %v304, 5
      %v797 = vsel %vm431, %v796, %v795
      %v798 = vrot.slane %v305, 4
      %v799 = vsel %vm434, %v798, %v797
      %v800 = vrot.slane %v306, 3
      %v801 = vsel %vm437, %v800, %v799
      %802 = vrot.lane.b32.xlu0 %v633, 4
      %v803 = vpop.permute.xlu0 %802
      %804 = vrot.lane.b32.xlu0 %v645, 4
      %v805 = vpop.permute.xlu0 %804
      %806 = vrot.lane.b32.xlu0 %v657, 4
      %v807 = vpop.permute.xlu0 %806
      %808 = vrot.lane.b32.xlu0 %v669, 4
      %v809 = vpop.permute.xlu0 %808
      %810 = vrot.lane.b32.xlu0 %v681, 4
      %v811 = vpop.permute.xlu0 %810
      %812 = vrot.lane.b32.xlu0 %v693, 4
      %v813 = vpop.permute.xlu0 %812
      %814 = vrot.lane.b32.xlu0 %v705, 4
      %v815 = vpop.permute.xlu0 %814
      %816 = vrot.lane.b32.xlu0 %v717, 4
      %v817 = vpop.permute.xlu0 %816
      %818 = vrot.lane.b32.xlu0 %v729, 4
      %v819 = vpop.permute.xlu0 %818
      %820 = vrot.lane.b32.xlu0 %v741, 4
      %v821 = vpop.permute.xlu0 %820
      %822 = vrot.lane.b32.xlu0 %v753, 4
      %v823 = vpop.permute.xlu0 %822
      %824 = vrot.lane.b32.xlu0 %v765, 4
      %v825 = vpop.permute.xlu0 %824
      %826 = vrot.lane.b32.xlu0 %v777, 4
      %v827 = vpop.permute.xlu0 %826
      %828 = vrot.lane.b32.xlu0 %v789, 4
      %v829 = vpop.permute.xlu0 %828
      %830 = vrot.lane.b32.xlu0 %v801, 4
      %v831 = vpop.permute.xlu0 %830
      %v862 = vsel %vm422, %v624, %v189
      %v863 = vsel %vm425, %v626, %v862
      %v864 = vsel %vm428, %v628, %v863
      %v865 = vsel %vm431, %v630, %v864
      %v866 = vsel %vm434, %v632, %v865
      %v867 = vrot.slane %v195, 2
      %v868 = vsel %vm437, %v867, %v866
      %v869 = vsel %vm422, %v636, %v197
      %v870 = vsel %vm425, %v638, %v869
      %v871 = vsel %vm428, %v640, %v870
      %v872 = vsel %vm431, %v642, %v871
      %v873 = vsel %vm434, %v644, %v872
      %v874 = vrot.slane %v203, 2
      %v875 = vsel %vm437, %v874, %v873
      %v876 = vsel %vm422, %v648, %v205
      %v877 = vsel %vm425, %v650, %v876
      %v878 = vsel %vm428, %v652, %v877
      %v879 = vsel %vm431, %v654, %v878
      %v880 = vsel %vm434, %v656, %v879
      %v881 = vrot.slane %v211, 2
      %v882 = vsel %vm437, %v881, %v880
      %v883 = vsel %vm422, %v660, %v213
      %v884 = vsel %vm425, %v662, %v883
      %v885 = vsel %vm428, %v664, %v884
      %v886 = vsel %vm431, %v666, %v885
      %v887 = vsel %vm434, %v668, %v886
      %v888 = vrot.slane %v219, 2
      %v889 = vsel %vm437, %v888, %v887
      %v890 = vsel %vm422, %v672, %v221
      %v891 = vsel %vm425, %v674, %v890
      %v892 = vsel %vm428, %v676, %v891
      %v893 = vsel %vm431, %v678, %v892
      %v894 = vsel %vm434, %v680, %v893
      %v895 = vrot.slane %v227, 2
      %v896 = vsel %vm437, %v895, %v894
      %v897 = vsel %vm422, %v684, %v229
      %v898 = vsel %vm425, %v686, %v897
      %v899 = vsel %vm428, %v688, %v898
      %v900 = vsel %vm431, %v690, %v899
      %v901 = vsel %vm434, %v692, %v900
      %v902 = vrot.slane %v235, 2
      %v903 = vsel %vm437, %v902, %v901
      %v904 = vsel %vm422, %v696, %v237
      %v905 = vsel %vm425, %v698, %v904
      %v906 = vsel %vm428, %v700, %v905
      %v907 = vsel %vm431, %v702, %v906
      %v908 = vsel %vm434, %v704, %v907
      %v909 = vrot.slane %v243, 2
      %v910 = vsel %vm437, %v909, %v908
      %v911 = vsel %vm422, %v708, %v245
      %v912 = vsel %vm425, %v710, %v911
      %v913 = vsel %vm428, %v712, %v912
      %v914 = vsel %vm431, %v714, %v913
      %v915 = vsel %vm434, %v716, %v914
      %v916 = vrot.slane %v251, 2
      %v917 = vsel %vm437, %v916, %v915
      %v918 = vsel %vm422, %v720, %v253
      %v919 = vsel %vm425, %v722, %v918
      %v920 = vsel %vm428, %v724, %v919
      %v921 = vsel %vm431, %v726, %v920
      %v922 = vsel %vm434, %v728, %v921
      %v923 = vrot.slane %v259, 2
      %v924 = vsel %vm437, %v923, %v922
      %v925 = vsel %vm422, %v732, %v261
      %v926 = vsel %vm425, %v734, %v925
      %v927 = vsel %vm428, %v736, %v926
      %v928 = vsel %vm431, %v738, %v927
      %v929 = vsel %vm434, %v740, %v928
      %v930 = vrot.slane %v267, 2
      %v931 = vsel %vm437, %v930, %v929
      %v932 = vsel %vm422, %v744, %v269
      %v933 = vsel %vm425, %v746, %v932
      %v934 = vsel %vm428, %v748, %v933
      %v935 = vsel %vm431, %v750, %v934
      %v936 = vsel %vm434, %v752, %v935
      %v937 = vrot.slane %v275, 2
      %v938 = vsel %vm437, %v937, %v936
      %v939 = vsel %vm422, %v756, %v277
      %v940 = vsel %vm425, %v758, %v939
      %v941 = vsel %vm428, %v760, %v940
      %v942 = vsel %vm431, %v762, %v941
      %v943 = vsel %vm434, %v764, %v942
      %v944 = vrot.slane %v283, 2
      %v945 = vsel %vm437, %v944, %v943
      %v946 = vsel %vm422, %v768, %v285
      %v947 = vsel %vm425, %v770, %v946
      %v948 = vsel %vm428, %v772, %v947
      %v949 = vsel %vm431, %v774, %v948
      %v950 = vsel %vm434, %v776, %v949
      %v951 = vrot.slane %v291, 2
      %v952 = vsel %vm437, %v951, %v950
      %v953 = vsel %vm422, %v780, %v293
      %v954 = vsel %vm425, %v782, %v953
      %v955 = vsel %vm428, %v784, %v954
      %v956 = vsel %vm431, %v786, %v955
      %v957 = vsel %vm434, %v788, %v956
      %v958 = vrot.slane %v299, 2
      %v959 = vsel %vm437, %v958, %v957
      %v960 = vsel %vm422, %v792, %v301
      %v961 = vsel %vm425, %v794, %v960
      %v962 = vsel %vm428, %v796, %v961
      %v963 = vsel %vm431, %v798, %v962
      %v964 = vsel %vm434, %v800, %v963
      %v965 = vrot.slane %v307, 2
      %v966 = vsel %vm437, %v965, %v964
      %967 = vrot.lane.b32.xlu0 %v868, 8
      %v968 = vpop.permute.xlu0 %967
      %969 = vrot.lane.b32.xlu0 %v875, 8
      %v970 = vpop.permute.xlu0 %969
      %971 = vrot.lane.b32.xlu0 %v882, 8
      %v972 = vpop.permute.xlu0 %971
      %973 = vrot.lane.b32.xlu0 %v889, 8
      %v974 = vpop.permute.xlu0 %973
      %975 = vrot.lane.b32.xlu0 %v896, 8
      %v976 = vpop.permute.xlu0 %975
      %977 = vrot.lane.b32.xlu0 %v903, 8
      %v978 = vpop.permute.xlu0 %977
      %979 = vrot.lane.b32.xlu0 %v910, 8
      %v980 = vpop.permute.xlu0 %979
      %981 = vrot.lane.b32.xlu0 %v917, 8
      %v982 = vpop.permute.xlu0 %981
      %983 = vrot.lane.b32.xlu0 %v924, 8
      %v984 = vpop.permute.xlu0 %983
      %985 = vrot.lane.b32.xlu0 %v931, 8
      %v986 = vpop.permute.xlu0 %985
      %987 = vrot.lane.b32.xlu0 %v938, 8
      %v988 = vpop.permute.xlu0 %987
      %989 = vrot.lane.b32.xlu0 %v945, 8
      %v990 = vpop.permute.xlu0 %989
      %991 = vrot.lane.b32.xlu0 %v952, 8
      %v992 = vpop.permute.xlu0 %991
      %993 = vrot.lane.b32.xlu0 %v959, 8
      %v994 = vpop.permute.xlu0 %993
      %995 = vrot.lane.b32.xlu0 %v966, 8
      %v996 = vpop.permute.xlu0 %995
      %v1019 = vrot.slane %v309, 7
      %v1020 = vsel %vm422, %v1019, %v308
      %v1021 = vrot.slane %v310, 6
      %v1022 = vsel %vm425, %v1021, %v1020
      %v1023 = vrot.slane %v311, 5
      %v1024 = vsel %vm428, %v1023, %v1022
      %v1025 = vrot.slane %v312, 4
      %v1026 = vsel %vm431, %v1025, %v1024
      %v1027 = vrot.slane %v313, 3
      %v1028 = vsel %vm434, %v1027, %v1026
      %v1029 = vrot.slane %v314, 2
      %v1030 = vsel %vm437, %v1029, %v1028
      %1031 = vrot.lane.b32.xlu0 %v450, 12
      %v1032 = vpop.permute.xlu0 %1031
      %1033 = vrot.lane.b32.xlu0 %v462, 12
      %v1034 = vpop.permute.xlu0 %1033
      %1035 = vrot.lane.b32.xlu0 %v474, 12
      %v1036 = vpop.permute.xlu0 %1035
      %1037 = vrot.lane.b32.xlu0 %v486, 12
      %v1038 = vpop.permute.xlu0 %1037
      %1039 = vrot.lane.b32.xlu0 %v498, 12
      %v1040 = vpop.permute.xlu0 %1039
      %1041 = vrot.lane.b32.xlu0 %v510, 12
      %v1042 = vpop.permute.xlu0 %1041
      %1043 = vrot.lane.b32.xlu0 %v522, 12
      %v1044 = vpop.permute.xlu0 %1043
      %1045 = vrot.lane.b32.xlu0 %v534, 12
      %v1046 = vpop.permute.xlu0 %1045
      %1047 = vrot.lane.b32.xlu0 %v546, 12
      %v1048 = vpop.permute.xlu0 %1047
      %1049 = vrot.lane.b32.xlu0 %v558, 12
      %v1050 = vpop.permute.xlu0 %1049
      %1051 = vrot.lane.b32.xlu0 %v570, 12
      %v1052 = vpop.permute.xlu0 %1051
      %1053 = vrot.lane.b32.xlu0 %v582, 12
      %v1054 = vpop.permute.xlu0 %1053
      %1055 = vrot.lane.b32.xlu0 %v594, 12
      %v1056 = vpop.permute.xlu0 %1055
      %1057 = vrot.lane.b32.xlu0 %v606, 12
      %v1058 = vpop.permute.xlu0 %1057
      %1059 = vrot.lane.b32.xlu0 %v1030, 12
      %v1060 = vpop.permute.xlu0 %1059
      %v1076 = vrot.slane %v308, 1
      %v1077 = vsel %vm422, %v309, %v1076
      %v1078 = vrot.slane %v310, 7
      %v1079 = vsel %vm425, %v1078, %v1077
      %v1080 = vrot.slane %v311, 6
      %v1081 = vsel %vm428, %v1080, %v1079
      %v1082 = vrot.slane %v312, 5
      %v1083 = vsel %vm431, %v1082, %v1081
      %v1084 = vrot.slane %v313, 4
      %v1085 = vsel %vm434, %v1084, %v1083
      %v1086 = vrot.slane %v314, 3
      %v1087 = vsel %vm437, %v1086, %v1085
      %1088 = vrot.lane.b32.xlu0 %v645, 16
      %v1089 = vpop.permute.xlu0 %1088
      %1090 = vrot.lane.b32.xlu0 %v657, 16
      %v1091 = vpop.permute.xlu0 %1090
      %1092 = vrot.lane.b32.xlu0 %v669, 16
      %v1093 = vpop.permute.xlu0 %1092
      %1094 = vrot.lane.b32.xlu0 %v681, 16
      %v1095 = vpop.permute.xlu0 %1094
      %1096 = vrot.lane.b32.xlu0 %v693, 16
      %v1097 = vpop.permute.xlu0 %1096
      %1098 = vrot.lane.b32.xlu0 %v705, 16
      %v1099 = vpop.permute.xlu0 %1098
      %1100 = vrot.lane.b32.xlu0 %v717, 16
      %v1101 = vpop.permute.xlu0 %1100
      %1102 = vrot.lane.b32.xlu0 %v729, 16
      %v1103 = vpop.permute.xlu0 %1102
      %1104 = vrot.lane.b32.xlu0 %v741, 16
      %v1105 = vpop.permute.xlu0 %1104
      %1106 = vrot.lane.b32.xlu0 %v753, 16
      %v1107 = vpop.permute.xlu0 %1106
      %1108 = vrot.lane.b32.xlu0 %v765, 16
      %v1109 = vpop.permute.xlu0 %1108
      %1110 = vrot.lane.b32.xlu0 %v777, 16
      %v1111 = vpop.permute.xlu0 %1110
      %1112 = vrot.lane.b32.xlu0 %v789, 16
      %v1113 = vpop.permute.xlu0 %1112
      %1114 = vrot.lane.b32.xlu0 %v801, 16
      %v1115 = vpop.permute.xlu0 %1114
      %1116 = vrot.lane.b32.xlu0 %v1087, 16
      %v1117 = vpop.permute.xlu0 %1116
      %v1134 = vsel %vm422, %v1078, %v309
      %v1135 = vsel %vm425, %v1080, %v1134
      %v1136 = vsel %vm428, %v1082, %v1135
      %v1137 = vsel %vm431, %v1084, %v1136
      %v1138 = vsel %vm434, %v1086, %v1137
      %v1139 = vrot.slane %v315, 2
      %v1140 = vsel %vm437, %v1139, %v1138
      %1141 = vrot.lane.b32.xlu0 %v875, 20
      %v1142 = vpop.permute.xlu0 %1141
      %1143 = vrot.lane.b32.xlu0 %v882, 20
      %v1144 = vpop.permute.xlu0 %1143
      %1145 = vrot.lane.b32.xlu0 %v889, 20
      %v1146 = vpop.permute.xlu0 %1145
      %1147 = vrot.lane.b32.xlu0 %v896, 20
      %v1148 = vpop.permute.xlu0 %1147
      %1149 = vrot.lane.b32.xlu0 %v903, 20
      %v1150 = vpop.permute.xlu0 %1149
      %1151 = vrot.lane.b32.xlu0 %v910, 20
      %v1152 = vpop.permute.xlu0 %1151
      %1153 = vrot.lane.b32.xlu0 %v917, 20
      %v1154 = vpop.permute.xlu0 %1153
      %1155 = vrot.lane.b32.xlu0 %v924, 20
      %v1156 = vpop.permute.xlu0 %1155
      %1157 = vrot.lane.b32.xlu0 %v931, 20
      %v1158 = vpop.permute.xlu0 %1157
      %1159 = vrot.lane.b32.xlu0 %v938, 20
      %v1160 = vpop.permute.xlu0 %1159
      %1161 = vrot.lane.b32.xlu0 %v945, 20
      %v1162 = vpop.permute.xlu0 %1161
      %1163 = vrot.lane.b32.xlu0 %v952, 20
      %v1164 = vpop.permute.xlu0 %1163
      %1165 = vrot.lane.b32.xlu0 %v959, 20
      %v1166 = vpop.permute.xlu0 %1165
      %1167 = vrot.lane.b32.xlu0 %v966, 20
      %v1168 = vpop.permute.xlu0 %1167
      %1169 = vrot.lane.b32.xlu0 %v1140, 20
      %v1170 = vpop.permute.xlu0 %1169
      %vm1186 = vcmask 31744
      %v1187 = vsel %vm1186, %v438, %v803
      %v1188 = vsel %vm1186, %v450, %v805
      %v1189 = vsel %vm1186, %v462, %v807
      %v1190 = vsel %vm1186, %v474, %v809
      %v1191 = vsel %vm1186, %v486, %v811
      %v1192 = vsel %vm1186, %v498, %v813
      %v1193 = vsel %vm1186, %v510, %v815
      %v1194 = vsel %vm1186, %v522, %v817
      %v1195 = vsel %vm1186, %v534, %v819
      %v1196 = vsel %vm1186, %v546, %v821
      %v1197 = vsel %vm1186, %v558, %v823
      %v1198 = vsel %vm1186, %v570, %v825
      %v1199 = vsel %vm1186, %v582, %v827
      %v1200 = vsel %vm1186, %v594, %v829
      %v1201 = vsel %vm1186, %v606, %v831
      %vm1202 = vcmask 64512
      %v1203 = vsel %vm1202, %v1187, %v968
      %v1204 = vsel %vm1202, %v1188, %v970
      %v1205 = vsel %vm1202, %v1189, %v972
      %v1206 = vsel %vm1202, %v1190, %v974
      %v1207 = vsel %vm1202, %v1191, %v976
      %v1208 = vsel %vm1202, %v1192, %v978
      %v1209 = vsel %vm1202, %v1193, %v980
      %v1210 = vsel %vm1202, %v1194, %v982
      %v1211 = vsel %vm1202, %v1195, %v984
      %v1212 = vsel %vm1202, %v1196, %v986
      %v1213 = vsel %vm1202, %v1197, %v988
      %v1214 = vsel %vm1202, %v1198, %v990
      %v1215 = vsel %vm1202, %v1199, %v992
      %v1216 = vsel %vm1202, %v1200, %v994
      %v1217 = vsel %vm1202, %v1201, %v996
      %vm1218 = vcmask 97280
      %v1219 = vsel %vm1218, %v1203, %v1032
      %v1220 = vsel %vm1218, %v1204, %v1034
      %v1221 = vsel %vm1218, %v1205, %v1036
      %v1222 = vsel %vm1218, %v1206, %v1038
      %v1223 = vsel %vm1218, %v1207, %v1040
      %v1224 = vsel %vm1218, %v1208, %v1042
      %v1225 = vsel %vm1218, %v1209, %v1044
      %v1226 = vsel %vm1218, %v1210, %v1046
      %v1227 = vsel %vm1218, %v1211, %v1048
      %v1228 = vsel %vm1218, %v1212, %v1050
      %v1229 = vsel %vm1218, %v1213, %v1052
      %v1230 = vsel %vm1218, %v1214, %v1054
      %v1231 = vsel %vm1218, %v1215, %v1056
      %v1232 = vsel %vm1218, %v1216, %v1058
      %v1233 = vsel %vm1218, %v1217, %v1060
      %vm1234 = vcmask 130048
      %v1235 = vsel %vm1234, %v1219, %v1089
      %v1236 = vsel %vm1234, %v1220, %v1091
      %v1237 = vsel %vm1234, %v1221, %v1093
      %v1238 = vsel %vm1234, %v1222, %v1095
      %v1239 = vsel %vm1234, %v1223, %v1097
      %v1240 = vsel %vm1234, %v1224, %v1099
      %v1241 = vsel %vm1234, %v1225, %v1101
      %v1242 = vsel %vm1234, %v1226, %v1103
      %v1243 = vsel %vm1234, %v1227, %v1105
      %v1244 = vsel %vm1234, %v1228, %v1107
      %v1245 = vsel %vm1234, %v1229, %v1109
      %v1246 = vsel %vm1234, %v1230, %v1111
      %v1247 = vsel %vm1234, %v1231, %v1113
      %v1248 = vsel %vm1234, %v1232, %v1115
      %v1249 = vsel %vm1234, %v1233, %v1117
      %vm1250 = vcmask 162816
      %v1251 = vsel %vm1250, %v1235, %v1142
      %v1252 = vsel %vm1250, %v1236, %v1144
      %v1253 = vsel %vm1250, %v1237, %v1146
      %v1254 = vsel %vm1250, %v1238, %v1148
      %v1255 = vsel %vm1250, %v1239, %v1150
      %v1256 = vsel %vm1250, %v1240, %v1152
      %v1257 = vsel %vm1250, %v1241, %v1154
      %v1258 = vsel %vm1250, %v1242, %v1156
      %v1259 = vsel %vm1250, %v1243, %v1158
      %v1260 = vsel %vm1250, %v1244, %v1160
      %v1261 = vsel %vm1250, %v1245, %v1162
      %v1262 = vsel %vm1250, %v1246, %v1164
      %v1263 = vsel %vm1250, %v1247, %v1166
      %v1264 = vsel %vm1250, %v1248, %v1168
      %v1265 = vsel %vm1250, %v1249, %v1170
      %v1266 = vld [vmem:[%s1] sm:$0xff]
      %v1267 = vld [vmem:[%s1 + $0x8] sm:$0xff]
      %v1268 = vld [vmem:[%s1 + $0x10] sm:$0xff]
      %v1284 = vcombine.high %v1251, %v1251
      %v1286 = vunpack.c.l.s4 1966171168
      %v1287 = vunpack.c.0.s8 %v1286
      %v1288 = vlaneseq
      %v1289 = vshrl.u32 %v1288, 7
      %v1290 = vsub.s32 %v1287, %v1289
      %v1291 = vrot.slane %v1251, %v1290
      %v1293 = vunpack.c.l.s4 1966171168
      %v1294 = vunpack.c.0.s8 %v1293
      %v1295 = vlaneseq
      %v1296 = vshrl.u32 %v1295, 7
      %v1297 = vsub.s32 %v1294, %v1296
      %v1298 = vrot.slane %v1284, %v1297
      %v1299 = vcombine.high %v1291, %v1291
      %v1300 = vcombine.high %v1298, %v1298
      %v1302 = vunpack.c.l.s4 1966171168
      %v1303 = vunpack.c.0.s8 %v1302
      %v1304 = vlaneseq
      %v1305 = vshrl.u32 %v1304, 7
      %v1306 = vsub.s32 %v1303, %v1305
      %v1307 = vrot.slane %v1291, %v1306
      %v1309 = vunpack.c.l.s4 1966171168
      %v1310 = vunpack.c.0.s8 %v1309
      %v1311 = vlaneseq
      %v1312 = vshrl.u32 %v1311, 7
      %v1313 = vsub.s32 %v1310, %v1312
      %v1314 = vrot.slane %v1298, %v1313
      %v1316 = vunpack.c.l.s4 1966171168
      %v1317 = vunpack.c.0.s8 %v1316
      %v1318 = vlaneseq
      %v1319 = vshrl.u32 %v1318, 7
      %v1320 = vsub.s32 %v1317, %v1319
      %v1321 = vrot.slane %v1299, %v1320
      %v1323 = vunpack.c.l.s4 1966171168
      %v1324 = vunpack.c.0.s8 %v1323
      %v1325 = vlaneseq
      %v1326 = vshrl.u32 %v1325, 7
      %v1327 = vsub.s32 %v1324, %v1326
      %v1328 = vrot.slane %v1300, %v1327
      %v1329 = vcombine.high %v1307, %v1307
      %v1330 = vcombine.high %v1314, %v1314
      %v1331 = vcombine.high %v1321, %v1321
      %v1332 = vcombine.high %v1252, %v1252
      %v1334 = vunpack.c.l.s4 1966171168
      %v1335 = vunpack.c.0.s8 %v1334
      %v1336 = vlaneseq
      %v1337 = vshrl.u32 %v1336, 7
      %v1338 = vsub.s32 %v1335, %v1337
      %v1339 = vrot.slane %v1252, %v1338
      %v1341 = vunpack.c.l.s4 1966171168
      %v1342 = vunpack.c.0.s8 %v1341
      %v1343 = vlaneseq
      %v1344 = vshrl.u32 %v1343, 7
      %v1345 = vsub.s32 %v1342, %v1344
      %v1346 = vrot.slane %v1332, %v1345
      %v1347 = vcombine.high %v1339, %v1339
      %v1348 = vcombine.high %v1346, %v1346
      %v1350 = vunpack.c.l.s4 1966171168
      %v1351 = vunpack.c.0.s8 %v1350
      %v1352 = vlaneseq
      %v1353 = vshrl.u32 %v1352, 7
      %v1354 = vsub.s32 %v1351, %v1353
      %v1355 = vrot.slane %v1339, %v1354
      %v1357 = vunpack.c.l.s4 1966171168
      %v1358 = vunpack.c.0.s8 %v1357
      %v1359 = vlaneseq
      %v1360 = vshrl.u32 %v1359, 7
      %v1361 = vsub.s32 %v1358, %v1360
      %v1362 = vrot.slane %v1346, %v1361
      %v1364 = vunpack.c.l.s4 1966171168
      %v1365 = vunpack.c.0.s8 %v1364
      %v1366 = vlaneseq
      %v1367 = vshrl.u32 %v1366, 7
      %v1368 = vsub.s32 %v1365, %v1367
      %v1369 = vrot.slane %v1347, %v1368
      %v1371 = vunpack.c.l.s4 1966171168
      %v1372 = vunpack.c.0.s8 %v1371
      %v1373 = vlaneseq
      %v1374 = vshrl.u32 %v1373, 7
      %v1375 = vsub.s32 %v1372, %v1374
      %v1376 = vrot.slane %v1348, %v1375
      %v1377 = vcombine.high %v1355, %v1355
      %v1378 = vcombine.high %v1362, %v1362
      %v1379 = vcombine.high %v1369, %v1369
      %v1380 = vcombine.high %v1253, %v1253
      %v1382 = vunpack.c.l.s4 1966171168
      %v1383 = vunpack.c.0.s8 %v1382
      %v1384 = vlaneseq
      %v1385 = vshrl.u32 %v1384, 7
      %v1386 = vsub.s32 %v1383, %v1385
      %v1387 = vrot.slane %v1253, %v1386
      %v1389 = vunpack.c.l.s4 1966171168
      %v1390 = vunpack.c.0.s8 %v1389
      %v1391 = vlaneseq
      %v1392 = vshrl.u32 %v1391, 7
      %v1393 = vsub.s32 %v1390, %v1392
      %v1394 = vrot.slane %v1380, %v1393
      %v1395 = vcombine.high %v1387, %v1387
      %v1396 = vcombine.high %v1394, %v1394
      %v1398 = vunpack.c.l.s4 1966171168
      %v1399 = vunpack.c.0.s8 %v1398
      %v1400 = vlaneseq
      %v1401 = vshrl.u32 %v1400, 7
      %v1402 = vsub.s32 %v1399, %v1401
      %v1403 = vrot.slane %v1387, %v1402
      %v1405 = vunpack.c.l.s4 1966171168
      %v1406 = vunpack.c.0.s8 %v1405
      %v1407 = vlaneseq
      %v1408 = vshrl.u32 %v1407, 7
      %v1409 = vsub.s32 %v1406, %v1408
      %v1410 = vrot.slane %v1394, %v1409
      %v1412 = vunpack.c.l.s4 1966171168
      %v1413 = vunpack.c.0.s8 %v1412
      %v1414 = vlaneseq
      %v1415 = vshrl.u32 %v1414, 7
      %v1416 = vsub.s32 %v1413, %v1415
      %v1417 = vrot.slane %v1395, %v1416
      %v1419 = vunpack.c.l.s4 1966171168
      %v1420 = vunpack.c.0.s8 %v1419
      %v1421 = vlaneseq
      %v1422 = vshrl.u32 %v1421, 7
      %v1423 = vsub.s32 %v1420, %v1422
      %v1424 = vrot.slane %v1396, %v1423
      %v1425 = vcombine.high %v1403, %v1403
      %v1426 = vcombine.high %v1410, %v1410
      %v1427 = vcombine.high %v1417, %v1417
      %v1428 = vcombine.high %v1254, %v1254
      %v1430 = vunpack.c.l.s4 1966171168
      %v1431 = vunpack.c.0.s8 %v1430
      %v1432 = vlaneseq
      %v1433 = vshrl.u32 %v1432, 7
      %v1434 = vsub.s32 %v1431, %v1433
      %v1435 = vrot.slane %v1254, %v1434
      %v1437 = vunpack.c.l.s4 1966171168
      %v1438 = vunpack.c.0.s8 %v1437
      %v1439 = vlaneseq
      %v1440 = vshrl.u32 %v1439, 7
      %v1441 = vsub.s32 %v1438, %v1440
      %v1442 = vrot.slane %v1428, %v1441
      %v1443 = vcombine.high %v1435, %v1435
      %v1444 = vcombine.high %v1442, %v1442
      %v1446 = vunpack.c.l.s4 1966171168
      %v1447 = vunpack.c.0.s8 %v1446
      %v1448 = vlaneseq
      %v1449 = vshrl.u32 %v1448, 7
      %v1450 = vsub.s32 %v1447, %v1449
      %v1451 = vrot.slane %v1435, %v1450
      %v1453 = vunpack.c.l.s4 1966171168
      %v1454 = vunpack.c.0.s8 %v1453
      %v1455 = vlaneseq
      %v1456 = vshrl.u32 %v1455, 7
      %v1457 = vsub.s32 %v1454, %v1456
      %v1458 = vrot.slane %v1442, %v1457
      %v1460 = vunpack.c.l.s4 1966171168
      %v1461 = vunpack.c.0.s8 %v1460
      %v1462 = vlaneseq
      %v1463 = vshrl.u32 %v1462, 7
      %v1464 = vsub.s32 %v1461, %v1463
      %v1465 = vrot.slane %v1443, %v1464
      %v1467 = vunpack.c.l.s4 1966171168
      %v1468 = vunpack.c.0.s8 %v1467
      %v1469 = vlaneseq
      %v1470 = vshrl.u32 %v1469, 7
      %v1471 = vsub.s32 %v1468, %v1470
      %v1472 = vrot.slane %v1444, %v1471
      %v1473 = vcombine.high %v1451, %v1451
      %v1474 = vcombine.high %v1458, %v1458
      %v1475 = vcombine.high %v1465, %v1465
      %v1476 = vcombine.high %v1255, %v1255
      %v1478 = vunpack.c.l.s4 1966171168
      %v1479 = vunpack.c.0.s8 %v1478
      %v1480 = vlaneseq
      %v1481 = vshrl.u32 %v1480, 7
      %v1482 = vsub.s32 %v1479, %v1481
      %v1483 = vrot.slane %v1255, %v1482
      %v1485 = vunpack.c.l.s4 1966171168
      %v1486 = vunpack.c.0.s8 %v1485
      %v1487 = vlaneseq
      %v1488 = vshrl.u32 %v1487, 7
      %v1489 = vsub.s32 %v1486, %v1488
      %v1490 = vrot.slane %v1476, %v1489
      %v1491 = vcombine.high %v1483, %v1483
      %v1492 = vcombine.high %v1490, %v1490
      %v1494 = vunpack.c.l.s4 1966171168
      %v1495 = vunpack.c.0.s8 %v1494
      %v1496 = vlaneseq
      %v1497 = vshrl.u32 %v1496, 7
      %v1498 = vsub.s32 %v1495, %v1497
      %v1499 = vrot.slane %v1483, %v1498
      %v1501 = vunpack.c.l.s4 1966171168
      %v1502 = vunpack.c.0.s8 %v1501
      %v1503 = vlaneseq
      %v1504 = vshrl.u32 %v1503, 7
      %v1505 = vsub.s32 %v1502, %v1504
      %v1506 = vrot.slane %v1490, %v1505
      %v1508 = vunpack.c.l.s4 1966171168
      %v1509 = vunpack.c.0.s8 %v1508
      %v1510 = vlaneseq
      %v1511 = vshrl.u32 %v1510, 7
      %v1512 = vsub.s32 %v1509, %v1511
      %v1513 = vrot.slane %v1491, %v1512
      %v1515 = vunpack.c.l.s4 1966171168
      %v1516 = vunpack.c.0.s8 %v1515
      %v1517 = vlaneseq
      %v1518 = vshrl.u32 %v1517, 7
      %v1519 = vsub.s32 %v1516, %v1518
      %v1520 = vrot.slane %v1492, %v1519
      %v1521 = vcombine.high %v1499, %v1499
      %v1522 = vcombine.high %v1506, %v1506
      %v1523 = vcombine.high %v1513, %v1513
      %v1524 = vcombine.high %v1256, %v1256
      %v1526 = vunpack.c.l.s4 1966171168
      %v1527 = vunpack.c.0.s8 %v1526
      %v1528 = vlaneseq
      %v1529 = vshrl.u32 %v1528, 7
      %v1530 = vsub.s32 %v1527, %v1529
      %v1531 = vrot.slane %v1256, %v1530
      %v1533 = vunpack.c.l.s4 1966171168
      %v1534 = vunpack.c.0.s8 %v1533
      %v1535 = vlaneseq
      %v1536 = vshrl.u32 %v1535, 7
      %v1537 = vsub.s32 %v1534, %v1536
      %v1538 = vrot.slane %v1524, %v1537
      %v1539 = vcombine.high %v1531, %v1531
      %v1540 = vcombine.high %v1538, %v1538
      %v1542 = vunpack.c.l.s4 1966171168
      %v1543 = vunpack.c.0.s8 %v1542
      %v1544 = vlaneseq
      %v1545 = vshrl.u32 %v1544, 7
      %v1546 = vsub.s32 %v1543, %v1545
      %v1547 = vrot.slane %v1531, %v1546
      %v1549 = vunpack.c.l.s4 1966171168
      %v1550 = vunpack.c.0.s8 %v1549
      %v1551 = vlaneseq
      %v1552 = vshrl.u32 %v1551, 7
      %v1553 = vsub.s32 %v1550, %v1552
      %v1554 = vrot.slane %v1538, %v1553
      %v1556 = vunpack.c.l.s4 1966171168
      %v1557 = vunpack.c.0.s8 %v1556
      %v1558 = vlaneseq
      %v1559 = vshrl.u32 %v1558, 7
      %v1560 = vsub.s32 %v1557, %v1559
      %v1561 = vrot.slane %v1539, %v1560
      %v1563 = vunpack.c.l.s4 1966171168
      %v1564 = vunpack.c.0.s8 %v1563
      %v1565 = vlaneseq
      %v1566 = vshrl.u32 %v1565, 7
      %v1567 = vsub.s32 %v1564, %v1566
      %v1568 = vrot.slane %v1540, %v1567
      %v1569 = vcombine.high %v1547, %v1547
      %v1570 = vcombine.high %v1554, %v1554
      %v1571 = vcombine.high %v1561, %v1561
      %v1572 = vcombine.high %v1257, %v1257
      %v1574 = vunpack.c.l.s4 1966171168
      %v1575 = vunpack.c.0.s8 %v1574
      %v1576 = vlaneseq
      %v1577 = vshrl.u32 %v1576, 7
      %v1578 = vsub.s32 %v1575, %v1577
      %v1579 = vrot.slane %v1257, %v1578
      %v1581 = vunpack.c.l.s4 1966171168
      %v1582 = vunpack.c.0.s8 %v1581
      %v1583 = vlaneseq
      %v1584 = vshrl.u32 %v1583, 7
      %v1585 = vsub.s32 %v1582, %v1584
      %v1586 = vrot.slane %v1572, %v1585
      %v1587 = vcombine.high %v1579, %v1579
      %v1588 = vcombine.high %v1586, %v1586
      %v1590 = vunpack.c.l.s4 1966171168
      %v1591 = vunpack.c.0.s8 %v1590
      %v1592 = vlaneseq
      %v1593 = vshrl.u32 %v1592, 7
      %v1594 = vsub.s32 %v1591, %v1593
      %v1595 = vrot.slane %v1579, %v1594
      %v1597 = vunpack.c.l.s4 1966171168
      %v1598 = vunpack.c.0.s8 %v1597
      %v1599 = vlaneseq
      %v1600 = vshrl.u32 %v1599, 7
      %v1601 = vsub.s32 %v1598, %v1600
      %v1602 = vrot.slane %v1586, %v1601
      %v1604 = vunpack.c.l.s4 1966171168
      %v1605 = vunpack.c.0.s8 %v1604
      %v1606 = vlaneseq
      %v1607 = vshrl.u32 %v1606, 7
      %v1608 = vsub.s32 %v1605, %v1607
      %v1609 = vrot.slane %v1587, %v1608
      %v1611 = vunpack.c.l.s4 1966171168
      %v1612 = vunpack.c.0.s8 %v1611
      %v1613 = vlaneseq
      %v1614 = vshrl.u32 %v1613, 7
      %v1615 = vsub.s32 %v1612, %v1614
      %v1616 = vrot.slane %v1588, %v1615
      %v1617 = vcombine.high %v1595, %v1595
      %v1618 = vcombine.high %v1602, %v1602
      %v1619 = vcombine.high %v1609, %v1609
      %v1620 = vcombine.high %v1258, %v1258
      %v1622 = vunpack.c.l.s4 1966171168
      %v1623 = vunpack.c.0.s8 %v1622
      %v1624 = vlaneseq
      %v1625 = vshrl.u32 %v1624, 7
      %v1626 = vsub.s32 %v1623, %v1625
      %v1627 = vrot.slane %v1258, %v1626
      %v1629 = vunpack.c.l.s4 1966171168
      %v1630 = vunpack.c.0.s8 %v1629
      %v1631 = vlaneseq
      %v1632 = vshrl.u32 %v1631, 7
      %v1633 = vsub.s32 %v1630, %v1632
      %v1634 = vrot.slane %v1620, %v1633
      %v1635 = vcombine.high %v1627, %v1627
      %v1636 = vcombine.high %v1634, %v1634
      %v1638 = vunpack.c.l.s4 1966171168
      %v1639 = vunpack.c.0.s8 %v1638
      %v1640 = vlaneseq
      %v1641 = vshrl.u32 %v1640, 7
      %v1642 = vsub.s32 %v1639, %v1641
      %v1643 = vrot.slane %v1627, %v1642
      %v1645 = vunpack.c.l.s4 1966171168
      %v1646 = vunpack.c.0.s8 %v1645
      %v1647 = vlaneseq
      %v1648 = vshrl.u32 %v1647, 7
      %v1649 = vsub.s32 %v1646, %v1648
      %v1650 = vrot.slane %v1634, %v1649
      %v1652 = vunpack.c.l.s4 1966171168
      %v1653 = vunpack.c.0.s8 %v1652
      %v1654 = vlaneseq
      %v1655 = vshrl.u32 %v1654, 7
      %v1656 = vsub.s32 %v1653, %v1655
      %v1657 = vrot.slane %v1635, %v1656
      %v1659 = vunpack.c.l.s4 1966171168
      %v1660 = vunpack.c.0.s8 %v1659
      %v1661 = vlaneseq
      %v1662 = vshrl.u32 %v1661, 7
      %v1663 = vsub.s32 %v1660, %v1662
      %v1664 = vrot.slane %v1636, %v1663
      %v1665 = vcombine.high %v1643, %v1643
      %v1666 = vcombine.high %v1650, %v1650
      %v1667 = vcombine.high %v1657, %v1657
      %v1668 = vcombine.high %v1259, %v1259
      %v1670 = vunpack.c.l.s4 1966171168
      %v1671 = vunpack.c.0.s8 %v1670
      %v1672 = vlaneseq
      %v1673 = vshrl.u32 %v1672, 7
      %v1674 = vsub.s32 %v1671, %v1673
      %v1675 = vrot.slane %v1259, %v1674
      %v1677 = vunpack.c.l.s4 1966171168
      %v1678 = vunpack.c.0.s8 %v1677
      %v1679 = vlaneseq
      %v1680 = vshrl.u32 %v1679, 7
      %v1681 = vsub.s32 %v1678, %v1680
      %v1682 = vrot.slane %v1668, %v1681
      %v1683 = vcombine.high %v1675, %v1675
      %v1684 = vcombine.high %v1682, %v1682
      %v1686 = vunpack.c.l.s4 1966171168
      %v1687 = vunpack.c.0.s8 %v1686
      %v1688 = vlaneseq
      %v1689 = vshrl.u32 %v1688, 7
      %v1690 = vsub.s32 %v1687, %v1689
      %v1691 = vrot.slane %v1675, %v1690
      %v1693 = vunpack.c.l.s4 1966171168
      %v1694 = vunpack.c.0.s8 %v1693
      %v1695 = vlaneseq
      %v1696 = vshrl.u32 %v1695, 7
      %v1697 = vsub.s32 %v1694, %v1696
      %v1698 = vrot.slane %v1682, %v1697
      %v1700 = vunpack.c.l.s4 1966171168
      %v1701 = vunpack.c.0.s8 %v1700
      %v1702 = vlaneseq
      %v1703 = vshrl.u32 %v1702, 7
      %v1704 = vsub.s32 %v1701, %v1703
      %v1705 = vrot.slane %v1683, %v1704
      %v1707 = vunpack.c.l.s4 1966171168
      %v1708 = vunpack.c.0.s8 %v1707
      %v1709 = vlaneseq
      %v1710 = vshrl.u32 %v1709, 7
      %v1711 = vsub.s32 %v1708, %v1710
      %v1712 = vrot.slane %v1684, %v1711
      %v1713 = vcombine.high %v1691, %v1691
      %v1714 = vcombine.high %v1698, %v1698
      %v1715 = vcombine.high %v1705, %v1705
      %v1716 = vcombine.high %v1260, %v1260
      %v1718 = vunpack.c.l.s4 1966171168
      %v1719 = vunpack.c.0.s8 %v1718
      %v1720 = vlaneseq
      %v1721 = vshrl.u32 %v1720, 7
      %v1722 = vsub.s32 %v1719, %v1721
      %v1723 = vrot.slane %v1260, %v1722
      %v1725 = vunpack.c.l.s4 1966171168
      %v1726 = vunpack.c.0.s8 %v1725
      %v1727 = vlaneseq
      %v1728 = vshrl.u32 %v1727, 7
      %v1729 = vsub.s32 %v1726, %v1728
      %v1730 = vrot.slane %v1716, %v1729
      %v1731 = vcombine.high %v1723, %v1723
      %v1732 = vcombine.high %v1730, %v1730
      %v1734 = vunpack.c.l.s4 1966171168
      %v1735 = vunpack.c.0.s8 %v1734
      %v1736 = vlaneseq
      %v1737 = vshrl.u32 %v1736, 7
      %v1738 = vsub.s32 %v1735, %v1737
      %v1739 = vrot.slane %v1723, %v1738
      %v1741 = vunpack.c.l.s4 1966171168
      %v1742 = vunpack.c.0.s8 %v1741
      %v1743 = vlaneseq
      %v1744 = vshrl.u32 %v1743, 7
      %v1745 = vsub.s32 %v1742, %v1744
      %v1746 = vrot.slane %v1730, %v1745
      %v1748 = vunpack.c.l.s4 1966171168
      %v1749 = vunpack.c.0.s8 %v1748
      %v1750 = vlaneseq
      %v1751 = vshrl.u32 %v1750, 7
      %v1752 = vsub.s32 %v1749, %v1751
      %v1753 = vrot.slane %v1731, %v1752
      %v1755 = vunpack.c.l.s4 1966171168
      %v1756 = vunpack.c.0.s8 %v1755
      %v1757 = vlaneseq
      %v1758 = vshrl.u32 %v1757, 7
      %v1759 = vsub.s32 %v1756, %v1758
      %v1760 = vrot.slane %v1732, %v1759
      %v1761 = vcombine.high %v1739, %v1739
      %v1762 = vcombine.high %v1746, %v1746
      %v1763 = vcombine.high %v1753, %v1753
      %v1764 = vcombine.high %v1261, %v1261
      %v1766 = vunpack.c.l.s4 1966171168
      %v1767 = vunpack.c.0.s8 %v1766
      %v1768 = vlaneseq
      %v1769 = vshrl.u32 %v1768, 7
      %v1770 = vsub.s32 %v1767, %v1769
      %v1771 = vrot.slane %v1261, %v1770
      %v1773 = vunpack.c.l.s4 1966171168
      %v1774 = vunpack.c.0.s8 %v1773
      %v1775 = vlaneseq
      %v1776 = vshrl.u32 %v1775, 7
      %v1777 = vsub.s32 %v1774, %v1776
      %v1778 = vrot.slane %v1764, %v1777
      %v1779 = vcombine.high %v1771, %v1771
      %v1780 = vcombine.high %v1778, %v1778
      %v1782 = vunpack.c.l.s4 1966171168
      %v1783 = vunpack.c.0.s8 %v1782
      %v1784 = vlaneseq
      %v1785 = vshrl.u32 %v1784, 7
      %v1786 = vsub.s32 %v1783, %v1785
      %v1787 = vrot.slane %v1771, %v1786
      %v1789 = vunpack.c.l.s4 1966171168
      %v1790 = vunpack.c.0.s8 %v1789
      %v1791 = vlaneseq
      %v1792 = vshrl.u32 %v1791, 7
      %v1793 = vsub.s32 %v1790, %v1792
      %v1794 = vrot.slane %v1778, %v1793
      %v1796 = vunpack.c.l.s4 1966171168
      %v1797 = vunpack.c.0.s8 %v1796
      %v1798 = vlaneseq
      %v1799 = vshrl.u32 %v1798, 7
      %v1800 = vsub.s32 %v1797, %v1799
      %v1801 = vrot.slane %v1779, %v1800
      %v1803 = vunpack.c.l.s4 1966171168
      %v1804 = vunpack.c.0.s8 %v1803
      %v1805 = vlaneseq
      %v1806 = vshrl.u32 %v1805, 7
      %v1807 = vsub.s32 %v1804, %v1806
      %v1808 = vrot.slane %v1780, %v1807
      %v1809 = vcombine.high %v1787, %v1787
      %v1810 = vcombine.high %v1794, %v1794
      %v1811 = vcombine.high %v1801, %v1801
      %v1812 = vcombine.high %v1262, %v1262
      %v1814 = vunpack.c.l.s4 1966171168
      %v1815 = vunpack.c.0.s8 %v1814
      %v1816 = vlaneseq
      %v1817 = vshrl.u32 %v1816, 7
      %v1818 = vsub.s32 %v1815, %v1817
      %v1819 = vrot.slane %v1262, %v1818
      %v1821 = vunpack.c.l.s4 1966171168
      %v1822 = vunpack.c.0.s8 %v1821
      %v1823 = vlaneseq
      %v1824 = vshrl.u32 %v1823, 7
      %v1825 = vsub.s32 %v1822, %v1824
      %v1826 = vrot.slane %v1812, %v1825
      %v1827 = vcombine.high %v1819, %v1819
      %v1828 = vcombine.high %v1826, %v1826
      %v1830 = vunpack.c.l.s4 1966171168
      %v1831 = vunpack.c.0.s8 %v1830
      %v1832 = vlaneseq
      %v1833 = vshrl.u32 %v1832, 7
      %v1834 = vsub.s32 %v1831, %v1833
      %v1835 = vrot.slane %v1819, %v1834
      %v1837 = vunpack.c.l.s4 1966171168
      %v1838 = vunpack.c.0.s8 %v1837
      %v1839 = vlaneseq
      %v1840 = vshrl.u32 %v1839, 7
      %v1841 = vsub.s32 %v1838, %v1840
      %v1842 = vrot.slane %v1826, %v1841
      %v1844 = vunpack.c.l.s4 1966171168
      %v1845 = vunpack.c.0.s8 %v1844
      %v1846 = vlaneseq
      %v1847 = vshrl.u32 %v1846, 7
      %v1848 = vsub.s32 %v1845, %v1847
      %v1849 = vrot.slane %v1827, %v1848
      %v1851 = vunpack.c.l.s4 1966171168
      %v1852 = vunpack.c.0.s8 %v1851
      %v1853 = vlaneseq
      %v1854 = vshrl.u32 %v1853, 7
      %v1855 = vsub.s32 %v1852, %v1854
      %v1856 = vrot.slane %v1828, %v1855
      %v1857 = vcombine.high %v1835, %v1835
      %v1858 = vcombine.high %v1842, %v1842
      %v1859 = vcombine.high %v1849, %v1849
      %v1860 = vcombine.high %v1263, %v1263
      %v1862 = vunpack.c.l.s4 1966171168
      %v1863 = vunpack.c.0.s8 %v1862
      %v1864 = vlaneseq
      %v1865 = vshrl.u32 %v1864, 7
      %v1866 = vsub.s32 %v1863, %v1865
      %v1867 = vrot.slane %v1263, %v1866
      %v1869 = vunpack.c.l.s4 1966171168
      %v1870 = vunpack.c.0.s8 %v1869
      %v1871 = vlaneseq
      %v1872 = vshrl.u32 %v1871, 7
      %v1873 = vsub.s32 %v1870, %v1872
      %v1874 = vrot.slane %v1860, %v1873
      %v1875 = vcombine.high %v1867, %v1867
      %v1876 = vcombine.high %v1874, %v1874
      %v1878 = vunpack.c.l.s4 1966171168
      %v1879 = vunpack.c.0.s8 %v1878
      %v1880 = vlaneseq
      %v1881 = vshrl.u32 %v1880, 7
      %v1882 = vsub.s32 %v1879, %v1881
      %v1883 = vrot.slane %v1867, %v1882
      %v1885 = vunpack.c.l.s4 1966171168
      %v1886 = vunpack.c.0.s8 %v1885
      %v1887 = vlaneseq
      %v1888 = vshrl.u32 %v1887, 7
      %v1889 = vsub.s32 %v1886, %v1888
      %v1890 = vrot.slane %v1874, %v1889
      %v1892 = vunpack.c.l.s4 1966171168
      %v1893 = vunpack.c.0.s8 %v1892
      %v1894 = vlaneseq
      %v1895 = vshrl.u32 %v1894, 7
      %v1896 = vsub.s32 %v1893, %v1895
      %v1897 = vrot.slane %v1875, %v1896
      %v1899 = vunpack.c.l.s4 1966171168
      %v1900 = vunpack.c.0.s8 %v1899
      %v1901 = vlaneseq
      %v1902 = vshrl.u32 %v1901, 7
      %v1903 = vsub.s32 %v1900, %v1902
      %v1904 = vrot.slane %v1876, %v1903
      %v1905 = vcombine.high %v1883, %v1883
      %v1906 = vcombine.high %v1890, %v1890
      %v1907 = vcombine.high %v1897, %v1897
      %v1908 = vcombine.high %v1264, %v1264
      %v1910 = vunpack.c.l.s4 1966171168
      %v1911 = vunpack.c.0.s8 %v1910
      %v1912 = vlaneseq
      %v1913 = vshrl.u32 %v1912, 7
      %v1914 = vsub.s32 %v1911, %v1913
      %v1915 = vrot.slane %v1264, %v1914
      %v1917 = vunpack.c.l.s4 1966171168
      %v1918 = vunpack.c.0.s8 %v1917
      %v1919 = vlaneseq
      %v1920 = vshrl.u32 %v1919, 7
      %v1921 = vsub.s32 %v1918, %v1920
      %v1922 = vrot.slane %v1908, %v1921
      %v1923 = vcombine.high %v1915, %v1915
      %v1924 = vcombine.high %v1922, %v1922
      %v1926 = vunpack.c.l.s4 1966171168
      %v1927 = vunpack.c.0.s8 %v1926
      %v1928 = vlaneseq
      %v1929 = vshrl.u32 %v1928, 7
      %v1930 = vsub.s32 %v1927, %v1929
      %v1931 = vrot.slane %v1915, %v1930
      %v1933 = vunpack.c.l.s4 1966171168
      %v1934 = vunpack.c.0.s8 %v1933
      %v1935 = vlaneseq
      %v1936 = vshrl.u32 %v1935, 7
      %v1937 = vsub.s32 %v1934, %v1936
      %v1938 = vrot.slane %v1922, %v1937
      %v1940 = vunpack.c.l.s4 1966171168
      %v1941 = vunpack.c.0.s8 %v1940
      %v1942 = vlaneseq
      %v1943 = vshrl.u32 %v1942, 7
      %v1944 = vsub.s32 %v1941, %v1943
      %v1945 = vrot.slane %v1923, %v1944
      %v1947 = vunpack.c.l.s4 1966171168
      %v1948 = vunpack.c.0.s8 %v1947
      %v1949 = vlaneseq
      %v1950 = vshrl.u32 %v1949, 7
      %v1951 = vsub.s32 %v1948, %v1950
      %v1952 = vrot.slane %v1924, %v1951
      %v1953 = vcombine.high %v1931, %v1931
      %v1954 = vcombine.high %v1938, %v1938
      %v1955 = vcombine.high %v1945, %v1945
      %v1956 = vcombine.high %v1265, %v1265
      %v1958 = vunpack.c.l.s4 1966171168
      %v1959 = vunpack.c.0.s8 %v1958
      %v1960 = vlaneseq
      %v1961 = vshrl.u32 %v1960, 7
      %v1962 = vsub.s32 %v1959, %v1961
      %v1963 = vrot.slane %v1265, %v1962
      %v1965 = vunpack.c.l.s4 1966171168
      %v1966 = vunpack.c.0.s8 %v1965
      %v1967 = vlaneseq
      %v1968 = vshrl.u32 %v1967, 7
      %v1969 = vsub.s32 %v1966, %v1968
      %v1970 = vrot.slane %v1956, %v1969
      %v1971 = vcombine.high %v1963, %v1963
      %v1972 = vcombine.high %v1970, %v1970
      %v1974 = vunpack.c.l.s4 1966171168
      %v1975 = vunpack.c.0.s8 %v1974
      %v1976 = vlaneseq
      %v1977 = vshrl.u32 %v1976, 7
      %v1978 = vsub.s32 %v1975, %v1977
      %v1979 = vrot.slane %v1963, %v1978
      %v1981 = vunpack.c.l.s4 1966171168
      %v1982 = vunpack.c.0.s8 %v1981
      %v1983 = vlaneseq
      %v1984 = vshrl.u32 %v1983, 7
      %v1985 = vsub.s32 %v1982, %v1984
      %v1986 = vrot.slane %v1970, %v1985
      %v1988 = vunpack.c.l.s4 1966171168
      %v1989 = vunpack.c.0.s8 %v1988
      %v1990 = vlaneseq
      %v1991 = vshrl.u32 %v1990, 7
      %v1992 = vsub.s32 %v1989, %v1991
      %v1993 = vrot.slane %v1971, %v1992
      %v1995 = vunpack.c.l.s4 1966171168
      %v1996 = vunpack.c.0.s8 %v1995
      %v1997 = vlaneseq
      %v1998 = vshrl.u32 %v1997, 7
      %v1999 = vsub.s32 %v1996, %v1998
      %v2000 = vrot.slane %v1972, %v1999
      %v2001 = vcombine.high %v1979, %v1979
      %v2002 = vcombine.high %v1986, %v1986
      %v2003 = vcombine.high %v1993, %v1993
      %v2004 = vcombine.low %v1307, %v1321
      %v2005 = vcombine.low %v1329, %v1331
      %v2006 = vcombine.low %v1314, %v1328
      %v2007 = vcombine.low %v1330, %v1355
      %v2009 = vunpack.c.l.s4 1966171168
      %v2010 = vunpack.c.0.s8 %v2009
      %v2011 = vlaneseq
      %v2012 = vshrl.u32 %v2011, 7
      %v2013 = vsub.s32 %v2010, %v2012
      %v2014 = vrot.slane %v2004, %v2013
      %v2016 = vunpack.c.l.s4 1966171168
      %v2017 = vunpack.c.0.s8 %v2016
      %v2018 = vlaneseq
      %v2019 = vshrl.u32 %v2018, 7
      %v2020 = vsub.s32 %v2017, %v2019
      %v2021 = vrot.slane %v2005, %v2020
      %v2023 = vunpack.c.l.s4 1966171168
      %v2024 = vunpack.c.0.s8 %v2023
      %v2025 = vlaneseq
      %v2026 = vshrl.u32 %v2025, 7
      %v2027 = vsub.s32 %v2024, %v2026
      %v2028 = vrot.slane %v2006, %v2027
      %v2030 = vunpack.c.l.s4 1966171168
      %v2031 = vunpack.c.0.s8 %v2030
      %v2032 = vlaneseq
      %v2033 = vshrl.u32 %v2032, 7
      %v2034 = vsub.s32 %v2031, %v2033
      %v2035 = vrot.slane %v2007, %v2034
      %v2036 = vcombine.low %v2014, %v2021
      %v2037 = vcombine.low %v2028, %v2035
      %v2039 = vunpack.c.l.s4 1966171168
      %v2040 = vunpack.c.0.s8 %v2039
      %v2041 = vlaneseq
      %v2042 = vshrl.u32 %v2041, 7
      %v2043 = vsub.s32 %v2040, %v2042
      %v2044 = vrot.slane %v2036, %v2043
      %v2046 = vunpack.c.l.s4 1966171168
      %v2047 = vunpack.c.0.s8 %v2046
      %v2048 = vlaneseq
      %v2049 = vshrl.u32 %v2048, 7
      %v2050 = vsub.s32 %v2047, %v2049
      %v2051 = vrot.slane %v2037, %v2050
      %v2052 = vcombine.low %v2044, %v2051
      %v2053 = vcombine.low %v1369, %v1377
      %v2054 = vcombine.low %v1379, %v1362
      %v2055 = vcombine.low %v1376, %v1378
      %v2056 = vcombine.low %v1403, %v1417
      %v2058 = vunpack.c.l.s4 1966171168
      %v2059 = vunpack.c.0.s8 %v2058
      %v2060 = vlaneseq
      %v2061 = vshrl.u32 %v2060, 7
      %v2062 = vsub.s32 %v2059, %v2061
      %v2063 = vrot.slane %v2053, %v2062
      %v2065 = vunpack.c.l.s4 1966171168
      %v2066 = vunpack.c.0.s8 %v2065
      %v2067 = vlaneseq
      %v2068 = vshrl.u32 %v2067, 7
      %v2069 = vsub.s32 %v2066, %v2068
      %v2070 = vrot.slane %v2054, %v2069
      %v2072 = vunpack.c.l.s4 1966171168
      %v2073 = vunpack.c.0.s8 %v2072
      %v2074 = vlaneseq
      %v2075 = vshrl.u32 %v2074, 7
      %v2076 = vsub.s32 %v2073, %v2075
      %v2077 = vrot.slane %v2055, %v2076
      %v2079 = vunpack.c.l.s4 1966171168
      %v2080 = vunpack.c.0.s8 %v2079
      %v2081 = vlaneseq
      %v2082 = vshrl.u32 %v2081, 7
      %v2083 = vsub.s32 %v2080, %v2082
      %v2084 = vrot.slane %v2056, %v2083
      %v2085 = vcombine.low %v2063, %v2070
      %v2086 = vcombine.low %v2077, %v2084
      %v2088 = vunpack.c.l.s4 1966171168
      %v2089 = vunpack.c.0.s8 %v2088
      %v2090 = vlaneseq
      %v2091 = vshrl.u32 %v2090, 7
      %v2092 = vsub.s32 %v2089, %v2091
      %v2093 = vrot.slane %v2085, %v2092
      %v2095 = vunpack.c.l.s4 1966171168
      %v2096 = vunpack.c.0.s8 %v2095
      %v2097 = vlaneseq
      %v2098 = vshrl.u32 %v2097, 7
      %v2099 = vsub.s32 %v2096, %v2098
      %v2100 = vrot.slane %v2086, %v2099
      %v2101 = vcombine.low %v2093, %v2100
      %v2102 = vcombine.low %v1425, %v1427
      %v2103 = vcombine.low %v1410, %v1424
      %v2104 = vcombine.low %v1426, %v1451
      %v2105 = vcombine.low %v1465, %v1473
      %v2107 = vunpack.c.l.s4 1966171168
      %v2108 = vunpack.c.0.s8 %v2107
      %v2109 = vlaneseq
      %v2110 = vshrl.u32 %v2109, 7
      %v2111 = vsub.s32 %v2108, %v2110
      %v2112 = vrot.slane %v2102, %v2111
      %v2114 = vunpack.c.l.s4 1966171168
      %v2115 = vunpack.c.0.s8 %v2114
      %v2116 = vlaneseq
      %v2117 = vshrl.u32 %v2116, 7
      %v2118 = vsub.s32 %v2115, %v2117
      %v2119 = vrot.slane %v2103, %v2118
      %v2121 = vunpack.c.l.s4 1966171168
      %v2122 = vunpack.c.0.s8 %v2121
      %v2123 = vlaneseq
      %v2124 = vshrl.u32 %v2123, 7
      %v2125 = vsub.s32 %v2122, %v2124
      %v2126 = vrot.slane %v2104, %v2125
      %v2128 = vunpack.c.l.s4 1966171168
      %v2129 = vunpack.c.0.s8 %v2128
      %v2130 = vlaneseq
      %v2131 = vshrl.u32 %v2130, 7
      %v2132 = vsub.s32 %v2129, %v2131
      %v2133 = vrot.slane %v2105, %v2132
      %v2134 = vcombine.low %v2112, %v2119
      %v2135 = vcombine.low %v2126, %v2133
      %v2137 = vunpack.c.l.s4 1966171168
      %v2138 = vunpack.c.0.s8 %v2137
      %v2139 = vlaneseq
      %v2140 = vshrl.u32 %v2139, 7
      %v2141 = vsub.s32 %v2138, %v2140
      %v2142 = vrot.slane %v2134, %v2141
      %v2144 = vunpack.c.l.s4 1966171168
      %v2145 = vunpack.c.0.s8 %v2144
      %v2146 = vlaneseq
      %v2147 = vshrl.u32 %v2146, 7
      %v2148 = vsub.s32 %v2145, %v2147
      %v2149 = vrot.slane %v2135, %v2148
      %v2150 = vcombine.low %v2142, %v2149
      %v2151 = vcombine.low %v1475, %v1458
      %v2152 = vcombine.low %v1472, %v1474
      %v2153 = vcombine.low %v1499, %v1513
      %v2154 = vcombine.low %v1521, %v1523
      %v2156 = vunpack.c.l.s4 1966171168
      %v2157 = vunpack.c.0.s8 %v2156
      %v2158 = vlaneseq
      %v2159 = vshrl.u32 %v2158, 7
      %v2160 = vsub.s32 %v2157, %v2159
      %v2161 = vrot.slane %v2151, %v2160
      %v2163 = vunpack.c.l.s4 1966171168
      %v2164 = vunpack.c.0.s8 %v2163
      %v2165 = vlaneseq
      %v2166 = vshrl.u32 %v2165, 7
      %v2167 = vsub.s32 %v2164, %v2166
      %v2168 = vrot.slane %v2152, %v2167
      %v2170 = vunpack.c.l.s4 1966171168
      %v2171 = vunpack.c.0.s8 %v2170
      %v2172 = vlaneseq
      %v2173 = vshrl.u32 %v2172, 7
      %v2174 = vsub.s32 %v2171, %v2173
      %v2175 = vrot.slane %v2153, %v2174
      %v2177 = vunpack.c.l.s4 1966171168
      %v2178 = vunpack.c.0.s8 %v2177
      %v2179 = vlaneseq
      %v2180 = vshrl.u32 %v2179, 7
      %v2181 = vsub.s32 %v2178, %v2180
      %v2182 = vrot.slane %v2154, %v2181
      %v2183 = vcombine.low %v2161, %v2168
      %v2184 = vcombine.low %v2175, %v2182
      %v2186 = vunpack.c.l.s4 1966171168
      %v2187 = vunpack.c.0.s8 %v2186
      %v2188 = vlaneseq
      %v2189 = vshrl.u32 %v2188, 7
      %v2190 = vsub.s32 %v2187, %v2189
      %v2191 = vrot.slane %v2183, %v2190
      %v2193 = vunpack.c.l.s4 1966171168
      %v2194 = vunpack.c.0.s8 %v2193
      %v2195 = vlaneseq
      %v2196 = vshrl.u32 %v2195, 7
      %v2197 = vsub.s32 %v2194, %v2196
      %v2198 = vrot.slane %v2184, %v2197
      %v2199 = vcombine.low %v2191, %v2198
      %v2200 = vcombine.low %v1506, %v1520
      %v2201 = vcombine.low %v1522, %v1547
      %v2202 = vcombine.low %v1561, %v1569
      %v2203 = vcombine.low %v1571, %v1554
      %v2205 = vunpack.c.l.s4 1966171168
      %v2206 = vunpack.c.0.s8 %v2205
      %v2207 = vlaneseq
      %v2208 = vshrl.u32 %v2207, 7
      %v2209 = vsub.s32 %v2206, %v2208
      %v2210 = vrot.slane %v2200, %v2209
      %v2212 = vunpack.c.l.s4 1966171168
      %v2213 = vunpack.c.0.s8 %v2212
      %v2214 = vlaneseq
      %v2215 = vshrl.u32 %v2214, 7
      %v2216 = vsub.s32 %v2213, %v2215
      %v2217 = vrot.slane %v2201, %v2216
      %v2219 = vunpack.c.l.s4 1966171168
      %v2220 = vunpack.c.0.s8 %v2219
      %v2221 = vlaneseq
      %v2222 = vshrl.u32 %v2221, 7
      %v2223 = vsub.s32 %v2220, %v2222
      %v2224 = vrot.slane %v2202, %v2223
      %v2226 = vunpack.c.l.s4 1966171168
      %v2227 = vunpack.c.0.s8 %v2226
      %v2228 = vlaneseq
      %v2229 = vshrl.u32 %v2228, 7
      %v2230 = vsub.s32 %v2227, %v2229
      %v2231 = vrot.slane %v2203, %v2230
      %v2232 = vcombine.low %v2210, %v2217
      %v2233 = vcombine.low %v2224, %v2231
      %v2235 = vunpack.c.l.s4 1966171168
      %v2236 = vunpack.c.0.s8 %v2235
      %v2237 = vlaneseq
      %v2238 = vshrl.u32 %v2237, 7
      %v2239 = vsub.s32 %v2236, %v2238
      %v2240 = vrot.slane %v2232, %v2239
      %v2242 = vunpack.c.l.s4 1966171168
      %v2243 = vunpack.c.0.s8 %v2242
      %v2244 = vlaneseq
      %v2245 = vshrl.u32 %v2244, 7
      %v2246 = vsub.s32 %v2243, %v2245
      %v2247 = vrot.slane %v2233, %v2246
      %v2248 = vcombine.low %v2240, %v2247
      %v2249 = vcombine.low %v1568, %v1570
      %v2250 = vcombine.low %v1595, %v1609
      %v2251 = vcombine.low %v1617, %v1619
      %v2252 = vcombine.low %v1602, %v1616
      %v2254 = vunpack.c.l.s4 1966171168
      %v2255 = vunpack.c.0.s8 %v2254
      %v2256 = vlaneseq
      %v2257 = vshrl.u32 %v2256, 7
      %v2258 = vsub.s32 %v2255, %v2257
      %v2259 = vrot.slane %v2249, %v2258
      %v2261 = vunpack.c.l.s4 1966171168
      %v2262 = vunpack.c.0.s8 %v2261
      %v2263 = vlaneseq
      %v2264 = vshrl.u32 %v2263, 7
      %v2265 = vsub.s32 %v2262, %v2264
      %v2266 = vrot.slane %v2250, %v2265
      %v2268 = vunpack.c.l.s4 1966171168
      %v2269 = vunpack.c.0.s8 %v2268
      %v2270 = vlaneseq
      %v2271 = vshrl.u32 %v2270, 7
      %v2272 = vsub.s32 %v2269, %v2271
      %v2273 = vrot.slane %v2251, %v2272
      %v2275 = vunpack.c.l.s4 1966171168
      %v2276 = vunpack.c.0.s8 %v2275
      %v2277 = vlaneseq
      %v2278 = vshrl.u32 %v2277, 7
      %v2279 = vsub.s32 %v2276, %v2278
      %v2280 = vrot.slane %v2252, %v2279
      %v2281 = vcombine.low %v2259, %v2266
      %v2282 = vcombine.low %v2273, %v2280
      %v2284 = vunpack.c.l.s4 1966171168
      %v2285 = vunpack.c.0.s8 %v2284
      %v2286 = vlaneseq
      %v2287 = vshrl.u32 %v2286, 7
      %v2288 = vsub.s32 %v2285, %v2287
      %v2289 = vrot.slane %v2281, %v2288
      %v2291 = vunpack.c.l.s4 1966171168
      %v2292 = vunpack.c.0.s8 %v2291
      %v2293 = vlaneseq
      %v2294 = vshrl.u32 %v2293, 7
      %v2295 = vsub.s32 %v2292, %v2294
      %v2296 = vrot.slane %v2282, %v2295
      %v2297 = vcombine.low %v2289, %v2296
      %v2298 = vcombine.low %v1618, %v1643
      %v2299 = vcombine.low %v1657, %v1665
      %v2300 = vcombine.low %v1667, %v1650
      %v2301 = vcombine.low %v1664, %v1666
      %v2303 = vunpack.c.l.s4 1966171168
      %v2304 = vunpack.c.0.s8 %v2303
      %v2305 = vlaneseq
      %v2306 = vshrl.u32 %v2305, 7
      %v2307 = vsub.s32 %v2304, %v2306
      %v2308 = vrot.slane %v2298, %v2307
      %v2310 = vunpack.c.l.s4 1966171168
      %v2311 = vunpack.c.0.s8 %v2310
      %v2312 = vlaneseq
      %v2313 = vshrl.u32 %v2312, 7
      %v2314 = vsub.s32 %v2311, %v2313
      %v2315 = vrot.slane %v2299, %v2314
      %v2317 = vunpack.c.l.s4 1966171168
      %v2318 = vunpack.c.0.s8 %v2317
      %v2319 = vlaneseq
      %v2320 = vshrl.u32 %v2319, 7
      %v2321 = vsub.s32 %v2318, %v2320
      %v2322 = vrot.slane %v2300, %v2321
      %v2324 = vunpack.c.l.s4 1966171168
      %v2325 = vunpack.c.0.s8 %v2324
      %v2326 = vlaneseq
      %v2327 = vshrl.u32 %v2326, 7
      %v2328 = vsub.s32 %v2325, %v2327
      %v2329 = vrot.slane %v2301, %v2328
      %v2330 = vcombine.low %v2308, %v2315
      %v2331 = vcombine.low %v2322, %v2329
      %v2333 = vunpack.c.l.s4 1966171168
      %v2334 = vunpack.c.0.s8 %v2333
      %v2335 = vlaneseq
      %v2336 = vshrl.u32 %v2335, 7
      %v2337 = vsub.s32 %v2334, %v2336
      %v2338 = vrot.slane %v2330, %v2337
      %v2340 = vunpack.c.l.s4 1966171168
      %v2341 = vunpack.c.0.s8 %v2340
      %v2342 = vlaneseq
      %v2343 = vshrl.u32 %v2342, 7
      %v2344 = vsub.s32 %v2341, %v2343
      %v2345 = vrot.slane %v2331, %v2344
      %v2346 = vcombine.low %v2338, %v2345
      %v2347 = vcombine.low %v1691, %v1705
      %v2348 = vcombine.low %v1713, %v1715
      %v2349 = vcombine.low %v1698, %v1712
      %v2350 = vcombine.low %v1714, %v1739
      %v2352 = vunpack.c.l.s4 1966171168
      %v2353 = vunpack.c.0.s8 %v2352
      %v2354 = vlaneseq
      %v2355 = vshrl.u32 %v2354, 7
      %v2356 = vsub.s32 %v2353, %v2355
      %v2357 = vrot.slane %v2347, %v2356
      %v2359 = vunpack.c.l.s4 1966171168
      %v2360 = vunpack.c.0.s8 %v2359
      %v2361 = vlaneseq
      %v2362 = vshrl.u32 %v2361, 7
      %v2363 = vsub.s32 %v2360, %v2362
      %v2364 = vrot.slane %v2348, %v2363
      %v2366 = vunpack.c.l.s4 1966171168
      %v2367 = vunpack.c.0.s8 %v2366
      %v2368 = vlaneseq
      %v2369 = vshrl.u32 %v2368, 7
      %v2370 = vsub.s32 %v2367, %v2369
      %v2371 = vrot.slane %v2349, %v2370
      %v2373 = vunpack.c.l.s4 1966171168
      %v2374 = vunpack.c.0.s8 %v2373
      %v2375 = vlaneseq
      %v2376 = vshrl.u32 %v2375, 7
      %v2377 = vsub.s32 %v2374, %v2376
      %v2378 = vrot.slane %v2350, %v2377
      %v2379 = vcombine.low %v2357, %v2364
      %v2380 = vcombine.low %v2371, %v2378
      %v2382 = vunpack.c.l.s4 1966171168
      %v2383 = vunpack.c.0.s8 %v2382
      %v2384 = vlaneseq
      %v2385 = vshrl.u32 %v2384, 7
      %v2386 = vsub.s32 %v2383, %v2385
      %v2387 = vrot.slane %v2379, %v2386
      %v2389 = vunpack.c.l.s4 1966171168
      %v2390 = vunpack.c.0.s8 %v2389
      %v2391 = vlaneseq
      %v2392 = vshrl.u32 %v2391, 7
      %v2393 = vsub.s32 %v2390, %v2392
      %v2394 = vrot.slane %v2380, %v2393
      %v2395 = vcombine.low %v2387, %v2394
      %v2396 = vcombine.low %v1753, %v1761
      %v2397 = vcombine.low %v1763, %v1746
      %v2398 = vcombine.low %v1760, %v1762
      %v2399 = vcombine.low %v1787, %v1801
      %v2401 = vunpack.c.l.s4 1966171168
      %v2402 = vunpack.c.0.s8 %v2401
      %v2403 = vlaneseq
      %v2404 = vshrl.u32 %v2403, 7
      %v2405 = vsub.s32 %v2402, %v2404
      %v2406 = vrot.slane %v2396, %v2405
      %v2408 = vunpack.c.l.s4 1966171168
      %v2409 = vunpack.c.0.s8 %v2408
      %v2410 = vlaneseq
      %v2411 = vshrl.u32 %v2410, 7
      %v2412 = vsub.s32 %v2409, %v2411
      %v2413 = vrot.slane %v2397, %v2412
      %v2415 = vunpack.c.l.s4 1966171168
      %v2416 = vunpack.c.0.s8 %v2415
      %v2417 = vlaneseq
      %v2418 = vshrl.u32 %v2417, 7
      %v2419 = vsub.s32 %v2416, %v2418
      %v2420 = vrot.slane %v2398, %v2419
      %v2422 = vunpack.c.l.s4 1966171168
      %v2423 = vunpack.c.0.s8 %v2422
      %v2424 = vlaneseq
      %v2425 = vshrl.u32 %v2424, 7
      %v2426 = vsub.s32 %v2423, %v2425
      %v2427 = vrot.slane %v2399, %v2426
      %v2428 = vcombine.low %v2406, %v2413
      %v2429 = vcombine.low %v2420, %v2427
      %v2431 = vunpack.c.l.s4 1966171168
      %v2432 = vunpack.c.0.s8 %v2431
      %v2433 = vlaneseq
      %v2434 = vshrl.u32 %v2433, 7
      %v2435 = vsub.s32 %v2432, %v2434
      %v2436 = vrot.slane %v2428, %v2435
      %v2438 = vunpack.c.l.s4 1966171168
      %v2439 = vunpack.c.0.s8 %v2438
      %v2440 = vlaneseq
      %v2441 = vshrl.u32 %v2440, 7
      %v2442 = vsub.s32 %v2439, %v2441
      %v2443 = vrot.slane %v2429, %v2442
      %v2444 = vcombine.low %v2436, %v2443
      %v2445 = vcombine.low %v1809, %v1811
      %v2446 = vcombine.low %v1794, %v1808
      %v2447 = vcombine.low %v1810, %v1835
      %v2448 = vcombine.low %v1849, %v1857
      %v2450 = vunpack.c.l.s4 1966171168
      %v2451 = vunpack.c.0.s8 %v2450
      %v2452 = vlaneseq
      %v2453 = vshrl.u32 %v2452, 7
      %v2454 = vsub.s32 %v2451, %v2453
      %v2455 = vrot.slane %v2445, %v2454
      %v2457 = vunpack.c.l.s4 1966171168
      %v2458 = vunpack.c.0.s8 %v2457
      %v2459 = vlaneseq
      %v2460 = vshrl.u32 %v2459, 7
      %v2461 = vsub.s32 %v2458, %v2460
      %v2462 = vrot.slane %v2446, %v2461
      %v2464 = vunpack.c.l.s4 1966171168
      %v2465 = vunpack.c.0.s8 %v2464
      %v2466 = vlaneseq
      %v2467 = vshrl.u32 %v2466, 7
      %v2468 = vsub.s32 %v2465, %v2467
      %v2469 = vrot.slane %v2447, %v2468
      %v2471 = vunpack.c.l.s4 1966171168
      %v2472 = vunpack.c.0.s8 %v2471
      %v2473 = vlaneseq
      %v2474 = vshrl.u32 %v2473, 7
      %v2475 = vsub.s32 %v2472, %v2474
      %v2476 = vrot.slane %v2448, %v2475
      %v2477 = vcombine.low %v2455, %v2462
      %v2478 = vcombine.low %v2469, %v2476
      %v2480 = vunpack.c.l.s4 1966171168
      %v2481 = vunpack.c.0.s8 %v2480
      %v2482 = vlaneseq
      %v2483 = vshrl.u32 %v2482, 7
      %v2484 = vsub.s32 %v2481, %v2483
      %v2485 = vrot.slane %v2477, %v2484
      %v2487 = vunpack.c.l.s4 1966171168
      %v2488 = vunpack.c.0.s8 %v2487
      %v2489 = vlaneseq
      %v2490 = vshrl.u32 %v2489, 7
      %v2491 = vsub.s32 %v2488, %v2490
      %v2492 = vrot.slane %v2478, %v2491
      %v2493 = vcombine.low %v2485, %v2492
      %v2494 = vcombine.low %v1859, %v1842
      %v2495 = vcombine.low %v1856, %v1858
      %v2496 = vcombine.low %v1883, %v1897
      %v2497 = vcombine.low %v1905, %v1907
      %v2499 = vunpack.c.l.s4 1966171168
      %v2500 = vunpack.c.0.s8 %v2499
      %v2501 = vlaneseq
      %v2502 = vshrl.u32 %v2501, 7
      %v2503 = vsub.s32 %v2500, %v2502
      %v2504 = vrot.slane %v2494, %v2503
      %v2506 = vunpack.c.l.s4 1966171168
      %v2507 = vunpack.c.0.s8 %v2506
      %v2508 = vlaneseq
      %v2509 = vshrl.u32 %v2508, 7
      %v2510 = vsub.s32 %v2507, %v2509
      %v2511 = vrot.slane %v2495, %v2510
      %v2513 = vunpack.c.l.s4 1966171168
      %v2514 = vunpack.c.0.s8 %v2513
      %v2515 = vlaneseq
      %v2516 = vshrl.u32 %v2515, 7
      %v2517 = vsub.s32 %v2514, %v2516
      %v2518 = vrot.slane %v2496, %v2517
      %v2520 = vunpack.c.l.s4 1966171168
      %v2521 = vunpack.c.0.s8 %v2520
      %v2522 = vlaneseq
      %v2523 = vshrl.u32 %v2522, 7
      %v2524 = vsub.s32 %v2521, %v2523
      %v2525 = vrot.slane %v2497, %v2524
      %v2526 = vcombine.low %v2504, %v2511
      %v2527 = vcombine.low %v2518, %v2525
      %v2529 = vunpack.c.l.s4 1966171168
      %v2530 = vunpack.c.0.s8 %v2529
      %v2531 = vlaneseq
      %v2532 = vshrl.u32 %v2531, 7
      %v2533 = vsub.s32 %v2530, %v2532
      %v2534 = vrot.slane %v2526, %v2533
      %v2536 = vunpack.c.l.s4 1966171168
      %v2537 = vunpack.c.0.s8 %v2536
      %v2538 = vlaneseq
      %v2539 = vshrl.u32 %v2538, 7
      %v2540 = vsub.s32 %v2537, %v2539
      %v2541 = vrot.slane %v2527, %v2540
      %v2542 = vcombine.low %v2534, %v2541
      %v2543 = vcombine.low %v1890, %v1904
      %v2544 = vcombine.low %v1906, %v1931
      %v2545 = vcombine.low %v1945, %v1953
      %v2546 = vcombine.low %v1955, %v1938
      %v2548 = vunpack.c.l.s4 1966171168
      %v2549 = vunpack.c.0.s8 %v2548
      %v2550 = vlaneseq
      %v2551 = vshrl.u32 %v2550, 7
      %v2552 = vsub.s32 %v2549, %v2551
      %v2553 = vrot.slane %v2543, %v2552
      %v2555 = vunpack.c.l.s4 1966171168
      %v2556 = vunpack.c.0.s8 %v2555
      %v2557 = vlaneseq
      %v2558 = vshrl.u32 %v2557, 7
      %v2559 = vsub.s32 %v2556, %v2558
      %v2560 = vrot.slane %v2544, %v2559
      %v2562 = vunpack.c.l.s4 1966171168
      %v2563 = vunpack.c.0.s8 %v2562
      %v2564 = vlaneseq
      %v2565 = vshrl.u32 %v2564, 7
      %v2566 = vsub.s32 %v2563, %v2565
      %v2567 = vrot.slane %v2545, %v2566
      %v2569 = vunpack.c.l.s4 1966171168
      %v2570 = vunpack.c.0.s8 %v2569
      %v2571 = vlaneseq
      %v2572 = vshrl.u32 %v2571, 7
      %v2573 = vsub.s32 %v2570, %v2572
      %v2574 = vrot.slane %v2546, %v2573
      %v2575 = vcombine.low %v2553, %v2560
      %v2576 = vcombine.low %v2567, %v2574
      %v2578 = vunpack.c.l.s4 1966171168
      %v2579 = vunpack.c.0.s8 %v2578
      %v2580 = vlaneseq
      %v2581 = vshrl.u32 %v2580, 7
      %v2582 = vsub.s32 %v2579, %v2581
      %v2583 = vrot.slane %v2575, %v2582
      %v2585 = vunpack.c.l.s4 1966171168
      %v2586 = vunpack.c.0.s8 %v2585
      %v2587 = vlaneseq
      %v2588 = vshrl.u32 %v2587, 7
      %v2589 = vsub.s32 %v2586, %v2588
      %v2590 = vrot.slane %v2576, %v2589
      %v2591 = vcombine.low %v2583, %v2590
      %v2592 = vcombine.low %v1952, %v1954
      %v2593 = vcombine.low %v1979, %v1993
      %v2594 = vcombine.low %v2001, %v2003
      %v2595 = vcombine.low %v1986, %v2000
      %v2597 = vunpack.c.l.s4 1966171168
      %v2598 = vunpack.c.0.s8 %v2597
      %v2599 = vlaneseq
      %v2600 = vshrl.u32 %v2599, 7
      %v2601 = vsub.s32 %v2598, %v2600
      %v2602 = vrot.slane %v2592, %v2601
      %v2604 = vunpack.c.l.s4 1966171168
      %v2605 = vunpack.c.0.s8 %v2604
      %v2606 = vlaneseq
      %v2607 = vshrl.u32 %v2606, 7
      %v2608 = vsub.s32 %v2605, %v2607
      %v2609 = vrot.slane %v2593, %v2608
      %v2611 = vunpack.c.l.s4 1966171168
      %v2612 = vunpack.c.0.s8 %v2611
      %v2613 = vlaneseq
      %v2614 = vshrl.u32 %v2613, 7
      %v2615 = vsub.s32 %v2612, %v2614
      %v2616 = vrot.slane %v2594, %v2615
      %v2618 = vunpack.c.l.s4 1966171168
      %v2619 = vunpack.c.0.s8 %v2618
      %v2620 = vlaneseq
      %v2621 = vshrl.u32 %v2620, 7
      %v2622 = vsub.s32 %v2619, %v2621
      %v2623 = vrot.slane %v2595, %v2622
      %v2624 = vcombine.low %v2602, %v2609
      %v2625 = vcombine.low %v2616, %v2623
      %v2627 = vunpack.c.l.s4 1966171168
      %v2628 = vunpack.c.0.s8 %v2627
      %v2629 = vlaneseq
      %v2630 = vshrl.u32 %v2629, 7
      %v2631 = vsub.s32 %v2628, %v2630
      %v2632 = vrot.slane %v2624, %v2631
      %v2634 = vunpack.c.l.s4 1966171168
      %v2635 = vunpack.c.0.s8 %v2634
      %v2636 = vlaneseq
      %v2637 = vshrl.u32 %v2636, 7
      %v2638 = vsub.s32 %v2635, %v2637
      %v2639 = vrot.slane %v2625, %v2638
      %v2640 = vcombine.low %v2632, %v2639
      %v2642 = vunpack.c.l.s4 1966171168
      %v2643 = vunpack.c.0.s8 %v2642
      %v2644 = vlaneseq
      %v2645 = vshrl.u32 %v2644, 7
      %v2646 = vsub.s32 %v2643, %v2645
      %v2647 = vrot.slane %v2002, %v2646
      %v2649 = vunpack.c.l.s4 1966171168
      %v2650 = vunpack.c.0.s8 %v2649
      %v2651 = vlaneseq
      %v2652 = vshrl.u32 %v2651, 7
      %v2653 = vsub.s32 %v2650, %v2652
      %v2654 = vrot.slane %v2647, %v2653
      %vm2655 = vcmask 195584
      %v2656 = vsel %vm2655, %v2052, 0
      %v2658 = vsel %vm2655, %v2101, 0
      %v2660 = vsel %vm2655, %v2150, 0
      %v2662 = vsel %vm2655, %v2199, 0
      %v2664 = vsel %vm2655, %v2248, 0
      %v2666 = vsel %vm2655, %v2297, 0
      %v2668 = vsel %vm2655, %v2346, 0
      %v2670 = vsel %vm2655, %v2395, 0
      %v2672 = vsel %vm2655, %v2444, 0
      %v2674 = vsel %vm2655, %v2493, 0
      %v2676 = vsel %vm2655, %v2542, 0
      %v2678 = vsel %vm2655, %v2591, 0
      %v2680 = vsel %vm2655, %v2640, 0
      %v2682 = vsel %vm2655, %v2654, 0
      %2684 = vmatprep.subr.mxu0 0.0
      %2685 = vmatpush1.msra.mxu0 %v1266
      %2686 = vmatprep.subr.mxu0 0.0
      %2687 = vmatpush1.msra.mxu0 %v1267
      %2688 = vmatprep.subr.mxu0 0.0
      %2689 = vmatpush1.msra.mxu0 %v1268
      %2690 = vmatprep.subr.mxu0 0.0
      %2691 = vmatpush1.msra.mxu0 0.0
      %2692 = vmatprep.subr.mxu0 0.0
      %2693 = vmatpush1.msra.mxu0 0.0
      %2694 = vmatprep.subr.mxu0 0.0
      %2695 = vmatpush1.msra.mxu0 0.0
      %2696 = vmatprep.subr.mxu0 0.0
      %2697 = vmatpush1.msra.mxu0 0.0
      %2698 = vmatprep.subr.mxu0 0.0
      %2699 = vmatpush1.msra.mxu0 0.0
      %2700 = vmatprep.subr.mxu0 0.0
      %2701 = vmatpush1.msra.mxu0 0.0
      %2702 = vmatprep.subr.mxu0 0.0
      %2703 = vmatpush1.msra.mxu0 0.0
      %2704 = vmatprep.subr.mxu0 0.0
      %2705 = vmatpush1.msra.mxu0 0.0
      %2706 = vmatprep.subr.mxu0 0.0
      %2707 = vmatpush1.msra.mxu0 0.0
      %2708 = vmatprep.subr.mxu0 0.0
      %2709 = vmatpush1.msra.mxu0 0.0
      %2710 = vmatprep.subr.mxu0 0.0
      %2711 = vmatpush1.msra.mxu0 0.0
      %2712 = vmatprep.subr.mxu0 0.0
      %2713 = vmatpush1.msra.mxu0 0.0
      %2714 = vmatprep.subr.mxu0 0.0
      %2715 = vmatpush1.msra.mxu0 0.0
      %2716 = vmatprep.subr.mxu0 0.0
      %2717 = vmatpush1.msra.mxu0 0.0
      %2718 = vmatprep.subr.mxu0 0.0
      %2719 = vmatpush1.msra.mxu0 0.0
      %2720 = vmatprep.subr.mxu0 0.0
      %2721 = vmatpush1.msra.mxu0 0.0
      %2722 = vmatprep.subr.mxu0 0.0
      %2723 = vmatpush1.msra.mxu0 0.0
      %2724 = vmatprep.subr.mxu0 0.0
      %2725 = vmatpush1.msra.mxu0 0.0
      %2726 = vmatprep.subr.mxu0 0.0
      %2727 = vmatpush1.msra.mxu0 0.0
      %2728 = vmatprep.subr.mxu0 0.0
      %2729 = vmatpush1.msra.mxu0 0.0
      %2730 = vmatprep.subr.mxu0 0.0
      %2731 = vmatpush1.msra.mxu0 0.0
      %2732 = vmatprep.subr.mxu0 0.0
      %2733 = vmatpush1.msra.mxu0 0.0
      %2734 = vmatprep.subr.mxu0 0.0
      %2735 = vmatpush1.msra.mxu0 0.0
      %2736 = vmatprep.subr.mxu0 0.0
      %2737 = vmatpush1.msra.mxu0 0.0
      %2738 = vmatprep.subr.mxu0 0.0
      %2739 = vmatpush1.msra.mxu0 0.0
      %2740 = vmatprep.subr.mxu0 0.0
      %2741 = vmatpush1.msra.mxu0 0.0
      %2742 = vmatprep.subr.mxu0 0.0
      %2743 = vmatpush1.msra.mxu0 0.0
      %2744 = vmatprep.subr.mxu0 0.0
      %2745 = vmatpush1.msra.mxu0 0.0
      %2746 = vmatprep.subr.mxu0 0.0
      %2747 = vmatpush1.msra.mxu0 0.0
      %2748 = vmatprep.mubr.f32.mxu0 0.0
      %2749 = vmatmul.mubr.f32.gmra.mrb[0].mxu0 %v2656
      %v2750 = vpop.f32.mrb[0].mxu0
      %v2751 = vadd.f32 0.0, %v2750
      %v2752 = vpop.f32.mrb[0].mxu0
      %2753 = vmatprep.mubr.f32.mxu0 0.0
      %2754 = vmatmul.mubr.f32.gmra.mrb[0].mxu0 %v2658
      %v2755 = vpop.f32.mrb[0].mxu0
      %v2756 = vadd.f32 0.0, %v2755
      %v2757 = vpop.f32.mrb[0].mxu0
      %2758 = vmatprep.mubr.f32.mxu0 0.0
      %2759 = vmatmul.mubr.f32.gmra.mrb[0].mxu0 %v2660
      %v2760 = vpop.f32.mrb[0].mxu0
      %v2761 = vadd.f32 0.0, %v2760
      %v2762 = vpop.f32.mrb[0].mxu0
      %2763 = vmatprep.mubr.f32.mxu0 0.0
      %2764 = vmatmul.mubr.f32.gmra.mrb[0].mxu0 %v2662
      %v2765 = vpop.f32.mrb[0].mxu0
      %v2766 = vadd.f32 0.0, %v2765
      %v2767 = vpop.f32.mrb[0].mxu0
      %2768 = vmatprep.mubr.f32.mxu0 0.0
      %2769 = vmatmul.mubr.f32.gmra.mrb[0].mxu0 %v2664
      %v2770 = vpop.f32.mrb[0].mxu0
      %v2771 = vadd.f32 0.0, %v2770
      %v2772 = vpop.f32.mrb[0].mxu0
      %2773 = vmatprep.mubr.f32.mxu0 0.0
      %2774 = vmatmul.mubr.f32.gmra.mrb[0].mxu0 %v2666
      %v2775 = vpop.f32.mrb[0].mxu0
      %v2776 = vadd.f32 0.0, %v2775
      %v2777 = vpop.f32.mrb[0].mxu0
      %2778 = vmatprep.mubr.f32.mxu0 0.0
      %2779 = vmatmul.mubr.f32.gmra.mrb[0].mxu0 %v2668
      %v2780 = vpop.f32.mrb[0].mxu0
      %v2781 = vadd.f32 0.0, %v2780
      %v2782 = vpop.f32.mrb[0].mxu0
      %2783 = vmatprep.mubr.f32.mxu0 0.0
      %2784 = vmatmul.mubr.f32.gmra.mrb[0].mxu0 %v2670
      %v2785 = vpop.f32.mrb[0].mxu0
      %v2786 = vadd.f32 0.0, %v2785
      %v2787 = vpop.f32.mrb[0].mxu0
      %2788 = vmatprep.mubr.f32.mxu0 0.0
      %2789 = vmatmul.mubr.f32.gmra.mrb[0].mxu0 %v2672
      %v2790 = vpop.f32.mrb[0].mxu0
      %v2791 = vadd.f32 0.0, %v2790
      %v2792 = vpop.f32.mrb[0].mxu0
      %2793 = vmatprep.mubr.f32.mxu0 0.0
      %2794 = vmatmul.mubr.f32.gmra.mrb[0].mxu0 %v2674
      %v2795 = vpop.f32.mrb[0].mxu0
      %v2796 = vadd.f32 0.0, %v2795
      %v2797 = vpop.f32.mrb[0].mxu0
      %2798 = vmatprep.mubr.f32.mxu0 0.0
      %2799 = vmatmul.mubr.f32.gmra.mrb[0].mxu0 %v2676
      %v2800 = vpop.f32.mrb[0].mxu0
      %v2801 = vadd.f32 0.0, %v2800
      %v2802 = vpop.f32.mrb[0].mxu0
      %2803 = vmatprep.mubr.f32.mxu0 0.0
      %2804 = vmatmul.mubr.f32.gmra.mrb[0].mxu0 %v2678
      %v2805 = vpop.f32.mrb[0].mxu0
      %v2806 = vadd.f32 0.0, %v2805
      %v2807 = vpop.f32.mrb[0].mxu0
      %2808 = vmatprep.mubr.f32.mxu0 0.0
      %2809 = vmatmul.mubr.f32.gmra.mrb[0].mxu0 %v2680
      %v2810 = vpop.f32.mrb[0].mxu0
      %v2811 = vadd.f32 0.0, %v2810
      %v2812 = vpop.f32.mrb[0].mxu0
      %2813 = vmatprep.mubr.f32.mxu0 0.0
      %2814 = vmatmul.mubr.f32.gmra.mrb[0].mxu0 %v2682
      %v2815 = vpop.f32.mrb[0].mxu0
      %v2816 = vadd.f32 0.0, %v2815
      %v2817 = vpop.f32.mrb[0].mxu0
      %2818 = vdwg.mxu0
      %v2833 = vcombine.high %v2751, %v2751
      %v2835 = vunpack.c.l.s4 1966171168
      %v2836 = vunpack.c.0.s8 %v2835
      %v2837 = vlaneseq
      %v2838 = vshrl.u32 %v2837, 7
      %v2839 = vsub.s32 %v2836, %v2838
      %v2840 = vrot.slane %v2751, %v2839
      %v2842 = vunpack.c.l.s4 1966171168
      %v2843 = vunpack.c.0.s8 %v2842
      %v2844 = vlaneseq
      %v2845 = vshrl.u32 %v2844, 7
      %v2846 = vsub.s32 %v2843, %v2845
      %v2847 = vrot.slane %v2833, %v2846
      %v2848 = vcombine.high %v2840, %v2840
      %v2849 = vcombine.high %v2847, %v2847
      %v2851 = vunpack.c.l.s4 1966171168
      %v2852 = vunpack.c.0.s8 %v2851
      %v2853 = vlaneseq
      %v2854 = vshrl.u32 %v2853, 7
      %v2855 = vsub.s32 %v2852, %v2854
      %v2856 = vrot.slane %v2840, %v2855
      %v2858 = vunpack.c.l.s4 1966171168
      %v2859 = vunpack.c.0.s8 %v2858
      %v2860 = vlaneseq
      %v2861 = vshrl.u32 %v2860, 7
      %v2862 = vsub.s32 %v2859, %v2861
      %v2863 = vrot.slane %v2847, %v2862
      %v2865 = vunpack.c.l.s4 1966171168
      %v2866 = vunpack.c.0.s8 %v2865
      %v2867 = vlaneseq
      %v2868 = vshrl.u32 %v2867, 7
      %v2869 = vsub.s32 %v2866, %v2868
      %v2870 = vrot.slane %v2848, %v2869
      %v2872 = vunpack.c.l.s4 1966171168
      %v2873 = vunpack.c.0.s8 %v2872
      %v2874 = vlaneseq
      %v2875 = vshrl.u32 %v2874, 7
      %v2876 = vsub.s32 %v2873, %v2875
      %v2877 = vrot.slane %v2849, %v2876
      %v2878 = vcombine.high %v2856, %v2856
      %v2879 = vcombine.high %v2863, %v2863
      %v2880 = vcombine.high %v2870, %v2870
      %v2881 = vcombine.high %v2877, %v2877
      %v2882 = vcombine.high %v2756, %v2756
      %v2884 = vunpack.c.l.s4 1966171168
      %v2885 = vunpack.c.0.s8 %v2884
      %v2886 = vlaneseq
      %v2887 = vshrl.u32 %v2886, 7
      %v2888 = vsub.s32 %v2885, %v2887
      %v2889 = vrot.slane %v2756, %v2888
      %v2891 = vunpack.c.l.s4 1966171168
      %v2892 = vunpack.c.0.s8 %v2891
      %v2893 = vlaneseq
      %v2894 = vshrl.u32 %v2893, 7
      %v2895 = vsub.s32 %v2892, %v2894
      %v2896 = vrot.slane %v2882, %v2895
      %v2897 = vcombine.high %v2889, %v2889
      %v2898 = vcombine.high %v2896, %v2896
      %v2900 = vunpack.c.l.s4 1966171168
      %v2901 = vunpack.c.0.s8 %v2900
      %v2902 = vlaneseq
      %v2903 = vshrl.u32 %v2902, 7
      %v2904 = vsub.s32 %v2901, %v2903
      %v2905 = vrot.slane %v2889, %v2904
      %v2907 = vunpack.c.l.s4 1966171168
      %v2908 = vunpack.c.0.s8 %v2907
      %v2909 = vlaneseq
      %v2910 = vshrl.u32 %v2909, 7
      %v2911 = vsub.s32 %v2908, %v2910
      %v2912 = vrot.slane %v2896, %v2911
      %v2914 = vunpack.c.l.s4 1966171168
      %v2915 = vunpack.c.0.s8 %v2914
      %v2916 = vlaneseq
      %v2917 = vshrl.u32 %v2916, 7
      %v2918 = vsub.s32 %v2915, %v2917
      %v2919 = vrot.slane %v2897, %v2918
      %v2921 = vunpack.c.l.s4 1966171168
      %v2922 = vunpack.c.0.s8 %v2921
      %v2923 = vlaneseq
      %v2924 = vshrl.u32 %v2923, 7
      %v2925 = vsub.s32 %v2922, %v2924
      %v2926 = vrot.slane %v2898, %v2925
      %v2927 = vcombine.high %v2905, %v2905
      %v2928 = vcombine.high %v2912, %v2912
      %v2929 = vcombine.high %v2919, %v2919
      %v2930 = vcombine.high %v2926, %v2926
      %v2931 = vcombine.high %v2761, %v2761
      %v2933 = vunpack.c.l.s4 1966171168
      %v2934 = vunpack.c.0.s8 %v2933
      %v2935 = vlaneseq
      %v2936 = vshrl.u32 %v2935, 7
      %v2937 = vsub.s32 %v2934, %v2936
      %v2938 = vrot.slane %v2761, %v2937
      %v2940 = vunpack.c.l.s4 1966171168
      %v2941 = vunpack.c.0.s8 %v2940
      %v2942 = vlaneseq
      %v2943 = vshrl.u32 %v2942, 7
      %v2944 = vsub.s32 %v2941, %v2943
      %v2945 = vrot.slane %v2931, %v2944
      %v2946 = vcombine.high %v2938, %v2938
      %v2947 = vcombine.high %v2945, %v2945
      %v2949 = vunpack.c.l.s4 1966171168
      %v2950 = vunpack.c.0.s8 %v2949
      %v2951 = vlaneseq
      %v2952 = vshrl.u32 %v2951, 7
      %v2953 = vsub.s32 %v2950, %v2952
      %v2954 = vrot.slane %v2938, %v2953
      %v2956 = vunpack.c.l.s4 1966171168
      %v2957 = vunpack.c.0.s8 %v2956
      %v2958 = vlaneseq
      %v2959 = vshrl.u32 %v2958, 7
      %v2960 = vsub.s32 %v2957, %v2959
      %v2961 = vrot.slane %v2945, %v2960
      %v2963 = vunpack.c.l.s4 1966171168
      %v2964 = vunpack.c.0.s8 %v2963
      %v2965 = vlaneseq
      %v2966 = vshrl.u32 %v2965, 7
      %v2967 = vsub.s32 %v2964, %v2966
      %v2968 = vrot.slane %v2946, %v2967
      %v2970 = vunpack.c.l.s4 1966171168
      %v2971 = vunpack.c.0.s8 %v2970
      %v2972 = vlaneseq
      %v2973 = vshrl.u32 %v2972, 7
      %v2974 = vsub.s32 %v2971, %v2973
      %v2975 = vrot.slane %v2947, %v2974
      %v2976 = vcombine.high %v2954, %v2954
      %v2977 = vcombine.high %v2961, %v2961
      %v2978 = vcombine.high %v2968, %v2968
      %v2979 = vcombine.high %v2975, %v2975
      %v2980 = vcombine.high %v2766, %v2766
      %v2982 = vunpack.c.l.s4 1966171168
      %v2983 = vunpack.c.0.s8 %v2982
      %v2984 = vlaneseq
      %v2985 = vshrl.u32 %v2984, 7
      %v2986 = vsub.s32 %v2983, %v2985
      %v2987 = vrot.slane %v2766, %v2986
      %v2989 = vunpack.c.l.s4 1966171168
      %v2990 = vunpack.c.0.s8 %v2989
      %v2991 = vlaneseq
      %v2992 = vshrl.u32 %v2991, 7
      %v2993 = vsub.s32 %v2990, %v2992
      %v2994 = vrot.slane %v2980, %v2993
      %v2995 = vcombine.high %v2987, %v2987
      %v2996 = vcombine.high %v2994, %v2994
      %v2998 = vunpack.c.l.s4 1966171168
      %v2999 = vunpack.c.0.s8 %v2998
      %v3000 = vlaneseq
      %v3001 = vshrl.u32 %v3000, 7
      %v3002 = vsub.s32 %v2999, %v3001
      %v3003 = vrot.slane %v2987, %v3002
      %v3005 = vunpack.c.l.s4 1966171168
      %v3006 = vunpack.c.0.s8 %v3005
      %v3007 = vlaneseq
      %v3008 = vshrl.u32 %v3007, 7
      %v3009 = vsub.s32 %v3006, %v3008
      %v3010 = vrot.slane %v2994, %v3009
      %v3012 = vunpack.c.l.s4 1966171168
      %v3013 = vunpack.c.0.s8 %v3012
      %v3014 = vlaneseq
      %v3015 = vshrl.u32 %v3014, 7
      %v3016 = vsub.s32 %v3013, %v3015
      %v3017 = vrot.slane %v2995, %v3016
      %v3019 = vunpack.c.l.s4 1966171168
      %v3020 = vunpack.c.0.s8 %v3019
      %v3021 = vlaneseq
      %v3022 = vshrl.u32 %v3021, 7
      %v3023 = vsub.s32 %v3020, %v3022
      %v3024 = vrot.slane %v2996, %v3023
      %v3025 = vcombine.high %v3003, %v3003
      %v3026 = vcombine.high %v3010, %v3010
      %v3027 = vcombine.high %v3017, %v3017
      %v3028 = vcombine.high %v3024, %v3024
      %v3029 = vcombine.high %v2771, %v2771
      %v3031 = vunpack.c.l.s4 1966171168
      %v3032 = vunpack.c.0.s8 %v3031
      %v3033 = vlaneseq
      %v3034 = vshrl.u32 %v3033, 7
      %v3035 = vsub.s32 %v3032, %v3034
      %v3036 = vrot.slane %v2771, %v3035
      %v3038 = vunpack.c.l.s4 1966171168
      %v3039 = vunpack.c.0.s8 %v3038
      %v3040 = vlaneseq
      %v3041 = vshrl.u32 %v3040, 7
      %v3042 = vsub.s32 %v3039, %v3041
      %v3043 = vrot.slane %v3029, %v3042
      %v3044 = vcombine.high %v3036, %v3036
      %v3045 = vcombine.high %v3043, %v3043
      %v3047 = vunpack.c.l.s4 1966171168
      %v3048 = vunpack.c.0.s8 %v3047
      %v3049 = vlaneseq
      %v3050 = vshrl.u32 %v3049, 7
      %v3051 = vsub.s32 %v3048, %v3050
      %v3052 = vrot.slane %v3036, %v3051
      %v3054 = vunpack.c.l.s4 1966171168
      %v3055 = vunpack.c.0.s8 %v3054
      %v3056 = vlaneseq
      %v3057 = vshrl.u32 %v3056, 7
      %v3058 = vsub.s32 %v3055, %v3057
      %v3059 = vrot.slane %v3043, %v3058
      %v3061 = vunpack.c.l.s4 1966171168
      %v3062 = vunpack.c.0.s8 %v3061
      %v3063 = vlaneseq
      %v3064 = vshrl.u32 %v3063, 7
      %v3065 = vsub.s32 %v3062, %v3064
      %v3066 = vrot.slane %v3044, %v3065
      %v3068 = vunpack.c.l.s4 1966171168
      %v3069 = vunpack.c.0.s8 %v3068
      %v3070 = vlaneseq
      %v3071 = vshrl.u32 %v3070, 7
      %v3072 = vsub.s32 %v3069, %v3071
      %v3073 = vrot.slane %v3045, %v3072
      %v3074 = vcombine.high %v3052, %v3052
      %v3075 = vcombine.high %v3059, %v3059
      %v3076 = vcombine.high %v3066, %v3066
      %v3077 = vcombine.high %v3073, %v3073
      %v3078 = vcombine.high %v2776, %v2776
      %v3080 = vunpack.c.l.s4 1966171168
      %v3081 = vunpack.c.0.s8 %v3080
      %v3082 = vlaneseq
      %v3083 = vshrl.u32 %v3082, 7
      %v3084 = vsub.s32 %v3081, %v3083
      %v3085 = vrot.slane %v2776, %v3084
      %v3087 = vunpack.c.l.s4 1966171168
      %v3088 = vunpack.c.0.s8 %v3087
      %v3089 = vlaneseq
      %v3090 = vshrl.u32 %v3089, 7
      %v3091 = vsub.s32 %v3088, %v3090
      %v3092 = vrot.slane %v3078, %v3091
      %v3093 = vcombine.high %v3085, %v3085
      %v3094 = vcombine.high %v3092, %v3092
      %v3096 = vunpack.c.l.s4 1966171168
      %v3097 = vunpack.c.0.s8 %v3096
      %v3098 = vlaneseq
      %v3099 = vshrl.u32 %v3098, 7
      %v3100 = vsub.s32 %v3097, %v3099
      %v3101 = vrot.slane %v3085, %v3100
      %v3103 = vunpack.c.l.s4 1966171168
      %v3104 = vunpack.c.0.s8 %v3103
      %v3105 = vlaneseq
      %v3106 = vshrl.u32 %v3105, 7
      %v3107 = vsub.s32 %v3104, %v3106
      %v3108 = vrot.slane %v3092, %v3107
      %v3110 = vunpack.c.l.s4 1966171168
      %v3111 = vunpack.c.0.s8 %v3110
      %v3112 = vlaneseq
      %v3113 = vshrl.u32 %v3112, 7
      %v3114 = vsub.s32 %v3111, %v3113
      %v3115 = vrot.slane %v3093, %v3114
      %v3117 = vunpack.c.l.s4 1966171168
      %v3118 = vunpack.c.0.s8 %v3117
      %v3119 = vlaneseq
      %v3120 = vshrl.u32 %v3119, 7
      %v3121 = vsub.s32 %v3118, %v3120
      %v3122 = vrot.slane %v3094, %v3121
      %v3123 = vcombine.high %v3101, %v3101
      %v3124 = vcombine.high %v3108, %v3108
      %v3125 = vcombine.high %v3115, %v3115
      %v3126 = vcombine.high %v3122, %v3122
      %v3127 = vcombine.high %v2781, %v2781
      %v3129 = vunpack.c.l.s4 1966171168
      %v3130 = vunpack.c.0.s8 %v3129
      %v3131 = vlaneseq
      %v3132 = vshrl.u32 %v3131, 7
      %v3133 = vsub.s32 %v3130, %v3132
      %v3134 = vrot.slane %v2781, %v3133
      %v3136 = vunpack.c.l.s4 1966171168
      %v3137 = vunpack.c.0.s8 %v3136
      %v3138 = vlaneseq
      %v3139 = vshrl.u32 %v3138, 7
      %v3140 = vsub.s32 %v3137, %v3139
      %v3141 = vrot.slane %v3127, %v3140
      %v3142 = vcombine.high %v3134, %v3134
      %v3143 = vcombine.high %v3141, %v3141
      %v3145 = vunpack.c.l.s4 1966171168
      %v3146 = vunpack.c.0.s8 %v3145
      %v3147 = vlaneseq
      %v3148 = vshrl.u32 %v3147, 7
      %v3149 = vsub.s32 %v3146, %v3148
      %v3150 = vrot.slane %v3134, %v3149
      %v3152 = vunpack.c.l.s4 1966171168
      %v3153 = vunpack.c.0.s8 %v3152
      %v3154 = vlaneseq
      %v3155 = vshrl.u32 %v3154, 7
      %v3156 = vsub.s32 %v3153, %v3155
      %v3157 = vrot.slane %v3141, %v3156
      %v3159 = vunpack.c.l.s4 1966171168
      %v3160 = vunpack.c.0.s8 %v3159
      %v3161 = vlaneseq
      %v3162 = vshrl.u32 %v3161, 7
      %v3163 = vsub.s32 %v3160, %v3162
      %v3164 = vrot.slane %v3142, %v3163
      %v3166 = vunpack.c.l.s4 1966171168
      %v3167 = vunpack.c.0.s8 %v3166
      %v3168 = vlaneseq
      %v3169 = vshrl.u32 %v3168, 7
      %v3170 = vsub.s32 %v3167, %v3169
      %v3171 = vrot.slane %v3143, %v3170
      %v3172 = vcombine.high %v3150, %v3150
      %v3173 = vcombine.high %v3157, %v3157
      %v3174 = vcombine.high %v3164, %v3164
      %v3175 = vcombine.high %v3171, %v3171
      %v3176 = vcombine.high %v2786, %v2786
      %v3178 = vunpack.c.l.s4 1966171168
      %v3179 = vunpack.c.0.s8 %v3178
      %v3180 = vlaneseq
      %v3181 = vshrl.u32 %v3180, 7
      %v3182 = vsub.s32 %v3179, %v3181
      %v3183 = vrot.slane %v2786, %v3182
      %v3185 = vunpack.c.l.s4 1966171168
      %v3186 = vunpack.c.0.s8 %v3185
      %v3187 = vlaneseq
      %v3188 = vshrl.u32 %v3187, 7
      %v3189 = vsub.s32 %v3186, %v3188
      %v3190 = vrot.slane %v3176, %v3189
      %v3191 = vcombine.high %v3183, %v3183
      %v3192 = vcombine.high %v3190, %v3190
      %v3194 = vunpack.c.l.s4 1966171168
      %v3195 = vunpack.c.0.s8 %v3194
      %v3196 = vlaneseq
      %v3197 = vshrl.u32 %v3196, 7
      %v3198 = vsub.s32 %v3195, %v3197
      %v3199 = vrot.slane %v3183, %v3198
      %v3201 = vunpack.c.l.s4 1966171168
      %v3202 = vunpack.c.0.s8 %v3201
      %v3203 = vlaneseq
      %v3204 = vshrl.u32 %v3203, 7
      %v3205 = vsub.s32 %v3202, %v3204
      %v3206 = vrot.slane %v3190, %v3205
      %v3208 = vunpack.c.l.s4 1966171168
      %v3209 = vunpack.c.0.s8 %v3208
      %v3210 = vlaneseq
      %v3211 = vshrl.u32 %v3210, 7
      %v3212 = vsub.s32 %v3209, %v3211
      %v3213 = vrot.slane %v3191, %v3212
      %v3215 = vunpack.c.l.s4 1966171168
      %v3216 = vunpack.c.0.s8 %v3215
      %v3217 = vlaneseq
      %v3218 = vshrl.u32 %v3217, 7
      %v3219 = vsub.s32 %v3216, %v3218
      %v3220 = vrot.slane %v3192, %v3219
      %v3221 = vcombine.high %v3199, %v3199
      %v3222 = vcombine.high %v3206, %v3206
      %v3223 = vcombine.high %v3213, %v3213
      %v3224 = vcombine.high %v3220, %v3220
      %v3225 = vcombine.high %v2791, %v2791
      %v3227 = vunpack.c.l.s4 1966171168
      %v3228 = vunpack.c.0.s8 %v3227
      %v3229 = vlaneseq
      %v3230 = vshrl.u32 %v3229, 7
      %v3231 = vsub.s32 %v3228, %v3230
      %v3232 = vrot.slane %v2791, %v3231
      %v3234 = vunpack.c.l.s4 1966171168
      %v3235 = vunpack.c.0.s8 %v3234
      %v3236 = vlaneseq
      %v3237 = vshrl.u32 %v3236, 7
      %v3238 = vsub.s32 %v3235, %v3237
      %v3239 = vrot.slane %v3225, %v3238
      %v3240 = vcombine.high %v3232, %v3232
      %v3241 = vcombine.high %v3239, %v3239
      %v3243 = vunpack.c.l.s4 1966171168
      %v3244 = vunpack.c.0.s8 %v3243
      %v3245 = vlaneseq
      %v3246 = vshrl.u32 %v3245, 7
      %v3247 = vsub.s32 %v3244, %v3246
      %v3248 = vrot.slane %v3232, %v3247
      %v3250 = vunpack.c.l.s4 1966171168
      %v3251 = vunpack.c.0.s8 %v3250
      %v3252 = vlaneseq
      %v3253 = vshrl.u32 %v3252, 7
      %v3254 = vsub.s32 %v3251, %v3253
      %v3255 = vrot.slane %v3239, %v3254
      %v3257 = vunpack.c.l.s4 1966171168
      %v3258 = vunpack.c.0.s8 %v3257
      %v3259 = vlaneseq
      %v3260 = vshrl.u32 %v3259, 7
      %v3261 = vsub.s32 %v3258, %v3260
      %v3262 = vrot.slane %v3240, %v3261
      %v3264 = vunpack.c.l.s4 1966171168
      %v3265 = vunpack.c.0.s8 %v3264
      %v3266 = vlaneseq
      %v3267 = vshrl.u32 %v3266, 7
      %v3268 = vsub.s32 %v3265, %v3267
      %v3269 = vrot.slane %v3241, %v3268
      %v3270 = vcombine.high %v3248, %v3248
      %v3271 = vcombine.high %v3255, %v3255
      %v3272 = vcombine.high %v3262, %v3262
      %v3273 = vcombine.high %v3269, %v3269
      %v3274 = vcombine.high %v2796, %v2796
      %v3276 = vunpack.c.l.s4 1966171168
      %v3277 = vunpack.c.0.s8 %v3276
      %v3278 = vlaneseq
      %v3279 = vshrl.u32 %v3278, 7
      %v3280 = vsub.s32 %v3277, %v3279
      %v3281 = vrot.slane %v2796, %v3280
      %v3283 = vunpack.c.l.s4 1966171168
      %v3284 = vunpack.c.0.s8 %v3283
      %v3285 = vlaneseq
      %v3286 = vshrl.u32 %v3285, 7
      %v3287 = vsub.s32 %v3284, %v3286
      %v3288 = vrot.slane %v3274, %v3287
      %v3289 = vcombine.high %v3281, %v3281
      %v3290 = vcombine.high %v3288, %v3288
      %v3292 = vunpack.c.l.s4 1966171168
      %v3293 = vunpack.c.0.s8 %v3292
      %v3294 = vlaneseq
      %v3295 = vshrl.u32 %v3294, 7
      %v3296 = vsub.s32 %v3293, %v3295
      %v3297 = vrot.slane %v3281, %v3296
      %v3299 = vunpack.c.l.s4 1966171168
      %v3300 = vunpack.c.0.s8 %v3299
      %v3301 = vlaneseq
      %v3302 = vshrl.u32 %v3301, 7
      %v3303 = vsub.s32 %v3300, %v3302
      %v3304 = vrot.slane %v3288, %v3303
      %v3306 = vunpack.c.l.s4 1966171168
      %v3307 = vunpack.c.0.s8 %v3306
      %v3308 = vlaneseq
      %v3309 = vshrl.u32 %v3308, 7
      %v3310 = vsub.s32 %v3307, %v3309
      %v3311 = vrot.slane %v3289, %v3310
      %v3313 = vunpack.c.l.s4 1966171168
      %v3314 = vunpack.c.0.s8 %v3313
      %v3315 = vlaneseq
      %v3316 = vshrl.u32 %v3315, 7
      %v3317 = vsub.s32 %v3314, %v3316
      %v3318 = vrot.slane %v3290, %v3317
      %v3319 = vcombine.high %v3297, %v3297
      %v3320 = vcombine.high %v3304, %v3304
      %v3321 = vcombine.high %v3311, %v3311
      %v3322 = vcombine.high %v3318, %v3318
      %v3323 = vcombine.high %v2801, %v2801
      %v3325 = vunpack.c.l.s4 1966171168
      %v3326 = vunpack.c.0.s8 %v3325
      %v3327 = vlaneseq
      %v3328 = vshrl.u32 %v3327, 7
      %v3329 = vsub.s32 %v3326, %v3328
      %v3330 = vrot.slane %v2801, %v3329
      %v3332 = vunpack.c.l.s4 1966171168
      %v3333 = vunpack.c.0.s8 %v3332
      %v3334 = vlaneseq
      %v3335 = vshrl.u32 %v3334, 7
      %v3336 = vsub.s32 %v3333, %v3335
      %v3337 = vrot.slane %v3323, %v3336
      %v3338 = vcombine.high %v3330, %v3330
      %v3339 = vcombine.high %v3337, %v3337
      %v3341 = vunpack.c.l.s4 1966171168
      %v3342 = vunpack.c.0.s8 %v3341
      %v3343 = vlaneseq
      %v3344 = vshrl.u32 %v3343, 7
      %v3345 = vsub.s32 %v3342, %v3344
      %v3346 = vrot.slane %v3330, %v3345
      %v3348 = vunpack.c.l.s4 1966171168
      %v3349 = vunpack.c.0.s8 %v3348
      %v3350 = vlaneseq
      %v3351 = vshrl.u32 %v3350, 7
      %v3352 = vsub.s32 %v3349, %v3351
      %v3353 = vrot.slane %v3337, %v3352
      %v3355 = vunpack.c.l.s4 1966171168
      %v3356 = vunpack.c.0.s8 %v3355
      %v3357 = vlaneseq
      %v3358 = vshrl.u32 %v3357, 7
      %v3359 = vsub.s32 %v3356, %v3358
      %v3360 = vrot.slane %v3338, %v3359
      %v3362 = vunpack.c.l.s4 1966171168
      %v3363 = vunpack.c.0.s8 %v3362
      %v3364 = vlaneseq
      %v3365 = vshrl.u32 %v3364, 7
      %v3366 = vsub.s32 %v3363, %v3365
      %v3367 = vrot.slane %v3339, %v3366
      %v3368 = vcombine.high %v3346, %v3346
      %v3369 = vcombine.high %v3353, %v3353
      %v3370 = vcombine.high %v3360, %v3360
      %v3371 = vcombine.high %v3367, %v3367
      %v3372 = vcombine.high %v2806, %v2806
      %v3374 = vunpack.c.l.s4 1966171168
      %v3375 = vunpack.c.0.s8 %v3374
      %v3376 = vlaneseq
      %v3377 = vshrl.u32 %v3376, 7
      %v3378 = vsub.s32 %v3375, %v3377
      %v3379 = vrot.slane %v2806, %v3378
      %v3381 = vunpack.c.l.s4 1966171168
      %v3382 = vunpack.c.0.s8 %v3381
      %v3383 = vlaneseq
      %v3384 = vshrl.u32 %v3383, 7
      %v3385 = vsub.s32 %v3382, %v3384
      %v3386 = vrot.slane %v3372, %v3385
      %v3387 = vcombine.high %v3379, %v3379
      %v3388 = vcombine.high %v3386, %v3386
      %v3390 = vunpack.c.l.s4 1966171168
      %v3391 = vunpack.c.0.s8 %v3390
      %v3392 = vlaneseq
      %v3393 = vshrl.u32 %v3392, 7
      %v3394 = vsub.s32 %v3391, %v3393
      %v3395 = vrot.slane %v3379, %v3394
      %v3397 = vunpack.c.l.s4 1966171168
      %v3398 = vunpack.c.0.s8 %v3397
      %v3399 = vlaneseq
      %v3400 = vshrl.u32 %v3399, 7
      %v3401 = vsub.s32 %v3398, %v3400
      %v3402 = vrot.slane %v3386, %v3401
      %v3404 = vunpack.c.l.s4 1966171168
      %v3405 = vunpack.c.0.s8 %v3404
      %v3406 = vlaneseq
      %v3407 = vshrl.u32 %v3406, 7
      %v3408 = vsub.s32 %v3405, %v3407
      %v3409 = vrot.slane %v3387, %v3408
      %v3411 = vunpack.c.l.s4 1966171168
      %v3412 = vunpack.c.0.s8 %v3411
      %v3413 = vlaneseq
      %v3414 = vshrl.u32 %v3413, 7
      %v3415 = vsub.s32 %v3412, %v3414
      %v3416 = vrot.slane %v3388, %v3415
      %v3417 = vcombine.high %v3395, %v3395
      %v3418 = vcombine.high %v3402, %v3402
      %v3419 = vcombine.high %v3409, %v3409
      %v3420 = vcombine.high %v3416, %v3416
      %v3421 = vcombine.high %v2811, %v2811
      %v3423 = vunpack.c.l.s4 1966171168
      %v3424 = vunpack.c.0.s8 %v3423
      %v3425 = vlaneseq
      %v3426 = vshrl.u32 %v3425, 7
      %v3427 = vsub.s32 %v3424, %v3426
      %v3428 = vrot.slane %v2811, %v3427
      %v3430 = vunpack.c.l.s4 1966171168
      %v3431 = vunpack.c.0.s8 %v3430
      %v3432 = vlaneseq
      %v3433 = vshrl.u32 %v3432, 7
      %v3434 = vsub.s32 %v3431, %v3433
      %v3435 = vrot.slane %v3421, %v3434
      %v3436 = vcombine.high %v3428, %v3428
      %v3437 = vcombine.high %v3435, %v3435
      %v3439 = vunpack.c.l.s4 1966171168
      %v3440 = vunpack.c.0.s8 %v3439
      %v3441 = vlaneseq
      %v3442 = vshrl.u32 %v3441, 7
      %v3443 = vsub.s32 %v3440, %v3442
      %v3444 = vrot.slane %v3428, %v3443
      %v3446 = vunpack.c.l.s4 1966171168
      %v3447 = vunpack.c.0.s8 %v3446
      %v3448 = vlaneseq
      %v3449 = vshrl.u32 %v3448, 7
      %v3450 = vsub.s32 %v3447, %v3449
      %v3451 = vrot.slane %v3435, %v3450
      %v3453 = vunpack.c.l.s4 1966171168
      %v3454 = vunpack.c.0.s8 %v3453
      %v3455 = vlaneseq
      %v3456 = vshrl.u32 %v3455, 7
      %v3457 = vsub.s32 %v3454, %v3456
      %v3458 = vrot.slane %v3436, %v3457
      %v3460 = vunpack.c.l.s4 1966171168
      %v3461 = vunpack.c.0.s8 %v3460
      %v3462 = vlaneseq
      %v3463 = vshrl.u32 %v3462, 7
      %v3464 = vsub.s32 %v3461, %v3463
      %v3465 = vrot.slane %v3437, %v3464
      %v3466 = vcombine.high %v3444, %v3444
      %v3467 = vcombine.high %v3451, %v3451
      %v3468 = vcombine.high %v3458, %v3458
      %v3469 = vcombine.high %v3465, %v3465
      %v3471 = vunpack.c.l.s4 1966171168
      %v3472 = vunpack.c.0.s8 %v3471
      %v3473 = vlaneseq
      %v3474 = vshrl.u32 %v3473, 7
      %v3475 = vsub.s32 %v3472, %v3474
      %v3476 = vrot.slane %v2816, %v3475
      %v3478 = vunpack.c.l.s4 1966171168
      %v3479 = vunpack.c.0.s8 %v3478
      %v3480 = vlaneseq
      %v3481 = vshrl.u32 %v3480, 7
      %v3482 = vsub.s32 %v3479, %v3481
      %v3483 = vrot.slane %v3476, %v3482
      %p3589 = scmp.eq.s32.totalorder %s18, 0
      %p3590 = scmp.eq.s32.totalorder %s19, 0
      %p3591 = pnand %p3589, %p3590
      %p3592 = pneg %p3591
      // Predicated region
      $region33: #{conv2d_unit.1} parent=31 // pred_check
        _
      $region34: #{conv2d_unit.1} parent=31 // pred_check_branch
        %3594 = sbr.rel (%p3591) target = $region36
      $region35: #{conv2d_unit.1} parent=31 // pred_region
        %vm3595 = vcmask 24576
        %3596 = vst.msk [vmem:[#allocation2] sm:$0x1] %vm3595, 0.0
        %3597 = vst.msk [vmem:[#allocation3] sm:$0x1] %vm3595, 0.0
      $region36: #{conv2d_unit.1} parent=31 // pred_fallthru
        _
      // Predicated region
      $region37: #{conv2d_unit.1} parent=31 // pred_check
        %p3598 = pneg %p3589
      $region38: #{conv2d_unit.1} parent=31 // pred_check_branch
        %3600 = sbr.rel (%p3598) target = $region40
      $region39: #{conv2d_unit.1} parent=31 // pred_region
        %v3601 = vld [vmem:[#allocation2] sm:$0x1]
        %v3602 = vcombine.low %v2856, %v2870
        %v3603 = vcombine.low %v2878, %v2880
        %v3604 = vcombine.low %v2863, %v2877
        %v3606 = vunpack.c.l.s4 1966171168
        %v3607 = vunpack.c.0.s8 %v3606
        %v3608 = vlaneseq
        %v3609 = vshrl.u32 %v3608, 7
        %v3610 = vsub.s32 %v3607, %v3609
        %v3611 = vrot.slane %v3602, %v3610
        %v3613 = vunpack.c.l.s4 1966171168
        %v3614 = vunpack.c.0.s8 %v3613
        %v3615 = vlaneseq
        %v3616 = vshrl.u32 %v3615, 7
        %v3617 = vsub.s32 %v3614, %v3616
        %v3618 = vrot.slane %v3603, %v3617
        %v3620 = vunpack.c.l.s4 1966171168
        %v3621 = vunpack.c.0.s8 %v3620
        %v3622 = vlaneseq
        %v3623 = vshrl.u32 %v3622, 7
        %v3624 = vsub.s32 %v3621, %v3623
        %v3625 = vrot.slane %v3604, %v3624
        %v3627 = vunpack.c.l.s4 1966171168
        %v3628 = vunpack.c.0.s8 %v3627
        %v3629 = vlaneseq
        %v3630 = vshrl.u32 %v3629, 7
        %v3631 = vsub.s32 %v3628, %v3630
        %v3632 = vrot.slane %v2879, %v3631
        %v3633 = vcombine.low %v3611, %v3618
        %v3634 = vcombine.low %v3625, %v3632
        %v3636 = vunpack.c.l.s4 1966171168
        %v3637 = vunpack.c.0.s8 %v3636
        %v3638 = vlaneseq
        %v3639 = vshrl.u32 %v3638, 7
        %v3640 = vsub.s32 %v3637, %v3639
        %v3641 = vrot.slane %v3633, %v3640
        %v3643 = vunpack.c.l.s4 1966171168
        %v3644 = vunpack.c.0.s8 %v3643
        %v3645 = vlaneseq
        %v3646 = vshrl.u32 %v3645, 7
        %v3647 = vsub.s32 %v3644, %v3646
        %v3648 = vrot.slane %v3634, %v3647
        %v3649 = vcombine.low %v3641, %v3648
        %v3650 = vcombine.low %v2881, %v2905
        %v3651 = vcombine.low %v2919, %v2927
        %v3652 = vcombine.low %v2929, %v2912
        %v3654 = vunpack.c.l.s4 1966171168
        %v3655 = vunpack.c.0.s8 %v3654
        %v3656 = vlaneseq
        %v3657 = vshrl.u32 %v3656, 7
        %v3658 = vsub.s32 %v3655, %v3657
        %v3659 = vrot.slane %v3650, %v3658
        %v3661 = vunpack.c.l.s4 1966171168
        %v3662 = vunpack.c.0.s8 %v3661
        %v3663 = vlaneseq
        %v3664 = vshrl.u32 %v3663, 7
        %v3665 = vsub.s32 %v3662, %v3664
        %v3666 = vrot.slane %v3651, %v3665
        %v3668 = vunpack.c.l.s4 1966171168
        %v3669 = vunpack.c.0.s8 %v3668
        %v3670 = vlaneseq
        %v3671 = vshrl.u32 %v3670, 7
        %v3672 = vsub.s32 %v3669, %v3671
        %v3673 = vrot.slane %v3652, %v3672
        %v3675 = vunpack.c.l.s4 1966171168
        %v3676 = vunpack.c.0.s8 %v3675
        %v3677 = vlaneseq
        %v3678 = vshrl.u32 %v3677, 7
        %v3679 = vsub.s32 %v3676, %v3678
        %v3680 = vrot.slane %v2926, %v3679
        %v3681 = vcombine.low %v3659, %v3666
        %v3682 = vcombine.low %v3673, %v3680
        %v3684 = vunpack.c.l.s4 1966171168
        %v3685 = vunpack.c.0.s8 %v3684
        %v3686 = vlaneseq
        %v3687 = vshrl.u32 %v3686, 7
        %v3688 = vsub.s32 %v3685, %v3687
        %v3689 = vrot.slane %v3681, %v3688
        %v3691 = vunpack.c.l.s4 1966171168
        %v3692 = vunpack.c.0.s8 %v3691
        %v3693 = vlaneseq
        %v3694 = vshrl.u32 %v3693, 7
        %v3695 = vsub.s32 %v3692, %v3694
        %v3696 = vrot.slane %v3682, %v3695
        %v3697 = vcombine.low %v3689, %v3696
        %v3698 = vcombine.low %v2928, %v2930
        %v3699 = vcombine.low %v2954, %v2968
        %v3700 = vcombine.low %v2976, %v2978
        %v3702 = vunpack.c.l.s4 1966171168
        %v3703 = vunpack.c.0.s8 %v3702
        %v3704 = vlaneseq
        %v3705 = vshrl.u32 %v3704, 7
        %v3706 = vsub.s32 %v3703, %v3705
        %v3707 = vrot.slane %v3698, %v3706
        %v3709 = vunpack.c.l.s4 1966171168
        %v3710 = vunpack.c.0.s8 %v3709
        %v3711 = vlaneseq
        %v3712 = vshrl.u32 %v3711, 7
        %v3713 = vsub.s32 %v3710, %v3712
        %v3714 = vrot.slane %v3699, %v3713
        %v3716 = vunpack.c.l.s4 1966171168
        %v3717 = vunpack.c.0.s8 %v3716
        %v3718 = vlaneseq
        %v3719 = vshrl.u32 %v3718, 7
        %v3720 = vsub.s32 %v3717, %v3719
        %v3721 = vrot.slane %v3700, %v3720
        %v3723 = vunpack.c.l.s4 1966171168
        %v3724 = vunpack.c.0.s8 %v3723
        %v3725 = vlaneseq
        %v3726 = vshrl.u32 %v3725, 7
        %v3727 = vsub.s32 %v3724, %v3726
        %v3728 = vrot.slane %v2961, %v3727
        %v3729 = vcombine.low %v3707, %v3714
        %v3730 = vcombine.low %v3721, %v3728
        %v3732 = vunpack.c.l.s4 1966171168
        %v3733 = vunpack.c.0.s8 %v3732
        %v3734 = vlaneseq
        %v3735 = vshrl.u32 %v3734, 7
        %v3736 = vsub.s32 %v3733, %v3735
        %v3737 = vrot.slane %v3729, %v3736
        %v3739 = vunpack.c.l.s4 1966171168
        %v3740 = vunpack.c.0.s8 %v3739
        %v3741 = vlaneseq
        %v3742 = vshrl.u32 %v3741, 7
        %v3743 = vsub.s32 %v3740, %v3742
        %v3744 = vrot.slane %v3730, %v3743
        %v3745 = vcombine.low %v3737, %v3744
        %v3746 = vcombine.low %v2975, %v2977
        %v3747 = vcombine.low %v2979, %v3003
        %v3748 = vcombine.low %v3017, %v3025
        %v3750 = vunpack.c.l.s4 1966171168
        %v3751 = vunpack.c.0.s8 %v3750
        %v3752 = vlaneseq
        %v3753 = vshrl.u32 %v3752, 7
        %v3754 = vsub.s32 %v3751, %v3753
        %v3755 = vrot.slane %v3746, %v3754
        %v3757 = vunpack.c.l.s4 1966171168
        %v3758 = vunpack.c.0.s8 %v3757
        %v3759 = vlaneseq
        %v3760 = vshrl.u32 %v3759, 7
        %v3761 = vsub.s32 %v3758, %v3760
        %v3762 = vrot.slane %v3747, %v3761
        %v3764 = vunpack.c.l.s4 1966171168
        %v3765 = vunpack.c.0.s8 %v3764
        %v3766 = vlaneseq
        %v3767 = vshrl.u32 %v3766, 7
        %v3768 = vsub.s32 %v3765, %v3767
        %v3769 = vrot.slane %v3748, %v3768
        %v3771 = vunpack.c.l.s4 1966171168
        %v3772 = vunpack.c.0.s8 %v3771
        %v3773 = vlaneseq
        %v3774 = vshrl.u32 %v3773, 7
        %v3775 = vsub.s32 %v3772, %v3774
        %v3776 = vrot.slane %v3027, %v3775
        %v3777 = vcombine.low %v3755, %v3762
        %v3778 = vcombine.low %v3769, %v3776
        %v3780 = vunpack.c.l.s4 1966171168
        %v3781 = vunpack.c.0.s8 %v3780
        %v3782 = vlaneseq
        %v3783 = vshrl.u32 %v3782, 7
        %v3784 = vsub.s32 %v3781, %v3783
        %v3785 = vrot.slane %v3777, %v3784
        %v3787 = vunpack.c.l.s4 1966171168
        %v3788 = vunpack.c.0.s8 %v3787
        %v3789 = vlaneseq
        %v3790 = vshrl.u32 %v3789, 7
        %v3791 = vsub.s32 %v3788, %v3790
        %v3792 = vrot.slane %v3778, %v3791
        %v3793 = vcombine.low %v3785, %v3792
        %v3794 = vcombine.low %v3010, %v3024
        %v3795 = vcombine.low %v3026, %v3028
        %v3796 = vcombine.low %v3052, %v3066
        %v3798 = vunpack.c.l.s4 1966171168
        %v3799 = vunpack.c.0.s8 %v3798
        %v3800 = vlaneseq
        %v3801 = vshrl.u32 %v3800, 7
        %v3802 = vsub.s32 %v3799, %v3801
        %v3803 = vrot.slane %v3794, %v3802
        %v3805 = vunpack.c.l.s4 1966171168
        %v3806 = vunpack.c.0.s8 %v3805
        %v3807 = vlaneseq
        %v3808 = vshrl.u32 %v3807, 7
        %v3809 = vsub.s32 %v3806, %v3808
        %v3810 = vrot.slane %v3795, %v3809
        %v3812 = vunpack.c.l.s4 1966171168
        %v3813 = vunpack.c.0.s8 %v3812
        %v3814 = vlaneseq
        %v3815 = vshrl.u32 %v3814, 7
        %v3816 = vsub.s32 %v3813, %v3815
        %v3817 = vrot.slane %v3796, %v3816
        %v3819 = vunpack.c.l.s4 1966171168
        %v3820 = vunpack.c.0.s8 %v3819
        %v3821 = vlaneseq
        %v3822 = vshrl.u32 %v3821, 7
        %v3823 = vsub.s32 %v3820, %v3822
        %v3824 = vrot.slane %v3074, %v3823
        %v3825 = vcombine.low %v3803, %v3810
        %v3826 = vcombine.low %v3817, %v3824
        %v3828 = vunpack.c.l.s4 1966171168
        %v3829 = vunpack.c.0.s8 %v3828
        %v3830 = vlaneseq
        %v3831 = vshrl.u32 %v3830, 7
        %v3832 = vsub.s32 %v3829, %v3831
        %v3833 = vrot.slane %v3825, %v3832
        %v3835 = vunpack.c.l.s4 1966171168
        %v3836 = vunpack.c.0.s8 %v3835
        %v3837 = vlaneseq
        %v3838 = vshrl.u32 %v3837, 7
        %v3839 = vsub.s32 %v3836, %v3838
        %v3840 = vrot.slane %v3826, %v3839
        %v3841 = vcombine.low %v3833, %v3840
        %v3842 = vcombine.low %v3076, %v3059
        %v3843 = vcombine.low %v3073, %v3075
        %v3844 = vcombine.low %v3077, %v3101
        %v3846 = vunpack.c.l.s4 1966171168
        %v3847 = vunpack.c.0.s8 %v3846
        %v3848 = vlaneseq
        %v3849 = vshrl.u32 %v3848, 7
        %v3850 = vsub.s32 %v3847, %v3849
        %v3851 = vrot.slane %v3842, %v3850
        %v3853 = vunpack.c.l.s4 1966171168
        %v3854 = vunpack.c.0.s8 %v3853
        %v3855 = vlaneseq
        %v3856 = vshrl.u32 %v3855, 7
        %v3857 = vsub.s32 %v3854, %v3856
        %v3858 = vrot.slane %v3843, %v3857
        %v3860 = vunpack.c.l.s4 1966171168
        %v3861 = vunpack.c.0.s8 %v3860
        %v3862 = vlaneseq
        %v3863 = vshrl.u32 %v3862, 7
        %v3864 = vsub.s32 %v3861, %v3863
        %v3865 = vrot.slane %v3844, %v3864
        %v3867 = vunpack.c.l.s4 1966171168
        %v3868 = vunpack.c.0.s8 %v3867
        %v3869 = vlaneseq
        %v3870 = vshrl.u32 %v3869, 7
        %v3871 = vsub.s32 %v3868, %v3870
        %v3872 = vrot.slane %v3115, %v3871
        %v3873 = vcombine.low %v3851, %v3858
        %v3874 = vcombine.low %v3865, %v3872
        %v3876 = vunpack.c.l.s4 1966171168
        %v3877 = vunpack.c.0.s8 %v3876
        %v3878 = vlaneseq
        %v3879 = vshrl.u32 %v3878, 7
        %v3880 = vsub.s32 %v3877, %v3879
        %v3881 = vrot.slane %v3873, %v3880
        %v3883 = vunpack.c.l.s4 1966171168
        %v3884 = vunpack.c.0.s8 %v3883
        %v3885 = vlaneseq
        %v3886 = vshrl.u32 %v3885, 7
        %v3887 = vsub.s32 %v3884, %v3886
        %v3888 = vrot.slane %v3874, %v3887
        %v3889 = vcombine.low %v3881, %v3888
        %v3890 = vcombine.low %v3123, %v3125
        %v3891 = vcombine.low %v3108, %v3122
        %v3892 = vcombine.low %v3124, %v3126
        %v3894 = vunpack.c.l.s4 1966171168
        %v3895 = vunpack.c.0.s8 %v3894
        %v3896 = vlaneseq
        %v3897 = vshrl.u32 %v3896, 7
        %v3898 = vsub.s32 %v3895, %v3897
        %v3899 = vrot.slane %v3890, %v3898
        %v3901 = vunpack.c.l.s4 1966171168
        %v3902 = vunpack.c.0.s8 %v3901
        %v3903 = vlaneseq
        %v3904 = vshrl.u32 %v3903, 7
        %v3905 = vsub.s32 %v3902, %v3904
        %v3906 = vrot.slane %v3891, %v3905
        %v3908 = vunpack.c.l.s4 1966171168
        %v3909 = vunpack.c.0.s8 %v3908
        %v3910 = vlaneseq
        %v3911 = vshrl.u32 %v3910, 7
        %v3912 = vsub.s32 %v3909, %v3911
        %v3913 = vrot.slane %v3892, %v3912
        %v3915 = vunpack.c.l.s4 1966171168
        %v3916 = vunpack.c.0.s8 %v3915
        %v3917 = vlaneseq
        %v3918 = vshrl.u32 %v3917, 7
        %v3919 = vsub.s32 %v3916, %v3918
        %v3920 = vrot.slane %v3150, %v3919
        %v3921 = vcombine.low %v3899, %v3906
        %v3922 = vcombine.low %v3913, %v3920
        %v3924 = vunpack.c.l.s4 1966171168
        %v3925 = vunpack.c.0.s8 %v3924
        %v3926 = vlaneseq
        %v3927 = vshrl.u32 %v3926, 7
        %v3928 = vsub.s32 %v3925, %v3927
        %v3929 = vrot.slane %v3921, %v3928
        %v3931 = vunpack.c.l.s4 1966171168
        %v3932 = vunpack.c.0.s8 %v3931
        %v3933 = vlaneseq
        %v3934 = vshrl.u32 %v3933, 7
        %v3935 = vsub.s32 %v3932, %v3934
        %v3936 = vrot.slane %v3922, %v3935
        %v3937 = vcombine.low %v3929, %v3936
        %v3938 = vcombine.low %v3164, %v3172
        %v3939 = vcombine.low %v3174, %v3157
        %v3940 = vcombine.low %v3171, %v3173
        %v3942 = vunpack.c.l.s4 1966171168
        %v3943 = vunpack.c.0.s8 %v3942
        %v3944 = vlaneseq
        %v3945 = vshrl.u32 %v3944, 7
        %v3946 = vsub.s32 %v3943, %v3945
        %v3947 = vrot.slane %v3938, %v3946
        %v3949 = vunpack.c.l.s4 1966171168
        %v3950 = vunpack.c.0.s8 %v3949
        %v3951 = vlaneseq
        %v3952 = vshrl.u32 %v3951, 7
        %v3953 = vsub.s32 %v3950, %v3952
        %v3954 = vrot.slane %v3939, %v3953
        %v3956 = vunpack.c.l.s4 1966171168
        %v3957 = vunpack.c.0.s8 %v3956
        %v3958 = vlaneseq
        %v3959 = vshrl.u32 %v3958, 7
        %v3960 = vsub.s32 %v3957, %v3959
        %v3961 = vrot.slane %v3940, %v3960
        %v3963 = vunpack.c.l.s4 1966171168
        %v3964 = vunpack.c.0.s8 %v3963
        %v3965 = vlaneseq
        %v3966 = vshrl.u32 %v3965, 7
        %v3967 = vsub.s32 %v3964, %v3966
        %v3968 = vrot.slane %v3175, %v3967
        %v3969 = vcombine.low %v3947, %v3954
        %v3970 = vcombine.low %v3961, %v3968
        %v3972 = vunpack.c.l.s4 1966171168
        %v3973 = vunpack.c.0.s8 %v3972
        %v3974 = vlaneseq
        %v3975 = vshrl.u32 %v3974, 7
        %v3976 = vsub.s32 %v3973, %v3975
        %v3977 = vrot.slane %v3969, %v3976
        %v3979 = vunpack.c.l.s4 1966171168
        %v3980 = vunpack.c.0.s8 %v3979
        %v3981 = vlaneseq
        %v3982 = vshrl.u32 %v3981, 7
        %v3983 = vsub.s32 %v3980, %v3982
        %v3984 = vrot.slane %v3970, %v3983
        %v3985 = vcombine.low %v3977, %v3984
        %v3986 = vcombine.low %v3199, %v3213
        %v3987 = vcombine.low %v3221, %v3223
        %v3988 = vcombine.low %v3206, %v3220
        %v3990 = vunpack.c.l.s4 1966171168
        %v3991 = vunpack.c.0.s8 %v3990
        %v3992 = vlaneseq
        %v3993 = vshrl.u32 %v3992, 7
        %v3994 = vsub.s32 %v3991, %v3993
        %v3995 = vrot.slane %v3986, %v3994
        %v3997 = vunpack.c.l.s4 1966171168
        %v3998 = vunpack.c.0.s8 %v3997
        %v3999 = vlaneseq
        %v4000 = vshrl.u32 %v3999, 7
        %v4001 = vsub.s32 %v3998, %v4000
        %v4002 = vrot.slane %v3987, %v4001
        %v4004 = vunpack.c.l.s4 1966171168
        %v4005 = vunpack.c.0.s8 %v4004
        %v4006 = vlaneseq
        %v4007 = vshrl.u32 %v4006, 7
        %v4008 = vsub.s32 %v4005, %v4007
        %v4009 = vrot.slane %v3988, %v4008
        %v4011 = vunpack.c.l.s4 1966171168
        %v4012 = vunpack.c.0.s8 %v4011
        %v4013 = vlaneseq
        %v4014 = vshrl.u32 %v4013, 7
        %v4015 = vsub.s32 %v4012, %v4014
        %v4016 = vrot.slane %v3222, %v4015
        %v4017 = vcombine.low %v3995, %v4002
        %v4018 = vcombine.low %v4009, %v4016
        %v4020 = vunpack.c.l.s4 1966171168
        %v4021 = vunpack.c.0.s8 %v4020
        %v4022 = vlaneseq
        %v4023 = vshrl.u32 %v4022, 7
        %v4024 = vsub.s32 %v4021, %v4023
        %v4025 = vrot.slane %v4017, %v4024
        %v4027 = vunpack.c.l.s4 1966171168
        %v4028 = vunpack.c.0.s8 %v4027
        %v4029 = vlaneseq
        %v4030 = vshrl.u32 %v4029, 7
        %v4031 = vsub.s32 %v4028, %v4030
        %v4032 = vrot.slane %v4018, %v4031
        %v4033 = vcombine.low %v4025, %v4032
        %v4034 = vcombine.low %v3224, %v3248
        %v4035 = vcombine.low %v3262, %v3270
        %v4036 = vcombine.low %v3272, %v3255
        %v4038 = vunpack.c.l.s4 1966171168
        %v4039 = vunpack.c.0.s8 %v4038
        %v4040 = vlaneseq
        %v4041 = vshrl.u32 %v4040, 7
        %v4042 = vsub.s32 %v4039, %v4041
        %v4043 = vrot.slane %v4034, %v4042
        %v4045 = vunpack.c.l.s4 1966171168
        %v4046 = vunpack.c.0.s8 %v4045
        %v4047 = vlaneseq
        %v4048 = vshrl.u32 %v4047, 7
        %v4049 = vsub.s32 %v4046, %v4048
        %v4050 = vrot.slane %v4035, %v4049
        %v4052 = vunpack.c.l.s4 1966171168
        %v4053 = vunpack.c.0.s8 %v4052
        %v4054 = vlaneseq
        %v4055 = vshrl.u32 %v4054, 7
        %v4056 = vsub.s32 %v4053, %v4055
        %v4057 = vrot.slane %v4036, %v4056
        %v4059 = vunpack.c.l.s4 1966171168
        %v4060 = vunpack.c.0.s8 %v4059
        %v4061 = vlaneseq
        %v4062 = vshrl.u32 %v4061, 7
        %v4063 = vsub.s32 %v4060, %v4062
        %v4064 = vrot.slane %v3269, %v4063
        %v4065 = vcombine.low %v4043, %v4050
        %v4066 = vcombine.low %v4057, %v4064
        %v4068 = vunpack.c.l.s4 1966171168
        %v4069 = vunpack.c.0.s8 %v4068
        %v4070 = vlaneseq
        %v4071 = vshrl.u32 %v4070, 7
        %v4072 = vsub.s32 %v4069, %v4071
        %v4073 = vrot.slane %v4065, %v4072
        %v4075 = vunpack.c.l.s4 1966171168
        %v4076 = vunpack.c.0.s8 %v4075
        %v4077 = vlaneseq
        %v4078 = vshrl.u32 %v4077, 7
        %v4079 = vsub.s32 %v4076, %v4078
        %v4080 = vrot.slane %v4066, %v4079
        %v4081 = vcombine.low %v4073, %v4080
        %v4082 = vcombine.low %v3271, %v3273
        %v4083 = vcombine.low %v3297, %v3311
        %v4084 = vcombine.low %v3319, %v3321
        %v4086 = vunpack.c.l.s4 1966171168
        %v4087 = vunpack.c.0.s8 %v4086
        %v4088 = vlaneseq
        %v4089 = vshrl.u32 %v4088, 7
        %v4090 = vsub.s32 %v4087, %v4089
        %v4091 = vrot.slane %v4082, %v4090
        %v4093 = vunpack.c.l.s4 1966171168
        %v4094 = vunpack.c.0.s8 %v4093
        %v4095 = vlaneseq
        %v4096 = vshrl.u32 %v4095, 7
        %v4097 = vsub.s32 %v4094, %v4096
        %v4098 = vrot.slane %v4083, %v4097
        %v4100 = vunpack.c.l.s4 1966171168
        %v4101 = vunpack.c.0.s8 %v4100
        %v4102 = vlaneseq
        %v4103 = vshrl.u32 %v4102, 7
        %v4104 = vsub.s32 %v4101, %v4103
        %v4105 = vrot.slane %v4084, %v4104
        %v4107 = vunpack.c.l.s4 1966171168
        %v4108 = vunpack.c.0.s8 %v4107
        %v4109 = vlaneseq
        %v4110 = vshrl.u32 %v4109, 7
        %v4111 = vsub.s32 %v4108, %v4110
        %v4112 = vrot.slane %v3304, %v4111
        %v4113 = vcombine.low %v4091, %v4098
        %v4114 = vcombine.low %v4105, %v4112
        %v4116 = vunpack.c.l.s4 1966171168
        %v4117 = vunpack.c.0.s8 %v4116
        %v4118 = vlaneseq
        %v4119 = vshrl.u32 %v4118, 7
        %v4120 = vsub.s32 %v4117, %v4119
        %v4121 = vrot.slane %v4113, %v4120
        %v4123 = vunpack.c.l.s4 1966171168
        %v4124 = vunpack.c.0.s8 %v4123
        %v4125 = vlaneseq
        %v4126 = vshrl.u32 %v4125, 7
        %v4127 = vsub.s32 %v4124, %v4126
        %v4128 = vrot.slane %v4114, %v4127
        %v4129 = vcombine.low %v4121, %v4128
        %v4130 = vcombine.low %v3318, %v3320
        %v4131 = vcombine.low %v3322, %v3346
        %v4132 = vcombine.low %v3360, %v3368
        %v4134 = vunpack.c.l.s4 1966171168
        %v4135 = vunpack.c.0.s8 %v4134
        %v4136 = vlaneseq
        %v4137 = vshrl.u32 %v4136, 7
        %v4138 = vsub.s32 %v4135, %v4137
        %v4139 = vrot.slane %v4130, %v4138
        %v4141 = vunpack.c.l.s4 1966171168
        %v4142 = vunpack.c.0.s8 %v4141
        %v4143 = vlaneseq
        %v4144 = vshrl.u32 %v4143, 7
        %v4145 = vsub.s32 %v4142, %v4144
        %v4146 = vrot.slane %v4131, %v4145
        %v4148 = vunpack.c.l.s4 1966171168
        %v4149 = vunpack.c.0.s8 %v4148
        %v4150 = vlaneseq
        %v4151 = vshrl.u32 %v4150, 7
        %v4152 = vsub.s32 %v4149, %v4151
        %v4153 = vrot.slane %v4132, %v4152
        %v4155 = vunpack.c.l.s4 1966171168
        %v4156 = vunpack.c.0.s8 %v4155
        %v4157 = vlaneseq
        %v4158 = vshrl.u32 %v4157, 7
        %v4159 = vsub.s32 %v4156, %v4158
        %v4160 = vrot.slane %v3370, %v4159
        %v4161 = vcombine.low %v4139, %v4146
        %v4162 = vcombine.low %v4153, %v4160
        %v4164 = vunpack.c.l.s4 1966171168
        %v4165 = vunpack.c.0.s8 %v4164
        %v4166 = vlaneseq
        %v4167 = vshrl.u32 %v4166, 7
        %v4168 = vsub.s32 %v4165, %v4167
        %v4169 = vrot.slane %v4161, %v4168
        %v4171 = vunpack.c.l.s4 1966171168
        %v4172 = vunpack.c.0.s8 %v4171
        %v4173 = vlaneseq
        %v4174 = vshrl.u32 %v4173, 7
        %v4175 = vsub.s32 %v4172, %v4174
        %v4176 = vrot.slane %v4162, %v4175
        %v4177 = vcombine.low %v4169, %v4176
        %v4178 = vcombine.low %v3353, %v3367
        %v4179 = vcombine.low %v3369, %v3371
        %v4180 = vcombine.low %v3395, %v3409
        %v4182 = vunpack.c.l.s4 1966171168
        %v4183 = vunpack.c.0.s8 %v4182
        %v4184 = vlaneseq
        %v4185 = vshrl.u32 %v4184, 7
        %v4186 = vsub.s32 %v4183, %v4185
        %v4187 = vrot.slane %v4178, %v4186
        %v4189 = vunpack.c.l.s4 1966171168
        %v4190 = vunpack.c.0.s8 %v4189
        %v4191 = vlaneseq
        %v4192 = vshrl.u32 %v4191, 7
        %v4193 = vsub.s32 %v4190, %v4192
        %v4194 = vrot.slane %v4179, %v4193
        %v4196 = vunpack.c.l.s4 1966171168
        %v4197 = vunpack.c.0.s8 %v4196
        %v4198 = vlaneseq
        %v4199 = vshrl.u32 %v4198, 7
        %v4200 = vsub.s32 %v4197, %v4199
        %v4201 = vrot.slane %v4180, %v4200
        %v4203 = vunpack.c.l.s4 1966171168
        %v4204 = vunpack.c.0.s8 %v4203
        %v4205 = vlaneseq
        %v4206 = vshrl.u32 %v4205, 7
        %v4207 = vsub.s32 %v4204, %v4206
        %v4208 = vrot.slane %v3417, %v4207
        %v4209 = vcombine.low %v4187, %v4194
        %v4210 = vcombine.low %v4201, %v4208
        %v4212 = vunpack.c.l.s4 1966171168
        %v4213 = vunpack.c.0.s8 %v4212
        %v4214 = vlaneseq
        %v4215 = vshrl.u32 %v4214, 7
        %v4216 = vsub.s32 %v4213, %v4215
        %v4217 = vrot.slane %v4209, %v4216
        %v4219 = vunpack.c.l.s4 1966171168
        %v4220 = vunpack.c.0.s8 %v4219
        %v4221 = vlaneseq
        %v4222 = vshrl.u32 %v4221, 7
        %v4223 = vsub.s32 %v4220, %v4222
        %v4224 = vrot.slane %v4210, %v4223
        %v4225 = vcombine.low %v4217, %v4224
        %v4226 = vcombine.low %v3419, %v3402
        %v4227 = vcombine.low %v3416, %v3418
        %v4228 = vcombine.low %v3420, %v3444
        %v4230 = vunpack.c.l.s4 1966171168
        %v4231 = vunpack.c.0.s8 %v4230
        %v4232 = vlaneseq
        %v4233 = vshrl.u32 %v4232, 7
        %v4234 = vsub.s32 %v4231, %v4233
        %v4235 = vrot.slane %v4226, %v4234
        %v4237 = vunpack.c.l.s4 1966171168
        %v4238 = vunpack.c.0.s8 %v4237
        %v4239 = vlaneseq
        %v4240 = vshrl.u32 %v4239, 7
        %v4241 = vsub.s32 %v4238, %v4240
        %v4242 = vrot.slane %v4227, %v4241
        %v4244 = vunpack.c.l.s4 1966171168
        %v4245 = vunpack.c.0.s8 %v4244
        %v4246 = vlaneseq
        %v4247 = vshrl.u32 %v4246, 7
        %v4248 = vsub.s32 %v4245, %v4247
        %v4249 = vrot.slane %v4228, %v4248
        %v4251 = vunpack.c.l.s4 1966171168
        %v4252 = vunpack.c.0.s8 %v4251
        %v4253 = vlaneseq
        %v4254 = vshrl.u32 %v4253, 7
        %v4255 = vsub.s32 %v4252, %v4254
        %v4256 = vrot.slane %v3458, %v4255
        %v4257 = vcombine.low %v4235, %v4242
        %v4258 = vcombine.low %v4249, %v4256
        %v4260 = vunpack.c.l.s4 1966171168
        %v4261 = vunpack.c.0.s8 %v4260
        %v4262 = vlaneseq
        %v4263 = vshrl.u32 %v4262, 7
        %v4264 = vsub.s32 %v4261, %v4263
        %v4265 = vrot.slane %v4257, %v4264
        %v4267 = vunpack.c.l.s4 1966171168
        %v4268 = vunpack.c.0.s8 %v4267
        %v4269 = vlaneseq
        %v4270 = vshrl.u32 %v4269, 7
        %v4271 = vsub.s32 %v4268, %v4270
        %v4272 = vrot.slane %v4258, %v4271
        %v4273 = vcombine.low %v4265, %v4272
        %v4274 = vcombine.low %v3466, %v3468
        %v4275 = vcombine.low %v3451, %v3465
        %v4276 = vcombine.low %v3467, %v3469
        %v4278 = vunpack.c.l.s4 1966171168
        %v4279 = vunpack.c.0.s8 %v4278
        %v4280 = vlaneseq
        %v4281 = vshrl.u32 %v4280, 7
        %v4282 = vsub.s32 %v4279, %v4281
        %v4283 = vrot.slane %v4274, %v4282
        %v4285 = vunpack.c.l.s4 1966171168
        %v4286 = vunpack.c.0.s8 %v4285
        %v4287 = vlaneseq
        %v4288 = vshrl.u32 %v4287, 7
        %v4289 = vsub.s32 %v4286, %v4288
        %v4290 = vrot.slane %v4275, %v4289
        %v4292 = vunpack.c.l.s4 1966171168
        %v4293 = vunpack.c.0.s8 %v4292
        %v4294 = vlaneseq
        %v4295 = vshrl.u32 %v4294, 7
        %v4296 = vsub.s32 %v4293, %v4295
        %v4297 = vrot.slane %v4276, %v4296
        %v4299 = vunpack.c.l.s4 1966171168
        %v4300 = vunpack.c.0.s8 %v4299
        %v4301 = vlaneseq
        %v4302 = vshrl.u32 %v4301, 7
        %v4303 = vsub.s32 %v4300, %v4302
        %v4304 = vrot.slane %v3483, %v4303
        %v4305 = vcombine.low %v4283, %v4290
        %v4306 = vcombine.low %v4297, %v4304
        %v4308 = vunpack.c.l.s4 1966171168
        %v4309 = vunpack.c.0.s8 %v4308
        %v4310 = vlaneseq
        %v4311 = vshrl.u32 %v4310, 7
        %v4312 = vsub.s32 %v4309, %v4311
        %v4313 = vrot.slane %v4305, %v4312
        %v4315 = vunpack.c.l.s4 1966171168
        %v4316 = vunpack.c.0.s8 %v4315
        %v4317 = vlaneseq
        %v4318 = vshrl.u32 %v4317, 7
        %v4319 = vsub.s32 %v4316, %v4318
        %v4320 = vrot.slane %v4306, %v4319
        %v4321 = vcombine.low %v4313, %v4320
        %vm4337 = vcmask 30720
        %v4338 = vsel %vm4337, %v3649, 0.0
        %v4339 = vsel %vm4337, %v3697, 0.0
        %v4340 = vadd.f32 %v4338, %v4339
        %v4341 = vsel %vm4337, %v3745, 0.0
        %v4342 = vadd.f32 %v4340, %v4341
        %v4343 = vsel %vm4337, %v3793, 0.0
        %v4344 = vadd.f32 %v4342, %v4343
        %v4345 = vsel %vm4337, %v3841, 0.0
        %v4346 = vadd.f32 %v4344, %v4345
        %v4347 = vsel %vm4337, %v3889, 0.0
        %v4348 = vadd.f32 %v4346, %v4347
        %v4349 = vsel %vm4337, %v3937, 0.0
        %v4350 = vadd.f32 %v4348, %v4349
        %v4351 = vsel %vm4337, %v3985, 0.0
        %v4352 = vadd.f32 %v4350, %v4351
        %v4353 = vsel %vm4337, %v4033, 0.0
        %v4354 = vadd.f32 %v4352, %v4353
        %v4355 = vsel %vm4337, %v4081, 0.0
        %v4356 = vadd.f32 %v4354, %v4355
        %v4357 = vsel %vm4337, %v4129, 0.0
        %v4358 = vadd.f32 %v4356, %v4357
        %v4359 = vsel %vm4337, %v4177, 0.0
        %v4360 = vadd.f32 %v4358, %v4359
        %v4361 = vsel %vm4337, %v4225, 0.0
        %v4362 = vadd.f32 %v4360, %v4361
        %v4363 = vsel %vm4337, %v4273, 0.0
        %v4364 = vadd.f32 %v4362, %v4363
        %v4365 = vsel %vm4337, %v4321, 0.0
        %v4366 = vadd.f32 %v4364, %v4365
        %v4367 = vrot.slane %v4366, 4
        %v4368 = vadd.f32 %v4366, %v4367
        %v4369 = vrot.slane %v4368, 2
        %v4370 = vadd.f32 %v4368, %v4369
        %v4371 = vrot.slane %v4370, 1
        %v4372 = vadd.f32 %v4370, %v4371
        %v4373 = vadd.f32 %v3601, %v4372
        %vm4374 = vcmask 24576
        %4375 = vst.msk [vmem:[#allocation2] sm:$0x1] %vm4374, %v4373
        %v4376 = vld [vmem:[#allocation3] sm:$0x1]
        %v4377 = vmul.f32 %v2856, %v2856
        %v4378 = vmul.f32 %v2870, %v2870
        %v4379 = vmul.f32 %v2878, %v2878
        %v4380 = vmul.f32 %v2880, %v2880
        %v4381 = vmul.f32 %v2863, %v2863
        %v4382 = vmul.f32 %v2877, %v2877
        %v4383 = vmul.f32 %v2879, %v2879
        %v4384 = vmul.f32 %v2881, %v2881
        %v4385 = vmul.f32 %v2905, %v2905
        %v4386 = vmul.f32 %v2919, %v2919
        %v4387 = vmul.f32 %v2927, %v2927
        %v4388 = vmul.f32 %v2929, %v2929
        %v4389 = vmul.f32 %v2912, %v2912
        %v4390 = vmul.f32 %v2926, %v2926
        %v4391 = vmul.f32 %v2928, %v2928
        %v4392 = vmul.f32 %v2930, %v2930
        %v4393 = vmul.f32 %v2954, %v2954
        %v4394 = vmul.f32 %v2968, %v2968
        %v4395 = vmul.f32 %v2976, %v2976
        %v4396 = vmul.f32 %v2978, %v2978
        %v4397 = vmul.f32 %v2961, %v2961
        %v4398 = vmul.f32 %v2975, %v2975
        %v4399 = vmul.f32 %v2977, %v2977
        %v4400 = vmul.f32 %v2979, %v2979
        %v4401 = vmul.f32 %v3003, %v3003
        %v4402 = vmul.f32 %v3017, %v3017
        %v4403 = vmul.f32 %v3025, %v3025
        %v4404 = vmul.f32 %v3027, %v3027
        %v4405 = vmul.f32 %v3010, %v3010
        %v4406 = vmul.f32 %v3024, %v3024
        %v4407 = vmul.f32 %v3026, %v3026
        %v4408 = vmul.f32 %v3028, %v3028
        %v4409 = vmul.f32 %v3052, %v3052
        %v4410 = vmul.f32 %v3066, %v3066
        %v4411 = vmul.f32 %v3074, %v3074
        %v4412 = vmul.f32 %v3076, %v3076
        %v4413 = vmul.f32 %v3059, %v3059
        %v4414 = vmul.f32 %v3073, %v3073
        %v4415 = vmul.f32 %v3075, %v3075
        %v4416 = vmul.f32 %v3077, %v3077
        %v4417 = vmul.f32 %v3101, %v3101
        %v4418 = vmul.f32 %v3115, %v3115
        %v4419 = vmul.f32 %v3123, %v3123
        %v4420 = vmul.f32 %v3125, %v3125
        %v4421 = vmul.f32 %v3108, %v3108
        %v4422 = vmul.f32 %v3122, %v3122
        %v4423 = vmul.f32 %v3124, %v3124
        %v4424 = vmul.f32 %v3126, %v3126
        %v4425 = vmul.f32 %v3150, %v3150
        %v4426 = vmul.f32 %v3164, %v3164
        %v4427 = vmul.f32 %v3172, %v3172
        %v4428 = vmul.f32 %v3174, %v3174
        %v4429 = vmul.f32 %v3157, %v3157
        %v4430 = vmul.f32 %v3171, %v3171
        %v4431 = vmul.f32 %v3173, %v3173
        %v4432 = vmul.f32 %v3175, %v3175
        %v4433 = vmul.f32 %v3199, %v3199
        %v4434 = vmul.f32 %v3213, %v3213
        %v4435 = vmul.f32 %v3221, %v3221
        %v4436 = vmul.f32 %v3223, %v3223
        %v4437 = vmul.f32 %v3206, %v3206
        %v4438 = vmul.f32 %v3220, %v3220
        %v4439 = vmul.f32 %v3222, %v3222
        %v4440 = vmul.f32 %v3224, %v3224
        %v4441 = vmul.f32 %v3248, %v3248
        %v4442 = vmul.f32 %v3262, %v3262
        %v4443 = vmul.f32 %v3270, %v3270
        %v4444 = vmul.f32 %v3272, %v3272
        %v4445 = vmul.f32 %v3255, %v3255
        %v4446 = vmul.f32 %v3269, %v3269
        %v4447 = vmul.f32 %v3271, %v3271
        %v4448 = vmul.f32 %v3273, %v3273
        %v4449 = vmul.f32 %v3297, %v3297
        %v4450 = vmul.f32 %v3311, %v3311
        %v4451 = vmul.f32 %v3319, %v3319
        %v4452 = vmul.f32 %v3321, %v3321
        %v4453 = vmul.f32 %v3304, %v3304
        %v4454 = vmul.f32 %v3318, %v3318
        %v4455 = vmul.f32 %v3320, %v3320
        %v4456 = vmul.f32 %v3322, %v3322
        %v4457 = vmul.f32 %v3346, %v3346
        %v4458 = vmul.f32 %v3360, %v3360
        %v4459 = vmul.f32 %v3368, %v3368
        %v4460 = vmul.f32 %v3370, %v3370
        %v4461 = vmul.f32 %v3353, %v3353
        %v4462 = vmul.f32 %v3367, %v3367
        %v4463 = vmul.f32 %v3369, %v3369
        %v4464 = vmul.f32 %v3371, %v3371
        %v4465 = vmul.f32 %v3395, %v3395
        %v4466 = vmul.f32 %v3409, %v3409
        %v4467 = vmul.f32 %v3417, %v3417
        %v4468 = vmul.f32 %v3419, %v3419
        %v4469 = vmul.f32 %v3402, %v3402
        %v4470 = vmul.f32 %v3416, %v3416
        %v4471 = vmul.f32 %v3418, %v3418
        %v4472 = vmul.f32 %v3420, %v3420
        %v4473 = vmul.f32 %v3444, %v3444
        %v4474 = vmul.f32 %v3458, %v3458
        %v4475 = vmul.f32 %v3466, %v3466
        %v4476 = vmul.f32 %v3468, %v3468
        %v4477 = vmul.f32 %v3451, %v3451
        %v4478 = vmul.f32 %v3465, %v3465
        %v4479 = vmul.f32 %v3467, %v3467
        %v4480 = vmul.f32 %v3469, %v3469
        %v4481 = vmul.f32 %v3483, %v3483
        %v4587 = vcombine.low %v4377, %v4378
        %v4588 = vcombine.low %v4379, %v4380
        %v4589 = vcombine.low %v4381, %v4382
        %v4591 = vunpack.c.l.s4 1966171168
        %v4592 = vunpack.c.0.s8 %v4591
        %v4593 = vlaneseq
        %v4594 = vshrl.u32 %v4593, 7
        %v4595 = vsub.s32 %v4592, %v4594
        %v4596 = vrot.slane %v4587, %v4595
        %v4598 = vunpack.c.l.s4 1966171168
        %v4599 = vunpack.c.0.s8 %v4598
        %v4600 = vlaneseq
        %v4601 = vshrl.u32 %v4600, 7
        %v4602 = vsub.s32 %v4599, %v4601
        %v4603 = vrot.slane %v4588, %v4602
        %v4605 = vunpack.c.l.s4 1966171168
        %v4606 = vunpack.c.0.s8 %v4605
        %v4607 = vlaneseq
        %v4608 = vshrl.u32 %v4607, 7
        %v4609 = vsub.s32 %v4606, %v4608
        %v4610 = vrot.slane %v4589, %v4609
        %v4612 = vunpack.c.l.s4 1966171168
        %v4613 = vunpack.c.0.s8 %v4612
        %v4614 = vlaneseq
        %v4615 = vshrl.u32 %v4614, 7
        %v4616 = vsub.s32 %v4613, %v4615
        %v4617 = vrot.slane %v4383, %v4616
        %v4618 = vcombine.low %v4596, %v4603
        %v4619 = vcombine.low %v4610, %v4617
        %v4621 = vunpack.c.l.s4 1966171168
        %v4622 = vunpack.c.0.s8 %v4621
        %v4623 = vlaneseq
        %v4624 = vshrl.u32 %v4623, 7
        %v4625 = vsub.s32 %v4622, %v4624
        %v4626 = vrot.slane %v4618, %v4625
        %v4628 = vunpack.c.l.s4 1966171168
        %v4629 = vunpack.c.0.s8 %v4628
        %v4630 = vlaneseq
        %v4631 = vshrl.u32 %v4630, 7
        %v4632 = vsub.s32 %v4629, %v4631
        %v4633 = vrot.slane %v4619, %v4632
        %v4634 = vcombine.low %v4626, %v4633
        %v4635 = vcombine.low %v4384, %v4385
        %v4636 = vcombine.low %v4386, %v4387
        %v4637 = vcombine.low %v4388, %v4389
        %v4639 = vunpack.c.l.s4 1966171168
        %v4640 = vunpack.c.0.s8 %v4639
        %v4641 = vlaneseq
        %v4642 = vshrl.u32 %v4641, 7
        %v4643 = vsub.s32 %v4640, %v4642
        %v4644 = vrot.slane %v4635, %v4643
        %v4646 = vunpack.c.l.s4 1966171168
        %v4647 = vunpack.c.0.s8 %v4646
        %v4648 = vlaneseq
        %v4649 = vshrl.u32 %v4648, 7
        %v4650 = vsub.s32 %v4647, %v4649
        %v4651 = vrot.slane %v4636, %v4650
        %v4653 = vunpack.c.l.s4 1966171168
        %v4654 = vunpack.c.0.s8 %v4653
        %v4655 = vlaneseq
        %v4656 = vshrl.u32 %v4655, 7
        %v4657 = vsub.s32 %v4654, %v4656
        %v4658 = vrot.slane %v4637, %v4657
        %v4660 = vunpack.c.l.s4 1966171168
        %v4661 = vunpack.c.0.s8 %v4660
        %v4662 = vlaneseq
        %v4663 = vshrl.u32 %v4662, 7
        %v4664 = vsub.s32 %v4661, %v4663
        %v4665 = vrot.slane %v4390, %v4664
        %v4666 = vcombine.low %v4644, %v4651
        %v4667 = vcombine.low %v4658, %v4665
        %v4669 = vunpack.c.l.s4 1966171168
        %v4670 = vunpack.c.0.s8 %v4669
        %v4671 = vlaneseq
        %v4672 = vshrl.u32 %v4671, 7
        %v4673 = vsub.s32 %v4670, %v4672
        %v4674 = vrot.slane %v4666, %v4673
        %v4676 = vunpack.c.l.s4 1966171168
        %v4677 = vunpack.c.0.s8 %v4676
        %v4678 = vlaneseq
        %v4679 = vshrl.u32 %v4678, 7
        %v4680 = vsub.s32 %v4677, %v4679
        %v4681 = vrot.slane %v4667, %v4680
        %v4682 = vcombine.low %v4674, %v4681
        %v4683 = vcombine.low %v4391, %v4392
        %v4684 = vcombine.low %v4393, %v4394
        %v4685 = vcombine.low %v4395, %v4396
        %v4687 = vunpack.c.l.s4 1966171168
        %v4688 = vunpack.c.0.s8 %v4687
        %v4689 = vlaneseq
        %v4690 = vshrl.u32 %v4689, 7
        %v4691 = vsub.s32 %v4688, %v4690
        %v4692 = vrot.slane %v4683, %v4691
        %v4694 = vunpack.c.l.s4 1966171168
        %v4695 = vunpack.c.0.s8 %v4694
        %v4696 = vlaneseq
        %v4697 = vshrl.u32 %v4696, 7
        %v4698 = vsub.s32 %v4695, %v4697
        %v4699 = vrot.slane %v4684, %v4698
        %v4701 = vunpack.c.l.s4 1966171168
        %v4702 = vunpack.c.0.s8 %v4701
        %v4703 = vlaneseq
        %v4704 = vshrl.u32 %v4703, 7
        %v4705 = vsub.s32 %v4702, %v4704
        %v4706 = vrot.slane %v4685, %v4705
        %v4708 = vunpack.c.l.s4 1966171168
        %v4709 = vunpack.c.0.s8 %v4708
        %v4710 = vlaneseq
        %v4711 = vshrl.u32 %v4710, 7
        %v4712 = vsub.s32 %v4709, %v4711
        %v4713 = vrot.slane %v4397, %v4712
        %v4714 = vcombine.low %v4692, %v4699
        %v4715 = vcombine.low %v4706, %v4713
        %v4717 = vunpack.c.l.s4 1966171168
        %v4718 = vunpack.c.0.s8 %v4717
        %v4719 = vlaneseq
        %v4720 = vshrl.u32 %v4719, 7
        %v4721 = vsub.s32 %v4718, %v4720
        %v4722 = vrot.slane %v4714, %v4721
        %v4724 = vunpack.c.l.s4 1966171168
        %v4725 = vunpack.c.0.s8 %v4724
        %v4726 = vlaneseq
        %v4727 = vshrl.u32 %v4726, 7
        %v4728 = vsub.s32 %v4725, %v4727
        %v4729 = vrot.slane %v4715, %v4728
        %v4730 = vcombine.low %v4722, %v4729
        %v4731 = vcombine.low %v4398, %v4399
        %v4732 = vcombine.low %v4400, %v4401
        %v4733 = vcombine.low %v4402, %v4403
        %v4735 = vunpack.c.l.s4 1966171168
        %v4736 = vunpack.c.0.s8 %v4735
        %v4737 = vlaneseq
        %v4738 = vshrl.u32 %v4737, 7
        %v4739 = vsub.s32 %v4736, %v4738
        %v4740 = vrot.slane %v4731, %v4739
        %v4742 = vunpack.c.l.s4 1966171168
        %v4743 = vunpack.c.0.s8 %v4742
        %v4744 = vlaneseq
        %v4745 = vshrl.u32 %v4744, 7
        %v4746 = vsub.s32 %v4743, %v4745
        %v4747 = vrot.slane %v4732, %v4746
        %v4749 = vunpack.c.l.s4 1966171168
        %v4750 = vunpack.c.0.s8 %v4749
        %v4751 = vlaneseq
        %v4752 = vshrl.u32 %v4751, 7
        %v4753 = vsub.s32 %v4750, %v4752
        %v4754 = vrot.slane %v4733, %v4753
        %v4756 = vunpack.c.l.s4 1966171168
        %v4757 = vunpack.c.0.s8 %v4756
        %v4758 = vlaneseq
        %v4759 = vshrl.u32 %v4758, 7
        %v4760 = vsub.s32 %v4757, %v4759
        %v4761 = vrot.slane %v4404, %v4760
        %v4762 = vcombine.low %v4740, %v4747
        %v4763 = vcombine.low %v4754, %v4761
        %v4765 = vunpack.c.l.s4 1966171168
        %v4766 = vunpack.c.0.s8 %v4765
        %v4767 = vlaneseq
        %v4768 = vshrl.u32 %v4767, 7
        %v4769 = vsub.s32 %v4766, %v4768
        %v4770 = vrot.slane %v4762, %v4769
        %v4772 = vunpack.c.l.s4 1966171168
        %v4773 = vunpack.c.0.s8 %v4772
        %v4774 = vlaneseq
        %v4775 = vshrl.u32 %v4774, 7
        %v4776 = vsub.s32 %v4773, %v4775
        %v4777 = vrot.slane %v4763, %v4776
        %v4778 = vcombine.low %v4770, %v4777
        %v4779 = vcombine.low %v4405, %v4406
        %v4780 = vcombine.low %v4407, %v4408
        %v4781 = vcombine.low %v4409, %v4410
        %v4783 = vunpack.c.l.s4 1966171168
        %v4784 = vunpack.c.0.s8 %v4783
        %v4785 = vlaneseq
        %v4786 = vshrl.u32 %v4785, 7
        %v4787 = vsub.s32 %v4784, %v4786
        %v4788 = vrot.slane %v4779, %v4787
        %v4790 = vunpack.c.l.s4 1966171168
        %v4791 = vunpack.c.0.s8 %v4790
        %v4792 = vlaneseq
        %v4793 = vshrl.u32 %v4792, 7
        %v4794 = vsub.s32 %v4791, %v4793
        %v4795 = vrot.slane %v4780, %v4794
        %v4797 = vunpack.c.l.s4 1966171168
        %v4798 = vunpack.c.0.s8 %v4797
        %v4799 = vlaneseq
        %v4800 = vshrl.u32 %v4799, 7
        %v4801 = vsub.s32 %v4798, %v4800
        %v4802 = vrot.slane %v4781, %v4801
        %v4804 = vunpack.c.l.s4 1966171168
        %v4805 = vunpack.c.0.s8 %v4804
        %v4806 = vlaneseq
        %v4807 = vshrl.u32 %v4806, 7
        %v4808 = vsub.s32 %v4805, %v4807
        %v4809 = vrot.slane %v4411, %v4808
        %v4810 = vcombine.low %v4788, %v4795
        %v4811 = vcombine.low %v4802, %v4809
        %v4813 = vunpack.c.l.s4 1966171168
        %v4814 = vunpack.c.0.s8 %v4813
        %v4815 = vlaneseq
        %v4816 = vshrl.u32 %v4815, 7
        %v4817 = vsub.s32 %v4814, %v4816
        %v4818 = vrot.slane %v4810, %v4817
        %v4820 = vunpack.c.l.s4 1966171168
        %v4821 = vunpack.c.0.s8 %v4820
        %v4822 = vlaneseq
        %v4823 = vshrl.u32 %v4822, 7
        %v4824 = vsub.s32 %v4821, %v4823
        %v4825 = vrot.slane %v4811, %v4824
        %v4826 = vcombine.low %v4818, %v4825
        %v4827 = vcombine.low %v4412, %v4413
        %v4828 = vcombine.low %v4414, %v4415
        %v4829 = vcombine.low %v4416, %v4417
        %v4831 = vunpack.c.l.s4 1966171168
        %v4832 = vunpack.c.0.s8 %v4831
        %v4833 = vlaneseq
        %v4834 = vshrl.u32 %v4833, 7
        %v4835 = vsub.s32 %v4832, %v4834
        %v4836 = vrot.slane %v4827, %v4835
        %v4838 = vunpack.c.l.s4 1966171168
        %v4839 = vunpack.c.0.s8 %v4838
        %v4840 = vlaneseq
        %v4841 = vshrl.u32 %v4840, 7
        %v4842 = vsub.s32 %v4839, %v4841
        %v4843 = vrot.slane %v4828, %v4842
        %v4845 = vunpack.c.l.s4 1966171168
        %v4846 = vunpack.c.0.s8 %v4845
        %v4847 = vlaneseq
        %v4848 = vshrl.u32 %v4847, 7
        %v4849 = vsub.s32 %v4846, %v4848
        %v4850 = vrot.slane %v4829, %v4849
        %v4852 = vunpack.c.l.s4 1966171168
        %v4853 = vunpack.c.0.s8 %v4852
        %v4854 = vlaneseq
        %v4855 = vshrl.u32 %v4854, 7
        %v4856 = vsub.s32 %v4853, %v4855
        %v4857 = vrot.slane %v4418, %v4856
        %v4858 = vcombine.low %v4836, %v4843
        %v4859 = vcombine.low %v4850, %v4857
        %v4861 = vunpack.c.l.s4 1966171168
        %v4862 = vunpack.c.0.s8 %v4861
        %v4863 = vlaneseq
        %v4864 = vshrl.u32 %v4863, 7
        %v4865 = vsub.s32 %v4862, %v4864
        %v4866 = vrot.slane %v4858, %v4865
        %v4868 = vunpack.c.l.s4 1966171168
        %v4869 = vunpack.c.0.s8 %v4868
        %v4870 = vlaneseq
        %v4871 = vshrl.u32 %v4870, 7
        %v4872 = vsub.s32 %v4869, %v4871
        %v4873 = vrot.slane %v4859, %v4872
        %v4874 = vcombine.low %v4866, %v4873
        %v4875 = vcombine.low %v4419, %v4420
        %v4876 = vcombine.low %v4421, %v4422
        %v4877 = vcombine.low %v4423, %v4424
        %v4879 = vunpack.c.l.s4 1966171168
        %v4880 = vunpack.c.0.s8 %v4879
        %v4881 = vlaneseq
        %v4882 = vshrl.u32 %v4881, 7
        %v4883 = vsub.s32 %v4880, %v4882
        %v4884 = vrot.slane %v4875, %v4883
        %v4886 = vunpack.c.l.s4 1966171168
        %v4887 = vunpack.c.0.s8 %v4886
        %v4888 = vlaneseq
        %v4889 = vshrl.u32 %v4888, 7
        %v4890 = vsub.s32 %v4887, %v4889
        %v4891 = vrot.slane %v4876, %v4890
        %v4893 = vunpack.c.l.s4 1966171168
        %v4894 = vunpack.c.0.s8 %v4893
        %v4895 = vlaneseq
        %v4896 = vshrl.u32 %v4895, 7
        %v4897 = vsub.s32 %v4894, %v4896
        %v4898 = vrot.slane %v4877, %v4897
        %v4900 = vunpack.c.l.s4 1966171168
        %v4901 = vunpack.c.0.s8 %v4900
        %v4902 = vlaneseq
        %v4903 = vshrl.u32 %v4902, 7
        %v4904 = vsub.s32 %v4901, %v4903
        %v4905 = vrot.slane %v4425, %v4904
        %v4906 = vcombine.low %v4884, %v4891
        %v4907 = vcombine.low %v4898, %v4905
        %v4909 = vunpack.c.l.s4 1966171168
        %v4910 = vunpack.c.0.s8 %v4909
        %v4911 = vlaneseq
        %v4912 = vshrl.u32 %v4911, 7
        %v4913 = vsub.s32 %v4910, %v4912
        %v4914 = vrot.slane %v4906, %v4913
        %v4916 = vunpack.c.l.s4 1966171168
        %v4917 = vunpack.c.0.s8 %v4916
        %v4918 = vlaneseq
        %v4919 = vshrl.u32 %v4918, 7
        %v4920 = vsub.s32 %v4917, %v4919
        %v4921 = vrot.slane %v4907, %v4920
        %v4922 = vcombine.low %v4914, %v4921
        %v4923 = vcombine.low %v4426, %v4427
        %v4924 = vcombine.low %v4428, %v4429
        %v4925 = vcombine.low %v4430, %v4431
        %v4927 = vunpack.c.l.s4 1966171168
        %v4928 = vunpack.c.0.s8 %v4927
        %v4929 = vlaneseq
        %v4930 = vshrl.u32 %v4929, 7
        %v4931 = vsub.s32 %v4928, %v4930
        %v4932 = vrot.slane %v4923, %v4931
        %v4934 = vunpack.c.l.s4 1966171168
        %v4935 = vunpack.c.0.s8 %v4934
        %v4936 = vlaneseq
        %v4937 = vshrl.u32 %v4936, 7
        %v4938 = vsub.s32 %v4935, %v4937
        %v4939 = vrot.slane %v4924, %v4938
        %v4941 = vunpack.c.l.s4 1966171168
        %v4942 = vunpack.c.0.s8 %v4941
        %v4943 = vlaneseq
        %v4944 = vshrl.u32 %v4943, 7
        %v4945 = vsub.s32 %v4942, %v4944
        %v4946 = vrot.slane %v4925, %v4945
        %v4948 = vunpack.c.l.s4 1966171168
        %v4949 = vunpack.c.0.s8 %v4948
        %v4950 = vlaneseq
        %v4951 = vshrl.u32 %v4950, 7
        %v4952 = vsub.s32 %v4949, %v4951
        %v4953 = vrot.slane %v4432, %v4952
        %v4954 = vcombine.low %v4932, %v4939
        %v4955 = vcombine.low %v4946, %v4953
        %v4957 = vunpack.c.l.s4 1966171168
        %v4958 = vunpack.c.0.s8 %v4957
        %v4959 = vlaneseq
        %v4960 = vshrl.u32 %v4959, 7
        %v4961 = vsub.s32 %v4958, %v4960
        %v4962 = vrot.slane %v4954, %v4961
        %v4964 = vunpack.c.l.s4 1966171168
        %v4965 = vunpack.c.0.s8 %v4964
        %v4966 = vlaneseq
        %v4967 = vshrl.u32 %v4966, 7
        %v4968 = vsub.s32 %v4965, %v4967
        %v4969 = vrot.slane %v4955, %v4968
        %v4970 = vcombine.low %v4962, %v4969
        %v4971 = vcombine.low %v4433, %v4434
        %v4972 = vcombine.low %v4435, %v4436
        %v4973 = vcombine.low %v4437, %v4438
        %v4975 = vunpack.c.l.s4 1966171168
        %v4976 = vunpack.c.0.s8 %v4975
        %v4977 = vlaneseq
        %v4978 = vshrl.u32 %v4977, 7
        %v4979 = vsub.s32 %v4976, %v4978
        %v4980 = vrot.slane %v4971, %v4979
        %v4982 = vunpack.c.l.s4 1966171168
        %v4983 = vunpack.c.0.s8 %v4982
        %v4984 = vlaneseq
        %v4985 = vshrl.u32 %v4984, 7
        %v4986 = vsub.s32 %v4983, %v4985
        %v4987 = vrot.slane %v4972, %v4986
        %v4989 = vunpack.c.l.s4 1966171168
        %v4990 = vunpack.c.0.s8 %v4989
        %v4991 = vlaneseq
        %v4992 = vshrl.u32 %v4991, 7
        %v4993 = vsub.s32 %v4990, %v4992
        %v4994 = vrot.slane %v4973, %v4993
        %v4996 = vunpack.c.l.s4 1966171168
        %v4997 = vunpack.c.0.s8 %v4996
        %v4998 = vlaneseq
        %v4999 = vshrl.u32 %v4998, 7
        %v5000 = vsub.s32 %v4997, %v4999
        %v5001 = vrot.slane %v4439, %v5000
        %v5002 = vcombine.low %v4980, %v4987
        %v5003 = vcombine.low %v4994, %v5001
        %v5005 = vunpack.c.l.s4 1966171168
        %v5006 = vunpack.c.0.s8 %v5005
        %v5007 = vlaneseq
        %v5008 = vshrl.u32 %v5007, 7
        %v5009 = vsub.s32 %v5006, %v5008
        %v5010 = vrot.slane %v5002, %v5009
        %v5012 = vunpack.c.l.s4 1966171168
        %v5013 = vunpack.c.0.s8 %v5012
        %v5014 = vlaneseq
        %v5015 = vshrl.u32 %v5014, 7
        %v5016 = vsub.s32 %v5013, %v5015
        %v5017 = vrot.slane %v5003, %v5016
        %v5018 = vcombine.low %v5010, %v5017
        %v5019 = vcombine.low %v4440, %v4441
        %v5020 = vcombine.low %v4442, %v4443
        %v5021 = vcombine.low %v4444, %v4445
        %v5023 = vunpack.c.l.s4 1966171168
        %v5024 = vunpack.c.0.s8 %v5023
        %v5025 = vlaneseq
        %v5026 = vshrl.u32 %v5025, 7
        %v5027 = vsub.s32 %v5024, %v5026
        %v5028 = vrot.slane %v5019, %v5027
        %v5030 = vunpack.c.l.s4 1966171168
        %v5031 = vunpack.c.0.s8 %v5030
        %v5032 = vlaneseq
        %v5033 = vshrl.u32 %v5032, 7
        %v5034 = vsub.s32 %v5031, %v5033
        %v5035 = vrot.slane %v5020, %v5034
        %v5037 = vunpack.c.l.s4 1966171168
        %v5038 = vunpack.c.0.s8 %v5037
        %v5039 = vlaneseq
        %v5040 = vshrl.u32 %v5039, 7
        %v5041 = vsub.s32 %v5038, %v5040
        %v5042 = vrot.slane %v5021, %v5041
        %v5044 = vunpack.c.l.s4 1966171168
        %v5045 = vunpack.c.0.s8 %v5044
        %v5046 = vlaneseq
        %v5047 = vshrl.u32 %v5046, 7
        %v5048 = vsub.s32 %v5045, %v5047
        %v5049 = vrot.slane %v4446, %v5048
        %v5050 = vcombine.low %v5028, %v5035
        %v5051 = vcombine.low %v5042, %v5049
        %v5053 = vunpack.c.l.s4 1966171168
        %v5054 = vunpack.c.0.s8 %v5053
        %v5055 = vlaneseq
        %v5056 = vshrl.u32 %v5055, 7
        %v5057 = vsub.s32 %v5054, %v5056
        %v5058 = vrot.slane %v5050, %v5057
        %v5060 = vunpack.c.l.s4 1966171168
        %v5061 = vunpack.c.0.s8 %v5060
        %v5062 = vlaneseq
        %v5063 = vshrl.u32 %v5062, 7
        %v5064 = vsub.s32 %v5061, %v5063
        %v5065 = vrot.slane %v5051, %v5064
        %v5066 = vcombine.low %v5058, %v5065
        %v5067 = vcombine.low %v4447, %v4448
        %v5068 = vcombine.low %v4449, %v4450
        %v5069 = vcombine.low %v4451, %v4452
        %v5071 = vunpack.c.l.s4 1966171168
        %v5072 = vunpack.c.0.s8 %v5071
        %v5073 = vlaneseq
        %v5074 = vshrl.u32 %v5073, 7
        %v5075 = vsub.s32 %v5072, %v5074
        %v5076 = vrot.slane %v5067, %v5075
        %v5078 = vunpack.c.l.s4 1966171168
        %v5079 = vunpack.c.0.s8 %v5078
        %v5080 = vlaneseq
        %v5081 = vshrl.u32 %v5080, 7
        %v5082 = vsub.s32 %v5079, %v5081
        %v5083 = vrot.slane %v5068, %v5082
        %v5085 = vunpack.c.l.s4 1966171168
        %v5086 = vunpack.c.0.s8 %v5085
        %v5087 = vlaneseq
        %v5088 = vshrl.u32 %v5087, 7
        %v5089 = vsub.s32 %v5086, %v5088
        %v5090 = vrot.slane %v5069, %v5089
        %v5092 = vunpack.c.l.s4 1966171168
        %v5093 = vunpack.c.0.s8 %v5092
        %v5094 = vlaneseq
        %v5095 = vshrl.u32 %v5094, 7
        %v5096 = vsub.s32 %v5093, %v5095
        %v5097 = vrot.slane %v4453, %v5096
        %v5098 = vcombine.low %v5076, %v5083
        %v5099 = vcombine.low %v5090, %v5097
        %v5101 = vunpack.c.l.s4 1966171168
        %v5102 = vunpack.c.0.s8 %v5101
        %v5103 = vlaneseq
        %v5104 = vshrl.u32 %v5103, 7
        %v5105 = vsub.s32 %v5102, %v5104
        %v5106 = vrot.slane %v5098, %v5105
        %v5108 = vunpack.c.l.s4 1966171168
        %v5109 = vunpack.c.0.s8 %v5108
        %v5110 = vlaneseq
        %v5111 = vshrl.u32 %v5110, 7
        %v5112 = vsub.s32 %v5109, %v5111
        %v5113 = vrot.slane %v5099, %v5112
        %v5114 = vcombine.low %v5106, %v5113
        %v5115 = vcombine.low %v4454, %v4455
        %v5116 = vcombine.low %v4456, %v4457
        %v5117 = vcombine.low %v4458, %v4459
        %v5119 = vunpack.c.l.s4 1966171168
        %v5120 = vunpack.c.0.s8 %v5119
        %v5121 = vlaneseq
        %v5122 = vshrl.u32 %v5121, 7
        %v5123 = vsub.s32 %v5120, %v5122
        %v5124 = vrot.slane %v5115, %v5123
        %v5126 = vunpack.c.l.s4 1966171168
        %v5127 = vunpack.c.0.s8 %v5126
        %v5128 = vlaneseq
        %v5129 = vshrl.u32 %v5128, 7
        %v5130 = vsub.s32 %v5127, %v5129
        %v5131 = vrot.slane %v5116, %v5130
        %v5133 = vunpack.c.l.s4 1966171168
        %v5134 = vunpack.c.0.s8 %v5133
        %v5135 = vlaneseq
        %v5136 = vshrl.u32 %v5135, 7
        %v5137 = vsub.s32 %v5134, %v5136
        %v5138 = vrot.slane %v5117, %v5137
        %v5140 = vunpack.c.l.s4 1966171168
        %v5141 = vunpack.c.0.s8 %v5140
        %v5142 = vlaneseq
        %v5143 = vshrl.u32 %v5142, 7
        %v5144 = vsub.s32 %v5141, %v5143
        %v5145 = vrot.slane %v4460, %v5144
        %v5146 = vcombine.low %v5124, %v5131
        %v5147 = vcombine.low %v5138, %v5145
        %v5149 = vunpack.c.l.s4 1966171168
        %v5150 = vunpack.c.0.s8 %v5149
        %v5151 = vlaneseq
        %v5152 = vshrl.u32 %v5151, 7
        %v5153 = vsub.s32 %v5150, %v5152
        %v5154 = vrot.slane %v5146, %v5153
        %v5156 = vunpack.c.l.s4 1966171168
        %v5157 = vunpack.c.0.s8 %v5156
        %v5158 = vlaneseq
        %v5159 = vshrl.u32 %v5158, 7
        %v5160 = vsub.s32 %v5157, %v5159
        %v5161 = vrot.slane %v5147, %v5160
        %v5162 = vcombine.low %v5154, %v5161
        %v5163 = vcombine.low %v4461, %v4462
        %v5164 = vcombine.low %v4463, %v4464
        %v5165 = vcombine.low %v4465, %v4466
        %v5167 = vunpack.c.l.s4 1966171168
        %v5168 = vunpack.c.0.s8 %v5167
        %v5169 = vlaneseq
        %v5170 = vshrl.u32 %v5169, 7
        %v5171 = vsub.s32 %v5168, %v5170
        %v5172 = vrot.slane %v5163, %v5171
        %v5174 = vunpack.c.l.s4 1966171168
        %v5175 = vunpack.c.0.s8 %v5174
        %v5176 = vlaneseq
        %v5177 = vshrl.u32 %v5176, 7
        %v5178 = vsub.s32 %v5175, %v5177
        %v5179 = vrot.slane %v5164, %v5178
        %v5181 = vunpack.c.l.s4 1966171168
        %v5182 = vunpack.c.0.s8 %v5181
        %v5183 = vlaneseq
        %v5184 = vshrl.u32 %v5183, 7
        %v5185 = vsub.s32 %v5182, %v5184
        %v5186 = vrot.slane %v5165, %v5185
        %v5188 = vunpack.c.l.s4 1966171168
        %v5189 = vunpack.c.0.s8 %v5188
        %v5190 = vlaneseq
        %v5191 = vshrl.u32 %v5190, 7
        %v5192 = vsub.s32 %v5189, %v5191
        %v5193 = vrot.slane %v4467, %v5192
        %v5194 = vcombine.low %v5172, %v5179
        %v5195 = vcombine.low %v5186, %v5193
        %v5197 = vunpack.c.l.s4 1966171168
        %v5198 = vunpack.c.0.s8 %v5197
        %v5199 = vlaneseq
        %v5200 = vshrl.u32 %v5199, 7
        %v5201 = vsub.s32 %v5198, %v5200
        %v5202 = vrot.slane %v5194, %v5201
        %v5204 = vunpack.c.l.s4 1966171168
        %v5205 = vunpack.c.0.s8 %v5204
        %v5206 = vlaneseq
        %v5207 = vshrl.u32 %v5206, 7
        %v5208 = vsub.s32 %v5205, %v5207
        %v5209 = vrot.slane %v5195, %v5208
        %v5210 = vcombine.low %v5202, %v5209
        %v5211 = vcombine.low %v4468, %v4469
        %v5212 = vcombine.low %v4470, %v4471
        %v5213 = vcombine.low %v4472, %v4473
        %v5215 = vunpack.c.l.s4 1966171168
        %v5216 = vunpack.c.0.s8 %v5215
        %v5217 = vlaneseq
        %v5218 = vshrl.u32 %v5217, 7
        %v5219 = vsub.s32 %v5216, %v5218
        %v5220 = vrot.slane %v5211, %v5219
        %v5222 = vunpack.c.l.s4 1966171168
        %v5223 = vunpack.c.0.s8 %v5222
        %v5224 = vlaneseq
        %v5225 = vshrl.u32 %v5224, 7
        %v5226 = vsub.s32 %v5223, %v5225
        %v5227 = vrot.slane %v5212, %v5226
        %v5229 = vunpack.c.l.s4 1966171168
        %v5230 = vunpack.c.0.s8 %v5229
        %v5231 = vlaneseq
        %v5232 = vshrl.u32 %v5231, 7
        %v5233 = vsub.s32 %v5230, %v5232
        %v5234 = vrot.slane %v5213, %v5233
        %v5236 = vunpack.c.l.s4 1966171168
        %v5237 = vunpack.c.0.s8 %v5236
        %v5238 = vlaneseq
        %v5239 = vshrl.u32 %v5238, 7
        %v5240 = vsub.s32 %v5237, %v5239
        %v5241 = vrot.slane %v4474, %v5240
        %v5242 = vcombine.low %v5220, %v5227
        %v5243 = vcombine.low %v5234, %v5241
        %v5245 = vunpack.c.l.s4 1966171168
        %v5246 = vunpack.c.0.s8 %v5245
        %v5247 = vlaneseq
        %v5248 = vshrl.u32 %v5247, 7
        %v5249 = vsub.s32 %v5246, %v5248
        %v5250 = vrot.slane %v5242, %v5249
        %v5252 = vunpack.c.l.s4 1966171168
        %v5253 = vunpack.c.0.s8 %v5252
        %v5254 = vlaneseq
        %v5255 = vshrl.u32 %v5254, 7
        %v5256 = vsub.s32 %v5253, %v5255
        %v5257 = vrot.slane %v5243, %v5256
        %v5258 = vcombine.low %v5250, %v5257
        %v5259 = vcombine.low %v4475, %v4476
        %v5260 = vcombine.low %v4477, %v4478
        %v5261 = vcombine.low %v4479, %v4480
        %v5263 = vunpack.c.l.s4 1966171168
        %v5264 = vunpack.c.0.s8 %v5263
        %v5265 = vlaneseq
        %v5266 = vshrl.u32 %v5265, 7
        %v5267 = vsub.s32 %v5264, %v5266
        %v5268 = vrot.slane %v5259, %v5267
        %v5270 = vunpack.c.l.s4 1966171168
        %v5271 = vunpack.c.0.s8 %v5270
        %v5272 = vlaneseq
        %v5273 = vshrl.u32 %v5272, 7
        %v5274 = vsub.s32 %v5271, %v5273
        %v5275 = vrot.slane %v5260, %v5274
        %v5277 = vunpack.c.l.s4 1966171168
        %v5278 = vunpack.c.0.s8 %v5277
        %v5279 = vlaneseq
        %v5280 = vshrl.u32 %v5279, 7
        %v5281 = vsub.s32 %v5278, %v5280
        %v5282 = vrot.slane %v5261, %v5281
        %v5284 = vunpack.c.l.s4 1966171168
        %v5285 = vunpack.c.0.s8 %v5284
        %v5286 = vlaneseq
        %v5287 = vshrl.u32 %v5286, 7
        %v5288 = vsub.s32 %v5285, %v5287
        %v5289 = vrot.slane %v4481, %v5288
        %v5290 = vcombine.low %v5268, %v5275
        %v5291 = vcombine.low %v5282, %v5289
        %v5293 = vunpack.c.l.s4 1966171168
        %v5294 = vunpack.c.0.s8 %v5293
        %v5295 = vlaneseq
        %v5296 = vshrl.u32 %v5295, 7
        %v5297 = vsub.s32 %v5294, %v5296
        %v5298 = vrot.slane %v5290, %v5297
        %v5300 = vunpack.c.l.s4 1966171168
        %v5301 = vunpack.c.0.s8 %v5300
        %v5302 = vlaneseq
        %v5303 = vshrl.u32 %v5302, 7
        %v5304 = vsub.s32 %v5301, %v5303
        %v5305 = vrot.slane %v5291, %v5304
        %v5306 = vcombine.low %v5298, %v5305
        %v5322 = vsel %vm4337, %v4634, 0.0
        %v5323 = vsel %vm4337, %v4682, 0.0
        %v5324 = vadd.f32 %v5322, %v5323
        %v5325 = vsel %vm4337, %v4730, 0.0
        %v5326 = vadd.f32 %v5324, %v5325
        %v5327 = vsel %vm4337, %v4778, 0.0
        %v5328 = vadd.f32 %v5326, %v5327
        %v5329 = vsel %vm4337, %v4826, 0.0
        %v5330 = vadd.f32 %v5328, %v5329
        %v5331 = vsel %vm4337, %v4874, 0.0
        %v5332 = vadd.f32 %v5330, %v5331
        %v5333 = vsel %vm4337, %v4922, 0.0
        %v5334 = vadd.f32 %v5332, %v5333
        %v5335 = vsel %vm4337, %v4970, 0.0
        %v5336 = vadd.f32 %v5334, %v5335
        %v5337 = vsel %vm4337, %v5018, 0.0
        %v5338 = vadd.f32 %v5336, %v5337
        %v5339 = vsel %vm4337, %v5066, 0.0
        %v5340 = vadd.f32 %v5338, %v5339
        %v5341 = vsel %vm4337, %v5114, 0.0
        %v5342 = vadd.f32 %v5340, %v5341
        %v5343 = vsel %vm4337, %v5162, 0.0
        %v5344 = vadd.f32 %v5342, %v5343
        %v5345 = vsel %vm4337, %v5210, 0.0
        %v5346 = vadd.f32 %v5344, %v5345
        %v5347 = vsel %vm4337, %v5258, 0.0
        %v5348 = vadd.f32 %v5346, %v5347
        %v5349 = vsel %vm4337, %v5306, 0.0
        %v5350 = vadd.f32 %v5348, %v5349
        %v5351 = vrot.slane %v5350, 4
        %v5352 = vadd.f32 %v5350, %v5351
        %v5353 = vrot.slane %v5352, 2
        %v5354 = vadd.f32 %v5352, %v5353
        %v5355 = vrot.slane %v5354, 1
        %v5356 = vadd.f32 %v5354, %v5355
        %v5357 = vadd.f32 %v4376, %v5356
        %5358 = vst.msk [vmem:[#allocation3] sm:$0x1] %vm4374, %v5357
      $region40: #{conv2d_unit.1} parent=31 // pred_fallthru
        _
      %p5359 = scmp.eq.s32.totalorder %s18, 1
      // Predicated region
      $region41: #{conv2d_unit.1} parent=31 // pred_check
        %p5360 = pneg %p5359
      $region42: #{conv2d_unit.1} parent=31 // pred_check_branch
        %5362 = sbr.rel (%p5360) target = $region44
      $region43: #{conv2d_unit.1} parent=31 // pred_region
        %v5363 = vld [vmem:[#allocation2] sm:$0x1]
        %v5364 = vmul.f32 %v5363, 0.004761905
        %v5365 = vld [vmem:[#allocation3] sm:$0x1]
        %v5366 = vmul.f32 %v5365, 0.004761905
        %v5367 = vmul.f32 %v5364, %v5364
        %v5368 = vsub.f32 %v5366, %v5367
        %v5369 = vmax.f32 %v5368, 0.0
        %v5370 = vld [vmem:[%s2] sm:$0x1]
        %v5371 = vld [vmem:[%s2 + $0x1] sm:$0x1]
        %v5372 = vld [vmem:[%s2 + $0x2] sm:$0x1]
        %v5373 = vadd.f32 %v5369, 1e-05
        %v5374 = vrsqrt.pop %v5373
        %v5375 = vmul.f32 %v5370, %v5374
        %v5376 = vmul.f32 %v5364, %v5375
        %v5377 = vsub.f32 %v5371, %v5376
        %v5378 = vlaneseq
        %v5379 = vshrl.u32 %v5378, 7
        %v5380 = vsub.s32 0, %v5379
        %v5381 = vrot.slane %v5375, %v5380
        %v5383 = vcombine.high %v5381, %v5381
        %v5385 = vunpack.c.l.s4 1966171168
        %v5386 = vunpack.c.0.s8 %v5385
        %v5387 = vlaneseq
        %v5388 = vshrl.u32 %v5387, 7
        %v5389 = vsub.s32 %v5386, %v5388
        %v5390 = vrot.slane %v5381, %v5389
        %v5392 = vunpack.c.l.s4 1966171168
        %v5393 = vunpack.c.0.s8 %v5392
        %v5394 = vlaneseq
        %v5395 = vshrl.u32 %v5394, 7
        %v5396 = vsub.s32 %v5393, %v5395
        %v5397 = vrot.slane %v5383, %v5396
        %v5398 = vcombine.high %v5390, %v5390
        %v5399 = vcombine.high %v5397, %v5397
        %v5401 = vunpack.c.l.s4 1966171168
        %v5402 = vunpack.c.0.s8 %v5401
        %v5403 = vlaneseq
        %v5404 = vshrl.u32 %v5403, 7
        %v5405 = vsub.s32 %v5402, %v5404
        %v5406 = vrot.slane %v5390, %v5405
        %v5408 = vunpack.c.l.s4 1966171168
        %v5409 = vunpack.c.0.s8 %v5408
        %v5410 = vlaneseq
        %v5411 = vshrl.u32 %v5410, 7
        %v5412 = vsub.s32 %v5409, %v5411
        %v5413 = vrot.slane %v5397, %v5412
        %v5415 = vunpack.c.l.s4 1966171168
        %v5416 = vunpack.c.0.s8 %v5415
        %v5417 = vlaneseq
        %v5418 = vshrl.u32 %v5417, 7
        %v5419 = vsub.s32 %v5416, %v5418
        %v5420 = vrot.slane %v5398, %v5419
        %v5422 = vunpack.c.l.s4 1966171168
        %v5423 = vunpack.c.0.s8 %v5422
        %v5424 = vlaneseq
        %v5425 = vshrl.u32 %v5424, 7
        %v5426 = vsub.s32 %v5423, %v5425
        %v5427 = vrot.slane %v5399, %v5426
        %v5428 = vcombine.high %v5406, %v5406
        %v5429 = vcombine.high %v5413, %v5413
        %v5430 = vcombine.high %v5420, %v5420
        %v5438 = vmul.f32 %v2856, %v5406
        %v5439 = vmul.f32 %v2870, %v5420
        %v5440 = vmul.f32 %v2878, %v5428
        %v5441 = vmul.f32 %v2880, %v5430
        %v5442 = vmul.f32 %v2863, %v5413
        %v5443 = vmul.f32 %v2877, %v5427
        %v5444 = vmul.f32 %v2879, %v5429
        %v5445 = vmul.f32 %v2881, %v5406
        %v5446 = vmul.f32 %v2905, %v5420
        %v5447 = vmul.f32 %v2919, %v5428
        %v5448 = vmul.f32 %v2927, %v5430
        %v5449 = vmul.f32 %v2929, %v5413
        %v5450 = vmul.f32 %v2912, %v5427
        %v5451 = vmul.f32 %v2926, %v5429
        %v5452 = vmul.f32 %v2928, %v5406
        %v5453 = vmul.f32 %v2930, %v5420
        %v5454 = vmul.f32 %v2954, %v5428
        %v5455 = vmul.f32 %v2968, %v5430
        %v5456 = vmul.f32 %v2976, %v5413
        %v5457 = vmul.f32 %v2978, %v5427
        %v5458 = vmul.f32 %v2961, %v5429
        %v5459 = vmul.f32 %v2975, %v5406
        %v5460 = vmul.f32 %v2977, %v5420
        %v5461 = vmul.f32 %v2979, %v5428
        %v5462 = vmul.f32 %v3003, %v5430
        %v5463 = vmul.f32 %v3017, %v5413
        %v5464 = vmul.f32 %v3025, %v5427
        %v5465 = vmul.f32 %v3027, %v5429
        %v5466 = vmul.f32 %v3010, %v5406
        %v5467 = vmul.f32 %v3024, %v5420
        %v5468 = vmul.f32 %v3026, %v5428
        %v5469 = vmul.f32 %v3028, %v5430
        %v5470 = vmul.f32 %v3052, %v5413
        %v5471 = vmul.f32 %v3066, %v5427
        %v5472 = vmul.f32 %v3074, %v5429
        %v5473 = vmul.f32 %v3076, %v5406
        %v5474 = vmul.f32 %v3059, %v5420
        %v5475 = vmul.f32 %v3073, %v5428
        %v5476 = vmul.f32 %v3075, %v5430
        %v5477 = vmul.f32 %v3077, %v5413
        %v5478 = vmul.f32 %v3101, %v5427
        %v5479 = vmul.f32 %v3115, %v5429
        %v5480 = vmul.f32 %v3123, %v5406
        %v5481 = vmul.f32 %v3125, %v5420
        %v5482 = vmul.f32 %v3108, %v5428
        %v5483 = vmul.f32 %v3122, %v5430
        %v5484 = vmul.f32 %v3124, %v5413
        %v5485 = vmul.f32 %v3126, %v5427
        %v5486 = vmul.f32 %v3150, %v5429
        %v5487 = vmul.f32 %v3164, %v5406
        %v5488 = vmul.f32 %v3172, %v5420
        %v5489 = vmul.f32 %v3174, %v5428
        %v5490 = vmul.f32 %v3157, %v5430
        %v5491 = vmul.f32 %v3171, %v5413
        %v5492 = vmul.f32 %v3173, %v5427
        %v5493 = vmul.f32 %v3175, %v5429
        %v5494 = vmul.f32 %v3199, %v5406
        %v5495 = vmul.f32 %v3213, %v5420
        %v5496 = vmul.f32 %v3221, %v5428
        %v5497 = vmul.f32 %v3223, %v5430
        %v5498 = vmul.f32 %v3206, %v5413
        %v5499 = vmul.f32 %v3220, %v5427
        %v5500 = vmul.f32 %v3222, %v5429
        %v5501 = vmul.f32 %v3224, %v5406
        %v5502 = vmul.f32 %v3248, %v5420
        %v5503 = vmul.f32 %v3262, %v5428
        %v5504 = vmul.f32 %v3270, %v5430
        %v5505 = vmul.f32 %v3272, %v5413
        %v5506 = vmul.f32 %v3255, %v5427
        %v5507 = vmul.f32 %v3269, %v5429
        %v5508 = vmul.f32 %v3271, %v5406
        %v5509 = vmul.f32 %v3273, %v5420
        %v5510 = vmul.f32 %v3297, %v5428
        %v5511 = vmul.f32 %v3311, %v5430
        %v5512 = vmul.f32 %v3319, %v5413
        %v5513 = vmul.f32 %v3321, %v5427
        %v5514 = vmul.f32 %v3304, %v5429
        %v5515 = vmul.f32 %v3318, %v5406
        %v5516 = vmul.f32 %v3320, %v5420
        %v5517 = vmul.f32 %v3322, %v5428
        %v5518 = vmul.f32 %v3346, %v5430
        %v5519 = vmul.f32 %v3360, %v5413
        %v5520 = vmul.f32 %v3368, %v5427
        %v5521 = vmul.f32 %v3370, %v5429
        %v5522 = vmul.f32 %v3353, %v5406
        %v5523 = vmul.f32 %v3367, %v5420
        %v5524 = vmul.f32 %v3369, %v5428
        %v5525 = vmul.f32 %v3371, %v5430
        %v5526 = vmul.f32 %v3395, %v5413
        %v5527 = vmul.f32 %v3409, %v5427
        %v5528 = vmul.f32 %v3417, %v5429
        %v5529 = vmul.f32 %v3419, %v5406
        %v5530 = vmul.f32 %v3402, %v5420
        %v5531 = vmul.f32 %v3416, %v5428
        %v5532 = vmul.f32 %v3418, %v5430
        %v5533 = vmul.f32 %v3420, %v5413
        %v5534 = vmul.f32 %v3444, %v5427
        %v5535 = vmul.f32 %v3458, %v5429
        %v5536 = vmul.f32 %v3466, %v5406
        %v5537 = vmul.f32 %v3468, %v5420
        %v5538 = vmul.f32 %v3451, %v5428
        %v5539 = vmul.f32 %v3465, %v5430
        %v5540 = vmul.f32 %v3467, %v5413
        %v5541 = vmul.f32 %v3469, %v5427
        %v5542 = vmul.f32 %v3483, %v5429
        %v5543 = vlaneseq
        %v5544 = vshrl.u32 %v5543, 7
        %v5545 = vsub.s32 0, %v5544
        %v5546 = vrot.slane %v5377, %v5545
        %v5548 = vcombine.high %v5546, %v5546
        %v5550 = vunpack.c.l.s4 1966171168
        %v5551 = vunpack.c.0.s8 %v5550
        %v5552 = vlaneseq
        %v5553 = vshrl.u32 %v5552, 7
        %v5554 = vsub.s32 %v5551, %v5553
        %v5555 = vrot.slane %v5546, %v5554
        %v5557 = vunpack.c.l.s4 1966171168
        %v5558 = vunpack.c.0.s8 %v5557
        %v5559 = vlaneseq
        %v5560 = vshrl.u32 %v5559, 7
        %v5561 = vsub.s32 %v5558, %v5560
        %v5562 = vrot.slane %v5548, %v5561
        %v5563 = vcombine.high %v5555, %v5555
        %v5564 = vcombine.high %v5562, %v5562
        %v5566 = vunpack.c.l.s4 1966171168
        %v5567 = vunpack.c.0.s8 %v5566
        %v5568 = vlaneseq
        %v5569 = vshrl.u32 %v5568, 7
        %v5570 = vsub.s32 %v5567, %v5569
        %v5571 = vrot.slane %v5555, %v5570
        %v5573 = vunpack.c.l.s4 1966171168
        %v5574 = vunpack.c.0.s8 %v5573
        %v5575 = vlaneseq
        %v5576 = vshrl.u32 %v5575, 7
        %v5577 = vsub.s32 %v5574, %v5576
        %v5578 = vrot.slane %v5562, %v5577
        %v5580 = vunpack.c.l.s4 1966171168
        %v5581 = vunpack.c.0.s8 %v5580
        %v5582 = vlaneseq
        %v5583 = vshrl.u32 %v5582, 7
        %v5584 = vsub.s32 %v5581, %v5583
        %v5585 = vrot.slane %v5563, %v5584
        %v5587 = vunpack.c.l.s4 1966171168
        %v5588 = vunpack.c.0.s8 %v5587
        %v5589 = vlaneseq
        %v5590 = vshrl.u32 %v5589, 7
        %v5591 = vsub.s32 %v5588, %v5590
        %v5592 = vrot.slane %v5564, %v5591
        %v5593 = vcombine.high %v5571, %v5571
        %v5594 = vcombine.high %v5578, %v5578
        %v5595 = vcombine.high %v5585, %v5585
        %v5603 = vadd.f32 %v5438, %v5571
        %v5604 = vadd.f32 %v5439, %v5585
        %v5605 = vadd.f32 %v5440, %v5593
        %v5606 = vadd.f32 %v5441, %v5595
        %v5607 = vadd.f32 %v5442, %v5578
        %v5608 = vadd.f32 %v5443, %v5592
        %v5609 = vadd.f32 %v5444, %v5594
        %v5610 = vadd.f32 %v5445, %v5571
        %v5611 = vadd.f32 %v5446, %v5585
        %v5612 = vadd.f32 %v5447, %v5593
        %v5613 = vadd.f32 %v5448, %v5595
        %v5614 = vadd.f32 %v5449, %v5578
        %v5615 = vadd.f32 %v5450, %v5592
        %v5616 = vadd.f32 %v5451, %v5594
        %v5617 = vadd.f32 %v5452, %v5571
        %v5618 = vadd.f32 %v5453, %v5585
        %v5619 = vadd.f32 %v5454, %v5593
        %v5620 = vadd.f32 %v5455, %v5595
        %v5621 = vadd.f32 %v5456, %v5578
        %v5622 = vadd.f32 %v5457, %v5592
        %v5623 = vadd.f32 %v5458, %v5594
        %v5624 = vadd.f32 %v5459, %v5571
        %v5625 = vadd.f32 %v5460, %v5585
        %v5626 = vadd.f32 %v5461, %v5593
        %v5627 = vadd.f32 %v5462, %v5595
        %v5628 = vadd.f32 %v5463, %v5578
        %v5629 = vadd.f32 %v5464, %v5592
        %v5630 = vadd.f32 %v5465, %v5594
        %v5631 = vadd.f32 %v5466, %v5571
        %v5632 = vadd.f32 %v5467, %v5585
        %v5633 = vadd.f32 %v5468, %v5593
        %v5634 = vadd.f32 %v5469, %v5595
        %v5635 = vadd.f32 %v5470, %v5578
        %v5636 = vadd.f32 %v5471, %v5592
        %v5637 = vadd.f32 %v5472, %v5594
        %v5638 = vadd.f32 %v5473, %v5571
        %v5639 = vadd.f32 %v5474, %v5585
        %v5640 = vadd.f32 %v5475, %v5593
        %v5641 = vadd.f32 %v5476, %v5595
        %v5642 = vadd.f32 %v5477, %v5578
        %v5643 = vadd.f32 %v5478, %v5592
        %v5644 = vadd.f32 %v5479, %v5594
        %v5645 = vadd.f32 %v5480, %v5571
        %v5646 = vadd.f32 %v5481, %v5585
        %v5647 = vadd.f32 %v5482, %v5593
        %v5648 = vadd.f32 %v5483, %v5595
        %v5649 = vadd.f32 %v5484, %v5578
        %v5650 = vadd.f32 %v5485, %v5592
        %v5651 = vadd.f32 %v5486, %v5594
        %v5652 = vadd.f32 %v5487, %v5571
        %v5653 = vadd.f32 %v5488, %v5585
        %v5654 = vadd.f32 %v5489, %v5593
        %v5655 = vadd.f32 %v5490, %v5595
        %v5656 = vadd.f32 %v5491, %v5578
        %v5657 = vadd.f32 %v5492, %v5592
        %v5658 = vadd.f32 %v5493, %v5594
        %v5659 = vadd.f32 %v5494, %v5571
        %v5660 = vadd.f32 %v5495, %v5585
        %v5661 = vadd.f32 %v5496, %v5593
        %v5662 = vadd.f32 %v5497, %v5595
        %v5663 = vadd.f32 %v5498, %v5578
        %v5664 = vadd.f32 %v5499, %v5592
        %v5665 = vadd.f32 %v5500, %v5594
        %v5666 = vadd.f32 %v5501, %v5571
        %v5667 = vadd.f32 %v5502, %v5585
        %v5668 = vadd.f32 %v5503, %v5593
        %v5669 = vadd.f32 %v5504, %v5595
        %v5670 = vadd.f32 %v5505, %v5578
        %v5671 = vadd.f32 %v5506, %v5592
        %v5672 = vadd.f32 %v5507, %v5594
        %v5673 = vadd.f32 %v5508, %v5571
        %v5674 = vadd.f32 %v5509, %v5585
        %v5675 = vadd.f32 %v5510, %v5593
        %v5676 = vadd.f32 %v5511, %v5595
        %v5677 = vadd.f32 %v5512, %v5578
        %v5678 = vadd.f32 %v5513, %v5592
        %v5679 = vadd.f32 %v5514, %v5594
        %v5680 = vadd.f32 %v5515, %v5571
        %v5681 = vadd.f32 %v5516, %v5585
        %v5682 = vadd.f32 %v5517, %v5593
        %v5683 = vadd.f32 %v5518, %v5595
        %v5684 = vadd.f32 %v5519, %v5578
        %v5685 = vadd.f32 %v5520, %v5592
        %v5686 = vadd.f32 %v5521, %v5594
        %v5687 = vadd.f32 %v5522, %v5571
        %v5688 = vadd.f32 %v5523, %v5585
        %v5689 = vadd.f32 %v5524, %v5593
        %v5690 = vadd.f32 %v5525, %v5595
        %v5691 = vadd.f32 %v5526, %v5578
        %v5692 = vadd.f32 %v5527, %v5592
        %v5693 = vadd.f32 %v5528, %v5594
        %v5694 = vadd.f32 %v5529, %v5571
        %v5695 = vadd.f32 %v5530, %v5585
        %v5696 = vadd.f32 %v5531, %v5593
        %v5697 = vadd.f32 %v5532, %v5595
        %v5698 = vadd.f32 %v5533, %v5578
        %v5699 = vadd.f32 %v5534, %v5592
        %v5700 = vadd.f32 %v5535, %v5594
        %v5701 = vadd.f32 %v5536, %v5571
        %v5702 = vadd.f32 %v5537, %v5585
        %v5703 = vadd.f32 %v5538, %v5593
        %v5704 = vadd.f32 %v5539, %v5595
        %v5705 = vadd.f32 %v5540, %v5578
        %v5706 = vadd.f32 %v5541, %v5592
        %v5707 = vadd.f32 %v5542, %v5594
        %vm5708 = vcmp.gt.f32.partialorder %v5603, 0.0
        %vm5709 = vcmp.gt.f32.partialorder %v5604, 0.0
        %vm5710 = vcmp.gt.f32.partialorder %v5605, 0.0
        %vm5711 = vcmp.gt.f32.partialorder %v5606, 0.0
        %vm5712 = vcmp.gt.f32.partialorder %v5607, 0.0
        %vm5713 = vcmp.gt.f32.partialorder %v5608, 0.0
        %vm5714 = vcmp.gt.f32.partialorder %v5609, 0.0
        %vm5715 = vcmp.gt.f32.partialorder %v5610, 0.0
        %vm5716 = vcmp.gt.f32.partialorder %v5611, 0.0
        %vm5717 = vcmp.gt.f32.partialorder %v5612, 0.0
        %vm5718 = vcmp.gt.f32.partialorder %v5613, 0.0
        %vm5719 = vcmp.gt.f32.partialorder %v5614, 0.0
        %vm5720 = vcmp.gt.f32.partialorder %v5615, 0.0
        %vm5721 = vcmp.gt.f32.partialorder %v5616, 0.0
        %vm5722 = vcmp.gt.f32.partialorder %v5617, 0.0
        %vm5723 = vcmp.gt.f32.partialorder %v5618, 0.0
        %vm5724 = vcmp.gt.f32.partialorder %v5619, 0.0
        %vm5725 = vcmp.gt.f32.partialorder %v5620, 0.0
        %vm5726 = vcmp.gt.f32.partialorder %v5621, 0.0
        %vm5727 = vcmp.gt.f32.partialorder %v5622, 0.0
        %vm5728 = vcmp.gt.f32.partialorder %v5623, 0.0
        %vm5729 = vcmp.gt.f32.partialorder %v5624, 0.0
        %vm5730 = vcmp.gt.f32.partialorder %v5625, 0.0
        %vm5731 = vcmp.gt.f32.partialorder %v5626, 0.0
        %vm5732 = vcmp.gt.f32.partialorder %v5627, 0.0
        %vm5733 = vcmp.gt.f32.partialorder %v5628, 0.0
        %vm5734 = vcmp.gt.f32.partialorder %v5629, 0.0
        %vm5735 = vcmp.gt.f32.partialorder %v5630, 0.0
        %vm5736 = vcmp.gt.f32.partialorder %v5631, 0.0
        %vm5737 = vcmp.gt.f32.partialorder %v5632, 0.0
        %vm5738 = vcmp.gt.f32.partialorder %v5633, 0.0
        %vm5739 = vcmp.gt.f32.partialorder %v5634, 0.0
        %vm5740 = vcmp.gt.f32.partialorder %v5635, 0.0
        %vm5741 = vcmp.gt.f32.partialorder %v5636, 0.0
        %vm5742 = vcmp.gt.f32.partialorder %v5637, 0.0
        %vm5743 = vcmp.gt.f32.partialorder %v5638, 0.0
        %vm5744 = vcmp.gt.f32.partialorder %v5639, 0.0
        %vm5745 = vcmp.gt.f32.partialorder %v5640, 0.0
        %vm5746 = vcmp.gt.f32.partialorder %v5641, 0.0
        %vm5747 = vcmp.gt.f32.partialorder %v5642, 0.0
        %vm5748 = vcmp.gt.f32.partialorder %v5643, 0.0
        %vm5749 = vcmp.gt.f32.partialorder %v5644, 0.0
        %vm5750 = vcmp.gt.f32.partialorder %v5645, 0.0
        %vm5751 = vcmp.gt.f32.partialorder %v5646, 0.0
        %vm5752 = vcmp.gt.f32.partialorder %v5647, 0.0
        %vm5753 = vcmp.gt.f32.partialorder %v5648, 0.0
        %vm5754 = vcmp.gt.f32.partialorder %v5649, 0.0
        %vm5755 = vcmp.gt.f32.partialorder %v5650, 0.0
        %vm5756 = vcmp.gt.f32.partialorder %v5651, 0.0
        %vm5757 = vcmp.gt.f32.partialorder %v5652, 0.0
        %vm5758 = vcmp.gt.f32.partialorder %v5653, 0.0
        %vm5759 = vcmp.gt.f32.partialorder %v5654, 0.0
        %vm5760 = vcmp.gt.f32.partialorder %v5655, 0.0
        %vm5761 = vcmp.gt.f32.partialorder %v5656, 0.0
        %vm5762 = vcmp.gt.f32.partialorder %v5657, 0.0
        %vm5763 = vcmp.gt.f32.partialorder %v5658, 0.0
        %vm5764 = vcmp.gt.f32.partialorder %v5659, 0.0
        %vm5765 = vcmp.gt.f32.partialorder %v5660, 0.0
        %vm5766 = vcmp.gt.f32.partialorder %v5661, 0.0
        %vm5767 = vcmp.gt.f32.partialorder %v5662, 0.0
        %vm5768 = vcmp.gt.f32.partialorder %v5663, 0.0
        %vm5769 = vcmp.gt.f32.partialorder %v5664, 0.0
        %vm5770 = vcmp.gt.f32.partialorder %v5665, 0.0
        %vm5771 = vcmp.gt.f32.partialorder %v5666, 0.0
        %vm5772 = vcmp.gt.f32.partialorder %v5667, 0.0
        %vm5773 = vcmp.gt.f32.partialorder %v5668, 0.0
        %vm5774 = vcmp.gt.f32.partialorder %v5669, 0.0
        %vm5775 = vcmp.gt.f32.partialorder %v5670, 0.0
        %vm5776 = vcmp.gt.f32.partialorder %v5671, 0.0
        %vm5777 = vcmp.gt.f32.partialorder %v5672, 0.0
        %vm5778 = vcmp.gt.f32.partialorder %v5673, 0.0
        %vm5779 = vcmp.gt.f32.partialorder %v5674, 0.0
        %vm5780 = vcmp.gt.f32.partialorder %v5675, 0.0
        %vm5781 = vcmp.gt.f32.partialorder %v5676, 0.0
        %vm5782 = vcmp.gt.f32.partialorder %v5677, 0.0
        %vm5783 = vcmp.gt.f32.partialorder %v5678, 0.0
        %vm5784 = vcmp.gt.f32.partialorder %v5679, 0.0
        %vm5785 = vcmp.gt.f32.partialorder %v5680, 0.0
        %vm5786 = vcmp.gt.f32.partialorder %v5681, 0.0
        %vm5787 = vcmp.gt.f32.partialorder %v5682, 0.0
        %vm5788 = vcmp.gt.f32.partialorder %v5683, 0.0
        %vm5789 = vcmp.gt.f32.partialorder %v5684, 0.0
        %vm5790 = vcmp.gt.f32.partialorder %v5685, 0.0
        %vm5791 = vcmp.gt.f32.partialorder %v5686, 0.0
        %vm5792 = vcmp.gt.f32.partialorder %v5687, 0.0
        %vm5793 = vcmp.gt.f32.partialorder %v5688, 0.0
        %vm5794 = vcmp.gt.f32.partialorder %v5689, 0.0
        %vm5795 = vcmp.gt.f32.partialorder %v5690, 0.0
        %vm5796 = vcmp.gt.f32.partialorder %v5691, 0.0
        %vm5797 = vcmp.gt.f32.partialorder %v5692, 0.0
        %vm5798 = vcmp.gt.f32.partialorder %v5693, 0.0
        %vm5799 = vcmp.gt.f32.partialorder %v5694, 0.0
        %vm5800 = vcmp.gt.f32.partialorder %v5695, 0.0
        %vm5801 = vcmp.gt.f32.partialorder %v5696, 0.0
        %vm5802 = vcmp.gt.f32.partialorder %v5697, 0.0
        %vm5803 = vcmp.gt.f32.partialorder %v5698, 0.0
        %vm5804 = vcmp.gt.f32.partialorder %v5699, 0.0
        %vm5805 = vcmp.gt.f32.partialorder %v5700, 0.0
        %vm5806 = vcmp.gt.f32.partialorder %v5701, 0.0
        %vm5807 = vcmp.gt.f32.partialorder %v5702, 0.0
        %vm5808 = vcmp.gt.f32.partialorder %v5703, 0.0
        %vm5809 = vcmp.gt.f32.partialorder %v5704, 0.0
        %vm5810 = vcmp.gt.f32.partialorder %v5705, 0.0
        %vm5811 = vcmp.gt.f32.partialorder %v5706, 0.0
        %vm5812 = vcmp.gt.f32.partialorder %v5707, 0.0
        %v5813 = vlaneseq
        %v5814 = vshrl.u32 %v5813, 7
        %v5815 = vsub.s32 0, %v5814
        %v5816 = vrot.slane %v5372, %v5815
        %v5922 = vcombine.low %v5603, %v5604
        %v5923 = vcombine.low %v5605, %v5606
        %v5924 = vcombine.low %v5607, %v5608
        %v5926 = vunpack.c.l.s4 1966171168
        %v5927 = vunpack.c.0.s8 %v5926
        %v5928 = vlaneseq
        %v5929 = vshrl.u32 %v5928, 7
        %v5930 = vsub.s32 %v5927, %v5929
        %v5931 = vrot.slane %v5922, %v5930
        %v5933 = vunpack.c.l.s4 1966171168
        %v5934 = vunpack.c.0.s8 %v5933
        %v5935 = vlaneseq
        %v5936 = vshrl.u32 %v5935, 7
        %v5937 = vsub.s32 %v5934, %v5936
        %v5938 = vrot.slane %v5923, %v5937
        %v5940 = vunpack.c.l.s4 1966171168
        %v5941 = vunpack.c.0.s8 %v5940
        %v5942 = vlaneseq
        %v5943 = vshrl.u32 %v5942, 7
        %v5944 = vsub.s32 %v5941, %v5943
        %v5945 = vrot.slane %v5924, %v5944
        %v5947 = vunpack.c.l.s4 1966171168
        %v5948 = vunpack.c.0.s8 %v5947
        %v5949 = vlaneseq
        %v5950 = vshrl.u32 %v5949, 7
        %v5951 = vsub.s32 %v5948, %v5950
        %v5952 = vrot.slane %v5609, %v5951
        %v5953 = vcombine.low %v5931, %v5938
        %v5954 = vcombine.low %v5945, %v5952
        %v5956 = vunpack.c.l.s4 1966171168
        %v5957 = vunpack.c.0.s8 %v5956
        %v5958 = vlaneseq
        %v5959 = vshrl.u32 %v5958, 7
        %v5960 = vsub.s32 %v5957, %v5959
        %v5961 = vrot.slane %v5953, %v5960
        %v5963 = vunpack.c.l.s4 1966171168
        %v5964 = vunpack.c.0.s8 %v5963
        %v5965 = vlaneseq
        %v5966 = vshrl.u32 %v5965, 7
        %v5967 = vsub.s32 %v5964, %v5966
        %v5968 = vrot.slane %v5954, %v5967
        %v5969 = vcombine.low %v5961, %v5968
        %v5970 = vcombine.low %v5610, %v5611
        %v5971 = vcombine.low %v5612, %v5613
        %v5972 = vcombine.low %v5614, %v5615
        %v5974 = vunpack.c.l.s4 1966171168
        %v5975 = vunpack.c.0.s8 %v5974
        %v5976 = vlaneseq
        %v5977 = vshrl.u32 %v5976, 7
        %v5978 = vsub.s32 %v5975, %v5977
        %v5979 = vrot.slane %v5970, %v5978
        %v5981 = vunpack.c.l.s4 1966171168
        %v5982 = vunpack.c.0.s8 %v5981
        %v5983 = vlaneseq
        %v5984 = vshrl.u32 %v5983, 7
        %v5985 = vsub.s32 %v5982, %v5984
        %v5986 = vrot.slane %v5971, %v5985
        %v5988 = vunpack.c.l.s4 1966171168
        %v5989 = vunpack.c.0.s8 %v5988
        %v5990 = vlaneseq
        %v5991 = vshrl.u32 %v5990, 7
        %v5992 = vsub.s32 %v5989, %v5991
        %v5993 = vrot.slane %v5972, %v5992
        %v5995 = vunpack.c.l.s4 1966171168
        %v5996 = vunpack.c.0.s8 %v5995
        %v5997 = vlaneseq
        %v5998 = vshrl.u32 %v5997, 7
        %v5999 = vsub.s32 %v5996, %v5998
        %v6000 = vrot.slane %v5616, %v5999
        %v6001 = vcombine.low %v5979, %v5986
        %v6002 = vcombine.low %v5993, %v6000
        %v6004 = vunpack.c.l.s4 1966171168
        %v6005 = vunpack.c.0.s8 %v6004
        %v6006 = vlaneseq
        %v6007 = vshrl.u32 %v6006, 7
        %v6008 = vsub.s32 %v6005, %v6007
        %v6009 = vrot.slane %v6001, %v6008
        %v6011 = vunpack.c.l.s4 1966171168
        %v6012 = vunpack.c.0.s8 %v6011
        %v6013 = vlaneseq
        %v6014 = vshrl.u32 %v6013, 7
        %v6015 = vsub.s32 %v6012, %v6014
        %v6016 = vrot.slane %v6002, %v6015
        %v6017 = vcombine.low %v6009, %v6016
        %v6018 = vcombine.low %v5617, %v5618
        %v6019 = vcombine.low %v5619, %v5620
        %v6020 = vcombine.low %v5621, %v5622
        %v6022 = vunpack.c.l.s4 1966171168
        %v6023 = vunpack.c.0.s8 %v6022
        %v6024 = vlaneseq
        %v6025 = vshrl.u32 %v6024, 7
        %v6026 = vsub.s32 %v6023, %v6025
        %v6027 = vrot.slane %v6018, %v6026
        %v6029 = vunpack.c.l.s4 1966171168
        %v6030 = vunpack.c.0.s8 %v6029
        %v6031 = vlaneseq
        %v6032 = vshrl.u32 %v6031, 7
        %v6033 = vsub.s32 %v6030, %v6032
        %v6034 = vrot.slane %v6019, %v6033
        %v6036 = vunpack.c.l.s4 1966171168
        %v6037 = vunpack.c.0.s8 %v6036
        %v6038 = vlaneseq
        %v6039 = vshrl.u32 %v6038, 7
        %v6040 = vsub.s32 %v6037, %v6039
        %v6041 = vrot.slane %v6020, %v6040
        %v6043 = vunpack.c.l.s4 1966171168
        %v6044 = vunpack.c.0.s8 %v6043
        %v6045 = vlaneseq
        %v6046 = vshrl.u32 %v6045, 7
        %v6047 = vsub.s32 %v6044, %v6046
        %v6048 = vrot.slane %v5623, %v6047
        %v6049 = vcombine.low %v6027, %v6034
        %v6050 = vcombine.low %v6041, %v6048
        %v6052 = vunpack.c.l.s4 1966171168
        %v6053 = vunpack.c.0.s8 %v6052
        %v6054 = vlaneseq
        %v6055 = vshrl.u32 %v6054, 7
        %v6056 = vsub.s32 %v6053, %v6055
        %v6057 = vrot.slane %v6049, %v6056
        %v6059 = vunpack.c.l.s4 1966171168
        %v6060 = vunpack.c.0.s8 %v6059
        %v6061 = vlaneseq
        %v6062 = vshrl.u32 %v6061, 7
        %v6063 = vsub.s32 %v6060, %v6062
        %v6064 = vrot.slane %v6050, %v6063
        %v6065 = vcombine.low %v6057, %v6064
        %v6066 = vcombine.low %v5624, %v5625
        %v6067 = vcombine.low %v5626, %v5627
        %v6068 = vcombine.low %v5628, %v5629
        %v6070 = vunpack.c.l.s4 1966171168
        %v6071 = vunpack.c.0.s8 %v6070
        %v6072 = vlaneseq
        %v6073 = vshrl.u32 %v6072, 7
        %v6074 = vsub.s32 %v6071, %v6073
        %v6075 = vrot.slane %v6066, %v6074
        %v6077 = vunpack.c.l.s4 1966171168
        %v6078 = vunpack.c.0.s8 %v6077
        %v6079 = vlaneseq
        %v6080 = vshrl.u32 %v6079, 7
        %v6081 = vsub.s32 %v6078, %v6080
        %v6082 = vrot.slane %v6067, %v6081
        %v6084 = vunpack.c.l.s4 1966171168
        %v6085 = vunpack.c.0.s8 %v6084
        %v6086 = vlaneseq
        %v6087 = vshrl.u32 %v6086, 7
        %v6088 = vsub.s32 %v6085, %v6087
        %v6089 = vrot.slane %v6068, %v6088
        %v6091 = vunpack.c.l.s4 1966171168
        %v6092 = vunpack.c.0.s8 %v6091
        %v6093 = vlaneseq
        %v6094 = vshrl.u32 %v6093, 7
        %v6095 = vsub.s32 %v6092, %v6094
        %v6096 = vrot.slane %v5630, %v6095
        %v6097 = vcombine.low %v6075, %v6082
        %v6098 = vcombine.low %v6089, %v6096
        %v6100 = vunpack.c.l.s4 1966171168
        %v6101 = vunpack.c.0.s8 %v6100
        %v6102 = vlaneseq
        %v6103 = vshrl.u32 %v6102, 7
        %v6104 = vsub.s32 %v6101, %v6103
        %v6105 = vrot.slane %v6097, %v6104
        %v6107 = vunpack.c.l.s4 1966171168
        %v6108 = vunpack.c.0.s8 %v6107
        %v6109 = vlaneseq
        %v6110 = vshrl.u32 %v6109, 7
        %v6111 = vsub.s32 %v6108, %v6110
        %v6112 = vrot.slane %v6098, %v6111
        %v6113 = vcombine.low %v6105, %v6112
        %v6114 = vcombine.low %v5631, %v5632
        %v6115 = vcombine.low %v5633, %v5634
        %v6116 = vcombine.low %v5635, %v5636
        %v6118 = vunpack.c.l.s4 1966171168
        %v6119 = vunpack.c.0.s8 %v6118
        %v6120 = vlaneseq
        %v6121 = vshrl.u32 %v6120, 7
        %v6122 = vsub.s32 %v6119, %v6121
        %v6123 = vrot.slane %v6114, %v6122
        %v6125 = vunpack.c.l.s4 1966171168
        %v6126 = vunpack.c.0.s8 %v6125
        %v6127 = vlaneseq
        %v6128 = vshrl.u32 %v6127, 7
        %v6129 = vsub.s32 %v6126, %v6128
        %v6130 = vrot.slane %v6115, %v6129
        %v6132 = vunpack.c.l.s4 1966171168
        %v6133 = vunpack.c.0.s8 %v6132
        %v6134 = vlaneseq
        %v6135 = vshrl.u32 %v6134, 7
        %v6136 = vsub.s32 %v6133, %v6135
        %v6137 = vrot.slane %v6116, %v6136
        %v6139 = vunpack.c.l.s4 1966171168
        %v6140 = vunpack.c.0.s8 %v6139
        %v6141 = vlaneseq
        %v6142 = vshrl.u32 %v6141, 7
        %v6143 = vsub.s32 %v6140, %v6142
        %v6144 = vrot.slane %v5637, %v6143
        %v6145 = vcombine.low %v6123, %v6130
        %v6146 = vcombine.low %v6137, %v6144
        %v6148 = vunpack.c.l.s4 1966171168
        %v6149 = vunpack.c.0.s8 %v6148
        %v6150 = vlaneseq
        %v6151 = vshrl.u32 %v6150, 7
        %v6152 = vsub.s32 %v6149, %v6151
        %v6153 = vrot.slane %v6145, %v6152
        %v6155 = vunpack.c.l.s4 1966171168
        %v6156 = vunpack.c.0.s8 %v6155
        %v6157 = vlaneseq
        %v6158 = vshrl.u32 %v6157, 7
        %v6159 = vsub.s32 %v6156, %v6158
        %v6160 = vrot.slane %v6146, %v6159
        %v6161 = vcombine.low %v6153, %v6160
        %v6162 = vcombine.low %v5638, %v5639
        %v6163 = vcombine.low %v5640, %v5641
        %v6164 = vcombine.low %v5642, %v5643
        %v6166 = vunpack.c.l.s4 1966171168
        %v6167 = vunpack.c.0.s8 %v6166
        %v6168 = vlaneseq
        %v6169 = vshrl.u32 %v6168, 7
        %v6170 = vsub.s32 %v6167, %v6169
        %v6171 = vrot.slane %v6162, %v6170
        %v6173 = vunpack.c.l.s4 1966171168
        %v6174 = vunpack.c.0.s8 %v6173
        %v6175 = vlaneseq
        %v6176 = vshrl.u32 %v6175, 7
        %v6177 = vsub.s32 %v6174, %v6176
        %v6178 = vrot.slane %v6163, %v6177
        %v6180 = vunpack.c.l.s4 1966171168
        %v6181 = vunpack.c.0.s8 %v6180
        %v6182 = vlaneseq
        %v6183 = vshrl.u32 %v6182, 7
        %v6184 = vsub.s32 %v6181, %v6183
        %v6185 = vrot.slane %v6164, %v6184
        %v6187 = vunpack.c.l.s4 1966171168
        %v6188 = vunpack.c.0.s8 %v6187
        %v6189 = vlaneseq
        %v6190 = vshrl.u32 %v6189, 7
        %v6191 = vsub.s32 %v6188, %v6190
        %v6192 = vrot.slane %v5644, %v6191
        %v6193 = vcombine.low %v6171, %v6178
        %v6194 = vcombine.low %v6185, %v6192
        %v6196 = vunpack.c.l.s4 1966171168
        %v6197 = vunpack.c.0.s8 %v6196
        %v6198 = vlaneseq
        %v6199 = vshrl.u32 %v6198, 7
        %v6200 = vsub.s32 %v6197, %v6199
        %v6201 = vrot.slane %v6193, %v6200
        %v6203 = vunpack.c.l.s4 1966171168
        %v6204 = vunpack.c.0.s8 %v6203
        %v6205 = vlaneseq
        %v6206 = vshrl.u32 %v6205, 7
        %v6207 = vsub.s32 %v6204, %v6206
        %v6208 = vrot.slane %v6194, %v6207
        %v6209 = vcombine.low %v6201, %v6208
        %v6210 = vcombine.low %v5645, %v5646
        %v6211 = vcombine.low %v5647, %v5648
        %v6212 = vcombine.low %v5649, %v5650
        %v6214 = vunpack.c.l.s4 1966171168
        %v6215 = vunpack.c.0.s8 %v6214
        %v6216 = vlaneseq
        %v6217 = vshrl.u32 %v6216, 7
        %v6218 = vsub.s32 %v6215, %v6217
        %v6219 = vrot.slane %v6210, %v6218
        %v6221 = vunpack.c.l.s4 1966171168
        %v6222 = vunpack.c.0.s8 %v6221
        %v6223 = vlaneseq
        %v6224 = vshrl.u32 %v6223, 7
        %v6225 = vsub.s32 %v6222, %v6224
        %v6226 = vrot.slane %v6211, %v6225
        %v6228 = vunpack.c.l.s4 1966171168
        %v6229 = vunpack.c.0.s8 %v6228
        %v6230 = vlaneseq
        %v6231 = vshrl.u32 %v6230, 7
        %v6232 = vsub.s32 %v6229, %v6231
        %v6233 = vrot.slane %v6212, %v6232
        %v6235 = vunpack.c.l.s4 1966171168
        %v6236 = vunpack.c.0.s8 %v6235
        %v6237 = vlaneseq
        %v6238 = vshrl.u32 %v6237, 7
        %v6239 = vsub.s32 %v6236, %v6238
        %v6240 = vrot.slane %v5651, %v6239
        %v6241 = vcombine.low %v6219, %v6226
        %v6242 = vcombine.low %v6233, %v6240
        %v6244 = vunpack.c.l.s4 1966171168
        %v6245 = vunpack.c.0.s8 %v6244
        %v6246 = vlaneseq
        %v6247 = vshrl.u32 %v6246, 7
        %v6248 = vsub.s32 %v6245, %v6247
        %v6249 = vrot.slane %v6241, %v6248
        %v6251 = vunpack.c.l.s4 1966171168
        %v6252 = vunpack.c.0.s8 %v6251
        %v6253 = vlaneseq
        %v6254 = vshrl.u32 %v6253, 7
        %v6255 = vsub.s32 %v6252, %v6254
        %v6256 = vrot.slane %v6242, %v6255
        %v6257 = vcombine.low %v6249, %v6256
        %v6258 = vcombine.low %v5652, %v5653
        %v6259 = vcombine.low %v5654, %v5655
        %v6260 = vcombine.low %v5656, %v5657
        %v6262 = vunpack.c.l.s4 1966171168
        %v6263 = vunpack.c.0.s8 %v6262
        %v6264 = vlaneseq
        %v6265 = vshrl.u32 %v6264, 7
        %v6266 = vsub.s32 %v6263, %v6265
        %v6267 = vrot.slane %v6258, %v6266
        %v6269 = vunpack.c.l.s4 1966171168
        %v6270 = vunpack.c.0.s8 %v6269
        %v6271 = vlaneseq
        %v6272 = vshrl.u32 %v6271, 7
        %v6273 = vsub.s32 %v6270, %v6272
        %v6274 = vrot.slane %v6259, %v6273
        %v6276 = vunpack.c.l.s4 1966171168
        %v6277 = vunpack.c.0.s8 %v6276
        %v6278 = vlaneseq
        %v6279 = vshrl.u32 %v6278, 7
        %v6280 = vsub.s32 %v6277, %v6279
        %v6281 = vrot.slane %v6260, %v6280
        %v6283 = vunpack.c.l.s4 1966171168
        %v6284 = vunpack.c.0.s8 %v6283
        %v6285 = vlaneseq
        %v6286 = vshrl.u32 %v6285, 7
        %v6287 = vsub.s32 %v6284, %v6286
        %v6288 = vrot.slane %v5658, %v6287
        %v6289 = vcombine.low %v6267, %v6274
        %v6290 = vcombine.low %v6281, %v6288
        %v6292 = vunpack.c.l.s4 1966171168
        %v6293 = vunpack.c.0.s8 %v6292
        %v6294 = vlaneseq
        %v6295 = vshrl.u32 %v6294, 7
        %v6296 = vsub.s32 %v6293, %v6295
        %v6297 = vrot.slane %v6289, %v6296
        %v6299 = vunpack.c.l.s4 1966171168
        %v6300 = vunpack.c.0.s8 %v6299
        %v6301 = vlaneseq
        %v6302 = vshrl.u32 %v6301, 7
        %v6303 = vsub.s32 %v6300, %v6302
        %v6304 = vrot.slane %v6290, %v6303
        %v6305 = vcombine.low %v6297, %v6304
        %v6306 = vcombine.low %v5659, %v5660
        %v6307 = vcombine.low %v5661, %v5662
        %v6308 = vcombine.low %v5663, %v5664
        %v6310 = vunpack.c.l.s4 1966171168
        %v6311 = vunpack.c.0.s8 %v6310
        %v6312 = vlaneseq
        %v6313 = vshrl.u32 %v6312, 7
        %v6314 = vsub.s32 %v6311, %v6313
        %v6315 = vrot.slane %v6306, %v6314
        %v6317 = vunpack.c.l.s4 1966171168
        %v6318 = vunpack.c.0.s8 %v6317
        %v6319 = vlaneseq
        %v6320 = vshrl.u32 %v6319, 7
        %v6321 = vsub.s32 %v6318, %v6320
        %v6322 = vrot.slane %v6307, %v6321
        %v6324 = vunpack.c.l.s4 1966171168
        %v6325 = vunpack.c.0.s8 %v6324
        %v6326 = vlaneseq
        %v6327 = vshrl.u32 %v6326, 7
        %v6328 = vsub.s32 %v6325, %v6327
        %v6329 = vrot.slane %v6308, %v6328
        %v6331 = vunpack.c.l.s4 1966171168
        %v6332 = vunpack.c.0.s8 %v6331
        %v6333 = vlaneseq
        %v6334 = vshrl.u32 %v6333, 7
        %v6335 = vsub.s32 %v6332, %v6334
        %v6336 = vrot.slane %v5665, %v6335
        %v6337 = vcombine.low %v6315, %v6322
        %v6338 = vcombine.low %v6329, %v6336
        %v6340 = vunpack.c.l.s4 1966171168
        %v6341 = vunpack.c.0.s8 %v6340
        %v6342 = vlaneseq
        %v6343 = vshrl.u32 %v6342, 7
        %v6344 = vsub.s32 %v6341, %v6343
        %v6345 = vrot.slane %v6337, %v6344
        %v6347 = vunpack.c.l.s4 1966171168
        %v6348 = vunpack.c.0.s8 %v6347
        %v6349 = vlaneseq
        %v6350 = vshrl.u32 %v6349, 7
        %v6351 = vsub.s32 %v6348, %v6350
        %v6352 = vrot.slane %v6338, %v6351
        %v6353 = vcombine.low %v6345, %v6352
        %v6354 = vcombine.low %v5666, %v5667
        %v6355 = vcombine.low %v5668, %v5669
        %v6356 = vcombine.low %v5670, %v5671
        %v6358 = vunpack.c.l.s4 1966171168
        %v6359 = vunpack.c.0.s8 %v6358
        %v6360 = vlaneseq
        %v6361 = vshrl.u32 %v6360, 7
        %v6362 = vsub.s32 %v6359, %v6361
        %v6363 = vrot.slane %v6354, %v6362
        %v6365 = vunpack.c.l.s4 1966171168
        %v6366 = vunpack.c.0.s8 %v6365
        %v6367 = vlaneseq
        %v6368 = vshrl.u32 %v6367, 7
        %v6369 = vsub.s32 %v6366, %v6368
        %v6370 = vrot.slane %v6355, %v6369
        %v6372 = vunpack.c.l.s4 1966171168
        %v6373 = vunpack.c.0.s8 %v6372
        %v6374 = vlaneseq
        %v6375 = vshrl.u32 %v6374, 7
        %v6376 = vsub.s32 %v6373, %v6375
        %v6377 = vrot.slane %v6356, %v6376
        %v6379 = vunpack.c.l.s4 1966171168
        %v6380 = vunpack.c.0.s8 %v6379
        %v6381 = vlaneseq
        %v6382 = vshrl.u32 %v6381, 7
        %v6383 = vsub.s32 %v6380, %v6382
        %v6384 = vrot.slane %v5672, %v6383
        %v6385 = vcombine.low %v6363, %v6370
        %v6386 = vcombine.low %v6377, %v6384
        %v6388 = vunpack.c.l.s4 1966171168
        %v6389 = vunpack.c.0.s8 %v6388
        %v6390 = vlaneseq
        %v6391 = vshrl.u32 %v6390, 7
        %v6392 = vsub.s32 %v6389, %v6391
        %v6393 = vrot.slane %v6385, %v6392
        %v6395 = vunpack.c.l.s4 1966171168
        %v6396 = vunpack.c.0.s8 %v6395
        %v6397 = vlaneseq
        %v6398 = vshrl.u32 %v6397, 7
        %v6399 = vsub.s32 %v6396, %v6398
        %v6400 = vrot.slane %v6386, %v6399
        %v6401 = vcombine.low %v6393, %v6400
        %v6402 = vcombine.low %v5673, %v5674
        %v6403 = vcombine.low %v5675, %v5676
        %v6404 = vcombine.low %v5677, %v5678
        %v6406 = vunpack.c.l.s4 1966171168
        %v6407 = vunpack.c.0.s8 %v6406
        %v6408 = vlaneseq
        %v6409 = vshrl.u32 %v6408, 7
        %v6410 = vsub.s32 %v6407, %v6409
        %v6411 = vrot.slane %v6402, %v6410
        %v6413 = vunpack.c.l.s4 1966171168
        %v6414 = vunpack.c.0.s8 %v6413
        %v6415 = vlaneseq
        %v6416 = vshrl.u32 %v6415, 7
        %v6417 = vsub.s32 %v6414, %v6416
        %v6418 = vrot.slane %v6403, %v6417
        %v6420 = vunpack.c.l.s4 1966171168
        %v6421 = vunpack.c.0.s8 %v6420
        %v6422 = vlaneseq
        %v6423 = vshrl.u32 %v6422, 7
        %v6424 = vsub.s32 %v6421, %v6423
        %v6425 = vrot.slane %v6404, %v6424
        %v6427 = vunpack.c.l.s4 1966171168
        %v6428 = vunpack.c.0.s8 %v6427
        %v6429 = vlaneseq
        %v6430 = vshrl.u32 %v6429, 7
        %v6431 = vsub.s32 %v6428, %v6430
        %v6432 = vrot.slane %v5679, %v6431
        %v6433 = vcombine.low %v6411, %v6418
        %v6434 = vcombine.low %v6425, %v6432
        %v6436 = vunpack.c.l.s4 1966171168
        %v6437 = vunpack.c.0.s8 %v6436
        %v6438 = vlaneseq
        %v6439 = vshrl.u32 %v6438, 7
        %v6440 = vsub.s32 %v6437, %v6439
        %v6441 = vrot.slane %v6433, %v6440
        %v6443 = vunpack.c.l.s4 1966171168
        %v6444 = vunpack.c.0.s8 %v6443
        %v6445 = vlaneseq
        %v6446 = vshrl.u32 %v6445, 7
        %v6447 = vsub.s32 %v6444, %v6446
        %v6448 = vrot.slane %v6434, %v6447
        %v6449 = vcombine.low %v6441, %v6448
        %v6450 = vcombine.low %v5680, %v5681
        %v6451 = vcombine.low %v5682, %v5683
        %v6452 = vcombine.low %v5684, %v5685
        %v6454 = vunpack.c.l.s4 1966171168
        %v6455 = vunpack.c.0.s8 %v6454
        %v6456 = vlaneseq
        %v6457 = vshrl.u32 %v6456, 7
        %v6458 = vsub.s32 %v6455, %v6457
        %v6459 = vrot.slane %v6450, %v6458
        %v6461 = vunpack.c.l.s4 1966171168
        %v6462 = vunpack.c.0.s8 %v6461
        %v6463 = vlaneseq
        %v6464 = vshrl.u32 %v6463, 7
        %v6465 = vsub.s32 %v6462, %v6464
        %v6466 = vrot.slane %v6451, %v6465
        %v6468 = vunpack.c.l.s4 1966171168
        %v6469 = vunpack.c.0.s8 %v6468
        %v6470 = vlaneseq
        %v6471 = vshrl.u32 %v6470, 7
        %v6472 = vsub.s32 %v6469, %v6471
        %v6473 = vrot.slane %v6452, %v6472
        %v6475 = vunpack.c.l.s4 1966171168
        %v6476 = vunpack.c.0.s8 %v6475
        %v6477 = vlaneseq
        %v6478 = vshrl.u32 %v6477, 7
        %v6479 = vsub.s32 %v6476, %v6478
        %v6480 = vrot.slane %v5686, %v6479
        %v6481 = vcombine.low %v6459, %v6466
        %v6482 = vcombine.low %v6473, %v6480
        %v6484 = vunpack.c.l.s4 1966171168
        %v6485 = vunpack.c.0.s8 %v6484
        %v6486 = vlaneseq
        %v6487 = vshrl.u32 %v6486, 7
        %v6488 = vsub.s32 %v6485, %v6487
        %v6489 = vrot.slane %v6481, %v6488
        %v6491 = vunpack.c.l.s4 1966171168
        %v6492 = vunpack.c.0.s8 %v6491
        %v6493 = vlaneseq
        %v6494 = vshrl.u32 %v6493, 7
        %v6495 = vsub.s32 %v6492, %v6494
        %v6496 = vrot.slane %v6482, %v6495
        %v6497 = vcombine.low %v6489, %v6496
        %v6498 = vcombine.low %v5687, %v5688
        %v6499 = vcombine.low %v5689, %v5690
        %v6500 = vcombine.low %v5691, %v5692
        %v6502 = vunpack.c.l.s4 1966171168
        %v6503 = vunpack.c.0.s8 %v6502
        %v6504 = vlaneseq
        %v6505 = vshrl.u32 %v6504, 7
        %v6506 = vsub.s32 %v6503, %v6505
        %v6507 = vrot.slane %v6498, %v6506
        %v6509 = vunpack.c.l.s4 1966171168
        %v6510 = vunpack.c.0.s8 %v6509
        %v6511 = vlaneseq
        %v6512 = vshrl.u32 %v6511, 7
        %v6513 = vsub.s32 %v6510, %v6512
        %v6514 = vrot.slane %v6499, %v6513
        %v6516 = vunpack.c.l.s4 1966171168
        %v6517 = vunpack.c.0.s8 %v6516
        %v6518 = vlaneseq
        %v6519 = vshrl.u32 %v6518, 7
        %v6520 = vsub.s32 %v6517, %v6519
        %v6521 = vrot.slane %v6500, %v6520
        %v6523 = vunpack.c.l.s4 1966171168
        %v6524 = vunpack.c.0.s8 %v6523
        %v6525 = vlaneseq
        %v6526 = vshrl.u32 %v6525, 7
        %v6527 = vsub.s32 %v6524, %v6526
        %v6528 = vrot.slane %v5693, %v6527
        %v6529 = vcombine.low %v6507, %v6514
        %v6530 = vcombine.low %v6521, %v6528
        %v6532 = vunpack.c.l.s4 1966171168
        %v6533 = vunpack.c.0.s8 %v6532
        %v6534 = vlaneseq
        %v6535 = vshrl.u32 %v6534, 7
        %v6536 = vsub.s32 %v6533, %v6535
        %v6537 = vrot.slane %v6529, %v6536
        %v6539 = vunpack.c.l.s4 1966171168
        %v6540 = vunpack.c.0.s8 %v6539
        %v6541 = vlaneseq
        %v6542 = vshrl.u32 %v6541, 7
        %v6543 = vsub.s32 %v6540, %v6542
        %v6544 = vrot.slane %v6530, %v6543
        %v6545 = vcombine.low %v6537, %v6544
        %v6546 = vcombine.low %v5694, %v5695
        %v6547 = vcombine.low %v5696, %v5697
        %v6548 = vcombine.low %v5698, %v5699
        %v6550 = vunpack.c.l.s4 1966171168
        %v6551 = vunpack.c.0.s8 %v6550
        %v6552 = vlaneseq
        %v6553 = vshrl.u32 %v6552, 7
        %v6554 = vsub.s32 %v6551, %v6553
        %v6555 = vrot.slane %v6546, %v6554
        %v6557 = vunpack.c.l.s4 1966171168
        %v6558 = vunpack.c.0.s8 %v6557
        %v6559 = vlaneseq
        %v6560 = vshrl.u32 %v6559, 7
        %v6561 = vsub.s32 %v6558, %v6560
        %v6562 = vrot.slane %v6547, %v6561
        %v6564 = vunpack.c.l.s4 1966171168
        %v6565 = vunpack.c.0.s8 %v6564
        %v6566 = vlaneseq
        %v6567 = vshrl.u32 %v6566, 7
        %v6568 = vsub.s32 %v6565, %v6567
        %v6569 = vrot.slane %v6548, %v6568
        %v6571 = vunpack.c.l.s4 1966171168
        %v6572 = vunpack.c.0.s8 %v6571
        %v6573 = vlaneseq
        %v6574 = vshrl.u32 %v6573, 7
        %v6575 = vsub.s32 %v6572, %v6574
        %v6576 = vrot.slane %v5700, %v6575
        %v6577 = vcombine.low %v6555, %v6562
        %v6578 = vcombine.low %v6569, %v6576
        %v6580 = vunpack.c.l.s4 1966171168
        %v6581 = vunpack.c.0.s8 %v6580
        %v6582 = vlaneseq
        %v6583 = vshrl.u32 %v6582, 7
        %v6584 = vsub.s32 %v6581, %v6583
        %v6585 = vrot.slane %v6577, %v6584
        %v6587 = vunpack.c.l.s4 1966171168
        %v6588 = vunpack.c.0.s8 %v6587
        %v6589 = vlaneseq
        %v6590 = vshrl.u32 %v6589, 7
        %v6591 = vsub.s32 %v6588, %v6590
        %v6592 = vrot.slane %v6578, %v6591
        %v6593 = vcombine.low %v6585, %v6592
        %v6594 = vcombine.low %v5701, %v5702
        %v6595 = vcombine.low %v5703, %v5704
        %v6596 = vcombine.low %v5705, %v5706
        %v6598 = vunpack.c.l.s4 1966171168
        %v6599 = vunpack.c.0.s8 %v6598
        %v6600 = vlaneseq
        %v6601 = vshrl.u32 %v6600, 7
        %v6602 = vsub.s32 %v6599, %v6601
        %v6603 = vrot.slane %v6594, %v6602
        %v6605 = vunpack.c.l.s4 1966171168
        %v6606 = vunpack.c.0.s8 %v6605
        %v6607 = vlaneseq
        %v6608 = vshrl.u32 %v6607, 7
        %v6609 = vsub.s32 %v6606, %v6608
        %v6610 = vrot.slane %v6595, %v6609
        %v6612 = vunpack.c.l.s4 1966171168
        %v6613 = vunpack.c.0.s8 %v6612
        %v6614 = vlaneseq
        %v6615 = vshrl.u32 %v6614, 7
        %v6616 = vsub.s32 %v6613, %v6615
        %v6617 = vrot.slane %v6596, %v6616
        %v6619 = vunpack.c.l.s4 1966171168
        %v6620 = vunpack.c.0.s8 %v6619
        %v6621 = vlaneseq
        %v6622 = vshrl.u32 %v6621, 7
        %v6623 = vsub.s32 %v6620, %v6622
        %v6624 = vrot.slane %v5707, %v6623
        %v6625 = vcombine.low %v6603, %v6610
        %v6626 = vcombine.low %v6617, %v6624
        %v6628 = vunpack.c.l.s4 1966171168
        %v6629 = vunpack.c.0.s8 %v6628
        %v6630 = vlaneseq
        %v6631 = vshrl.u32 %v6630, 7
        %v6632 = vsub.s32 %v6629, %v6631
        %v6633 = vrot.slane %v6625, %v6632
        %v6635 = vunpack.c.l.s4 1966171168
        %v6636 = vunpack.c.0.s8 %v6635
        %v6637 = vlaneseq
        %v6638 = vshrl.u32 %v6637, 7
        %v6639 = vsub.s32 %v6636, %v6638
        %v6640 = vrot.slane %v6626, %v6639
        %v6641 = vcombine.low %v6633, %v6640
        %v6657 = vmul.f32 %v5816, %v5969
        %v6658 = vmul.f32 %v5816, %v6017
        %v6659 = vmul.f32 %v5816, %v6065
        %v6660 = vmul.f32 %v5816, %v6113
        %v6661 = vmul.f32 %v5816, %v6161
        %v6662 = vmul.f32 %v5816, %v6209
        %v6663 = vmul.f32 %v5816, %v6257
        %v6664 = vmul.f32 %v5816, %v6305
        %v6665 = vmul.f32 %v5816, %v6353
        %v6666 = vmul.f32 %v5816, %v6401
        %v6667 = vmul.f32 %v5816, %v6449
        %v6668 = vmul.f32 %v5816, %v6497
        %v6669 = vmul.f32 %v5816, %v6545
        %v6670 = vmul.f32 %v5816, %v6593
        %v6671 = vmul.f32 %v5816, %v6641
        %v6687 = vcombine.high %v6657, %v6657
        %v6689 = vunpack.c.l.s4 1966171168
        %v6690 = vunpack.c.0.s8 %v6689
        %v6691 = vlaneseq
        %v6692 = vshrl.u32 %v6691, 7
        %v6693 = vsub.s32 %v6690, %v6692
        %v6694 = vrot.slane %v6657, %v6693
        %v6696 = vunpack.c.l.s4 1966171168
        %v6697 = vunpack.c.0.s8 %v6696
        %v6698 = vlaneseq
        %v6699 = vshrl.u32 %v6698, 7
        %v6700 = vsub.s32 %v6697, %v6699
        %v6701 = vrot.slane %v6687, %v6700
        %v6702 = vcombine.high %v6694, %v6694
        %v6703 = vcombine.high %v6701, %v6701
        %v6705 = vunpack.c.l.s4 1966171168
        %v6706 = vunpack.c.0.s8 %v6705
        %v6707 = vlaneseq
        %v6708 = vshrl.u32 %v6707, 7
        %v6709 = vsub.s32 %v6706, %v6708
        %v6710 = vrot.slane %v6694, %v6709
        %v6712 = vunpack.c.l.s4 1966171168
        %v6713 = vunpack.c.0.s8 %v6712
        %v6714 = vlaneseq
        %v6715 = vshrl.u32 %v6714, 7
        %v6716 = vsub.s32 %v6713, %v6715
        %v6717 = vrot.slane %v6701, %v6716
        %v6719 = vunpack.c.l.s4 1966171168
        %v6720 = vunpack.c.0.s8 %v6719
        %v6721 = vlaneseq
        %v6722 = vshrl.u32 %v6721, 7
        %v6723 = vsub.s32 %v6720, %v6722
        %v6724 = vrot.slane %v6702, %v6723
        %v6726 = vunpack.c.l.s4 1966171168
        %v6727 = vunpack.c.0.s8 %v6726
        %v6728 = vlaneseq
        %v6729 = vshrl.u32 %v6728, 7
        %v6730 = vsub.s32 %v6727, %v6729
        %v6731 = vrot.slane %v6703, %v6730
        %v6732 = vcombine.high %v6710, %v6710
        %v6733 = vcombine.high %v6717, %v6717
        %v6734 = vcombine.high %v6724, %v6724
        %v6735 = vcombine.high %v6658, %v6658
        %v6737 = vunpack.c.l.s4 1966171168
        %v6738 = vunpack.c.0.s8 %v6737
        %v6739 = vlaneseq
        %v6740 = vshrl.u32 %v6739, 7
        %v6741 = vsub.s32 %v6738, %v6740
        %v6742 = vrot.slane %v6658, %v6741
        %v6744 = vunpack.c.l.s4 1966171168
        %v6745 = vunpack.c.0.s8 %v6744
        %v6746 = vlaneseq
        %v6747 = vshrl.u32 %v6746, 7
        %v6748 = vsub.s32 %v6745, %v6747
        %v6749 = vrot.slane %v6735, %v6748
        %v6750 = vcombine.high %v6742, %v6742
        %v6751 = vcombine.high %v6749, %v6749
        %v6753 = vunpack.c.l.s4 1966171168
        %v6754 = vunpack.c.0.s8 %v6753
        %v6755 = vlaneseq
        %v6756 = vshrl.u32 %v6755, 7
        %v6757 = vsub.s32 %v6754, %v6756
        %v6758 = vrot.slane %v6742, %v6757
        %v6760 = vunpack.c.l.s4 1966171168
        %v6761 = vunpack.c.0.s8 %v6760
        %v6762 = vlaneseq
        %v6763 = vshrl.u32 %v6762, 7
        %v6764 = vsub.s32 %v6761, %v6763
        %v6765 = vrot.slane %v6749, %v6764
        %v6767 = vunpack.c.l.s4 1966171168
        %v6768 = vunpack.c.0.s8 %v6767
        %v6769 = vlaneseq
        %v6770 = vshrl.u32 %v6769, 7
        %v6771 = vsub.s32 %v6768, %v6770
        %v6772 = vrot.slane %v6750, %v6771
        %v6774 = vunpack.c.l.s4 1966171168
        %v6775 = vunpack.c.0.s8 %v6774
        %v6776 = vlaneseq
        %v6777 = vshrl.u32 %v6776, 7
        %v6778 = vsub.s32 %v6775, %v6777
        %v6779 = vrot.slane %v6751, %v6778
        %v6780 = vcombine.high %v6758, %v6758
        %v6781 = vcombine.high %v6765, %v6765
        %v6782 = vcombine.high %v6772, %v6772
        %v6783 = vcombine.high %v6659, %v6659
        %v6785 = vunpack.c.l.s4 1966171168
        %v6786 = vunpack.c.0.s8 %v6785
        %v6787 = vlaneseq
        %v6788 = vshrl.u32 %v6787, 7
        %v6789 = vsub.s32 %v6786, %v6788
        %v6790 = vrot.slane %v6659, %v6789
        %v6792 = vunpack.c.l.s4 1966171168
        %v6793 = vunpack.c.0.s8 %v6792
        %v6794 = vlaneseq
        %v6795 = vshrl.u32 %v6794, 7
        %v6796 = vsub.s32 %v6793, %v6795
        %v6797 = vrot.slane %v6783, %v6796
        %v6798 = vcombine.high %v6790, %v6790
        %v6799 = vcombine.high %v6797, %v6797
        %v6801 = vunpack.c.l.s4 1966171168
        %v6802 = vunpack.c.0.s8 %v6801
        %v6803 = vlaneseq
        %v6804 = vshrl.u32 %v6803, 7
        %v6805 = vsub.s32 %v6802, %v6804
        %v6806 = vrot.slane %v6790, %v6805
        %v6808 = vunpack.c.l.s4 1966171168
        %v6809 = vunpack.c.0.s8 %v6808
        %v6810 = vlaneseq
        %v6811 = vshrl.u32 %v6810, 7
        %v6812 = vsub.s32 %v6809, %v6811
        %v6813 = vrot.slane %v6797, %v6812
        %v6815 = vunpack.c.l.s4 1966171168
        %v6816 = vunpack.c.0.s8 %v6815
        %v6817 = vlaneseq
        %v6818 = vshrl.u32 %v6817, 7
        %v6819 = vsub.s32 %v6816, %v6818
        %v6820 = vrot.slane %v6798, %v6819
        %v6822 = vunpack.c.l.s4 1966171168
        %v6823 = vunpack.c.0.s8 %v6822
        %v6824 = vlaneseq
        %v6825 = vshrl.u32 %v6824, 7
        %v6826 = vsub.s32 %v6823, %v6825
        %v6827 = vrot.slane %v6799, %v6826
        %v6828 = vcombine.high %v6806, %v6806
        %v6829 = vcombine.high %v6813, %v6813
        %v6830 = vcombine.high %v6820, %v6820
        %v6831 = vcombine.high %v6660, %v6660
        %v6833 = vunpack.c.l.s4 1966171168
        %v6834 = vunpack.c.0.s8 %v6833
        %v6835 = vlaneseq
        %v6836 = vshrl.u32 %v6835, 7
        %v6837 = vsub.s32 %v6834, %v6836
        %v6838 = vrot.slane %v6660, %v6837
        %v6840 = vunpack.c.l.s4 1966171168
        %v6841 = vunpack.c.0.s8 %v6840
        %v6842 = vlaneseq
        %v6843 = vshrl.u32 %v6842, 7
        %v6844 = vsub.s32 %v6841, %v6843
        %v6845 = vrot.slane %v6831, %v6844
        %v6846 = vcombine.high %v6838, %v6838
        %v6847 = vcombine.high %v6845, %v6845
        %v6849 = vunpack.c.l.s4 1966171168
        %v6850 = vunpack.c.0.s8 %v6849
        %v6851 = vlaneseq
        %v6852 = vshrl.u32 %v6851, 7
        %v6853 = vsub.s32 %v6850, %v6852
        %v6854 = vrot.slane %v6838, %v6853
        %v6856 = vunpack.c.l.s4 1966171168
        %v6857 = vunpack.c.0.s8 %v6856
        %v6858 = vlaneseq
        %v6859 = vshrl.u32 %v6858, 7
        %v6860 = vsub.s32 %v6857, %v6859
        %v6861 = vrot.slane %v6845, %v6860
        %v6863 = vunpack.c.l.s4 1966171168
        %v6864 = vunpack.c.0.s8 %v6863
        %v6865 = vlaneseq
        %v6866 = vshrl.u32 %v6865, 7
        %v6867 = vsub.s32 %v6864, %v6866
        %v6868 = vrot.slane %v6846, %v6867
        %v6870 = vunpack.c.l.s4 1966171168
        %v6871 = vunpack.c.0.s8 %v6870
        %v6872 = vlaneseq
        %v6873 = vshrl.u32 %v6872, 7
        %v6874 = vsub.s32 %v6871, %v6873
        %v6875 = vrot.slane %v6847, %v6874
        %v6876 = vcombine.high %v6854, %v6854
        %v6877 = vcombine.high %v6861, %v6861
        %v6878 = vcombine.high %v6868, %v6868
        %v6879 = vcombine.high %v6661, %v6661
        %v6881 = vunpack.c.l.s4 1966171168
        %v6882 = vunpack.c.0.s8 %v6881
        %v6883 = vlaneseq
        %v6884 = vshrl.u32 %v6883, 7
        %v6885 = vsub.s32 %v6882, %v6884
        %v6886 = vrot.slane %v6661, %v6885
        %v6888 = vunpack.c.l.s4 1966171168
        %v6889 = vunpack.c.0.s8 %v6888
        %v6890 = vlaneseq
        %v6891 = vshrl.u32 %v6890, 7
        %v6892 = vsub.s32 %v6889, %v6891
        %v6893 = vrot.slane %v6879, %v6892
        %v6894 = vcombine.high %v6886, %v6886
        %v6895 = vcombine.high %v6893, %v6893
        %v6897 = vunpack.c.l.s4 1966171168
        %v6898 = vunpack.c.0.s8 %v6897
        %v6899 = vlaneseq
        %v6900 = vshrl.u32 %v6899, 7
        %v6901 = vsub.s32 %v6898, %v6900
        %v6902 = vrot.slane %v6886, %v6901
        %v6904 = vunpack.c.l.s4 1966171168
        %v6905 = vunpack.c.0.s8 %v6904
        %v6906 = vlaneseq
        %v6907 = vshrl.u32 %v6906, 7
        %v6908 = vsub.s32 %v6905, %v6907
        %v6909 = vrot.slane %v6893, %v6908
        %v6911 = vunpack.c.l.s4 1966171168
        %v6912 = vunpack.c.0.s8 %v6911
        %v6913 = vlaneseq
        %v6914 = vshrl.u32 %v6913, 7
        %v6915 = vsub.s32 %v6912, %v6914
        %v6916 = vrot.slane %v6894, %v6915
        %v6918 = vunpack.c.l.s4 1966171168
        %v6919 = vunpack.c.0.s8 %v6918
        %v6920 = vlaneseq
        %v6921 = vshrl.u32 %v6920, 7
        %v6922 = vsub.s32 %v6919, %v6921
        %v6923 = vrot.slane %v6895, %v6922
        %v6924 = vcombine.high %v6902, %v6902
        %v6925 = vcombine.high %v6909, %v6909
        %v6926 = vcombine.high %v6916, %v6916
        %v6927 = vcombine.high %v6662, %v6662
        %v6929 = vunpack.c.l.s4 1966171168
        %v6930 = vunpack.c.0.s8 %v6929
        %v6931 = vlaneseq
        %v6932 = vshrl.u32 %v6931, 7
        %v6933 = vsub.s32 %v6930, %v6932
        %v6934 = vrot.slane %v6662, %v6933
        %v6936 = vunpack.c.l.s4 1966171168
        %v6937 = vunpack.c.0.s8 %v6936
        %v6938 = vlaneseq
        %v6939 = vshrl.u32 %v6938, 7
        %v6940 = vsub.s32 %v6937, %v6939
        %v6941 = vrot.slane %v6927, %v6940
        %v6942 = vcombine.high %v6934, %v6934
        %v6943 = vcombine.high %v6941, %v6941
        %v6945 = vunpack.c.l.s4 1966171168
        %v6946 = vunpack.c.0.s8 %v6945
        %v6947 = vlaneseq
        %v6948 = vshrl.u32 %v6947, 7
        %v6949 = vsub.s32 %v6946, %v6948
        %v6950 = vrot.slane %v6934, %v6949
        %v6952 = vunpack.c.l.s4 1966171168
        %v6953 = vunpack.c.0.s8 %v6952
        %v6954 = vlaneseq
        %v6955 = vshrl.u32 %v6954, 7
        %v6956 = vsub.s32 %v6953, %v6955
        %v6957 = vrot.slane %v6941, %v6956
        %v6959 = vunpack.c.l.s4 1966171168
        %v6960 = vunpack.c.0.s8 %v6959
        %v6961 = vlaneseq
        %v6962 = vshrl.u32 %v6961, 7
        %v6963 = vsub.s32 %v6960, %v6962
        %v6964 = vrot.slane %v6942, %v6963
        %v6966 = vunpack.c.l.s4 1966171168
        %v6967 = vunpack.c.0.s8 %v6966
        %v6968 = vlaneseq
        %v6969 = vshrl.u32 %v6968, 7
        %v6970 = vsub.s32 %v6967, %v6969
        %v6971 = vrot.slane %v6943, %v6970
        %v6972 = vcombine.high %v6950, %v6950
        %v6973 = vcombine.high %v6957, %v6957
        %v6974 = vcombine.high %v6964, %v6964
        %v6975 = vcombine.high %v6663, %v6663
        %v6977 = vunpack.c.l.s4 1966171168
        %v6978 = vunpack.c.0.s8 %v6977
        %v6979 = vlaneseq
        %v6980 = vshrl.u32 %v6979, 7
        %v6981 = vsub.s32 %v6978, %v6980
        %v6982 = vrot.slane %v6663, %v6981
        %v6984 = vunpack.c.l.s4 1966171168
        %v6985 = vunpack.c.0.s8 %v6984
        %v6986 = vlaneseq
        %v6987 = vshrl.u32 %v6986, 7
        %v6988 = vsub.s32 %v6985, %v6987
        %v6989 = vrot.slane %v6975, %v6988
        %v6990 = vcombine.high %v6982, %v6982
        %v6991 = vcombine.high %v6989, %v6989
        %v6993 = vunpack.c.l.s4 1966171168
        %v6994 = vunpack.c.0.s8 %v6993
        %v6995 = vlaneseq
        %v6996 = vshrl.u32 %v6995, 7
        %v6997 = vsub.s32 %v6994, %v6996
        %v6998 = vrot.slane %v6982, %v6997
        %v7000 = vunpack.c.l.s4 1966171168
        %v7001 = vunpack.c.0.s8 %v7000
        %v7002 = vlaneseq
        %v7003 = vshrl.u32 %v7002, 7
        %v7004 = vsub.s32 %v7001, %v7003
        %v7005 = vrot.slane %v6989, %v7004
        %v7007 = vunpack.c.l.s4 1966171168
        %v7008 = vunpack.c.0.s8 %v7007
        %v7009 = vlaneseq
        %v7010 = vshrl.u32 %v7009, 7
        %v7011 = vsub.s32 %v7008, %v7010
        %v7012 = vrot.slane %v6990, %v7011
        %v7014 = vunpack.c.l.s4 1966171168
        %v7015 = vunpack.c.0.s8 %v7014
        %v7016 = vlaneseq
        %v7017 = vshrl.u32 %v7016, 7
        %v7018 = vsub.s32 %v7015, %v7017
        %v7019 = vrot.slane %v6991, %v7018
        %v7020 = vcombine.high %v6998, %v6998
        %v7021 = vcombine.high %v7005, %v7005
        %v7022 = vcombine.high %v7012, %v7012
        %v7023 = vcombine.high %v6664, %v6664
        %v7025 = vunpack.c.l.s4 1966171168
        %v7026 = vunpack.c.0.s8 %v7025
        %v7027 = vlaneseq
        %v7028 = vshrl.u32 %v7027, 7
        %v7029 = vsub.s32 %v7026, %v7028
        %v7030 = vrot.slane %v6664, %v7029
        %v7032 = vunpack.c.l.s4 1966171168
        %v7033 = vunpack.c.0.s8 %v7032
        %v7034 = vlaneseq
        %v7035 = vshrl.u32 %v7034, 7
        %v7036 = vsub.s32 %v7033, %v7035
        %v7037 = vrot.slane %v7023, %v7036
        %v7038 = vcombine.high %v7030, %v7030
        %v7039 = vcombine.high %v7037, %v7037
        %v7041 = vunpack.c.l.s4 1966171168
        %v7042 = vunpack.c.0.s8 %v7041
        %v7043 = vlaneseq
        %v7044 = vshrl.u32 %v7043, 7
        %v7045 = vsub.s32 %v7042, %v7044
        %v7046 = vrot.slane %v7030, %v7045
        %v7048 = vunpack.c.l.s4 1966171168
        %v7049 = vunpack.c.0.s8 %v7048
        %v7050 = vlaneseq
        %v7051 = vshrl.u32 %v7050, 7
        %v7052 = vsub.s32 %v7049, %v7051
        %v7053 = vrot.slane %v7037, %v7052
        %v7055 = vunpack.c.l.s4 1966171168
        %v7056 = vunpack.c.0.s8 %v7055
        %v7057 = vlaneseq
        %v7058 = vshrl.u32 %v7057, 7
        %v7059 = vsub.s32 %v7056, %v7058
        %v7060 = vrot.slane %v7038, %v7059
        %v7062 = vunpack.c.l.s4 1966171168
        %v7063 = vunpack.c.0.s8 %v7062
        %v7064 = vlaneseq
        %v7065 = vshrl.u32 %v7064, 7
        %v7066 = vsub.s32 %v7063, %v7065
        %v7067 = vrot.slane %v7039, %v7066
        %v7068 = vcombine.high %v7046, %v7046
        %v7069 = vcombine.high %v7053, %v7053
        %v7070 = vcombine.high %v7060, %v7060
        %v7071 = vcombine.high %v6665, %v6665
        %v7073 = vunpack.c.l.s4 1966171168
        %v7074 = vunpack.c.0.s8 %v7073
        %v7075 = vlaneseq
        %v7076 = vshrl.u32 %v7075, 7
        %v7077 = vsub.s32 %v7074, %v7076
        %v7078 = vrot.slane %v6665, %v7077
        %v7080 = vunpack.c.l.s4 1966171168
        %v7081 = vunpack.c.0.s8 %v7080
        %v7082 = vlaneseq
        %v7083 = vshrl.u32 %v7082, 7
        %v7084 = vsub.s32 %v7081, %v7083
        %v7085 = vrot.slane %v7071, %v7084
        %v7086 = vcombine.high %v7078, %v7078
        %v7087 = vcombine.high %v7085, %v7085
        %v7089 = vunpack.c.l.s4 1966171168
        %v7090 = vunpack.c.0.s8 %v7089
        %v7091 = vlaneseq
        %v7092 = vshrl.u32 %v7091, 7
        %v7093 = vsub.s32 %v7090, %v7092
        %v7094 = vrot.slane %v7078, %v7093
        %v7096 = vunpack.c.l.s4 1966171168
        %v7097 = vunpack.c.0.s8 %v7096
        %v7098 = vlaneseq
        %v7099 = vshrl.u32 %v7098, 7
        %v7100 = vsub.s32 %v7097, %v7099
        %v7101 = vrot.slane %v7085, %v7100
        %v7103 = vunpack.c.l.s4 1966171168
        %v7104 = vunpack.c.0.s8 %v7103
        %v7105 = vlaneseq
        %v7106 = vshrl.u32 %v7105, 7
        %v7107 = vsub.s32 %v7104, %v7106
        %v7108 = vrot.slane %v7086, %v7107
        %v7110 = vunpack.c.l.s4 1966171168
        %v7111 = vunpack.c.0.s8 %v7110
        %v7112 = vlaneseq
        %v7113 = vshrl.u32 %v7112, 7
        %v7114 = vsub.s32 %v7111, %v7113
        %v7115 = vrot.slane %v7087, %v7114
        %v7116 = vcombine.high %v7094, %v7094
        %v7117 = vcombine.high %v7101, %v7101
        %v7118 = vcombine.high %v7108, %v7108
        %v7119 = vcombine.high %v6666, %v6666
        %v7121 = vunpack.c.l.s4 1966171168
        %v7122 = vunpack.c.0.s8 %v7121
        %v7123 = vlaneseq
        %v7124 = vshrl.u32 %v7123, 7
        %v7125 = vsub.s32 %v7122, %v7124
        %v7126 = vrot.slane %v6666, %v7125
        %v7128 = vunpack.c.l.s4 1966171168
        %v7129 = vunpack.c.0.s8 %v7128
        %v7130 = vlaneseq
        %v7131 = vshrl.u32 %v7130, 7
        %v7132 = vsub.s32 %v7129, %v7131
        %v7133 = vrot.slane %v7119, %v7132
        %v7134 = vcombine.high %v7126, %v7126
        %v7135 = vcombine.high %v7133, %v7133
        %v7137 = vunpack.c.l.s4 1966171168
        %v7138 = vunpack.c.0.s8 %v7137
        %v7139 = vlaneseq
        %v7140 = vshrl.u32 %v7139, 7
        %v7141 = vsub.s32 %v7138, %v7140
        %v7142 = vrot.slane %v7126, %v7141
        %v7144 = vunpack.c.l.s4 1966171168
        %v7145 = vunpack.c.0.s8 %v7144
        %v7146 = vlaneseq
        %v7147 = vshrl.u32 %v7146, 7
        %v7148 = vsub.s32 %v7145, %v7147
        %v7149 = vrot.slane %v7133, %v7148
        %v7151 = vunpack.c.l.s4 1966171168
        %v7152 = vunpack.c.0.s8 %v7151
        %v7153 = vlaneseq
        %v7154 = vshrl.u32 %v7153, 7
        %v7155 = vsub.s32 %v7152, %v7154
        %v7156 = vrot.slane %v7134, %v7155
        %v7158 = vunpack.c.l.s4 1966171168
        %v7159 = vunpack.c.0.s8 %v7158
        %v7160 = vlaneseq
        %v7161 = vshrl.u32 %v7160, 7
        %v7162 = vsub.s32 %v7159, %v7161
        %v7163 = vrot.slane %v7135, %v7162
        %v7164 = vcombine.high %v7142, %v7142
        %v7165 = vcombine.high %v7149, %v7149
        %v7166 = vcombine.high %v7156, %v7156
        %v7167 = vcombine.high %v6667, %v6667
        %v7169 = vunpack.c.l.s4 1966171168
        %v7170 = vunpack.c.0.s8 %v7169
        %v7171 = vlaneseq
        %v7172 = vshrl.u32 %v7171, 7
        %v7173 = vsub.s32 %v7170, %v7172
        %v7174 = vrot.slane %v6667, %v7173
        %v7176 = vunpack.c.l.s4 1966171168
        %v7177 = vunpack.c.0.s8 %v7176
        %v7178 = vlaneseq
        %v7179 = vshrl.u32 %v7178, 7
        %v7180 = vsub.s32 %v7177, %v7179
        %v7181 = vrot.slane %v7167, %v7180
        %v7182 = vcombine.high %v7174, %v7174
        %v7183 = vcombine.high %v7181, %v7181
        %v7185 = vunpack.c.l.s4 1966171168
        %v7186 = vunpack.c.0.s8 %v7185
        %v7187 = vlaneseq
        %v7188 = vshrl.u32 %v7187, 7
        %v7189 = vsub.s32 %v7186, %v7188
        %v7190 = vrot.slane %v7174, %v7189
        %v7192 = vunpack.c.l.s4 1966171168
        %v7193 = vunpack.c.0.s8 %v7192
        %v7194 = vlaneseq
        %v7195 = vshrl.u32 %v7194, 7
        %v7196 = vsub.s32 %v7193, %v7195
        %v7197 = vrot.slane %v7181, %v7196
        %v7199 = vunpack.c.l.s4 1966171168
        %v7200 = vunpack.c.0.s8 %v7199
        %v7201 = vlaneseq
        %v7202 = vshrl.u32 %v7201, 7
        %v7203 = vsub.s32 %v7200, %v7202
        %v7204 = vrot.slane %v7182, %v7203
        %v7206 = vunpack.c.l.s4 1966171168
        %v7207 = vunpack.c.0.s8 %v7206
        %v7208 = vlaneseq
        %v7209 = vshrl.u32 %v7208, 7
        %v7210 = vsub.s32 %v7207, %v7209
        %v7211 = vrot.slane %v7183, %v7210
        %v7212 = vcombine.high %v7190, %v7190
        %v7213 = vcombine.high %v7197, %v7197
        %v7214 = vcombine.high %v7204, %v7204
        %v7215 = vcombine.high %v6668, %v6668
        %v7217 = vunpack.c.l.s4 1966171168
        %v7218 = vunpack.c.0.s8 %v7217
        %v7219 = vlaneseq
        %v7220 = vshrl.u32 %v7219, 7
        %v7221 = vsub.s32 %v7218, %v7220
        %v7222 = vrot.slane %v6668, %v7221
        %v7224 = vunpack.c.l.s4 1966171168
        %v7225 = vunpack.c.0.s8 %v7224
        %v7226 = vlaneseq
        %v7227 = vshrl.u32 %v7226, 7
        %v7228 = vsub.s32 %v7225, %v7227
        %v7229 = vrot.slane %v7215, %v7228
        %v7230 = vcombine.high %v7222, %v7222
        %v7231 = vcombine.high %v7229, %v7229
        %v7233 = vunpack.c.l.s4 1966171168
        %v7234 = vunpack.c.0.s8 %v7233
        %v7235 = vlaneseq
        %v7236 = vshrl.u32 %v7235, 7
        %v7237 = vsub.s32 %v7234, %v7236
        %v7238 = vrot.slane %v7222, %v7237
        %v7240 = vunpack.c.l.s4 1966171168
        %v7241 = vunpack.c.0.s8 %v7240
        %v7242 = vlaneseq
        %v7243 = vshrl.u32 %v7242, 7
        %v7244 = vsub.s32 %v7241, %v7243
        %v7245 = vrot.slane %v7229, %v7244
        %v7247 = vunpack.c.l.s4 1966171168
        %v7248 = vunpack.c.0.s8 %v7247
        %v7249 = vlaneseq
        %v7250 = vshrl.u32 %v7249, 7
        %v7251 = vsub.s32 %v7248, %v7250
        %v7252 = vrot.slane %v7230, %v7251
        %v7254 = vunpack.c.l.s4 1966171168
        %v7255 = vunpack.c.0.s8 %v7254
        %v7256 = vlaneseq
        %v7257 = vshrl.u32 %v7256, 7
        %v7258 = vsub.s32 %v7255, %v7257
        %v7259 = vrot.slane %v7231, %v7258
        %v7260 = vcombine.high %v7238, %v7238
        %v7261 = vcombine.high %v7245, %v7245
        %v7262 = vcombine.high %v7252, %v7252
        %v7263 = vcombine.high %v6669, %v6669
        %v7265 = vunpack.c.l.s4 1966171168
        %v7266 = vunpack.c.0.s8 %v7265
        %v7267 = vlaneseq
        %v7268 = vshrl.u32 %v7267, 7
        %v7269 = vsub.s32 %v7266, %v7268
        %v7270 = vrot.slane %v6669, %v7269
        %v7272 = vunpack.c.l.s4 1966171168
        %v7273 = vunpack.c.0.s8 %v7272
        %v7274 = vlaneseq
        %v7275 = vshrl.u32 %v7274, 7
        %v7276 = vsub.s32 %v7273, %v7275
        %v7277 = vrot.slane %v7263, %v7276
        %v7278 = vcombine.high %v7270, %v7270
        %v7279 = vcombine.high %v7277, %v7277
        %v7281 = vunpack.c.l.s4 1966171168
        %v7282 = vunpack.c.0.s8 %v7281
        %v7283 = vlaneseq
        %v7284 = vshrl.u32 %v7283, 7
        %v7285 = vsub.s32 %v7282, %v7284
        %v7286 = vrot.slane %v7270, %v7285
        %v7288 = vunpack.c.l.s4 1966171168
        %v7289 = vunpack.c.0.s8 %v7288
        %v7290 = vlaneseq
        %v7291 = vshrl.u32 %v7290, 7
        %v7292 = vsub.s32 %v7289, %v7291
        %v7293 = vrot.slane %v7277, %v7292
        %v7295 = vunpack.c.l.s4 1966171168
        %v7296 = vunpack.c.0.s8 %v7295
        %v7297 = vlaneseq
        %v7298 = vshrl.u32 %v7297, 7
        %v7299 = vsub.s32 %v7296, %v7298
        %v7300 = vrot.slane %v7278, %v7299
        %v7302 = vunpack.c.l.s4 1966171168
        %v7303 = vunpack.c.0.s8 %v7302
        %v7304 = vlaneseq
        %v7305 = vshrl.u32 %v7304, 7
        %v7306 = vsub.s32 %v7303, %v7305
        %v7307 = vrot.slane %v7279, %v7306
        %v7308 = vcombine.high %v7286, %v7286
        %v7309 = vcombine.high %v7293, %v7293
        %v7310 = vcombine.high %v7300, %v7300
        %v7311 = vcombine.high %v6670, %v6670
        %v7313 = vunpack.c.l.s4 1966171168
        %v7314 = vunpack.c.0.s8 %v7313
        %v7315 = vlaneseq
        %v7316 = vshrl.u32 %v7315, 7
        %v7317 = vsub.s32 %v7314, %v7316
        %v7318 = vrot.slane %v6670, %v7317
        %v7320 = vunpack.c.l.s4 1966171168
        %v7321 = vunpack.c.0.s8 %v7320
        %v7322 = vlaneseq
        %v7323 = vshrl.u32 %v7322, 7
        %v7324 = vsub.s32 %v7321, %v7323
        %v7325 = vrot.slane %v7311, %v7324
        %v7326 = vcombine.high %v7318, %v7318
        %v7327 = vcombine.high %v7325, %v7325
        %v7329 = vunpack.c.l.s4 1966171168
        %v7330 = vunpack.c.0.s8 %v7329
        %v7331 = vlaneseq
        %v7332 = vshrl.u32 %v7331, 7
        %v7333 = vsub.s32 %v7330, %v7332
        %v7334 = vrot.slane %v7318, %v7333
        %v7336 = vunpack.c.l.s4 1966171168
        %v7337 = vunpack.c.0.s8 %v7336
        %v7338 = vlaneseq
        %v7339 = vshrl.u32 %v7338, 7
        %v7340 = vsub.s32 %v7337, %v7339
        %v7341 = vrot.slane %v7325, %v7340
        %v7343 = vunpack.c.l.s4 1966171168
        %v7344 = vunpack.c.0.s8 %v7343
        %v7345 = vlaneseq
        %v7346 = vshrl.u32 %v7345, 7
        %v7347 = vsub.s32 %v7344, %v7346
        %v7348 = vrot.slane %v7326, %v7347
        %v7350 = vunpack.c.l.s4 1966171168
        %v7351 = vunpack.c.0.s8 %v7350
        %v7352 = vlaneseq
        %v7353 = vshrl.u32 %v7352, 7
        %v7354 = vsub.s32 %v7351, %v7353
        %v7355 = vrot.slane %v7327, %v7354
        %v7356 = vcombine.high %v7334, %v7334
        %v7357 = vcombine.high %v7341, %v7341
        %v7358 = vcombine.high %v7348, %v7348
        %v7359 = vcombine.high %v6671, %v6671
        %v7361 = vunpack.c.l.s4 1966171168
        %v7362 = vunpack.c.0.s8 %v7361
        %v7363 = vlaneseq
        %v7364 = vshrl.u32 %v7363, 7
        %v7365 = vsub.s32 %v7362, %v7364
        %v7366 = vrot.slane %v6671, %v7365
        %v7368 = vunpack.c.l.s4 1966171168
        %v7369 = vunpack.c.0.s8 %v7368
        %v7370 = vlaneseq
        %v7371 = vshrl.u32 %v7370, 7
        %v7372 = vsub.s32 %v7369, %v7371
        %v7373 = vrot.slane %v7359, %v7372
        %v7374 = vcombine.high %v7366, %v7366
        %v7375 = vcombine.high %v7373, %v7373
        %v7377 = vunpack.c.l.s4 1966171168
        %v7378 = vunpack.c.0.s8 %v7377
        %v7379 = vlaneseq
        %v7380 = vshrl.u32 %v7379, 7
        %v7381 = vsub.s32 %v7378, %v7380
        %v7382 = vrot.slane %v7366, %v7381
        %v7384 = vunpack.c.l.s4 1966171168
        %v7385 = vunpack.c.0.s8 %v7384
        %v7386 = vlaneseq
        %v7387 = vshrl.u32 %v7386, 7
        %v7388 = vsub.s32 %v7385, %v7387
        %v7389 = vrot.slane %v7373, %v7388
        %v7391 = vunpack.c.l.s4 1966171168
        %v7392 = vunpack.c.0.s8 %v7391
        %v7393 = vlaneseq
        %v7394 = vshrl.u32 %v7393, 7
        %v7395 = vsub.s32 %v7392, %v7394
        %v7396 = vrot.slane %v7374, %v7395
        %v7398 = vunpack.c.l.s4 1966171168
        %v7399 = vunpack.c.0.s8 %v7398
        %v7400 = vlaneseq
        %v7401 = vshrl.u32 %v7400, 7
        %v7402 = vsub.s32 %v7399, %v7401
        %v7403 = vrot.slane %v7375, %v7402
        %v7404 = vcombine.high %v7382, %v7382
        %v7405 = vcombine.high %v7389, %v7389
        %v7406 = vcombine.high %v7396, %v7396
        %v7512 = vsel %vm5708, %v5603, %v6710
        %v7513 = vsel %vm5709, %v5604, %v6724
        %v7514 = vsel %vm5710, %v5605, %v6732
        %v7515 = vsel %vm5711, %v5606, %v6734
        %v7516 = vsel %vm5712, %v5607, %v6717
        %v7517 = vsel %vm5713, %v5608, %v6731
        %v7518 = vsel %vm5714, %v5609, %v6733
        %v7519 = vsel %vm5715, %v5610, %v6758
        %v7520 = vsel %vm5716, %v5611, %v6772
        %v7521 = vsel %vm5717, %v5612, %v6780
        %v7522 = vsel %vm5718, %v5613, %v6782
        %v7523 = vsel %vm5719, %v5614, %v6765
        %v7524 = vsel %vm5720, %v5615, %v6779
        %v7525 = vsel %vm5721, %v5616, %v6781
        %v7526 = vsel %vm5722, %v5617, %v6806
        %v7527 = vsel %vm5723, %v5618, %v6820
        %v7528 = vsel %vm5724, %v5619, %v6828
        %v7529 = vsel %vm5725, %v5620, %v6830
        %v7530 = vsel %vm5726, %v5621, %v6813
        %v7531 = vsel %vm5727, %v5622, %v6827
        %v7532 = vsel %vm5728, %v5623, %v6829
        %v7533 = vsel %vm5729, %v5624, %v6854
        %v7534 = vsel %vm5730, %v5625, %v6868
        %v7535 = vsel %vm5731, %v5626, %v6876
        %v7536 = vsel %vm5732, %v5627, %v6878
        %v7537 = vsel %vm5733, %v5628, %v6861
        %v7538 = vsel %vm5734, %v5629, %v6875
        %v7539 = vsel %vm5735, %v5630, %v6877
        %v7540 = vsel %vm5736, %v5631, %v6902
        %v7541 = vsel %vm5737, %v5632, %v6916
        %v7542 = vsel %vm5738, %v5633, %v6924
        %v7543 = vsel %vm5739, %v5634, %v6926
        %v7544 = vsel %vm5740, %v5635, %v6909
        %v7545 = vsel %vm5741, %v5636, %v6923
        %v7546 = vsel %vm5742, %v5637, %v6925
        %v7547 = vsel %vm5743, %v5638, %v6950
        %v7548 = vsel %vm5744, %v5639, %v6964
        %v7549 = vsel %vm5745, %v5640, %v6972
        %v7550 = vsel %vm5746, %v5641, %v6974
        %v7551 = vsel %vm5747, %v5642, %v6957
        %v7552 = vsel %vm5748, %v5643, %v6971
        %v7553 = vsel %vm5749, %v5644, %v6973
        %v7554 = vsel %vm5750, %v5645, %v6998
        %v7555 = vsel %vm5751, %v5646, %v7012
        %v7556 = vsel %vm5752, %v5647, %v7020
        %v7557 = vsel %vm5753, %v5648, %v7022
        %v7558 = vsel %vm5754, %v5649, %v7005
        %v7559 = vsel %vm5755, %v5650, %v7019
        %v7560 = vsel %vm5756, %v5651, %v7021
        %v7561 = vsel %vm5757, %v5652, %v7046
        %v7562 = vsel %vm5758, %v5653, %v7060
        %v7563 = vsel %vm5759, %v5654, %v7068
        %v7564 = vsel %vm5760, %v5655, %v7070
        %v7565 = vsel %vm5761, %v5656, %v7053
        %v7566 = vsel %vm5762, %v5657, %v7067
        %v7567 = vsel %vm5763, %v5658, %v7069
        %v7568 = vsel %vm5764, %v5659, %v7094
        %v7569 = vsel %vm5765, %v5660, %v7108
        %v7570 = vsel %vm5766, %v5661, %v7116
        %v7571 = vsel %vm5767, %v5662, %v7118
        %v7572 = vsel %vm5768, %v5663, %v7101
        %v7573 = vsel %vm5769, %v5664, %v7115
        %v7574 = vsel %vm5770, %v5665, %v7117
        %v7575 = vsel %vm5771, %v5666, %v7142
        %v7576 = vsel %vm5772, %v5667, %v7156
        %v7577 = vsel %vm5773, %v5668, %v7164
        %v7578 = vsel %vm5774, %v5669, %v7166
        %v7579 = vsel %vm5775, %v5670, %v7149
        %v7580 = vsel %vm5776, %v5671, %v7163
        %v7581 = vsel %vm5777, %v5672, %v7165
        %v7582 = vsel %vm5778, %v5673, %v7190
        %v7583 = vsel %vm5779, %v5674, %v7204
        %v7584 = vsel %vm5780, %v5675, %v7212
        %v7585 = vsel %vm5781, %v5676, %v7214
        %v7586 = vsel %vm5782, %v5677, %v7197
        %v7587 = vsel %vm5783, %v5678, %v7211
        %v7588 = vsel %vm5784, %v5679, %v7213
        %v7589 = vsel %vm5785, %v5680, %v7238
        %v7590 = vsel %vm5786, %v5681, %v7252
        %v7591 = vsel %vm5787, %v5682, %v7260
        %v7592 = vsel %vm5788, %v5683, %v7262
        %v7593 = vsel %vm5789, %v5684, %v7245
        %v7594 = vsel %vm5790, %v5685, %v7259
        %v7595 = vsel %vm5791, %v5686, %v7261
        %v7596 = vsel %vm5792, %v5687, %v7286
        %v7597 = vsel %vm5793, %v5688, %v7300
        %v7598 = vsel %vm5794, %v5689, %v7308
        %v7599 = vsel %vm5795, %v5690, %v7310
        %v7600 = vsel %vm5796, %v5691, %v7293
        %v7601 = vsel %vm5797, %v5692, %v7307
        %v7602 = vsel %vm5798, %v5693, %v7309
        %v7603 = vsel %vm5799, %v5694, %v7334
        %v7604 = vsel %vm5800, %v5695, %v7348
        %v7605 = vsel %vm5801, %v5696, %v7356
        %v7606 = vsel %vm5802, %v5697, %v7358
        %v7607 = vsel %vm5803, %v5698, %v7341
        %v7608 = vsel %vm5804, %v5699, %v7355
        %v7609 = vsel %vm5805, %v5700, %v7357
        %v7610 = vsel %vm5806, %v5701, %v7382
        %v7611 = vsel %vm5807, %v5702, %v7396
        %v7612 = vsel %vm5808, %v5703, %v7404
        %v7613 = vsel %vm5809, %v5704, %v7406
        %v7614 = vsel %vm5810, %v5705, %v7389
        %v7615 = vsel %vm5811, %v5706, %v7403
        %v7616 = vsel %vm5812, %v5707, %v7405
        %v7722 = vcombine.low %v7512, %v7513
        %v7723 = vcombine.low %v7514, %v7515
        %v7724 = vcombine.low %v7516, %v7517
        %v7726 = vunpack.c.l.s4 1966171168
        %v7727 = vunpack.c.0.s8 %v7726
        %v7728 = vlaneseq
        %v7729 = vshrl.u32 %v7728, 7
        %v7730 = vsub.s32 %v7727, %v7729
        %v7731 = vrot.slane %v7722, %v7730
        %v7733 = vunpack.c.l.s4 1966171168
        %v7734 = vunpack.c.0.s8 %v7733
        %v7735 = vlaneseq
        %v7736 = vshrl.u32 %v7735, 7
        %v7737 = vsub.s32 %v7734, %v7736
        %v7738 = vrot.slane %v7723, %v7737
        %v7740 = vunpack.c.l.s4 1966171168
        %v7741 = vunpack.c.0.s8 %v7740
        %v7742 = vlaneseq
        %v7743 = vshrl.u32 %v7742, 7
        %v7744 = vsub.s32 %v7741, %v7743
        %v7745 = vrot.slane %v7724, %v7744
        %v7747 = vunpack.c.l.s4 1966171168
        %v7748 = vunpack.c.0.s8 %v7747
        %v7749 = vlaneseq
        %v7750 = vshrl.u32 %v7749, 7
        %v7751 = vsub.s32 %v7748, %v7750
        %v7752 = vrot.slane %v7518, %v7751
        %v7753 = vcombine.low %v7731, %v7738
        %v7754 = vcombine.low %v7745, %v7752
        %v7756 = vunpack.c.l.s4 1966171168
        %v7757 = vunpack.c.0.s8 %v7756
        %v7758 = vlaneseq
        %v7759 = vshrl.u32 %v7758, 7
        %v7760 = vsub.s32 %v7757, %v7759
        %v7761 = vrot.slane %v7753, %v7760
        %v7763 = vunpack.c.l.s4 1966171168
        %v7764 = vunpack.c.0.s8 %v7763
        %v7765 = vlaneseq
        %v7766 = vshrl.u32 %v7765, 7
        %v7767 = vsub.s32 %v7764, %v7766
        %v7768 = vrot.slane %v7754, %v7767
        %v7769 = vcombine.low %v7761, %v7768
        %v7770 = vcombine.low %v7519, %v7520
        %v7771 = vcombine.low %v7521, %v7522
        %v7772 = vcombine.low %v7523, %v7524
        %v7774 = vunpack.c.l.s4 1966171168
        %v7775 = vunpack.c.0.s8 %v7774
        %v7776 = vlaneseq
        %v7777 = vshrl.u32 %v7776, 7
        %v7778 = vsub.s32 %v7775, %v7777
        %v7779 = vrot.slane %v7770, %v7778
        %v7781 = vunpack.c.l.s4 1966171168
        %v7782 = vunpack.c.0.s8 %v7781
        %v7783 = vlaneseq
        %v7784 = vshrl.u32 %v7783, 7
        %v7785 = vsub.s32 %v7782, %v7784
        %v7786 = vrot.slane %v7771, %v7785
        %v7788 = vunpack.c.l.s4 1966171168
        %v7789 = vunpack.c.0.s8 %v7788
        %v7790 = vlaneseq
        %v7791 = vshrl.u32 %v7790, 7
        %v7792 = vsub.s32 %v7789, %v7791
        %v7793 = vrot.slane %v7772, %v7792
        %v7795 = vunpack.c.l.s4 1966171168
        %v7796 = vunpack.c.0.s8 %v7795
        %v7797 = vlaneseq
        %v7798 = vshrl.u32 %v7797, 7
        %v7799 = vsub.s32 %v7796, %v7798
        %v7800 = vrot.slane %v7525, %v7799
        %v7801 = vcombine.low %v7779, %v7786
        %v7802 = vcombine.low %v7793, %v7800
        %v7804 = vunpack.c.l.s4 1966171168
        %v7805 = vunpack.c.0.s8 %v7804
        %v7806 = vlaneseq
        %v7807 = vshrl.u32 %v7806, 7
        %v7808 = vsub.s32 %v7805, %v7807
        %v7809 = vrot.slane %v7801, %v7808
        %v7811 = vunpack.c.l.s4 1966171168
        %v7812 = vunpack.c.0.s8 %v7811
        %v7813 = vlaneseq
        %v7814 = vshrl.u32 %v7813, 7
        %v7815 = vsub.s32 %v7812, %v7814
        %v7816 = vrot.slane %v7802, %v7815
        %v7817 = vcombine.low %v7809, %v7816
        %v7818 = vcombine.low %v7526, %v7527
        %v7819 = vcombine.low %v7528, %v7529
        %v7820 = vcombine.low %v7530, %v7531
        %v7822 = vunpack.c.l.s4 1966171168
        %v7823 = vunpack.c.0.s8 %v7822
        %v7824 = vlaneseq
        %v7825 = vshrl.u32 %v7824, 7
        %v7826 = vsub.s32 %v7823, %v7825
        %v7827 = vrot.slane %v7818, %v7826
        %v7829 = vunpack.c.l.s4 1966171168
        %v7830 = vunpack.c.0.s8 %v7829
        %v7831 = vlaneseq
        %v7832 = vshrl.u32 %v7831, 7
        %v7833 = vsub.s32 %v7830, %v7832
        %v7834 = vrot.slane %v7819, %v7833
        %v7836 = vunpack.c.l.s4 1966171168
        %v7837 = vunpack.c.0.s8 %v7836
        %v7838 = vlaneseq
        %v7839 = vshrl.u32 %v7838, 7
        %v7840 = vsub.s32 %v7837, %v7839
        %v7841 = vrot.slane %v7820, %v7840
        %v7843 = vunpack.c.l.s4 1966171168
        %v7844 = vunpack.c.0.s8 %v7843
        %v7845 = vlaneseq
        %v7846 = vshrl.u32 %v7845, 7
        %v7847 = vsub.s32 %v7844, %v7846
        %v7848 = vrot.slane %v7532, %v7847
        %v7849 = vcombine.low %v7827, %v7834
        %v7850 = vcombine.low %v7841, %v7848
        %v7852 = vunpack.c.l.s4 1966171168
        %v7853 = vunpack.c.0.s8 %v7852
        %v7854 = vlaneseq
        %v7855 = vshrl.u32 %v7854, 7
        %v7856 = vsub.s32 %v7853, %v7855
        %v7857 = vrot.slane %v7849, %v7856
        %v7859 = vunpack.c.l.s4 1966171168
        %v7860 = vunpack.c.0.s8 %v7859
        %v7861 = vlaneseq
        %v7862 = vshrl.u32 %v7861, 7
        %v7863 = vsub.s32 %v7860, %v7862
        %v7864 = vrot.slane %v7850, %v7863
        %v7865 = vcombine.low %v7857, %v7864
        %v7866 = vcombine.low %v7533, %v7534
        %v7867 = vcombine.low %v7535, %v7536
        %v7868 = vcombine.low %v7537, %v7538
        %v7870 = vunpack.c.l.s4 1966171168
        %v7871 = vunpack.c.0.s8 %v7870
        %v7872 = vlaneseq
        %v7873 = vshrl.u32 %v7872, 7
        %v7874 = vsub.s32 %v7871, %v7873
        %v7875 = vrot.slane %v7866, %v7874
        %v7877 = vunpack.c.l.s4 1966171168
        %v7878 = vunpack.c.0.s8 %v7877
        %v7879 = vlaneseq
        %v7880 = vshrl.u32 %v7879, 7
        %v7881 = vsub.s32 %v7878, %v7880
        %v7882 = vrot.slane %v7867, %v7881
        %v7884 = vunpack.c.l.s4 1966171168
        %v7885 = vunpack.c.0.s8 %v7884
        %v7886 = vlaneseq
        %v7887 = vshrl.u32 %v7886, 7
        %v7888 = vsub.s32 %v7885, %v7887
        %v7889 = vrot.slane %v7868, %v7888
        %v7891 = vunpack.c.l.s4 1966171168
        %v7892 = vunpack.c.0.s8 %v7891
        %v7893 = vlaneseq
        %v7894 = vshrl.u32 %v7893, 7
        %v7895 = vsub.s32 %v7892, %v7894
        %v7896 = vrot.slane %v7539, %v7895
        %v7897 = vcombine.low %v7875, %v7882
        %v7898 = vcombine.low %v7889, %v7896
        %v7900 = vunpack.c.l.s4 1966171168
        %v7901 = vunpack.c.0.s8 %v7900
        %v7902 = vlaneseq
        %v7903 = vshrl.u32 %v7902, 7
        %v7904 = vsub.s32 %v7901, %v7903
        %v7905 = vrot.slane %v7897, %v7904
        %v7907 = vunpack.c.l.s4 1966171168
        %v7908 = vunpack.c.0.s8 %v7907
        %v7909 = vlaneseq
        %v7910 = vshrl.u32 %v7909, 7
        %v7911 = vsub.s32 %v7908, %v7910
        %v7912 = vrot.slane %v7898, %v7911
        %v7913 = vcombine.low %v7905, %v7912
        %v7914 = vcombine.low %v7540, %v7541
        %v7915 = vcombine.low %v7542, %v7543
        %v7916 = vcombine.low %v7544, %v7545
        %v7918 = vunpack.c.l.s4 1966171168
        %v7919 = vunpack.c.0.s8 %v7918
        %v7920 = vlaneseq
        %v7921 = vshrl.u32 %v7920, 7
        %v7922 = vsub.s32 %v7919, %v7921
        %v7923 = vrot.slane %v7914, %v7922
        %v7925 = vunpack.c.l.s4 1966171168
        %v7926 = vunpack.c.0.s8 %v7925
        %v7927 = vlaneseq
        %v7928 = vshrl.u32 %v7927, 7
        %v7929 = vsub.s32 %v7926, %v7928
        %v7930 = vrot.slane %v7915, %v7929
        %v7932 = vunpack.c.l.s4 1966171168
        %v7933 = vunpack.c.0.s8 %v7932
        %v7934 = vlaneseq
        %v7935 = vshrl.u32 %v7934, 7
        %v7936 = vsub.s32 %v7933, %v7935
        %v7937 = vrot.slane %v7916, %v7936
        %v7939 = vunpack.c.l.s4 1966171168
        %v7940 = vunpack.c.0.s8 %v7939
        %v7941 = vlaneseq
        %v7942 = vshrl.u32 %v7941, 7
        %v7943 = vsub.s32 %v7940, %v7942
        %v7944 = vrot.slane %v7546, %v7943
        %v7945 = vcombine.low %v7923, %v7930
        %v7946 = vcombine.low %v7937, %v7944
        %v7948 = vunpack.c.l.s4 1966171168
        %v7949 = vunpack.c.0.s8 %v7948
        %v7950 = vlaneseq
        %v7951 = vshrl.u32 %v7950, 7
        %v7952 = vsub.s32 %v7949, %v7951
        %v7953 = vrot.slane %v7945, %v7952
        %v7955 = vunpack.c.l.s4 1966171168
        %v7956 = vunpack.c.0.s8 %v7955
        %v7957 = vlaneseq
        %v7958 = vshrl.u32 %v7957, 7
        %v7959 = vsub.s32 %v7956, %v7958
        %v7960 = vrot.slane %v7946, %v7959
        %v7961 = vcombine.low %v7953, %v7960
        %v7962 = vcombine.low %v7547, %v7548
        %v7963 = vcombine.low %v7549, %v7550
        %v7964 = vcombine.low %v7551, %v7552
        %v7966 = vunpack.c.l.s4 1966171168
        %v7967 = vunpack.c.0.s8 %v7966
        %v7968 = vlaneseq
        %v7969 = vshrl.u32 %v7968, 7
        %v7970 = vsub.s32 %v7967, %v7969
        %v7971 = vrot.slane %v7962, %v7970
        %v7973 = vunpack.c.l.s4 1966171168
        %v7974 = vunpack.c.0.s8 %v7973
        %v7975 = vlaneseq
        %v7976 = vshrl.u32 %v7975, 7
        %v7977 = vsub.s32 %v7974, %v7976
        %v7978 = vrot.slane %v7963, %v7977
        %v7980 = vunpack.c.l.s4 1966171168
        %v7981 = vunpack.c.0.s8 %v7980
        %v7982 = vlaneseq
        %v7983 = vshrl.u32 %v7982, 7
        %v7984 = vsub.s32 %v7981, %v7983
        %v7985 = vrot.slane %v7964, %v7984
        %v7987 = vunpack.c.l.s4 1966171168
        %v7988 = vunpack.c.0.s8 %v7987
        %v7989 = vlaneseq
        %v7990 = vshrl.u32 %v7989, 7
        %v7991 = vsub.s32 %v7988, %v7990
        %v7992 = vrot.slane %v7553, %v7991
        %v7993 = vcombine.low %v7971, %v7978
        %v7994 = vcombine.low %v7985, %v7992
        %v7996 = vunpack.c.l.s4 1966171168
        %v7997 = vunpack.c.0.s8 %v7996
        %v7998 = vlaneseq
        %v7999 = vshrl.u32 %v7998, 7
        %v8000 = vsub.s32 %v7997, %v7999
        %v8001 = vrot.slane %v7993, %v8000
        %v8003 = vunpack.c.l.s4 1966171168
        %v8004 = vunpack.c.0.s8 %v8003
        %v8005 = vlaneseq
        %v8006 = vshrl.u32 %v8005, 7
        %v8007 = vsub.s32 %v8004, %v8006
        %v8008 = vrot.slane %v7994, %v8007
        %v8009 = vcombine.low %v8001, %v8008
        %v8010 = vcombine.low %v7554, %v7555
        %v8011 = vcombine.low %v7556, %v7557
        %v8012 = vcombine.low %v7558, %v7559
        %v8014 = vunpack.c.l.s4 1966171168
        %v8015 = vunpack.c.0.s8 %v8014
        %v8016 = vlaneseq
        %v8017 = vshrl.u32 %v8016, 7
        %v8018 = vsub.s32 %v8015, %v8017
        %v8019 = vrot.slane %v8010, %v8018
        %v8021 = vunpack.c.l.s4 1966171168
        %v8022 = vunpack.c.0.s8 %v8021
        %v8023 = vlaneseq
        %v8024 = vshrl.u32 %v8023, 7
        %v8025 = vsub.s32 %v8022, %v8024
        %v8026 = vrot.slane %v8011, %v8025
        %v8028 = vunpack.c.l.s4 1966171168
        %v8029 = vunpack.c.0.s8 %v8028
        %v8030 = vlaneseq
        %v8031 = vshrl.u32 %v8030, 7
        %v8032 = vsub.s32 %v8029, %v8031
        %v8033 = vrot.slane %v8012, %v8032
        %v8035 = vunpack.c.l.s4 1966171168
        %v8036 = vunpack.c.0.s8 %v8035
        %v8037 = vlaneseq
        %v8038 = vshrl.u32 %v8037, 7
        %v8039 = vsub.s32 %v8036, %v8038
        %v8040 = vrot.slane %v7560, %v8039
        %v8041 = vcombine.low %v8019, %v8026
        %v8042 = vcombine.low %v8033, %v8040
        %v8044 = vunpack.c.l.s4 1966171168
        %v8045 = vunpack.c.0.s8 %v8044
        %v8046 = vlaneseq
        %v8047 = vshrl.u32 %v8046, 7
        %v8048 = vsub.s32 %v8045, %v8047
        %v8049 = vrot.slane %v8041, %v8048
        %v8051 = vunpack.c.l.s4 1966171168
        %v8052 = vunpack.c.0.s8 %v8051
        %v8053 = vlaneseq
        %v8054 = vshrl.u32 %v8053, 7
        %v8055 = vsub.s32 %v8052, %v8054
        %v8056 = vrot.slane %v8042, %v8055
        %v8057 = vcombine.low %v8049, %v8056
        %v8058 = vcombine.low %v7561, %v7562
        %v8059 = vcombine.low %v7563, %v7564
        %v8060 = vcombine.low %v7565, %v7566
        %v8062 = vunpack.c.l.s4 1966171168
        %v8063 = vunpack.c.0.s8 %v8062
        %v8064 = vlaneseq
        %v8065 = vshrl.u32 %v8064, 7
        %v8066 = vsub.s32 %v8063, %v8065
        %v8067 = vrot.slane %v8058, %v8066
        %v8069 = vunpack.c.l.s4 1966171168
        %v8070 = vunpack.c.0.s8 %v8069
        %v8071 = vlaneseq
        %v8072 = vshrl.u32 %v8071, 7
        %v8073 = vsub.s32 %v8070, %v8072
        %v8074 = vrot.slane %v8059, %v8073
        %v8076 = vunpack.c.l.s4 1966171168
        %v8077 = vunpack.c.0.s8 %v8076
        %v8078 = vlaneseq
        %v8079 = vshrl.u32 %v8078, 7
        %v8080 = vsub.s32 %v8077, %v8079
        %v8081 = vrot.slane %v8060, %v8080
        %v8083 = vunpack.c.l.s4 1966171168
        %v8084 = vunpack.c.0.s8 %v8083
        %v8085 = vlaneseq
        %v8086 = vshrl.u32 %v8085, 7
        %v8087 = vsub.s32 %v8084, %v8086
        %v8088 = vrot.slane %v7567, %v8087
        %v8089 = vcombine.low %v8067, %v8074
        %v8090 = vcombine.low %v8081, %v8088
        %v8092 = vunpack.c.l.s4 1966171168
        %v8093 = vunpack.c.0.s8 %v8092
        %v8094 = vlaneseq
        %v8095 = vshrl.u32 %v8094, 7
        %v8096 = vsub.s32 %v8093, %v8095
        %v8097 = vrot.slane %v8089, %v8096
        %v8099 = vunpack.c.l.s4 1966171168
        %v8100 = vunpack.c.0.s8 %v8099
        %v8101 = vlaneseq
        %v8102 = vshrl.u32 %v8101, 7
        %v8103 = vsub.s32 %v8100, %v8102
        %v8104 = vrot.slane %v8090, %v8103
        %v8105 = vcombine.low %v8097, %v8104
        %v8106 = vcombine.low %v7568, %v7569
        %v8107 = vcombine.low %v7570, %v7571
        %v8108 = vcombine.low %v7572, %v7573
        %v8110 = vunpack.c.l.s4 1966171168
        %v8111 = vunpack.c.0.s8 %v8110
        %v8112 = vlaneseq
        %v8113 = vshrl.u32 %v8112, 7
        %v8114 = vsub.s32 %v8111, %v8113
        %v8115 = vrot.slane %v8106, %v8114
        %v8117 = vunpack.c.l.s4 1966171168
        %v8118 = vunpack.c.0.s8 %v8117
        %v8119 = vlaneseq
        %v8120 = vshrl.u32 %v8119, 7
        %v8121 = vsub.s32 %v8118, %v8120
        %v8122 = vrot.slane %v8107, %v8121
        %v8124 = vunpack.c.l.s4 1966171168
        %v8125 = vunpack.c.0.s8 %v8124
        %v8126 = vlaneseq
        %v8127 = vshrl.u32 %v8126, 7
        %v8128 = vsub.s32 %v8125, %v8127
        %v8129 = vrot.slane %v8108, %v8128
        %v8131 = vunpack.c.l.s4 1966171168
        %v8132 = vunpack.c.0.s8 %v8131
        %v8133 = vlaneseq
        %v8134 = vshrl.u32 %v8133, 7
        %v8135 = vsub.s32 %v8132, %v8134
        %v8136 = vrot.slane %v7574, %v8135
        %v8137 = vcombine.low %v8115, %v8122
        %v8138 = vcombine.low %v8129, %v8136
        %v8140 = vunpack.c.l.s4 1966171168
        %v8141 = vunpack.c.0.s8 %v8140
        %v8142 = vlaneseq
        %v8143 = vshrl.u32 %v8142, 7
        %v8144 = vsub.s32 %v8141, %v8143
        %v8145 = vrot.slane %v8137, %v8144
        %v8147 = vunpack.c.l.s4 1966171168
        %v8148 = vunpack.c.0.s8 %v8147
        %v8149 = vlaneseq
        %v8150 = vshrl.u32 %v8149, 7
        %v8151 = vsub.s32 %v8148, %v8150
        %v8152 = vrot.slane %v8138, %v8151
        %v8153 = vcombine.low %v8145, %v8152
        %v8154 = vcombine.low %v7575, %v7576
        %v8155 = vcombine.low %v7577, %v7578
        %v8156 = vcombine.low %v7579, %v7580
        %v8158 = vunpack.c.l.s4 1966171168
        %v8159 = vunpack.c.0.s8 %v8158
        %v8160 = vlaneseq
        %v8161 = vshrl.u32 %v8160, 7
        %v8162 = vsub.s32 %v8159, %v8161
        %v8163 = vrot.slane %v8154, %v8162
        %v8165 = vunpack.c.l.s4 1966171168
        %v8166 = vunpack.c.0.s8 %v8165
        %v8167 = vlaneseq
        %v8168 = vshrl.u32 %v8167, 7
        %v8169 = vsub.s32 %v8166, %v8168
        %v8170 = vrot.slane %v8155, %v8169
        %v8172 = vunpack.c.l.s4 1966171168
        %v8173 = vunpack.c.0.s8 %v8172
        %v8174 = vlaneseq
        %v8175 = vshrl.u32 %v8174, 7
        %v8176 = vsub.s32 %v8173, %v8175
        %v8177 = vrot.slane %v8156, %v8176
        %v8179 = vunpack.c.l.s4 1966171168
        %v8180 = vunpack.c.0.s8 %v8179
        %v8181 = vlaneseq
        %v8182 = vshrl.u32 %v8181, 7
        %v8183 = vsub.s32 %v8180, %v8182
        %v8184 = vrot.slane %v7581, %v8183
        %v8185 = vcombine.low %v8163, %v8170
        %v8186 = vcombine.low %v8177, %v8184
        %v8188 = vunpack.c.l.s4 1966171168
        %v8189 = vunpack.c.0.s8 %v8188
        %v8190 = vlaneseq
        %v8191 = vshrl.u32 %v8190, 7
        %v8192 = vsub.s32 %v8189, %v8191
        %v8193 = vrot.slane %v8185, %v8192
        %v8195 = vunpack.c.l.s4 1966171168
        %v8196 = vunpack.c.0.s8 %v8195
        %v8197 = vlaneseq
        %v8198 = vshrl.u32 %v8197, 7
        %v8199 = vsub.s32 %v8196, %v8198
        %v8200 = vrot.slane %v8186, %v8199
        %v8201 = vcombine.low %v8193, %v8200
        %v8202 = vcombine.low %v7582, %v7583
        %v8203 = vcombine.low %v7584, %v7585
        %v8204 = vcombine.low %v7586, %v7587
        %v8206 = vunpack.c.l.s4 1966171168
        %v8207 = vunpack.c.0.s8 %v8206
        %v8208 = vlaneseq
        %v8209 = vshrl.u32 %v8208, 7
        %v8210 = vsub.s32 %v8207, %v8209
        %v8211 = vrot.slane %v8202, %v8210
        %v8213 = vunpack.c.l.s4 1966171168
        %v8214 = vunpack.c.0.s8 %v8213
        %v8215 = vlaneseq
        %v8216 = vshrl.u32 %v8215, 7
        %v8217 = vsub.s32 %v8214, %v8216
        %v8218 = vrot.slane %v8203, %v8217
        %v8220 = vunpack.c.l.s4 1966171168
        %v8221 = vunpack.c.0.s8 %v8220
        %v8222 = vlaneseq
        %v8223 = vshrl.u32 %v8222, 7
        %v8224 = vsub.s32 %v8221, %v8223
        %v8225 = vrot.slane %v8204, %v8224
        %v8227 = vunpack.c.l.s4 1966171168
        %v8228 = vunpack.c.0.s8 %v8227
        %v8229 = vlaneseq
        %v8230 = vshrl.u32 %v8229, 7
        %v8231 = vsub.s32 %v8228, %v8230
        %v8232 = vrot.slane %v7588, %v8231
        %v8233 = vcombine.low %v8211, %v8218
        %v8234 = vcombine.low %v8225, %v8232
        %v8236 = vunpack.c.l.s4 1966171168
        %v8237 = vunpack.c.0.s8 %v8236
        %v8238 = vlaneseq
        %v8239 = vshrl.u32 %v8238, 7
        %v8240 = vsub.s32 %v8237, %v8239
        %v8241 = vrot.slane %v8233, %v8240
        %v8243 = vunpack.c.l.s4 1966171168
        %v8244 = vunpack.c.0.s8 %v8243
        %v8245 = vlaneseq
        %v8246 = vshrl.u32 %v8245, 7
        %v8247 = vsub.s32 %v8244, %v8246
        %v8248 = vrot.slane %v8234, %v8247
        %v8249 = vcombine.low %v8241, %v8248
        %v8250 = vcombine.low %v7589, %v7590
        %v8251 = vcombine.low %v7591, %v7592
        %v8252 = vcombine.low %v7593, %v7594
        %v8254 = vunpack.c.l.s4 1966171168
        %v8255 = vunpack.c.0.s8 %v8254
        %v8256 = vlaneseq
        %v8257 = vshrl.u32 %v8256, 7
        %v8258 = vsub.s32 %v8255, %v8257
        %v8259 = vrot.slane %v8250, %v8258
        %v8261 = vunpack.c.l.s4 1966171168
        %v8262 = vunpack.c.0.s8 %v8261
        %v8263 = vlaneseq
        %v8264 = vshrl.u32 %v8263, 7
        %v8265 = vsub.s32 %v8262, %v8264
        %v8266 = vrot.slane %v8251, %v8265
        %v8268 = vunpack.c.l.s4 1966171168
        %v8269 = vunpack.c.0.s8 %v8268
        %v8270 = vlaneseq
        %v8271 = vshrl.u32 %v8270, 7
        %v8272 = vsub.s32 %v8269, %v8271
        %v8273 = vrot.slane %v8252, %v8272
        %v8275 = vunpack.c.l.s4 1966171168
        %v8276 = vunpack.c.0.s8 %v8275
        %v8277 = vlaneseq
        %v8278 = vshrl.u32 %v8277, 7
        %v8279 = vsub.s32 %v8276, %v8278
        %v8280 = vrot.slane %v7595, %v8279
        %v8281 = vcombine.low %v8259, %v8266
        %v8282 = vcombine.low %v8273, %v8280
        %v8284 = vunpack.c.l.s4 1966171168
        %v8285 = vunpack.c.0.s8 %v8284
        %v8286 = vlaneseq
        %v8287 = vshrl.u32 %v8286, 7
        %v8288 = vsub.s32 %v8285, %v8287
        %v8289 = vrot.slane %v8281, %v8288
        %v8291 = vunpack.c.l.s4 1966171168
        %v8292 = vunpack.c.0.s8 %v8291
        %v8293 = vlaneseq
        %v8294 = vshrl.u32 %v8293, 7
        %v8295 = vsub.s32 %v8292, %v8294
        %v8296 = vrot.slane %v8282, %v8295
        %v8297 = vcombine.low %v8289, %v8296
        %v8298 = vcombine.low %v7596, %v7597
        %v8299 = vcombine.low %v7598, %v7599
        %v8300 = vcombine.low %v7600, %v7601
        %v8302 = vunpack.c.l.s4 1966171168
        %v8303 = vunpack.c.0.s8 %v8302
        %v8304 = vlaneseq
        %v8305 = vshrl.u32 %v8304, 7
        %v8306 = vsub.s32 %v8303, %v8305
        %v8307 = vrot.slane %v8298, %v8306
        %v8309 = vunpack.c.l.s4 1966171168
        %v8310 = vunpack.c.0.s8 %v8309
        %v8311 = vlaneseq
        %v8312 = vshrl.u32 %v8311, 7
        %v8313 = vsub.s32 %v8310, %v8312
        %v8314 = vrot.slane %v8299, %v8313
        %v8316 = vunpack.c.l.s4 1966171168
        %v8317 = vunpack.c.0.s8 %v8316
        %v8318 = vlaneseq
        %v8319 = vshrl.u32 %v8318, 7
        %v8320 = vsub.s32 %v8317, %v8319
        %v8321 = vrot.slane %v8300, %v8320
        %v8323 = vunpack.c.l.s4 1966171168
        %v8324 = vunpack.c.0.s8 %v8323
        %v8325 = vlaneseq
        %v8326 = vshrl.u32 %v8325, 7
        %v8327 = vsub.s32 %v8324, %v8326
        %v8328 = vrot.slane %v7602, %v8327
        %v8329 = vcombine.low %v8307, %v8314
        %v8330 = vcombine.low %v8321, %v8328
        %v8332 = vunpack.c.l.s4 1966171168
        %v8333 = vunpack.c.0.s8 %v8332
        %v8334 = vlaneseq
        %v8335 = vshrl.u32 %v8334, 7
        %v8336 = vsub.s32 %v8333, %v8335
        %v8337 = vrot.slane %v8329, %v8336
        %v8339 = vunpack.c.l.s4 1966171168
        %v8340 = vunpack.c.0.s8 %v8339
        %v8341 = vlaneseq
        %v8342 = vshrl.u32 %v8341, 7
        %v8343 = vsub.s32 %v8340, %v8342
        %v8344 = vrot.slane %v8330, %v8343
        %v8345 = vcombine.low %v8337, %v8344
        %v8346 = vcombine.low %v7603, %v7604
        %v8347 = vcombine.low %v7605, %v7606
        %v8348 = vcombine.low %v7607, %v7608
        %v8350 = vunpack.c.l.s4 1966171168
        %v8351 = vunpack.c.0.s8 %v8350
        %v8352 = vlaneseq
        %v8353 = vshrl.u32 %v8352, 7
        %v8354 = vsub.s32 %v8351, %v8353
        %v8355 = vrot.slane %v8346, %v8354
        %v8357 = vunpack.c.l.s4 1966171168
        %v8358 = vunpack.c.0.s8 %v8357
        %v8359 = vlaneseq
        %v8360 = vshrl.u32 %v8359, 7
        %v8361 = vsub.s32 %v8358, %v8360
        %v8362 = vrot.slane %v8347, %v8361
        %v8364 = vunpack.c.l.s4 1966171168
        %v8365 = vunpack.c.0.s8 %v8364
        %v8366 = vlaneseq
        %v8367 = vshrl.u32 %v8366, 7
        %v8368 = vsub.s32 %v8365, %v8367
        %v8369 = vrot.slane %v8348, %v8368
        %v8371 = vunpack.c.l.s4 1966171168
        %v8372 = vunpack.c.0.s8 %v8371
        %v8373 = vlaneseq
        %v8374 = vshrl.u32 %v8373, 7
        %v8375 = vsub.s32 %v8372, %v8374
        %v8376 = vrot.slane %v7609, %v8375
        %v8377 = vcombine.low %v8355, %v8362
        %v8378 = vcombine.low %v8369, %v8376
        %v8380 = vunpack.c.l.s4 1966171168
        %v8381 = vunpack.c.0.s8 %v8380
        %v8382 = vlaneseq
        %v8383 = vshrl.u32 %v8382, 7
        %v8384 = vsub.s32 %v8381, %v8383
        %v8385 = vrot.slane %v8377, %v8384
        %v8387 = vunpack.c.l.s4 1966171168
        %v8388 = vunpack.c.0.s8 %v8387
        %v8389 = vlaneseq
        %v8390 = vshrl.u32 %v8389, 7
        %v8391 = vsub.s32 %v8388, %v8390
        %v8392 = vrot.slane %v8378, %v8391
        %v8393 = vcombine.low %v8385, %v8392
        %v8394 = vcombine.low %v7610, %v7611
        %v8395 = vcombine.low %v7612, %v7613
        %v8396 = vcombine.low %v7614, %v7615
        %v8398 = vunpack.c.l.s4 1966171168
        %v8399 = vunpack.c.0.s8 %v8398
        %v8400 = vlaneseq
        %v8401 = vshrl.u32 %v8400, 7
        %v8402 = vsub.s32 %v8399, %v8401
        %v8403 = vrot.slane %v8394, %v8402
        %v8405 = vunpack.c.l.s4 1966171168
        %v8406 = vunpack.c.0.s8 %v8405
        %v8407 = vlaneseq
        %v8408 = vshrl.u32 %v8407, 7
        %v8409 = vsub.s32 %v8406, %v8408
        %v8410 = vrot.slane %v8395, %v8409
        %v8412 = vunpack.c.l.s4 1966171168
        %v8413 = vunpack.c.0.s8 %v8412
        %v8414 = vlaneseq
        %v8415 = vshrl.u32 %v8414, 7
        %v8416 = vsub.s32 %v8413, %v8415
        %v8417 = vrot.slane %v8396, %v8416
        %v8419 = vunpack.c.l.s4 1966171168
        %v8420 = vunpack.c.0.s8 %v8419
        %v8421 = vlaneseq
        %v8422 = vshrl.u32 %v8421, 7
        %v8423 = vsub.s32 %v8420, %v8422
        %v8424 = vrot.slane %v7616, %v8423
        %v8425 = vcombine.low %v8403, %v8410
        %v8426 = vcombine.low %v8417, %v8424
        %v8428 = vunpack.c.l.s4 1966171168
        %v8429 = vunpack.c.0.s8 %v8428
        %v8430 = vlaneseq
        %v8431 = vshrl.u32 %v8430, 7
        %v8432 = vsub.s32 %v8429, %v8431
        %v8433 = vrot.slane %v8425, %v8432
        %v8435 = vunpack.c.l.s4 1966171168
        %v8436 = vunpack.c.0.s8 %v8435
        %v8437 = vlaneseq
        %v8438 = vshrl.u32 %v8437, 7
        %v8439 = vsub.s32 %v8436, %v8438
        %v8440 = vrot.slane %v8426, %v8439
        %v8441 = vcombine.low %v8433, %v8440
        %vm8457 = vcmask 30720
        %8458 = vst.msk [vmem:[%s186] sm:$0x7f] %vm8457, %v7769
        %8459 = vst.msk [vmem:[%s186 + $0x8] sm:$0x7f] %vm8457, %v7817
        %8460 = vst.msk [vmem:[%s186 + $0x10] sm:$0x7f] %vm8457, %v7865
        %8461 = vst.msk [vmem:[%s186 + $0x18] sm:$0x7f] %vm8457, %v7913
        %8462 = vst.msk [vmem:[%s186 + $0x20] sm:$0x7f] %vm8457, %v7961
        %8463 = vst.msk [vmem:[%s186 + $0x28] sm:$0x7f] %vm8457, %v8009
        %8464 = vst.msk [vmem:[%s186 + $0x30] sm:$0x7f] %vm8457, %v8057
        %8465 = vst.msk [vmem:[%s186 + $0x38] sm:$0x7f] %vm8457, %v8105
        %8466 = vst.msk [vmem:[%s186 + $0x40] sm:$0x7f] %vm8457, %v8153
        %8467 = vst.msk [vmem:[%s186 + $0x48] sm:$0x7f] %vm8457, %v8201
        %8468 = vst.msk [vmem:[%s186 + $0x50] sm:$0x7f] %vm8457, %v8249
        %8469 = vst.msk [vmem:[%s186 + $0x58] sm:$0x7f] %vm8457, %v8297
        %8470 = vst.msk [vmem:[%s186 + $0x60] sm:$0x7f] %vm8457, %v8345
        %8471 = vst.msk [vmem:[%s186 + $0x68] sm:$0x7f] %vm8457, %v8393
        %8472 = vst.msk [vmem:[%s186 + $0x70] sm:$0x7f] %vm8457, %v8441
      $region44: #{conv2d_unit.1} parent=31 // pred_fallthru
        _
      %s8473 = smul.u32 %s19, %s18
      %p8474 = scmp.lt.s32.totalorder %s8473, 1
      %s8475 = scalar_select %p8474, %s8473, 1
      %s8476 = smul.addr %s8475, 15
      %s8477 = smul.addr %s8476, 8
      %s8478 = scalar_lea.vmem %s3, %s8477
      // Predicated region
      $region45: #{conv2d_unit.1} parent=31 // pred_check
        %p8479 = pneg %p114
      $region46: #{conv2d_unit.1} parent=31 // pred_check_branch
        %8481 = sbr.rel (%p8479) target = $region48
      $region47: #{conv2d_unit.1} parent=31 // pred_region
        %s8482 = smul.u32 %s19, %s18
      $region48: #{conv2d_unit.1} parent=31 // pred_fallthru
        _
    $region32: #{conv2d_unit.1} parent=5 // pred_fallthru
      _
    %p8483 = scmp.le.s32.totalorder 2, %s9
    // Predicated region
    $region49: #{conv2d_unit.1} parent=5 // pred_check
      %p8484 = pneg %p8483
    $region50: #{conv2d_unit.1} parent=5 // pred_check_branch
      %8486 = sbr.rel (%p8484) target = $region52
    $region51: #{conv2d_unit.1} parent=5 // pred_region
      %s8487 = ssub.s32 %s9, 2
      // Predicated region
      $region53: #{conv2d_unit.1} parent=51 // pred_check
        %p8488 = pneg %p120
      $region54: #{conv2d_unit.1} parent=51 // pred_check_branch
        %8490 = sbr.rel (%p8488) target = $region56
      $region55: #{conv2d_unit.1} parent=51 // pred_region
        %s8491 = smul.u32 %s21, %s20
        %p8492 = scmp.lt.s32.totalorder %s8491, 1
        %s8493 = scalar_select %p8492, %s8491, 1
        %s8494 = smul.addr %s8493, 15
        %s8495 = smul.addr %s8494, 8
        %s8496 = scalar_lea.vmem %s3, %s8495
      $region56: #{conv2d_unit.1} parent=51 // pred_fallthru
        _
    $region52: #{conv2d_unit.1} parent=5 // pred_fallthru
      _
  $region6: #{conv2d_unit.1} parent=0 // loop_footer
    %s13 = sadd.s32 1, %s9
  $region7: #{conv2d_unit.1} parent=0 // loop_footer_branch
    %8 = sbr.rel target = $region3
  $region8: #{conv2d_unit.1} parent=0 // loop_exit
    _

</llo_original>
